<compile_context>
chip_gen: v7x
topology: tpu7x:2x2x1
jax: 0.10.0
libtpu: 0.0.40
codegen_flags: <defaults>
</compile_context>

<pallas_src>
import functools

import jax
import jax.numpy as jnp
from jax import lax
from jax.experimental import pallas as pl
from jax.experimental.pallas import tpu as pltpu

NUM_HEAD = 4


# --------------------------------------------------------------------------
# helpers
# --------------------------------------------------------------------------
def _largest_tile(dim, preferred, base):
    """Largest multiple of `base` that divides `dim` and is <= preferred (else dim)."""
    t = min(preferred, dim)
    t = (t // base) * base
    while t >= base:
        if dim % t == 0:
            return t
        t -= base
    return dim


def _tiles(M, K, N):
    tm = _largest_tile(M, 512, 16)     # bf16 operand: sublane base 16
    tk = _largest_tile(K, 512, 128)
    tn = _largest_tile(N, 512, 128)
    return tm, tk, tn


# --------------------------------------------------------------------------
# tiled bf16 matmul (f32 accumulation in VMEM scratch)
# --------------------------------------------------------------------------
def _matmul_kernel(x_ref, w_ref, o_ref, acc_ref):
    @pl.when(pl.program_id(2) == 0)
    def _():
        acc_ref[...] = jnp.zeros_like(acc_ref)

    acc_ref[...] += jnp.dot(x_ref[...], w_ref[...],
                            preferred_element_type=jnp.float32)

    @pl.when(pl.program_id(2) == pl.num_programs(2) - 1)
    def _():
        o_ref[...] = acc_ref[...].astype(o_ref.dtype)


def matmul_pallas(x_bf, w_bf, out_dtype=jnp.float32):
    M, K = x_bf.shape
    _, N = w_bf.shape
    tm, tk, tn = _tiles(M, K, N)
    return pl.pallas_call(
        _matmul_kernel,
        grid=(M // tm, N // tn, K // tk),
        in_specs=[pl.BlockSpec((tm, tk), lambda i, j, k: (i, k)),
                  pl.BlockSpec((tk, tn), lambda i, j, k: (k, j))],
        out_specs=pl.BlockSpec((tm, tn), lambda i, j, k: (i, j)),
        out_shape=jax.ShapeDtypeStruct((M, N), out_dtype),
        scratch_shapes=[pltpu.VMEM((tm, tn), jnp.float32)],
        compiler_params=pltpu.CompilerParams(
            dimension_semantics=("parallel", "parallel", "arbitrary")),
    )(x_bf, w_bf)


def linear(x, w_t_bf16, out_dtype=jnp.float32):
    """nn.Linear(bias=False) with pre-transposed bf16 weight (in, out)."""
    lead = x.shape[:-1]
    y = matmul_pallas(x.reshape(-1, x.shape[-1]).astype(jnp.bfloat16),
                      w_t_bf16, out_dtype)
    return y.reshape(*lead, w_t_bf16.shape[1])


# --------------------------------------------------------------------------
# fused Q/K/V/G projection: token-shift mix prologue + RMSNorm/exp epilogue
# --------------------------------------------------------------------------
def _qkvg_kernel(x_ref, xx_ref, mix_ref, w_ref, scale_ref,
                 oq_ref, ok_ref, ov_ref, og_ref, acc_ref, *, C):
    k_id = pl.program_id(1)

    @pl.when(k_id == 0)
    def _():
        acc_ref[...] = jnp.zeros_like(acc_ref)

    x = x_ref[...].astype(jnp.float32)
    xx = xx_ref[...].astype(jnp.float32)
    for p in range(4):                                   # q, k, v, g
        mu = mix_ref[p:p + 1, :]
        xm = (x * mu + xx * (1.0 - mu)).astype(jnp.bfloat16)
        acc_ref[:, p * C:(p + 1) * C] += jnp.dot(
            xm, w_ref[:, p * C:(p + 1) * C], preferred_element_type=jnp.float32)

    @pl.when(k_id == pl.num_programs(1) - 1)
    def _():
        scale = scale_ref[...]

        def rms_exp(y):
            norm = jnp.sqrt(jnp.sum(y * y, axis=-1, keepdims=True)) / (C ** 0.5)
            return jnp.exp(scale * (y / (norm + 1e-8)))

        oq_ref[...] = rms_exp(acc_ref[:, 0:C]).astype(oq_ref.dtype)
        ok_ref[...] = rms_exp(acc_ref[:, C:2 * C]).astype(ok_ref.dtype)
        ov_ref[...] = acc_ref[:, 2 * C:3 * C].astype(ov_ref.dtype)
        og_ref[...] = acc_ref[:, 3 * C:4 * C].astype(og_ref.dtype)


def qkvg_project(x2_bf, xx2_bf, mix, w_cat_bf, scale):
    """x2/xx2: (M,C) bf16, mix: (4,C) f32, w_cat: (C,4C) bf16, scale: (1,C)."""
    M, C = x2_bf.shape
    tm = _largest_tile(M, 256, 16)
    tk = _largest_tile(C, 512, 128)
    out_sd = jax.ShapeDtypeStruct((M, C), jnp.bfloat16)
    kern = functools.partial(_qkvg_kernel, C=C)
    return pl.pallas_call(
        kern,
        grid=(M // tm, C // tk),
        in_specs=[
            pl.BlockSpec((tm, tk), lambda i, k: (i, k)),
            pl.BlockSpec((tm, tk), lambda i, k: (i, k)),
            pl.BlockSpec((4, tk), lambda i, k: (0, k)),
            pl.BlockSpec((tk, 4 * C), lambda i, k: (k, 0)),
            pl.BlockSpec((1, C), lambda i, k: (0, 0)),
        ],
        out_specs=[pl.BlockSpec((tm, C), lambda i, k: (i, 0))] * 4,
        out_shape=(out_sd,) * 4,
        scratch_shapes=[pltpu.VMEM((tm, 4 * C), jnp.float32)],
        compiler_params=pltpu.CompilerParams(
            dimension_semantics=("parallel", "arbitrary")),
    )(x2_bf, xx2_bf, mix, w_cat_bf, scale)


# --------------------------------------------------------------------------
# row-tiled LayerNorm
# --------------------------------------------------------------------------
def _layernorm_kernel(x_ref, g_ref, b_ref, o_ref):
    x = x_ref[...]
    mean = jnp.mean(x, axis=-1, keepdims=True)
    var = jnp.mean(jnp.square(x - mean), axis=-1, keepdims=True)
    y = (x - mean) * lax.rsqrt(var + 1e-5) * g_ref[...] + b_ref[...]
    o_ref[...] = y.astype(o_ref.dtype)


def layernorm(x, g, b, out_dtype=jnp.float32):
    B, T, C = x.shape
    M = B * T
    rt = _largest_tile(M, 256, 8)
    y = pl.pallas_call(
        _layernorm_kernel,
        grid=(M // rt,),
        in_specs=[pl.BlockSpec((rt, C), lambda i: (i, 0)),
                  pl.BlockSpec((1, C), lambda i: (0, 0)),
                  pl.BlockSpec((1, C), lambda i: (0, 0))],
        out_specs=pl.BlockSpec((rt, C), lambda i: (i, 0)),
        out_shape=jax.ShapeDtypeStruct((M, C), out_dtype),
        compiler_params=pltpu.CompilerParams(dimension_semantics=("parallel",)),
    )(x.reshape(M, C), g.reshape(1, C), b.reshape(1, C))
    return y.reshape(B, T, C)


# --------------------------------------------------------------------------
# LNSSM TimeMix core: chunked linear-attention form on the MXU
# --------------------------------------------------------------------------
def _lnssm_kernel(q_ref, k_ref, v_ref, g_ref, wq_ref, wk_ref, d_ref,
                  wl1_ref, wln_ref, o_ref, a_state, z_state, *, H, L):
    """One (batch, Tc-chunk) block; inside, sub-chunks of L steps per head:

      S = (q*w^{t+1}) @ A_prev + P @ V       (inter + intra, MXU)
      Z_scalar = (q*w^{t+1}) . z_prev + row-sum(P)
      A <- w^L * A + (k*w^{L-1-s})^T @ V ,  z <- w^L * z + col-sum(k*w^{L-1-s})

    with P[t,s] = sum_n q[t,n] k[s,n] w[n]^{t-s} (causal decay baked into the
    precomputed constant d).  The sigmoid gate and the S/Z normalization are
    fused into the store.
    """
    Tc = q_ref.shape[1]
    C = q_ref.shape[2]
    N = C // H
    n_sub = Tc // L

    @pl.when(pl.program_id(1) == 0)
    def _():
        a_state[...] = jnp.zeros_like(a_state)
        z_state[...] = jnp.zeros_like(z_state)

    wq = wq_ref[...]          # (L, C)  w^{t+1}
    wkd = wk_ref[...]         # (L, C)  w^{L-1-s}
    wl1 = wl1_ref[...]        # (1, C)  w^L
    wln = wln_ref[...]        # (N, C)  w^L laid out per (key-index, lane)

    for sc in range(n_sub):
        r0 = sc * L
        q_sub = q_ref[0, r0:r0 + L, :].astype(jnp.float32)     # (L, C)
        k_sub = k_ref[0, r0:r0 + L, :].astype(jnp.float32)
        v_sub = v_ref[0, r0:r0 + L, :].astype(jnp.float32)
        g_sub = g_ref[0, r0:r0 + L, :].astype(jnp.float32)

        qhat = q_sub * wq
        khat = k_sub * wkd

        outs = []
        for h in range(H):
            c0 = h * N
            qh = q_sub[:, c0:c0 + N]                           # (L, N)
            kh = k_sub[:, c0:c0 + N]
            vh = v_sub[:, c0:c0 + N]
            qhat_h = qhat[:, c0:c0 + N]
            khat_h = khat[:, c0:c0 + N]
            dh = d_ref[:, :, c0:c0 + N]                        # (L, L, N)
            ah = a_state[:, c0:c0 + N]                         # (N, N)
            zh = z_state[:, c0:c0 + N]                         # (1, N)

            # intra-chunk causal interactions (decay mask baked into dh)
            p = jnp.sum(qh[:, None, :] * kh[None, :, :] * dh, axis=-1)   # (L, L)

            s_h = (jnp.dot(qhat_h, ah, preferred_element_type=jnp.float32)
                   + jnp.dot(p, vh, preferred_element_type=jnp.float32))  # (L, N)
            z_sc = (jnp.sum(qhat_h * zh, axis=-1, keepdims=True)
                    + jnp.sum(p, axis=-1, keepdims=True))                 # (L, 1)

            # state update (end of this sub-chunk)
            a_state[:, c0:c0 + N] = ah * wln[:, c0:c0 + N] + lax.dot_general(
                khat_h, vh, (((0,), (0,)), ((), ())),
                preferred_element_type=jnp.float32)
            z_state[:, c0:c0 + N] = zh * wl1[:, c0:c0 + N] + jnp.sum(
                khat_h, axis=0, keepdims=True)

            outs.append(s_h / z_sc)

        att = jnp.concatenate(outs, axis=-1)                               # (L, C)
        gate = 1.0 / (1.0 + jnp.exp(-g_sub))
        o_ref[0, r0:r0 + L, :] = (gate * att).astype(o_ref.dtype)


def lnssm_pallas(q_bf, k_bf, v_bf, g_bf, ea):
    """q/k/v/g: (B,T,C) bf16 (g is the gate pre-activation), ea=exp(bf16(a)) (C,)."""
    B, T, C = q_bf.shape
    H = NUM_HEAD
    N = C // H
    if T % 16 == 0:
        L = 16
    elif T % 8 == 0:
        L = 8
    else:
        L = T
    Tc = _largest_tile(T, max(128, L), L)

    # precomputed decay constants (all exponents <= 0 -> numerically stable)
    tt = jnp.arange(L, dtype=jnp.float32)
    ea_r = ea.reshape(1, C)
    wq = jnp.exp(-(tt + 1.0)[:, None] * ea_r)                        # (L, C)
    wkd = jnp.exp(-(float(L) - 1.0 - tt)[:, None] * ea_r)            # (L, C)
    dt = tt[:, None] - tt[None, :]                                   # (L, L)
    d = jnp.exp(-jnp.maximum(dt, 0.0)[:, :, None] * ea.reshape(1, 1, C))
    d = jnp.where((dt >= 0.0)[:, :, None], d, 0.0)                   # (L, L, C)
    wl1 = jnp.exp(-float(L) * ea_r)                                  # (1, C)
    lane = jnp.arange(C)
    idx = (lane // N)[None, :] * N + jnp.arange(N)[:, None]          # (N, C)
    wln = jnp.exp(-float(L) * ea[idx])                               # (N, C)

    kern = functools.partial(_lnssm_kernel, H=H, L=L)
    blk = lambda b, t: (b, t, 0)
    c2 = lambda b, t: (0, 0)
    c3 = lambda b, t: (0, 0, 0)
    return pl.pallas_call(
        kern,
        grid=(B, T // Tc),
        in_specs=[
            pl.BlockSpec((1, Tc, C), blk),       # q
            pl.BlockSpec((1, Tc, C), blk),       # k
            pl.BlockSpec((1, Tc, C), blk),       # v
            pl.BlockSpec((1, Tc, C), blk),       # gate pre-activation
            pl.BlockSpec((L, C), c2),            # w^{t+1}
            pl.BlockSpec((L, C), c2),            # w^{L-1-s}
            pl.BlockSpec((L, L, C), c3),         # causal decay tensor
            pl.BlockSpec((1, C), c2),            # w^L (z layout)
            pl.BlockSpec((N, C), c2),            # w^L (A layout)
        ],
        out_specs=pl.BlockSpec((1, Tc, C), blk),
        out_shape=jax.ShapeDtypeStruct((B, T, C), jnp.bfloat16),
        scratch_shapes=[pltpu.VMEM((N, C), jnp.float32),             # A state
                        pltpu.VMEM((1, C), jnp.float32)],            # z state
        compiler_params=pltpu.CompilerParams(
            dimension_semantics=("parallel", "arbitrary")),
    )(q_bf, k_bf, v_bf, g_bf, wq, wkd, d, wl1, wln)


# --------------------------------------------------------------------------
# Model forward (plain-JAX glue around the Pallas kernels)
# --------------------------------------------------------------------------
def time_mix_forward(x_bf, p):
    B, T, C = x_bf.shape
    M = B * T

    # time_shift: ZeroPad2d((0,0,1,-1)) -> xx[t] = x[t-1], xx[0] = 0
    xx = jnp.concatenate([jnp.zeros((B, 1, C), x_bf.dtype), x_bf[:, :-1, :]], axis=1)

    q, k, v, g = qkvg_project(x_bf.reshape(M, C), xx.reshape(M, C),
                              p["tm_mix"], p["Wqkvg_t"],
                              p["rms_scale"].reshape(1, C))

    # decay constants (mirror RUN_CUDA: a -> bf16, w = exp(-exp(a)))
    ea = jnp.exp(p["time_decay"].astype(jnp.bfloat16).astype(jnp.float32))  # (C,)

    att = lnssm_pallas(q.reshape(B, T, C), k.reshape(B, T, C),
                       v.reshape(B, T, C), g.reshape(B, T, C), ea)
    return linear(att.reshape(M, C), p["Wo_t"]).reshape(B, T, C)


def channel_mix_forward(x_bf, p):
    B, T, C = x_bf.shape
    h = linear(x_bf.reshape(B * T, C), p["W1_t"], out_dtype=jnp.bfloat16)
    # TODO(synk): exact (erf) GELU kept in XLA rather than fused in-kernel,
    # to avoid relying on an erf lowering in Mosaic; it is a light bf16 pass.
    h = jax.nn.gelu(h.astype(jnp.float32), approximate=False).astype(jnp.bfloat16)
    return linear(h, p["W2_t"]).reshape(B, T, C)


def block_forward(x, p, layer_id):
    if layer_id == 0:
        x = layernorm(x, p["ln0_g"], p["ln0_b"], out_dtype=jnp.float32)
    x = x + time_mix_forward(layernorm(x, p["ln1_g"], p["ln1_b"], jnp.bfloat16), p)
    x = x + channel_mix_forward(layernorm(x, p["ln2_g"], p["ln2_b"], jnp.bfloat16), p)
    return x


@jax.jit
def llm_forward(params, idx, targets):
    C = params["emb"].shape[1]
    x = jnp.take(params["emb"], idx, axis=0)               # embedding lookup
    for i, blk in enumerate(params["blocks"]):
        x = block_forward(x, blk, i)
    xn = layernorm(x, params["lnout_g"], params["lnout_b"], out_dtype=jnp.bfloat16)
    logits = linear(xn.reshape(-1, C), params["head_t"]).reshape(*idx.shape, -1)
    logp = jax.nn.log_softmax(logits, axis=-1)
    loss = -jnp.mean(jnp.take_along_axis(logp, targets[..., None], axis=-1))
    # L2Wrap is identity in the forward pass (only modifies backward)
    return loss, logits


# --------------------------------------------------------------------------
# Deterministic parameter init (shapes from LLM.__init__ / TimeMix.__init__)
# --------------------------------------------------------------------------
def init_params(key, vocab_size, n_embd, n_layer):
    C, V, L = n_embd, vocab_size, n_layer
    keys = iter(jax.random.split(key, 4 + 8 * L))

    def lin_t(k, out_f, in_f, std=0.02):
        w = jax.random.normal(k, (out_f, in_f), jnp.float32) * std
        return jnp.transpose(w).astype(jnp.bfloat16)    # stored (in, out) bf16

    params = {
        "emb": jax.random.normal(next(keys), (V, C), jnp.float32) * 1e-4,
        "lnout_g": jnp.ones((C,), jnp.float32),
        "lnout_b": jnp.zeros((C,), jnp.float32),
        "head_t": lin_t(next(keys), V, C),
        "blocks": [],
    }
    for l in range(L):
        ratio_0_to_1 = l / max(L - 1, 1)
        ratio_1_to_almost0 = 1.0 - l / L
        ch = jnp.arange(C, dtype=jnp.float32)
        decay = -5.0 + 8.0 * (ch / (C - 1)) ** (0.7 + 1.3 * ratio_0_to_1)
        xr = ch / C
        tm_q = xr ** ratio_1_to_almost0
        tm_k = xr ** ratio_1_to_almost0
        tm_v = xr ** ratio_1_to_almost0 + 0.3 * ratio_0_to_1
        tm_g = xr ** (0.5 * ratio_1_to_almost0)
        w_q = lin_t(next(keys), C, C)
        w_k = lin_t(next(keys), C, C)
        w_v = lin_t(next(keys), C, C)
        w_g = lin_t(next(keys), C, C)
        blk = {
            "ln1_g": jnp.ones((C,)), "ln1_b": jnp.zeros((C,)),
            "ln2_g": jnp.ones((C,)), "ln2_b": jnp.zeros((C,)),
            "time_decay": decay,
            "tm_mix": jnp.stack([tm_q, tm_k, tm_v, tm_g], axis=0),     # (4, C)
            "Wqkvg_t": jnp.concatenate([w_q, w_k, w_v, w_g], axis=1),  # (C, 4C)
            "Wo_t": lin_t(next(keys), C, C),
            "rms_scale": jnp.ones((C,)),
            "W1_t": lin_t(next(keys), 4 * C, C),
            "W2_t": lin_t(next(keys), C, 4 * C),
        }
        if l == 0:
            blk["ln0_g"] = jnp.ones((C,))
            blk["ln0_b"] = jnp.zeros((C,))
        params["blocks"].append(blk)
    return params


# --------------------------------------------------------------------------
if __name__ == "__main__":
    # small config: vocab=256, n_embd=128 (head_dim=32), n_layer=2, B=2, T=16
    VOCAB, C, LAYERS = 256, 128, 2
    B, T = 2, 16

    key = jax.random.PRNGKey(0)
    kp, ki, kt = jax.random.split(key, 3)
    params = init_params(kp, VOCAB, C, LAYERS)
    idx = jax.random.randint(ki, (B, T), 0, VOCAB, dtype=jnp.int32)
    targets = jax.random.randint(kt, (B, T), 0, VOCAB, dtype=jnp.int32)

    loss, logits = llm_forward(params, idx, targets)
    jax.block_until_ready((loss, logits))

    assert logits.shape == (B, T, VOCAB)
    assert bool(jnp.isfinite(loss)) and bool(jnp.all(jnp.isfinite(logits)))
    print("KERNEL_OK")
</pallas_src>

<mosaic_0001>
module attributes {stable_mosaic.version = 11 : i64} {
  func.func @_layernorm_kernel(%arg0: i32, %arg1: memref<32x128xf32, #tpu.memory_space<vmem>>, %arg2: memref<1x128xf32, #tpu.memory_space<vmem>>, %arg3: memref<1x128xf32, #tpu.memory_space<vmem>>, %arg4: memref<32x128xf32, #tpu.memory_space<vmem>>) attributes {dimension_semantics = [#tpu.dimension_semantics<parallel>], iteration_bounds = array<i64: 1>, scalar_prefetch = 0 : i64, scratch_operands = 0 : i64, tpu.core_type = #tpu.core_type<tc>, window_params = [{transform_indices = @transform_0, window_bounds = array<i64: 32, 128>}, {pipeline_mode = #tpu.pipeline_mode<synchronous>, transform_indices = @transform_1, window_bounds = array<i64: 1, 128>}, {pipeline_mode = #tpu.pipeline_mode<synchronous>, transform_indices = @transform_2, window_bounds = array<i64: 1, 128>}, {transform_indices = @transform_3, window_bounds = array<i64: 32, 128>}]} {
    %c0 = arith.constant 0 : index
    %c0_0 = arith.constant 0 : index
    %0 = vector.load %arg1[%c0, %c0_0] : memref<32x128xf32, #tpu.memory_space<vmem>>, vector<32x128xf32>
    %cst = arith.constant dense<0.000000e+00> : vector<32xf32>
    %1 = vector.multi_reduction <add>, %0, %cst [1] : vector<32x128xf32> to vector<32xf32>
    %2 = vector.shape_cast %1 : vector<32xf32> to vector<32x1xf32>
    %cst_1 = arith.constant 1.280000e+02 : f32
    %3 = vector.broadcast %cst_1 : f32 to vector<32x1xf32>
    %4 = arith.divf %2, %3 : vector<32x1xf32>
    %5 = vector.broadcast %4 : vector<32x1xf32> to vector<32x128xf32>
    %6 = arith.subf %0, %5 : vector<32x128xf32>
    %7 = arith.mulf %6, %6 : vector<32x128xf32>
    %cst_2 = arith.constant dense<0.000000e+00> : vector<32xf32>
    %8 = vector.multi_reduction <add>, %7, %cst_2 [1] : vector<32x128xf32> to vector<32xf32>
    %9 = vector.shape_cast %8 : vector<32xf32> to vector<32x1xf32>
    %cst_3 = arith.constant 1.280000e+02 : f32
    %10 = vector.broadcast %cst_3 : f32 to vector<32x1xf32>
    %11 = arith.divf %9, %10 : vector<32x1xf32>
    %12 = vector.broadcast %4 : vector<32x1xf32> to vector<32x128xf32>
    %13 = arith.subf %0, %12 : vector<32x128xf32>
    %cst_4 = arith.constant 9.99999974E-6 : f32
    %14 = vector.broadcast %cst_4 : f32 to vector<32x1xf32>
    %15 = arith.addf %11, %14 : vector<32x1xf32>
    %16 = math.rsqrt %15 : vector<32x1xf32>
    %17 = vector.broadcast %16 : vector<32x1xf32> to vector<32x128xf32>
    %18 = arith.mulf %13, %17 : vector<32x128xf32>
    %c0_5 = arith.constant 0 : index
    %c0_6 = arith.constant 0 : index
    %19 = vector.load %arg2[%c0_5, %c0_6] : memref<1x128xf32, #tpu.memory_space<vmem>>, vector<1x128xf32>
    %20 = vector.broadcast %19 : vector<1x128xf32> to vector<32x128xf32>
    %21 = arith.mulf %18, %20 : vector<32x128xf32>
    %c0_7 = arith.constant 0 : index
    %c0_8 = arith.constant 0 : index
    %22 = vector.load %arg3[%c0_7, %c0_8] : memref<1x128xf32, #tpu.memory_space<vmem>>, vector<1x128xf32>
    %23 = vector.broadcast %22 : vector<1x128xf32> to vector<32x128xf32>
    %24 = arith.addf %21, %23 : vector<32x128xf32>
    %c0_9 = arith.constant 0 : index
    %c0_10 = arith.constant 0 : index
    %25 = vector.load %arg4[%c0_9, %c0_10] : memref<32x128xf32, #tpu.memory_space<vmem>>, vector<32x128xf32>
    tpu.vector_store %arg4[%c0_9, %c0_10], %24 {strides = array<i32>} : memref<32x128xf32, #tpu.memory_space<vmem>>, vector<32x128xf32>,
    return
  }
  func.func @transform_0(%arg0: i32) -> (i32, i32) {
    %c0_i32 = arith.constant 0 : i32
    %c0_i32_0 = arith.constant 0 : i32
    return %arg0, %c0_i32 : i32, i32
  }
  func.func @transform_1(%arg0: i32) -> (i32, i32) {
    %c0_i32 = arith.constant 0 : i32
    %c0_i32_0 = arith.constant 0 : i32
    %c0_i32_1 = arith.constant 0 : i32
    return %c0_i32, %c0_i32_0 : i32, i32
  }
  func.func @transform_2(%arg0: i32) -> (i32, i32) {
    %c0_i32 = arith.constant 0 : i32
    %c0_i32_0 = arith.constant 0 : i32
    %c0_i32_1 = arith.constant 0 : i32
    return %c0_i32, %c0_i32_0 : i32, i32
  }
  func.func @transform_3(%arg0: i32) -> (i32, i32) {
    %c0_i32 = arith.constant 0 : i32
    %c0_i32_0 = arith.constant 0 : i32
    return %arg0, %c0_i32 : i32, i32
  }
}

module attributes {stable_mosaic.version = 11 : i64} {
  func.func @_layernorm_kernel(%arg0: i32, %arg1: memref<32x128xf32, #tpu.memory_space<vmem>>, %arg2: memref<1x128xf32, #tpu.memory_space<vmem>>, %arg3: memref<1x128xf32, #tpu.memory_space<vmem>>, %arg4: memref<32x128xbf16, #tpu.memory_space<vmem>>) attributes {dimension_semantics = [#tpu.dimension_semantics<parallel>], iteration_bounds = array<i64: 1>, scalar_prefetch = 0 : i64, scratch_operands = 0 : i64, tpu.core_type = #tpu.core_type<tc>, window_params = [{transform_indices = @transform_0, window_bounds = array<i64: 32, 128>}, {pipeline_mode = #tpu.pipeline_mode<synchronous>, transform_indices = @transform_1, window_bounds = array<i64: 1, 128>}, {pipeline_mode = #tpu.pipeline_mode<synchronous>, transform_indices = @transform_2, window_bounds = array<i64: 1, 128>}, {transform_indices = @transform_3, window_bounds = array<i64: 32, 128>}]} {
    %c0 = arith.constant 0 : index
    %c0_0 = arith.constant 0 : index
    %0 = vector.load %arg1[%c0, %c0_0] : memref<32x128xf32, #tpu.memory_space<vmem>>, vector<32x128xf32>
    %cst = arith.constant dense<0.000000e+00> : vector<32xf32>
    %1 = vector.multi_reduction <add>, %0, %cst [1] : vector<32x128xf32> to vector<32xf32>
    %2 = vector.shape_cast %1 : vector<32xf32> to vector<32x1xf32>
    %cst_1 = arith.constant 1.280000e+02 : f32
    %3 = vector.broadcast %cst_1 : f32 to vector<32x1xf32>
    %4 = arith.divf %2, %3 : vector<32x1xf32>
    %5 = vector.broadcast %4 : vector<32x1xf32> to vector<32x128xf32>
    %6 = arith.subf %0, %5 : vector<32x128xf32>
    %7 = arith.mulf %6, %6 : vector<32x128xf32>
    %cst_2 = arith.constant dense<0.000000e+00> : vector<32xf32>
    %8 = vector.multi_reduction <add>, %7, %cst_2 [1] : vector<32x128xf32> to vector<32xf32>
    %9 = vector.shape_cast %8 : vector<32xf32> to vector<32x1xf32>
    %cst_3 = arith.constant 1.280000e+02 : f32
    %10 = vector.broadcast %cst_3 : f32 to vector<32x1xf32>
    %11 = arith.divf %9, %10 : vector<32x1xf32>
    %12 = vector.broadcast %4 : vector<32x1xf32> to vector<32x128xf32>
    %13 = arith.subf %0, %12 : vector<32x128xf32>
    %cst_4 = arith.constant 9.99999974E-6 : f32
    %14 = vector.broadcast %cst_4 : f32 to vector<32x1xf32>
    %15 = arith.addf %11, %14 : vector<32x1xf32>
    %16 = math.rsqrt %15 : vector<32x1xf32>
    %17 = vector.broadcast %16 : vector<32x1xf32> to vector<32x128xf32>
    %18 = arith.mulf %13, %17 : vector<32x128xf32>
    %c0_5 = arith.constant 0 : index
    %c0_6 = arith.constant 0 : index
    %19 = vector.load %arg2[%c0_5, %c0_6] : memref<1x128xf32, #tpu.memory_space<vmem>>, vector<1x128xf32>
    %20 = vector.broadcast %19 : vector<1x128xf32> to vector<32x128xf32>
    %21 = arith.mulf %18, %20 : vector<32x128xf32>
    %c0_7 = arith.constant 0 : index
    %c0_8 = arith.constant 0 : index
    %22 = vector.load %arg3[%c0_7, %c0_8] : memref<1x128xf32, #tpu.memory_space<vmem>>, vector<1x128xf32>
    %23 = vector.broadcast %22 : vector<1x128xf32> to vector<32x128xf32>
    %24 = arith.addf %21, %23 : vector<32x128xf32>
    %25 = arith.truncf %24 : vector<32x128xf32> to vector<32x128xbf16>
    %c0_9 = arith.constant 0 : index
    %c0_10 = arith.constant 0 : index
    %26 = vector.load %arg4[%c0_9, %c0_10] : memref<32x128xbf16, #tpu.memory_space<vmem>>, vector<32x128xbf16>
    tpu.vector_store %arg4[%c0_9, %c0_10], %25 {strides = array<i32>} : memref<32x128xbf16, #tpu.memory_space<vmem>>, vector<32x128xbf16>,
    return
  }
  func.func @transform_0(%arg0: i32) -> (i32, i32) {
    %c0_i32 = arith.constant 0 : i32
    %c0_i32_0 = arith.constant 0 : i32
    return %arg0, %c0_i32 : i32, i32
  }
  func.func @transform_1(%arg0: i32) -> (i32, i32) {
    %c0_i32 = arith.constant 0 : i32
    %c0_i32_0 = arith.constant 0 : i32
    %c0_i32_1 = arith.constant 0 : i32
    return %c0_i32, %c0_i32_0 : i32, i32
  }
  func.func @transform_2(%arg0: i32) -> (i32, i32) {
    %c0_i32 = arith.constant 0 : i32
    %c0_i32_0 = arith.constant 0 : i32
    %c0_i32_1 = arith.constant 0 : i32
    return %c0_i32, %c0_i32_0 : i32, i32
  }
  func.func @transform_3(%arg0: i32) -> (i32, i32) {
    %c0_i32 = arith.constant 0 : i32
    %c0_i32_0 = arith.constant 0 : i32
    return %arg0, %c0_i32 : i32, i32
  }
}

module attributes {stable_mosaic.version = 11 : i64} {
  func.func @_qkvg_kernel(%arg0: i32, %arg1: i32, %arg2: memref<32x128xbf16, #tpu.memory_space<vmem>>, %arg3: memref<32x128xbf16, #tpu.memory_space<vmem>>, %arg4: memref<4x128xf32, #tpu.memory_space<vmem>>, %arg5: memref<128x512xbf16, #tpu.memory_space<vmem>>, %arg6: memref<1x128xf32, #tpu.memory_space<vmem>>, %arg7: memref<32x128xbf16, #tpu.memory_space<vmem>>, %arg8: memref<32x128xbf16, #tpu.memory_space<vmem>>, %arg9: memref<32x128xbf16, #tpu.memory_space<vmem>>, %arg10: memref<32x128xbf16, #tpu.memory_space<vmem>>, %arg11: memref<32x512xf32, #tpu.memory_space<vmem>>) attributes {dimension_semantics = [#tpu.dimension_semantics<parallel>, #tpu.dimension_semantics<arbitrary>], iteration_bounds = array<i64: 1, 1>, scalar_prefetch = 0 : i64, scratch_operands = 1 : i64, tpu.core_type = #tpu.core_type<tc>, window_params = [{transform_indices = @transform_0, window_bounds = array<i64: 32, 128>}, {transform_indices = @transform_1, window_bounds = array<i64: 32, 128>}, {transform_indices = @transform_2, window_bounds = array<i64: 4, 128>}, {transform_indices = @transform_3, window_bounds = array<i64: 128, 512>}, {pipeline_mode = #tpu.pipeline_mode<synchronous>, transform_indices = @transform_4, window_bounds = array<i64: 1, 128>}, {transform_indices = @transform_5, window_bounds = array<i64: 32, 128>}, {transform_indices = @transform_6, window_bounds = array<i64: 32, 128>}, {transform_indices = @transform_7, window_bounds = array<i64: 32, 128>}, {transform_indices = @transform_8, window_bounds = array<i64: 32, 128>}]} {
    %c0_i32 = arith.constant 0 : i32
    %0 = arith.cmpi eq, %arg1, %c0_i32 : i32
    %1 = arith.extui %0 : i1 to i32
    %c0_i32_0 = arith.constant 0 : i32
    %2 = arith.cmpi ne, %1, %c0_i32_0 : i32
    scf.if %2 {
      %cst_39 = arith.constant 0.000000e+00 : f32
      %66 = vector.broadcast %cst_39 : f32 to vector<32x512xf32>
      %c0_40 = arith.constant 0 : index
      %c0_41 = arith.constant 0 : index
      %67 = vector.load %arg11[%c0_40, %c0_41] : memref<32x512xf32, #tpu.memory_space<vmem>>, vector<32x512xf32>
      tpu.vector_store %arg11[%c0_40, %c0_41], %66 {strides = array<i32>} : memref<32x512xf32, #tpu.memory_space<vmem>>, vector<32x512xf32>,
    } else {
    }
    %c0 = arith.constant 0 : index
    %c0_1 = arith.constant 0 : index
    %3 = vector.load %arg2[%c0, %c0_1] : memref<32x128xbf16, #tpu.memory_space<vmem>>, vector<32x128xbf16>
    %4 = arith.extf %3 : vector<32x128xbf16> to vector<32x128xf32>
    %c0_2 = arith.constant 0 : index
    %c0_3 = arith.constant 0 : index
    %5 = vector.load %arg3[%c0_2, %c0_3] : memref<32x128xbf16, #tpu.memory_space<vmem>>, vector<32x128xbf16>
    %6 = arith.extf %5 : vector<32x128xbf16> to vector<32x128xf32>
    %c0_4 = arith.constant 0 : index
    %c0_5 = arith.constant 0 : index
    %7 = vector.load %arg4[%c0_4, %c0_5] : memref<4x128xf32, #tpu.memory_space<vmem>>, vector<1x128xf32>
    %8 = vector.broadcast %7 : vector<1x128xf32> to vector<32x128xf32>
    %9 = arith.mulf %4, %8 : vector<32x128xf32>
    %cst = arith.constant 1.000000e+00 : f32
    %10 = vector.broadcast %cst : f32 to vector<1x128xf32>
    %11 = arith.subf %10, %7 : vector<1x128xf32>
    %12 = vector.broadcast %11 : vector<1x128xf32> to vector<32x128xf32>
    %13 = arith.mulf %6, %12 : vector<32x128xf32>
    %14 = arith.addf %9, %13 : vector<32x128xf32>
    %15 = arith.truncf %14 : vector<32x128xf32> to vector<32x128xbf16>
    %c0_6 = arith.constant 0 : index
    %c0_7 = arith.constant 0 : index
    %16 = vector.load %arg11[%c0_6, %c0_7] : memref<32x512xf32, #tpu.memory_space<vmem>>, vector<32x128xf32>
    %c0_8 = arith.constant 0 : index
    %c0_9 = arith.constant 0 : index
    %17 = vector.load %arg5[%c0_8, %c0_9] : memref<128x512xbf16, #tpu.memory_space<vmem>>, vector<128x128xbf16>
    %cst_10 = arith.constant dense<0.000000e+00> : vector<32x128xf32>
    %18 = tpu.matmul %15, %17, %cst_10 {dimension_numbers = #tpu.dot_dimension_numbers<[1], [0], [0], [1], [0, 0, 1, 1], [], []>} : vector<32x128xbf16>, vector<128x128xbf16>, vector<32x128xf32> -> vector<32x128xf32>
    %19 = arith.addf %16, %18 : vector<32x128xf32>
    %c0_11 = arith.constant 0 : index
    %c0_12 = arith.constant 0 : index
    %20 = vector.load %arg11[%c0_11, %c0_12] : memref<32x512xf32, #tpu.memory_space<vmem>>, vector<32x128xf32>
    tpu.vector_store %arg11[%c0_11, %c0_12], %19 {strides = array<i32>} : memref<32x512xf32, #tpu.memory_space<vmem>>, vector<32x128xf32>,
    %c1 = arith.constant 1 : index
    %c0_13 = arith.constant 0 : index
    %21 = vector.load %arg4[%c1, %c0_13] : memref<4x128xf32, #tpu.memory_space<vmem>>, vector<1x128xf32>
    %22 = vector.broadcast %21 : vector<1x128xf32> to vector<32x128xf32>
    %23 = arith.mulf %4, %22 : vector<32x128xf32>
    %cst_14 = arith.constant 1.000000e+00 : f32
    %24 = vector.broadcast %cst_14 : f32 to vector<1x128xf32>
    %25 = arith.subf %24, %21 : vector<1x128xf32>
    %26 = vector.broadcast %25 : vector<1x128xf32> to vector<32x128xf32>
    %27 = arith.mulf %6, %26 : vector<32x128xf32>
    %28 = arith.addf %23, %27 : vector<32x128xf32>
    %29 = arith.truncf %28 : vector<32x128xf32> to vector<32x128xbf16>
    %c0_15 = arith.constant 0 : index
    %c128 = arith.constant 128 : index
    %30 = vector.load %arg11[%c0_15, %c128] : memref<32x512xf32, #tpu.memory_space<vmem>>, vector<32x128xf32>
    %c0_16 = arith.constant 0 : index
    %c128_17 = arith.constant 128 : index
    %31 = vector.load %arg5[%c0_16, %c128_17] : memref<128x512xbf16, #tpu.memory_space<vmem>>, vector<128x128xbf16>
    %cst_18 = arith.constant dense<0.000000e+00> : vector<32x128xf32>
    %32 = tpu.matmul %29, %31, %cst_18 {dimension_numbers = #tpu.dot_dimension_numbers<[1], [0], [0], [1], [0, 0, 1, 1], [], []>} : vector<32x128xbf16>, vector<128x128xbf16>, vector<32x128xf32> -> vector<32x128xf32>
    %33 = arith.addf %30, %32 : vector<32x128xf32>
    %c0_19 = arith.constant 0 : index
    %c128_20 = arith.constant 128 : index
    %34 = vector.load %arg11[%c0_19, %c128_20] : memref<32x512xf32, #tpu.memory_space<vmem>>, vector<32x128xf32>
    tpu.vector_store %arg11[%c0_19, %c128_20], %33 {strides = array<i32>} : memref<32x512xf32, #tpu.memory_space<vmem>>, vector<32x128xf32>,
    %c2 = arith.constant 2 : index
    %c0_21 = arith.constant 0 : index
    %35 = vector.load %arg4[%c2, %c0_21] : memref<4x128xf32, #tpu.memory_space<vmem>>, vector<1x128xf32>
    %36 = vector.broadcast %35 : vector<1x128xf32> to vector<32x128xf32>
    %37 = arith.mulf %4, %36 : vector<32x128xf32>
    %cst_22 = arith.constant 1.000000e+00 : f32
    %38 = vector.broadcast %cst_22 : f32 to vector<1x128xf32>
    %39 = arith.subf %38, %35 : vector<1x128xf32>
    %40 = vector.broadcast %39 : vector<1x128xf32> to vector<32x128xf32>
    %41 = arith.mulf %6, %40 : vector<32x128xf32>
    %42 = arith.addf %37, %41 : vector<32x128xf32>
    %43 = arith.truncf %42 : vector<32x128xf32> to vector<32x128xbf16>
    %c0_23 = arith.constant 0 : index
    %c256 = arith.constant 256 : index
    %44 = vector.load %arg11[%c0_23, %c256] : memref<32x512xf32, #tpu.memory_space<vmem>>, vector<32x128xf32>
    %c0_24 = arith.constant 0 : index
    %c256_25 = arith.constant 256 : index
    %45 = vector.load %arg5[%c0_24, %c256_25] : memref<128x512xbf16, #tpu.memory_space<vmem>>, vector<128x128xbf16>
    %cst_26 = arith.constant dense<0.000000e+00> : vector<32x128xf32>
    %46 = tpu.matmul %43, %45, %cst_26 {dimension_numbers = #tpu.dot_dimension_numbers<[1], [0], [0], [1], [0, 0, 1, 1], [], []>} : vector<32x128xbf16>, vector<128x128xbf16>, vector<32x128xf32> -> vector<32x128xf32>
    %47 = arith.addf %44, %46 : vector<32x128xf32>
    %c0_27 = arith.constant 0 : index
    %c256_28 = arith.constant 256 : index
    %48 = vector.load %arg11[%c0_27, %c256_28] : memref<32x512xf32, #tpu.memory_space<vmem>>, vector<32x128xf32>
    tpu.vector_store %arg11[%c0_27, %c256_28], %47 {strides = array<i32>} : memref<32x512xf32, #tpu.memory_space<vmem>>, vector<32x128xf32>,
    %c3 = arith.constant 3 : index
    %c0_29 = arith.constant 0 : index
    %49 = vector.load %arg4[%c3, %c0_29] : memref<4x128xf32, #tpu.memory_space<vmem>>, vector<1x128xf32>
    %50 = vector.broadcast %49 : vector<1x128xf32> to vector<32x128xf32>
    %51 = arith.mulf %4, %50 : vector<32x128xf32>
    %cst_30 = arith.constant 1.000000e+00 : f32
    %52 = vector.broadcast %cst_30 : f32 to vector<1x128xf32>
    %53 = arith.subf %52, %49 : vector<1x128xf32>
    %54 = vector.broadcast %53 : vector<1x128xf32> to vector<32x128xf32>
    %55 = arith.mulf %6, %54 : vector<32x128xf32>
    %56 = arith.addf %51, %55 : vector<32x128xf32>
    %57 = arith.truncf %56 : vector<32x128xf32> to vector<32x128xbf16>
    %c0_31 = arith.constant 0 : index
    %c384 = arith.constant 384 : index
    %58 = vector.load %arg11[%c0_31, %c384] : memref<32x512xf32, #tpu.memory_space<vmem>>, vector<32x128xf32>
    %c0_32 = arith.constant 0 : index
    %c384_33 = arith.constant 384 : index
    %59 = vector.load %arg5[%c0_32, %c384_33] : memref<128x512xbf16, #tpu.memory_space<vmem>>, vector<128x128xbf16>
    %cst_34 = arith.constant dense<0.000000e+00> : vector<32x128xf32>
    %60 = tpu.matmul %57, %59, %cst_34 {dimension_numbers = #tpu.dot_dimension_numbers<[1], [0], [0], [1], [0, 0, 1, 1], [], []>} : vector<32x128xbf16>, vector<128x128xbf16>, vector<32x128xf32> -> vector<32x128xf32>
    %61 = arith.addf %58, %60 : vector<32x128xf32>
    %c0_35 = arith.constant 0 : index
    %c384_36 = arith.constant 384 : index
    %62 = vector.load %arg11[%c0_35, %c384_36] : memref<32x512xf32, #tpu.memory_space<vmem>>, vector<32x128xf32>
    tpu.vector_store %arg11[%c0_35, %c384_36], %61 {strides = array<i32>} : memref<32x512xf32, #tpu.memory_space<vmem>>, vector<32x128xf32>,
    %c0_i32_37 = arith.constant 0 : i32
    %63 = arith.cmpi eq, %arg1, %c0_i32_37 : i32
    %64 = arith.extui %63 : i1 to i32
    %c0_i32_38 = arith.constant 0 : i32
    %65 = arith.cmpi ne, %64, %c0_i32_38 : i32
    scf.if %65 {
      %c0_39 = arith.constant 0 : index
      %c0_40 = arith.constant 0 : index
      %66 = vector.load %arg6[%c0_39, %c0_40] : memref<1x128xf32, #tpu.memory_space<vmem>>, vector<1x128xf32>
      %c0_41 = arith.constant 0 : index
      %c0_42 = arith.constant 0 : index
      %67 = vector.load %arg11[%c0_41, %c0_42] : memref<32x512xf32, #tpu.memory_space<vmem>>, vector<32x128xf32>
      %68 = arith.mulf %67, %67 : vector<32x128xf32>
      %cst_43 = arith.constant dense<0.000000e+00> : vector<32xf32>
      %69 = vector.multi_reduction <add>, %68, %cst_43 [1] : vector<32x128xf32> to vector<32xf32>
      %70 = vector.shape_cast %69 : vector<32xf32> to vector<32x1xf32>
      %71 = math.sqrt %70 : vector<32x1xf32>
      %cst_44 = arith.constant 11.3137083 : f32
      %72 = vector.broadcast %cst_44 : f32 to vector<32x1xf32>
      %73 = arith.divf %71, %72 : vector<32x1xf32>
      %cst_45 = arith.constant 9.99999993E-9 : f32
      %74 = vector.broadcast %cst_45 : f32 to vector<32x1xf32>
      %75 = arith.addf %73, %74 : vector<32x1xf32>
      %76 = vector.broadcast %75 : vector<32x1xf32> to vector<32x128xf32>
      %77 = arith.divf %67, %76 : vector<32x128xf32>
      %78 = vector.broadcast %66 : vector<1x128xf32> to vector<32x128xf32>
      %79 = arith.mulf %78, %77 : vector<32x128xf32>
      %80 = math.exp %79 : vector<32x128xf32>
      %81 = arith.truncf %80 : vector<32x128xf32> to vector<32x128xbf16>
      %c0_46 = arith.constant 0 : index
      %c0_47 = arith.constant 0 : index
      %82 = vector.load %arg7[%c0_46, %c0_47] : memref<32x128xbf16, #tpu.memory_space<vmem>>, vector<32x128xbf16>
      tpu.vector_store %arg7[%c0_46, %c0_47], %81 {strides = array<i32>} : memref<32x128xbf16, #tpu.memory_space<vmem>>, vector<32x128xbf16>,
      %c0_48 = arith.constant 0 : index
      %c128_49 = arith.constant 128 : index
      %83 = vector.load %arg11[%c0_48, %c128_49] : memref<32x512xf32, #tpu.memory_space<vmem>>, vector<32x128xf32>
      %84 = arith.mulf %83, %83 : vector<32x128xf32>
      %cst_50 = arith.constant dense<0.000000e+00> : vector<32xf32>
      %85 = vector.multi_reduction <add>, %84, %cst_50 [1] : vector<32x128xf32> to vector<32xf32>
      %86 = vector.shape_cast %85 : vector<32xf32> to vector<32x1xf32>
      %87 = math.sqrt %86 : vector<32x1xf32>
      %cst_51 = arith.constant 11.3137083 : f32
      %88 = vector.broadcast %cst_51 : f32 to vector<32x1xf32>
      %89 = arith.divf %87, %88 : vector<32x1xf32>
      %cst_52 = arith.constant 9.99999993E-9 : f32
      %90 = vector.broadcast %cst_52 : f32 to vector<32x1xf32>
      %91 = arith.addf %89, %90 : vector<32x1xf32>
      %92 = vector.broadcast %91 : vector<32x1xf32> to vector<32x128xf32>
      %93 = arith.divf %83, %92 : vector<32x128xf32>
      %94 = vector.broadcast %66 : vector<1x128xf32> to vector<32x128xf32>
      %95 = arith.mulf %94, %93 : vector<32x128xf32>
      %96 = math.exp %95 : vector<32x128xf32>
      %97 = arith.truncf %96 : vector<32x128xf32> to vector<32x128xbf16>
      %c0_53 = arith.constant 0 : index
      %c0_54 = arith.constant 0 : index
      %98 = vector.load %arg8[%c0_53, %c0_54] : memref<32x128xbf16, #tpu.memory_space<vmem>>, vector<32x128xbf16>
      tpu.vector_store %arg8[%c0_53, %c0_54], %97 {strides = array<i32>} : memref<32x128xbf16, #tpu.memory_space<vmem>>, vector<32x128xbf16>,
      %c0_55 = arith.constant 0 : index
      %c256_56 = arith.constant 256 : index
      %99 = vector.load %arg11[%c0_55, %c256_56] : memref<32x512xf32, #tpu.memory_space<vmem>>, vector<32x128xf32>
      %100 = arith.truncf %99 : vector<32x128xf32> to vector<32x128xbf16>
      %c0_57 = arith.constant 0 : index
      %c0_58 = arith.constant 0 : index
      %101 = vector.load %arg9[%c0_57, %c0_58] : memref<32x128xbf16, #tpu.memory_space<vmem>>, vector<32x128xbf16>
      tpu.vector_store %arg9[%c0_57, %c0_58], %100 {strides = array<i32>} : memref<32x128xbf16, #tpu.memory_space<vmem>>, vector<32x128xbf16>,
      %c0_59 = arith.constant 0 : index
      %c384_60 = arith.constant 384 : index
      %102 = vector.load %arg11[%c0_59, %c384_60] : memref<32x512xf32, #tpu.memory_space<vmem>>, vector<32x128xf32>
      %103 = arith.truncf %102 : vector<32x128xf32> to vector<32x128xbf16>
      %c0_61 = arith.constant 0 : index
      %c0_62 = arith.constant 0 : index
      %104 = vector.load %arg10[%c0_61, %c0_62] : memref<32x128xbf16, #tpu.memory_space<vmem>>, vector<32x128xbf16>
      tpu.vector_store %arg10[%c0_61, %c0_62], %103 {strides = array<i32>} : memref<32x128xbf16, #tpu.memory_space<vmem>>, vector<32x128xbf16>,
    } else {
    }
    return
  }
  func.func @transform_0(%arg0: i32, %arg1: i32) -> (i32, i32) {
    %c0_i32 = arith.constant 0 : i32
    return %arg0, %arg1 : i32, i32
  }
  func.func @transform_1(%arg0: i32, %arg1: i32) -> (i32, i32) {
    %c0_i32 = arith.constant 0 : i32
    return %arg0, %arg1 : i32, i32
  }
  func.func @transform_2(%arg0: i32, %arg1: i32) -> (i32, i32) {
    %c0_i32 = arith.constant 0 : i32
    %c0_i32_0 = arith.constant 0 : i32
    return %c0_i32, %arg1 : i32, i32
  }
  func.func @transform_3(%arg0: i32, %arg1: i32) -> (i32, i32) {
    %c0_i32 = arith.constant 0 : i32
    %c0_i32_0 = arith.constant 0 : i32
    return %arg1, %c0_i32 : i32, i32
  }
  func.func @transform_4(%arg0: i32, %arg1: i32) -> (i32, i32) {
    %c0_i32 = arith.constant 0 : i32
    %c0_i32_0 = arith.constant 0 : i32
    %c0_i32_1 = arith.constant 0 : i32
    return %c0_i32, %c0_i32_0 : i32, i32
  }
  func.func @transform_5(%arg0: i32, %arg1: i32) -> (i32, i32) {
    %c0_i32 = arith.constant 0 : i32
    %c0_i32_0 = arith.constant 0 : i32
    return %arg0, %c0_i32 : i32, i32
  }
  func.func @transform_6(%arg0: i32, %arg1: i32) -> (i32, i32) {
    %c0_i32 = arith.constant 0 : i32
    %c0_i32_0 = arith.constant 0 : i32
    return %arg0, %c0_i32 : i32, i32
  }
  func.func @transform_7(%arg0: i32, %arg1: i32) -> (i32, i32) {
    %c0_i32 = arith.constant 0 : i32
    %c0_i32_0 = arith.constant 0 : i32
    return %arg0, %c0_i32 : i32, i32
  }
  func.func @transform_8(%arg0: i32, %arg1: i32) -> (i32, i32) {
    %c0_i32 = arith.constant 0 : i32
    %c0_i32_0 = arith.constant 0 : i32
    return %arg0, %c0_i32 : i32, i32
  }
}

module attributes {stable_mosaic.version = 11 : i64} {
  func.func @_lnssm_kernel(%arg0: i32, %arg1: i32, %arg2: memref<1x16x128xbf16, #tpu.memory_space<vmem>>, %arg3: memref<1x16x128xbf16, #tpu.memory_space<vmem>>, %arg4: memref<1x16x128xbf16, #tpu.memory_space<vmem>>, %arg5: memref<1x16x128xbf16, #tpu.memory_space<vmem>>, %arg6: memref<16x128xf32, #tpu.memory_space<vmem>>, %arg7: memref<16x128xf32, #tpu.memory_space<vmem>>, %arg8: memref<16x16x128xf32, #tpu.memory_space<vmem>>, %arg9: memref<1x128xf32, #tpu.memory_space<vmem>>, %arg10: memref<32x128xf32, #tpu.memory_space<vmem>>, %arg11: memref<1x16x128xbf16, #tpu.memory_space<vmem>>, %arg12: memref<32x128xf32, #tpu.memory_space<vmem>>, %arg13: memref<1x128xf32, #tpu.memory_space<vmem>>) attributes {dimension_semantics = [#tpu.dimension_semantics<parallel>, #tpu.dimension_semantics<arbitrary>], iteration_bounds = array<i64: 2, 1>, scalar_prefetch = 0 : i64, scratch_operands = 2 : i64, tpu.core_type = #tpu.core_type<tc>, window_params = [{transform_indices = @transform_0, window_bounds = array<i64: 1, 16, 128>}, {transform_indices = @transform_1, window_bounds = array<i64: 1, 16, 128>}, {transform_indices = @transform_2, window_bounds = array<i64: 1, 16, 128>}, {transform_indices = @transform_3, window_bounds = array<i64: 1, 16, 128>}, {pipeline_mode = #tpu.pipeline_mode<synchronous>, transform_indices = @transform_4, window_bounds = array<i64: 16, 128>}, {pipeline_mode = #tpu.pipeline_mode<synchronous>, transform_indices = @transform_5, window_bounds = array<i64: 16, 128>}, {pipeline_mode = #tpu.pipeline_mode<synchronous>, transform_indices = @transform_6, window_bounds = array<i64: 16, 16, 128>}, {pipeline_mode = #tpu.pipeline_mode<synchronous>, transform_indices = @transform_7, window_bounds = array<i64: 1, 128>}, {pipeline_mode = #tpu.pipeline_mode<synchronous>, transform_indices = @transform_8, window_bounds = array<i64: 32, 128>}, {transform_indices = @transform_9, window_bounds = array<i64: 1, 16, 128>}]} {
    %c0_i32 = arith.constant 0 : i32
    %0 = arith.cmpi eq, %arg1, %c0_i32 : i32
    %1 = arith.extui %0 : i1 to i32
    %c0_i32_0 = arith.constant 0 : i32
    %2 = arith.cmpi ne, %1, %c0_i32_0 : i32
    scf.if %2 {
      %cst_94 = arith.constant 0.000000e+00 : f32
      %186 = vector.broadcast %cst_94 : f32 to vector<32x128xf32>
      %c0_95 = arith.constant 0 : index
      %c0_96 = arith.constant 0 : index
      %187 = vector.load %arg12[%c0_95, %c0_96] : memref<32x128xf32, #tpu.memory_space<vmem>>, vector<32x128xf32>
      tpu.vector_store %arg12[%c0_95, %c0_96], %186 {strides = array<i32>} : memref<32x128xf32, #tpu.memory_space<vmem>>, vector<32x128xf32>,
      %cst_97 = arith.constant 0.000000e+00 : f32
      %188 = vector.broadcast %cst_97 : f32 to vector<1x128xf32>
      %c0_98 = arith.constant 0 : index
      %c0_99 = arith.constant 0 : index
      %189 = vector.load %arg13[%c0_98, %c0_99] : memref<1x128xf32, #tpu.memory_space<vmem>>, vector<1x128xf32>
      tpu.vector_store %arg13[%c0_98, %c0_99], %188 {strides = array<i32>} : memref<1x128xf32, #tpu.memory_space<vmem>>, vector<1x128xf32>,
    } else {
    }
    %c0 = arith.constant 0 : index
    %c0_1 = arith.constant 0 : index
    %3 = vector.load %arg6[%c0, %c0_1] : memref<16x128xf32, #tpu.memory_space<vmem>>, vector<16x128xf32>
    %c0_2 = arith.constant 0 : index
    %c0_3 = arith.constant 0 : index
    %4 = vector.load %arg7[%c0_2, %c0_3] : memref<16x128xf32, #tpu.memory_space<vmem>>, vector<16x128xf32>
    %c0_4 = arith.constant 0 : index
    %c0_5 = arith.constant 0 : index
    %5 = vector.load %arg9[%c0_4, %c0_5] : memref<1x128xf32, #tpu.memory_space<vmem>>, vector<1x128xf32>
    %c0_6 = arith.constant 0 : index
    %c0_7 = arith.constant 0 : index
    %6 = vector.load %arg10[%c0_6, %c0_7] : memref<32x128xf32, #tpu.memory_space<vmem>>, vector<32x128xf32>
    %c0_8 = arith.constant 0 : index
    %c0_9 = arith.constant 0 : index
    %c0_10 = arith.constant 0 : index
    %7 = vector.load %arg2[%c0_8, %c0_9, %c0_10] : memref<1x16x128xbf16, #tpu.memory_space<vmem>>, vector<1x16x128xbf16>
    %8 = vector.shape_cast %7 : vector<1x16x128xbf16> to vector<16x128xbf16>
    %9 = arith.extf %8 : vector<16x128xbf16> to vector<16x128xf32>
    %c0_11 = arith.constant 0 : index
    %c0_12 = arith.constant 0 : index
    %c0_13 = arith.constant 0 : index
    %10 = vector.load %arg3[%c0_11, %c0_12, %c0_13] : memref<1x16x128xbf16, #tpu.memory_space<vmem>>, vector<1x16x128xbf16>
    %11 = vector.shape_cast %10 : vector<1x16x128xbf16> to vector<16x128xbf16>
    %12 = arith.extf %11 : vector<16x128xbf16> to vector<16x128xf32>
    %c0_14 = arith.constant 0 : index
    %c0_15 = arith.constant 0 : index
    %c0_16 = arith.constant 0 : index
    %13 = vector.load %arg4[%c0_14, %c0_15, %c0_16] : memref<1x16x128xbf16, #tpu.memory_space<vmem>>, vector<1x16x128xbf16>
    %14 = vector.shape_cast %13 : vector<1x16x128xbf16> to vector<16x128xbf16>
    %15 = arith.extf %14 : vector<16x128xbf16> to vector<16x128xf32>
    %c0_17 = arith.constant 0 : index
    %c0_18 = arith.constant 0 : index
    %c0_19 = arith.constant 0 : index
    %16 = vector.load %arg5[%c0_17, %c0_18, %c0_19] : memref<1x16x128xbf16, #tpu.memory_space<vmem>>, vector<1x16x128xbf16>
    %17 = vector.shape_cast %16 : vector<1x16x128xbf16> to vector<16x128xbf16>
    %18 = arith.extf %17 : vector<16x128xbf16> to vector<16x128xf32>
    %19 = arith.mulf %9, %3 : vector<16x128xf32>
    %20 = arith.mulf %12, %4 : vector<16x128xf32>
    %21 = vector.extract_strided_slice %9 {offsets = [0, 0], sizes = [16, 32], strides = [1, 1]} : vector<16x128xf32> to vector<16x32xf32>
    %22 = vector.extract_strided_slice %12 {offsets = [0, 0], sizes = [16, 32], strides = [1, 1]} : vector<16x128xf32> to vector<16x32xf32>
    %23 = vector.extract_strided_slice %15 {offsets = [0, 0], sizes = [16, 32], strides = [1, 1]} : vector<16x128xf32> to vector<16x32xf32>
    %24 = vector.extract_strided_slice %19 {offsets = [0, 0], sizes = [16, 32], strides = [1, 1]} : vector<16x128xf32> to vector<16x32xf32>
    %25 = vector.extract_strided_slice %20 {offsets = [0, 0], sizes = [16, 32], strides = [1, 1]} : vector<16x128xf32> to vector<16x32xf32>
    %c0_20 = arith.constant 0 : index
    %c0_21 = arith.constant 0 : index
    %c0_22 = arith.constant 0 : index
    %26 = vector.load %arg8[%c0_20, %c0_21, %c0_22] : memref<16x16x128xf32, #tpu.memory_space<vmem>>, vector<16x16x32xf32>
    %c0_23 = arith.constant 0 : index
    %c0_24 = arith.constant 0 : index
    %27 = vector.load %arg12[%c0_23, %c0_24] : memref<32x128xf32, #tpu.memory_space<vmem>>, vector<32x32xf32>
    %c0_25 = arith.constant 0 : index
    %c0_26 = arith.constant 0 : index
    %28 = vector.load %arg13[%c0_25, %c0_26] : memref<1x128xf32, #tpu.memory_space<vmem>>, vector<1x32xf32>
    %29 = vector.shape_cast %21 : vector<16x32xf32> to vector<16x1x32xf32>
    %30 = vector.shape_cast %22 : vector<16x32xf32> to vector<1x16x32xf32>
    %31 = vector.broadcast %29 : vector<16x1x32xf32> to vector<16x16x32xf32>
    %32 = vector.broadcast %30 : vector<1x16x32xf32> to vector<16x16x32xf32>
    %33 = arith.mulf %31, %32 : vector<16x16x32xf32>
    %34 = arith.mulf %33, %26 : vector<16x16x32xf32>
    %cst = arith.constant dense<0.000000e+00> : vector<16x16xf32>
    %35 = vector.multi_reduction <add>, %34, %cst [2] : vector<16x16x32xf32> to vector<16x16xf32>
    %cst_27 = arith.constant dense<0.000000e+00> : vector<16x32xf32>
    %36 = tpu.matmul %24, %27, %cst_27 {dimension_numbers = #tpu.dot_dimension_numbers<[1], [0], [0], [1], [0, 0, 1, 1], [], []>} : vector<16x32xf32>, vector<32x32xf32>, vector<16x32xf32> -> vector<16x32xf32>
    %cst_28 = arith.constant dense<0.000000e+00> : vector<16x32xf32>
    %37 = tpu.matmul %35, %23, %cst_28 {dimension_numbers = #tpu.dot_dimension_numbers<[1], [0], [0], [1], [0, 0, 1, 1], [], []>} : vector<16x16xf32>, vector<16x32xf32>, vector<16x32xf32> -> vector<16x32xf32>
    %38 = arith.addf %36, %37 : vector<16x32xf32>
    %39 = vector.broadcast %28 : vector<1x32xf32> to vector<16x32xf32>
    %40 = arith.mulf %24, %39 : vector<16x32xf32>
    %cst_29 = arith.constant dense<0.000000e+00> : vector<16xf32>
    %41 = vector.multi_reduction <add>, %40, %cst_29 [1] : vector<16x32xf32> to vector<16xf32>
    %42 = vector.shape_cast %41 : vector<16xf32> to vector<16x1xf32>
    %cst_30 = arith.constant dense<0.000000e+00> : vector<16xf32>
    %43 = vector.multi_reduction <add>, %35, %cst_30 [1] : vector<16x16xf32> to vector<16xf32>
    %44 = vector.shape_cast %43 : vector<16xf32> to vector<16x1xf32>
    %45 = arith.addf %42, %44 : vector<16x1xf32>
    %46 = vector.extract_strided_slice %6 {offsets = [0, 0], sizes = [32, 32], strides = [1, 1]} : vector<32x128xf32> to vector<32x32xf32>
    %47 = arith.mulf %27, %46 : vector<32x32xf32>
    %cst_31 = arith.constant dense<0.000000e+00> : vector<32x32xf32>
    %48 = tpu.matmul %25, %23, %cst_31 {dimension_numbers = #tpu.dot_dimension_numbers<[0], [0], [1], [1], [0, 1, 1, 1], [], []>} : vector<16x32xf32>, vector<16x32xf32>, vector<32x32xf32> -> vector<32x32xf32>
    %49 = arith.addf %47, %48 : vector<32x32xf32>
    %c0_32 = arith.constant 0 : index
    %c0_33 = arith.constant 0 : index
    %50 = vector.load %arg12[%c0_32, %c0_33] : memref<32x128xf32, #tpu.memory_space<vmem>>, vector<32x32xf32>
    tpu.vector_store %arg12[%c0_32, %c0_33], %49 {strides = array<i32>} : memref<32x128xf32, #tpu.memory_space<vmem>>, vector<32x32xf32>,
    %51 = vector.extract_strided_slice %5 {offsets = [0, 0], sizes = [1, 32], strides = [1, 1]} : vector<1x128xf32> to vector<1x32xf32>
    %52 = arith.mulf %28, %51 : vector<1x32xf32>
    %cst_34 = arith.constant dense<0.000000e+00> : vector<32xf32>
    %53 = vector.multi_reduction <add>, %25, %cst_34 [0] : vector<16x32xf32> to vector<32xf32>
    %54 = vector.shape_cast %53 : vector<32xf32> to vector<1x32xf32>
    %55 = arith.addf %52, %54 : vector<1x32xf32>
    %c0_35 = arith.constant 0 : index
    %c0_36 = arith.constant 0 : index
    %56 = vector.load %arg13[%c0_35, %c0_36] : memref<1x128xf32, #tpu.memory_space<vmem>>, vector<1x32xf32>
    tpu.vector_store %arg13[%c0_35, %c0_36], %55 {strides = array<i32>} : memref<1x128xf32, #tpu.memory_space<vmem>>, vector<1x32xf32>,
    %57 = vector.broadcast %45 : vector<16x1xf32> to vector<16x32xf32>
    %58 = arith.divf %38, %57 : vector<16x32xf32>
    %59 = vector.extract_strided_slice %9 {offsets = [0, 32], sizes = [16, 32], strides = [1, 1]} : vector<16x128xf32> to vector<16x32xf32>
    %60 = vector.extract_strided_slice %12 {offsets = [0, 32], sizes = [16, 32], strides = [1, 1]} : vector<16x128xf32> to vector<16x32xf32>
    %61 = vector.extract_strided_slice %15 {offsets = [0, 32], sizes = [16, 32], strides = [1, 1]} : vector<16x128xf32> to vector<16x32xf32>
    %62 = vector.extract_strided_slice %19 {offsets = [0, 32], sizes = [16, 32], strides = [1, 1]} : vector<16x128xf32> to vector<16x32xf32>
    %63 = vector.extract_strided_slice %20 {offsets = [0, 32], sizes = [16, 32], strides = [1, 1]} : vector<16x128xf32> to vector<16x32xf32>
    %c0_37 = arith.constant 0 : index
    %c0_38 = arith.constant 0 : index
    %c32 = arith.constant 32 : index
    %64 = vector.load %arg8[%c0_37, %c0_38, %c32] : memref<16x16x128xf32, #tpu.memory_space<vmem>>, vector<16x16x32xf32>
    %c0_39 = arith.constant 0 : index
    %c32_40 = arith.constant 32 : index
    %65 = vector.load %arg12[%c0_39, %c32_40] : memref<32x128xf32, #tpu.memory_space<vmem>>, vector<32x32xf32>
    %c0_41 = arith.constant 0 : index
    %c32_42 = arith.constant 32 : index
    %66 = vector.load %arg13[%c0_41, %c32_42] : memref<1x128xf32, #tpu.memory_space<vmem>>, vector<1x32xf32>
    %67 = vector.shape_cast %59 : vector<16x32xf32> to vector<16x1x32xf32>
    %68 = vector.shape_cast %60 : vector<16x32xf32> to vector<1x16x32xf32>
    %69 = vector.broadcast %67 : vector<16x1x32xf32> to vector<16x16x32xf32>
    %70 = vector.broadcast %68 : vector<1x16x32xf32> to vector<16x16x32xf32>
    %71 = arith.mulf %69, %70 : vector<16x16x32xf32>
    %72 = arith.mulf %71, %64 : vector<16x16x32xf32>
    %cst_43 = arith.constant dense<0.000000e+00> : vector<16x16xf32>
    %73 = vector.multi_reduction <add>, %72, %cst_43 [2] : vector<16x16x32xf32> to vector<16x16xf32>
    %cst_44 = arith.constant dense<0.000000e+00> : vector<16x32xf32>
    %74 = tpu.matmul %62, %65, %cst_44 {dimension_numbers = #tpu.dot_dimension_numbers<[1], [0], [0], [1], [0, 0, 1, 1], [], []>} : vector<16x32xf32>, vector<32x32xf32>, vector<16x32xf32> -> vector<16x32xf32>
    %cst_45 = arith.constant dense<0.000000e+00> : vector<16x32xf32>
    %75 = tpu.matmul %73, %61, %cst_45 {dimension_numbers = #tpu.dot_dimension_numbers<[1], [0], [0], [1], [0, 0, 1, 1], [], []>} : vector<16x16xf32>, vector<16x32xf32>, vector<16x32xf32> -> vector<16x32xf32>
    %76 = arith.addf %74, %75 : vector<16x32xf32>
    %77 = vector.broadcast %66 : vector<1x32xf32> to vector<16x32xf32>
    %78 = arith.mulf %62, %77 : vector<16x32xf32>
    %cst_46 = arith.constant dense<0.000000e+00> : vector<16xf32>
    %79 = vector.multi_reduction <add>, %78, %cst_46 [1] : vector<16x32xf32> to vector<16xf32>
    %80 = vector.shape_cast %79 : vector<16xf32> to vector<16x1xf32>
    %cst_47 = arith.constant dense<0.000000e+00> : vector<16xf32>
    %81 = vector.multi_reduction <add>, %73, %cst_47 [1] : vector<16x16xf32> to vector<16xf32>
    %82 = vector.shape_cast %81 : vector<16xf32> to vector<16x1xf32>
    %83 = arith.addf %80, %82 : vector<16x1xf32>
    %84 = vector.extract_strided_slice %6 {offsets = [0, 32], sizes = [32, 32], strides = [1, 1]} : vector<32x128xf32> to vector<32x32xf32>
    %85 = arith.mulf %65, %84 : vector<32x32xf32>
    %cst_48 = arith.constant dense<0.000000e+00> : vector<32x32xf32>
    %86 = tpu.matmul %63, %61, %cst_48 {dimension_numbers = #tpu.dot_dimension_numbers<[0], [0], [1], [1], [0, 1, 1, 1], [], []>} : vector<16x32xf32>, vector<16x32xf32>, vector<32x32xf32> -> vector<32x32xf32>
    %87 = arith.addf %85, %86 : vector<32x32xf32>
    %c0_49 = arith.constant 0 : index
    %c32_50 = arith.constant 32 : index
    %88 = vector.load %arg12[%c0_49, %c32_50] : memref<32x128xf32, #tpu.memory_space<vmem>>, vector<32x32xf32>
    tpu.vector_store %arg12[%c0_49, %c32_50], %87 {strides = array<i32>} : memref<32x128xf32, #tpu.memory_space<vmem>>, vector<32x32xf32>,
    %89 = vector.extract_strided_slice %5 {offsets = [0, 32], sizes = [1, 32], strides = [1, 1]} : vector<1x128xf32> to vector<1x32xf32>
    %90 = arith.mulf %66, %89 : vector<1x32xf32>
    %cst_51 = arith.constant dense<0.000000e+00> : vector<32xf32>
    %91 = vector.multi_reduction <add>, %63, %cst_51 [0] : vector<16x32xf32> to vector<32xf32>
    %92 = vector.shape_cast %91 : vector<32xf32> to vector<1x32xf32>
    %93 = arith.addf %90, %92 : vector<1x32xf32>
    %c0_52 = arith.constant 0 : index
    %c32_53 = arith.constant 32 : index
    %94 = vector.load %arg13[%c0_52, %c32_53] : memref<1x128xf32, #tpu.memory_space<vmem>>, vector<1x32xf32>
    tpu.vector_store %arg13[%c0_52, %c32_53], %93 {strides = array<i32>} : memref<1x128xf32, #tpu.memory_space<vmem>>, vector<1x32xf32>,
    %95 = vector.broadcast %83 : vector<16x1xf32> to vector<16x32xf32>
    %96 = arith.divf %76, %95 : vector<16x32xf32>
    %97 = vector.extract_strided_slice %9 {offsets = [0, 64], sizes = [16, 32], strides = [1, 1]} : vector<16x128xf32> to vector<16x32xf32>
    %98 = vector.extract_strided_slice %12 {offsets = [0, 64], sizes = [16, 32], strides = [1, 1]} : vector<16x128xf32> to vector<16x32xf32>
    %99 = vector.extract_strided_slice %15 {offsets = [0, 64], sizes = [16, 32], strides = [1, 1]} : vector<16x128xf32> to vector<16x32xf32>
    %100 = vector.extract_strided_slice %19 {offsets = [0, 64], sizes = [16, 32], strides = [1, 1]} : vector<16x128xf32> to vector<16x32xf32>
    %101 = vector.extract_strided_slice %20 {offsets = [0, 64], sizes = [16, 32], strides = [1, 1]} : vector<16x128xf32> to vector<16x32xf32>
    %c0_54 = arith.constant 0 : index
    %c0_55 = arith.constant 0 : index
    %c64 = arith.constant 64 : index
    %102 = vector.load %arg8[%c0_54, %c0_55, %c64] : memref<16x16x128xf32, #tpu.memory_space<vmem>>, vector<16x16x32xf32>
    %c0_56 = arith.constant 0 : index
    %c64_57 = arith.constant 64 : index
    %103 = vector.load %arg12[%c0_56, %c64_57] : memref<32x128xf32, #tpu.memory_space<vmem>>, vector<32x32xf32>
    %c0_58 = arith.constant 0 : index
    %c64_59 = arith.constant 64 : index
    %104 = vector.load %arg13[%c0_58, %c64_59] : memref<1x128xf32, #tpu.memory_space<vmem>>, vector<1x32xf32>
    %105 = vector.shape_cast %97 : vector<16x32xf32> to vector<16x1x32xf32>
    %106 = vector.shape_cast %98 : vector<16x32xf32> to vector<1x16x32xf32>
    %107 = vector.broadcast %105 : vector<16x1x32xf32> to vector<16x16x32xf32>
    %108 = vector.broadcast %106 : vector<1x16x32xf32> to vector<16x16x32xf32>
    %109 = arith.mulf %107, %108 : vector<16x16x32xf32>
    %110 = arith.mulf %109, %102 : vector<16x16x32xf32>
    %cst_60 = arith.constant dense<0.000000e+00> : vector<16x16xf32>
    %111 = vector.multi_reduction <add>, %110, %cst_60 [2] : vector<16x16x32xf32> to vector<16x16xf32>
    %cst_61 = arith.constant dense<0.000000e+00> : vector<16x32xf32>
    %112 = tpu.matmul %100, %103, %cst_61 {dimension_numbers = #tpu.dot_dimension_numbers<[1], [0], [0], [1], [0, 0, 1, 1], [], []>} : vector<16x32xf32>, vector<32x32xf32>, vector<16x32xf32> -> vector<16x32xf32>
    %cst_62 = arith.constant dense<0.000000e+00> : vector<16x32xf32>
    %113 = tpu.matmul %111, %99, %cst_62 {dimension_numbers = #tpu.dot_dimension_numbers<[1], [0], [0], [1], [0, 0, 1, 1], [], []>} : vector<16x16xf32>, vector<16x32xf32>, vector<16x32xf32> -> vector<16x32xf32>
    %114 = arith.addf %112, %113 : vector<16x32xf32>
    %115 = vector.broadcast %104 : vector<1x32xf32> to vector<16x32xf32>
    %116 = arith.mulf %100, %115 : vector<16x32xf32>
    %cst_63 = arith.constant dense<0.000000e+00> : vector<16xf32>
    %117 = vector.multi_reduction <add>, %116, %cst_63 [1] : vector<16x32xf32> to vector<16xf32>
    %118 = vector.shape_cast %117 : vector<16xf32> to vector<16x1xf32>
    %cst_64 = arith.constant dense<0.000000e+00> : vector<16xf32>
    %119 = vector.multi_reduction <add>, %111, %cst_64 [1] : vector<16x16xf32> to vector<16xf32>
    %120 = vector.shape_cast %119 : vector<16xf32> to vector<16x1xf32>
    %121 = arith.addf %118, %120 : vector<16x1xf32>
    %122 = vector.extract_strided_slice %6 {offsets = [0, 64], sizes = [32, 32], strides = [1, 1]} : vector<32x128xf32> to vector<32x32xf32>
    %123 = arith.mulf %103, %122 : vector<32x32xf32>
    %cst_65 = arith.constant dense<0.000000e+00> : vector<32x32xf32>
    %124 = tpu.matmul %101, %99, %cst_65 {dimension_numbers = #tpu.dot_dimension_numbers<[0], [0], [1], [1], [0, 1, 1, 1], [], []>} : vector<16x32xf32>, vector<16x32xf32>, vector<32x32xf32> -> vector<32x32xf32>
    %125 = arith.addf %123, %124 : vector<32x32xf32>
    %c0_66 = arith.constant 0 : index
    %c64_67 = arith.constant 64 : index
    %126 = vector.load %arg12[%c0_66, %c64_67] : memref<32x128xf32, #tpu.memory_space<vmem>>, vector<32x32xf32>
    tpu.vector_store %arg12[%c0_66, %c64_67], %125 {strides = array<i32>} : memref<32x128xf32, #tpu.memory_space<vmem>>, vector<32x32xf32>,
    %127 = vector.extract_strided_slice %5 {offsets = [0, 64], sizes = [1, 32], strides = [1, 1]} : vector<1x128xf32> to vector<1x32xf32>
    %128 = arith.mulf %104, %127 : vector<1x32xf32>
    %cst_68 = arith.constant dense<0.000000e+00> : vector<32xf32>
    %129 = vector.multi_reduction <add>, %101, %cst_68 [0] : vector<16x32xf32> to vector<32xf32>
    %130 = vector.shape_cast %129 : vector<32xf32> to vector<1x32xf32>
    %131 = arith.addf %128, %130 : vector<1x32xf32>
    %c0_69 = arith.constant 0 : index
    %c64_70 = arith.constant 64 : index
    %132 = vector.load %arg13[%c0_69, %c64_70] : memref<1x128xf32, #tpu.memory_space<vmem>>, vector<1x32xf32>
    tpu.vector_store %arg13[%c0_69, %c64_70], %131 {strides = array<i32>} : memref<1x128xf32, #tpu.memory_space<vmem>>, vector<1x32xf32>,
    %133 = vector.broadcast %121 : vector<16x1xf32> to vector<16x32xf32>
    %134 = arith.divf %114, %133 : vector<16x32xf32>
    %135 = vector.extract_strided_slice %9 {offsets = [0, 96], sizes = [16, 32], strides = [1, 1]} : vector<16x128xf32> to vector<16x32xf32>
    %136 = vector.extract_strided_slice %12 {offsets = [0, 96], sizes = [16, 32], strides = [1, 1]} : vector<16x128xf32> to vector<16x32xf32>
    %137 = vector.extract_strided_slice %15 {offsets = [0, 96], sizes = [16, 32], strides = [1, 1]} : vector<16x128xf32> to vector<16x32xf32>
    %138 = vector.extract_strided_slice %19 {offsets = [0, 96], sizes = [16, 32], strides = [1, 1]} : vector<16x128xf32> to vector<16x32xf32>
    %139 = vector.extract_strided_slice %20 {offsets = [0, 96], sizes = [16, 32], strides = [1, 1]} : vector<16x128xf32> to vector<16x32xf32>
    %c0_71 = arith.constant 0 : index
    %c0_72 = arith.constant 0 : index
    %c96 = arith.constant 96 : index
    %140 = vector.load %arg8[%c0_71, %c0_72, %c96] : memref<16x16x128xf32, #tpu.memory_space<vmem>>, vector<16x16x32xf32>
    %c0_73 = arith.constant 0 : index
    %c96_74 = arith.constant 96 : index
    %141 = vector.load %arg12[%c0_73, %c96_74] : memref<32x128xf32, #tpu.memory_space<vmem>>, vector<32x32xf32>
    %c0_75 = arith.constant 0 : index
    %c96_76 = arith.constant 96 : index
    %142 = vector.load %arg13[%c0_75, %c96_76] : memref<1x128xf32, #tpu.memory_space<vmem>>, vector<1x32xf32>
    %143 = vector.shape_cast %135 : vector<16x32xf32> to vector<16x1x32xf32>
    %144 = vector.shape_cast %136 : vector<16x32xf32> to vector<1x16x32xf32>
    %145 = vector.broadcast %143 : vector<16x1x32xf32> to vector<16x16x32xf32>
    %146 = vector.broadcast %144 : vector<1x16x32xf32> to vector<16x16x32xf32>
    %147 = arith.mulf %145, %146 : vector<16x16x32xf32>
    %148 = arith.mulf %147, %140 : vector<16x16x32xf32>
    %cst_77 = arith.constant dense<0.000000e+00> : vector<16x16xf32>
    %149 = vector.multi_reduction <add>, %148, %cst_77 [2] : vector<16x16x32xf32> to vector<16x16xf32>
    %cst_78 = arith.constant dense<0.000000e+00> : vector<16x32xf32>
    %150 = tpu.matmul %138, %141, %cst_78 {dimension_numbers = #tpu.dot_dimension_numbers<[1], [0], [0], [1], [0, 0, 1, 1], [], []>} : vector<16x32xf32>, vector<32x32xf32>, vector<16x32xf32> -> vector<16x32xf32>
    %cst_79 = arith.constant dense<0.000000e+00> : vector<16x32xf32>
    %151 = tpu.matmul %149, %137, %cst_79 {dimension_numbers = #tpu.dot_dimension_numbers<[1], [0], [0], [1], [0, 0, 1, 1], [], []>} : vector<16x16xf32>, vector<16x32xf32>, vector<16x32xf32> -> vector<16x32xf32>
    %152 = arith.addf %150, %151 : vector<16x32xf32>
    %153 = vector.broadcast %142 : vector<1x32xf32> to vector<16x32xf32>
    %154 = arith.mulf %138, %153 : vector<16x32xf32>
    %cst_80 = arith.constant dense<0.000000e+00> : vector<16xf32>
    %155 = vector.multi_reduction <add>, %154, %cst_80 [1] : vector<16x32xf32> to vector<16xf32>
    %156 = vector.shape_cast %155 : vector<16xf32> to vector<16x1xf32>
    %cst_81 = arith.constant dense<0.000000e+00> : vector<16xf32>
    %157 = vector.multi_reduction <add>, %149, %cst_81 [1] : vector<16x16xf32> to vector<16xf32>
    %158 = vector.shape_cast %157 : vector<16xf32> to vector<16x1xf32>
    %159 = arith.addf %156, %158 : vector<16x1xf32>
    %160 = vector.extract_strided_slice %6 {offsets = [0, 96], sizes = [32, 32], strides = [1, 1]} : vector<32x128xf32> to vector<32x32xf32>
    %161 = arith.mulf %141, %160 : vector<32x32xf32>
    %cst_82 = arith.constant dense<0.000000e+00> : vector<32x32xf32>
    %162 = tpu.matmul %139, %137, %cst_82 {dimension_numbers = #tpu.dot_dimension_numbers<[0], [0], [1], [1], [0, 1, 1, 1], [], []>} : vector<16x32xf32>, vector<16x32xf32>, vector<32x32xf32> -> vector<32x32xf32>
    %163 = arith.addf %161, %162 : vector<32x32xf32>
    %c0_83 = arith.constant 0 : index
    %c96_84 = arith.constant 96 : index
    %164 = vector.load %arg12[%c0_83, %c96_84] : memref<32x128xf32, #tpu.memory_space<vmem>>, vector<32x32xf32>
    tpu.vector_store %arg12[%c0_83, %c96_84], %163 {strides = array<i32>} : memref<32x128xf32, #tpu.memory_space<vmem>>, vector<32x32xf32>,
    %165 = vector.extract_strided_slice %5 {offsets = [0, 96], sizes = [1, 32], strides = [1, 1]} : vector<1x128xf32> to vector<1x32xf32>
    %166 = arith.mulf %142, %165 : vector<1x32xf32>
    %cst_85 = arith.constant dense<0.000000e+00> : vector<32xf32>
    %167 = vector.multi_reduction <add>, %139, %cst_85 [0] : vector<16x32xf32> to vector<32xf32>
    %168 = vector.shape_cast %167 : vector<32xf32> to vector<1x32xf32>
    %169 = arith.addf %166, %168 : vector<1x32xf32>
    %c0_86 = arith.constant 0 : index
    %c96_87 = arith.constant 96 : index
    %170 = vector.load %arg13[%c0_86, %c96_87] : memref<1x128xf32, #tpu.memory_space<vmem>>, vector<1x32xf32>
    tpu.vector_store %arg13[%c0_86, %c96_87], %169 {strides = array<i32>} : memref<1x128xf32, #tpu.memory_space<vmem>>, vector<1x32xf32>,
    %171 = vector.broadcast %159 : vector<16x1xf32> to vector<16x32xf32>
    %172 = arith.divf %152, %171 : vector<16x32xf32>
    %173 = tpu.concatenate %58, %96, %134, %172 in 1 : vector<16x32xf32>, vector<16x32xf32>, vector<16x32xf32>, vector<16x32xf32> -> vector<16x128xf32>
    %cst_88 = arith.constant 0.000000e+00 : f32
    %174 = vector.broadcast %cst_88 : f32 to vector<16x128xf32>
    %175 = arith.subf %174, %18 : vector<16x128xf32>
    %176 = math.exp %175 : vector<16x128xf32>
    %cst_89 = arith.constant 1.000000e+00 : f32
    %177 = vector.broadcast %cst_89 : f32 to vector<16x128xf32>
    %178 = arith.addf %177, %176 : vector<16x128xf32>
    %cst_90 = arith.constant 1.000000e+00 : f32
    %179 = vector.broadcast %cst_90 : f32 to vector<16x128xf32>
    %180 = arith.divf %179, %178 : vector<16x128xf32>
    %181 = arith.mulf %180, %173 : vector<16x128xf32>
    %182 = arith.truncf %181 : vector<16x128xf32> to vector<16x128xbf16>
    %c0_91 = arith.constant 0 : index
    %c0_92 = arith.constant 0 : index
    %c0_93 = arith.constant 0 : index
    %183 = vector.load %arg11[%c0_91, %c0_92, %c0_93] : memref<1x16x128xbf16, #tpu.memory_space<vmem>>, vector<1x16x128xbf16>
    %184 = vector.shape_cast %183 : vector<1x16x128xbf16> to vector<16x128xbf16>
    %185 = vector.shape_cast %182 : vector<16x128xbf16> to vector<1x16x128xbf16>
    tpu.vector_store %arg11[%c0_91, %c0_92, %c0_93], %185 {strides = array<i32>} : memref<1x16x128xbf16, #tpu.memory_space<vmem>>, vector<1x16x128xbf16>,
    return
  }
  func.func @transform_0(%arg0: i32, %arg1: i32) -> (i32, i32, i32) {
    %c0_i32 = arith.constant 0 : i32
    %c0_i32_0 = arith.constant 0 : i32
    return %arg0, %arg1, %c0_i32 : i32, i32, i32
  }
  func.func @transform_1(%arg0: i32, %arg1: i32) -> (i32, i32, i32) {
    %c0_i32 = arith.constant 0 : i32
    %c0_i32_0 = arith.constant 0 : i32
    return %arg0, %arg1, %c0_i32 : i32, i32, i32
  }
  func.func @transform_2(%arg0: i32, %arg1: i32) -> (i32, i32, i32) {
    %c0_i32 = arith.constant 0 : i32
    %c0_i32_0 = arith.constant 0 : i32
    return %arg0, %arg1, %c0_i32 : i32, i32, i32
  }
  func.func @transform_3(%arg0: i32, %arg1: i32) -> (i32, i32, i32) {
    %c0_i32 = arith.constant 0 : i32
    %c0_i32_0 = arith.constant 0 : i32
    return %arg0, %arg1, %c0_i32 : i32, i32, i32
  }
  func.func @transform_4(%arg0: i32, %arg1: i32) -> (i32, i32) {
    %c0_i32 = arith.constant 0 : i32
    %c0_i32_0 = arith.constant 0 : i32
    %c0_i32_1 = arith.constant 0 : i32
    return %c0_i32, %c0_i32_0 : i32, i32
  }
  func.func @transform_5(%arg0: i32, %arg1: i32) -> (i32, i32) {
    %c0_i32 = arith.constant 0 : i32
    %c0_i32_0 = arith.constant 0 : i32
    %c0_i32_1 = arith.constant 0 : i32
    return %c0_i32, %c0_i32_0 : i32, i32
  }
  func.func @transform_6(%arg0: i32, %arg1: i32) -> (i32, i32, i32) {
    %c0_i32 = arith.constant 0 : i32
    %c0_i32_0 = arith.constant 0 : i32
    %c0_i32_1 = arith.constant 0 : i32
    %c0_i32_2 = arith.constant 0 : i32
    return %c0_i32, %c0_i32_0, %c0_i32_1 : i32, i32, i32
  }
  func.func @transform_7(%arg0: i32, %arg1: i32) -> (i32, i32) {
    %c0_i32 = arith.constant 0 : i32
    %c0_i32_0 = arith.constant 0 : i32
    %c0_i32_1 = arith.constant 0 : i32
    return %c0_i32, %c0_i32_0 : i32, i32
  }
  func.func @transform_8(%arg0: i32, %arg1: i32) -> (i32, i32) {
    %c0_i32 = arith.constant 0 : i32
    %c0_i32_0 = arith.constant 0 : i32
    %c0_i32_1 = arith.constant 0 : i32
    return %c0_i32, %c0_i32_0 : i32, i32
  }
  func.func @transform_9(%arg0: i32, %arg1: i32) -> (i32, i32, i32) {
    %c0_i32 = arith.constant 0 : i32
    %c0_i32_0 = arith.constant 0 : i32
    return %arg0, %arg1, %c0_i32 : i32, i32, i32
  }
}

module attributes {stable_mosaic.version = 11 : i64} {
  func.func @_matmul_kernel(%arg0: i32, %arg1: i32, %arg2: i32, %arg3: memref<32x128xbf16, #tpu.memory_space<vmem>>, %arg4: memref<128x128xbf16, #tpu.memory_space<vmem>>, %arg5: memref<32x128xf32, #tpu.memory_space<vmem>>, %arg6: memref<32x128xf32, #tpu.memory_space<vmem>>) attributes {dimension_semantics = [#tpu.dimension_semantics<parallel>, #tpu.dimension_semantics<parallel>, #tpu.dimension_semantics<arbitrary>], iteration_bounds = array<i64: 1, 1, 1>, scalar_prefetch = 0 : i64, scratch_operands = 1 : i64, tpu.core_type = #tpu.core_type<tc>, window_params = [{transform_indices = @transform_0, window_bounds = array<i64: 32, 128>}, {transform_indices = @transform_1, window_bounds = array<i64: 128, 128>}, {transform_indices = @transform_2, window_bounds = array<i64: 32, 128>}]} {
    %c0_i32 = arith.constant 0 : i32
    %0 = arith.cmpi eq, %arg2, %c0_i32 : i32
    %1 = arith.extui %0 : i1 to i32
    %c0_i32_0 = arith.constant 0 : i32
    %2 = arith.cmpi ne, %1, %c0_i32_0 : i32
    scf.if %2 {
      %cst_10 = arith.constant 0.000000e+00 : f32
      %12 = vector.broadcast %cst_10 : f32 to vector<32x128xf32>
      %c0_11 = arith.constant 0 : index
      %c0_12 = arith.constant 0 : index
      %13 = vector.load %arg6[%c0_11, %c0_12] : memref<32x128xf32, #tpu.memory_space<vmem>>, vector<32x128xf32>
      tpu.vector_store %arg6[%c0_11, %c0_12], %12 {strides = array<i32>} : memref<32x128xf32, #tpu.memory_space<vmem>>, vector<32x128xf32>,
    } else {
    }
    %c0 = arith.constant 0 : index
    %c0_1 = arith.constant 0 : index
    %3 = vector.load %arg6[%c0, %c0_1] : memref<32x128xf32, #tpu.memory_space<vmem>>, vector<32x128xf32>
    %c0_2 = arith.constant 0 : index
    %c0_3 = arith.constant 0 : index
    %4 = vector.load %arg3[%c0_2, %c0_3] : memref<32x128xbf16, #tpu.memory_space<vmem>>, vector<32x128xbf16>
    %c0_4 = arith.constant 0 : index
    %c0_5 = arith.constant 0 : index
    %5 = vector.load %arg4[%c0_4, %c0_5] : memref<128x128xbf16, #tpu.memory_space<vmem>>, vector<128x128xbf16>
    %cst = arith.constant dense<0.000000e+00> : vector<32x128xf32>
    %6 = tpu.matmul %4, %5, %cst {dimension_numbers = #tpu.dot_dimension_numbers<[1], [0], [0], [1], [0, 0, 1, 1], [], []>} : vector<32x128xbf16>, vector<128x128xbf16>, vector<32x128xf32> -> vector<32x128xf32>
    %7 = arith.addf %3, %6 : vector<32x128xf32>
    %c0_6 = arith.constant 0 : index
    %c0_7 = arith.constant 0 : index
    %8 = vector.load %arg6[%c0_6, %c0_7] : memref<32x128xf32, #tpu.memory_space<vmem>>, vector<32x128xf32>
    tpu.vector_store %arg6[%c0_6, %c0_7], %7 {strides = array<i32>} : memref<32x128xf32, #tpu.memory_space<vmem>>, vector<32x128xf32>,
    %c0_i32_8 = arith.constant 0 : i32
    %9 = arith.cmpi eq, %arg2, %c0_i32_8 : i32
    %10 = arith.extui %9 : i1 to i32
    %c0_i32_9 = arith.constant 0 : i32
    %11 = arith.cmpi ne, %10, %c0_i32_9 : i32
    scf.if %11 {
      %c0_10 = arith.constant 0 : index
      %c0_11 = arith.constant 0 : index
      %12 = vector.load %arg6[%c0_10, %c0_11] : memref<32x128xf32, #tpu.memory_space<vmem>>, vector<32x128xf32>
      %c0_12 = arith.constant 0 : index
      %c0_13 = arith.constant 0 : index
      %13 = vector.load %arg5[%c0_12, %c0_13] : memref<32x128xf32, #tpu.memory_space<vmem>>, vector<32x128xf32>
      tpu.vector_store %arg5[%c0_12, %c0_13], %12 {strides = array<i32>} : memref<32x128xf32, #tpu.memory_space<vmem>>, vector<32x128xf32>,
    } else {
    }
    return
  }
  func.func @transform_0(%arg0: i32, %arg1: i32, %arg2: i32) -> (i32, i32) {
    %c0_i32 = arith.constant 0 : i32
    return %arg0, %arg2 : i32, i32
  }
  func.func @transform_1(%arg0: i32, %arg1: i32, %arg2: i32) -> (i32, i32) {
    %c0_i32 = arith.constant 0 : i32
    return %arg2, %arg1 : i32, i32
  }
  func.func @transform_2(%arg0: i32, %arg1: i32, %arg2: i32) -> (i32, i32) {
    %c0_i32 = arith.constant 0 : i32
    return %arg0, %arg1 : i32, i32
  }
}

module attributes {stable_mosaic.version = 11 : i64} {
  func.func @_matmul_kernel(%arg0: i32, %arg1: i32, %arg2: i32, %arg3: memref<32x128xbf16, #tpu.memory_space<vmem>>, %arg4: memref<128x512xbf16, #tpu.memory_space<vmem>>, %arg5: memref<32x512xbf16, #tpu.memory_space<vmem>>, %arg6: memref<32x512xf32, #tpu.memory_space<vmem>>) attributes {dimension_semantics = [#tpu.dimension_semantics<parallel>, #tpu.dimension_semantics<parallel>, #tpu.dimension_semantics<arbitrary>], iteration_bounds = array<i64: 1, 1, 1>, scalar_prefetch = 0 : i64, scratch_operands = 1 : i64, tpu.core_type = #tpu.core_type<tc>, window_params = [{transform_indices = @transform_0, window_bounds = array<i64: 32, 128>}, {transform_indices = @transform_1, window_bounds = array<i64: 128, 512>}, {transform_indices = @transform_2, window_bounds = array<i64: 32, 512>}]} {
    %c0_i32 = arith.constant 0 : i32
    %0 = arith.cmpi eq, %arg2, %c0_i32 : i32
    %1 = arith.extui %0 : i1 to i32
    %c0_i32_0 = arith.constant 0 : i32
    %2 = arith.cmpi ne, %1, %c0_i32_0 : i32
    scf.if %2 {
      %cst_10 = arith.constant 0.000000e+00 : f32
      %12 = vector.broadcast %cst_10 : f32 to vector<32x512xf32>
      %c0_11 = arith.constant 0 : index
      %c0_12 = arith.constant 0 : index
      %13 = vector.load %arg6[%c0_11, %c0_12] : memref<32x512xf32, #tpu.memory_space<vmem>>, vector<32x512xf32>
      tpu.vector_store %arg6[%c0_11, %c0_12], %12 {strides = array<i32>} : memref<32x512xf32, #tpu.memory_space<vmem>>, vector<32x512xf32>,
    } else {
    }
    %c0 = arith.constant 0 : index
    %c0_1 = arith.constant 0 : index
    %3 = vector.load %arg6[%c0, %c0_1] : memref<32x512xf32, #tpu.memory_space<vmem>>, vector<32x512xf32>
    %c0_2 = arith.constant 0 : index
    %c0_3 = arith.constant 0 : index
    %4 = vector.load %arg3[%c0_2, %c0_3] : memref<32x128xbf16, #tpu.memory_space<vmem>>, vector<32x128xbf16>
    %c0_4 = arith.constant 0 : index
    %c0_5 = arith.constant 0 : index
    %5 = vector.load %arg4[%c0_4, %c0_5] : memref<128x512xbf16, #tpu.memory_space<vmem>>, vector<128x512xbf16>
    %cst = arith.constant dense<0.000000e+00> : vector<32x512xf32>
    %6 = tpu.matmul %4, %5, %cst {dimension_numbers = #tpu.dot_dimension_numbers<[1], [0], [0], [1], [0, 0, 1, 1], [], []>} : vector<32x128xbf16>, vector<128x512xbf16>, vector<32x512xf32> -> vector<32x512xf32>
    %7 = arith.addf %3, %6 : vector<32x512xf32>
    %c0_6 = arith.constant 0 : index
    %c0_7 = arith.constant 0 : index
    %8 = vector.load %arg6[%c0_6, %c0_7] : memref<32x512xf32, #tpu.memory_space<vmem>>, vector<32x512xf32>
    tpu.vector_store %arg6[%c0_6, %c0_7], %7 {strides = array<i32>} : memref<32x512xf32, #tpu.memory_space<vmem>>, vector<32x512xf32>,
    %c0_i32_8 = arith.constant 0 : i32
    %9 = arith.cmpi eq, %arg2, %c0_i32_8 : i32
    %10 = arith.extui %9 : i1 to i32
    %c0_i32_9 = arith.constant 0 : i32
    %11 = arith.cmpi ne, %10, %c0_i32_9 : i32
    scf.if %11 {
      %c0_10 = arith.constant 0 : index
      %c0_11 = arith.constant 0 : index
      %12 = vector.load %arg6[%c0_10, %c0_11] : memref<32x512xf32, #tpu.memory_space<vmem>>, vector<32x512xf32>
      %13 = arith.truncf %12 : vector<32x512xf32> to vector<32x512xbf16>
      %c0_12 = arith.constant 0 : index
      %c0_13 = arith.constant 0 : index
      %14 = vector.load %arg5[%c0_12, %c0_13] : memref<32x512xbf16, #tpu.memory_space<vmem>>, vector<32x512xbf16>
      tpu.vector_store %arg5[%c0_12, %c0_13], %13 {strides = array<i32>} : memref<32x512xbf16, #tpu.memory_space<vmem>>, vector<32x512xbf16>,
    } else {
    }
    return
  }
  func.func @transform_0(%arg0: i32, %arg1: i32, %arg2: i32) -> (i32, i32) {
    %c0_i32 = arith.constant 0 : i32
    return %arg0, %arg2 : i32, i32
  }
  func.func @transform_1(%arg0: i32, %arg1: i32, %arg2: i32) -> (i32, i32) {
    %c0_i32 = arith.constant 0 : i32
    return %arg2, %arg1 : i32, i32
  }
  func.func @transform_2(%arg0: i32, %arg1: i32, %arg2: i32) -> (i32, i32) {
    %c0_i32 = arith.constant 0 : i32
    return %arg0, %arg1 : i32, i32
  }
}

module attributes {stable_mosaic.version = 11 : i64} {
  func.func @_matmul_kernel(%arg0: i32, %arg1: i32, %arg2: i32, %arg3: memref<32x512xbf16, #tpu.memory_space<vmem>>, %arg4: memref<512x128xbf16, #tpu.memory_space<vmem>>, %arg5: memref<32x128xf32, #tpu.memory_space<vmem>>, %arg6: memref<32x128xf32, #tpu.memory_space<vmem>>) attributes {dimension_semantics = [#tpu.dimension_semantics<parallel>, #tpu.dimension_semantics<parallel>, #tpu.dimension_semantics<arbitrary>], iteration_bounds = array<i64: 1, 1, 1>, scalar_prefetch = 0 : i64, scratch_operands = 1 : i64, tpu.core_type = #tpu.core_type<tc>, window_params = [{transform_indices = @transform_0, window_bounds = array<i64: 32, 512>}, {transform_indices = @transform_1, window_bounds = array<i64: 512, 128>}, {transform_indices = @transform_2, window_bounds = array<i64: 32, 128>}]} {
    %c0_i32 = arith.constant 0 : i32
    %0 = arith.cmpi eq, %arg2, %c0_i32 : i32
    %1 = arith.extui %0 : i1 to i32
    %c0_i32_0 = arith.constant 0 : i32
    %2 = arith.cmpi ne, %1, %c0_i32_0 : i32
    scf.if %2 {
      %cst_10 = arith.constant 0.000000e+00 : f32
      %12 = vector.broadcast %cst_10 : f32 to vector<32x128xf32>
      %c0_11 = arith.constant 0 : index
      %c0_12 = arith.constant 0 : index
      %13 = vector.load %arg6[%c0_11, %c0_12] : memref<32x128xf32, #tpu.memory_space<vmem>>, vector<32x128xf32>
      tpu.vector_store %arg6[%c0_11, %c0_12], %12 {strides = array<i32>} : memref<32x128xf32, #tpu.memory_space<vmem>>, vector<32x128xf32>,
    } else {
    }
    %c0 = arith.constant 0 : index
    %c0_1 = arith.constant 0 : index
    %3 = vector.load %arg6[%c0, %c0_1] : memref<32x128xf32, #tpu.memory_space<vmem>>, vector<32x128xf32>
    %c0_2 = arith.constant 0 : index
    %c0_3 = arith.constant 0 : index
    %4 = vector.load %arg3[%c0_2, %c0_3] : memref<32x512xbf16, #tpu.memory_space<vmem>>, vector<32x512xbf16>
    %c0_4 = arith.constant 0 : index
    %c0_5 = arith.constant 0 : index
    %5 = vector.load %arg4[%c0_4, %c0_5] : memref<512x128xbf16, #tpu.memory_space<vmem>>, vector<512x128xbf16>
    %cst = arith.constant dense<0.000000e+00> : vector<32x128xf32>
    %6 = tpu.matmul %4, %5, %cst {dimension_numbers = #tpu.dot_dimension_numbers<[1], [0], [0], [1], [0, 0, 1, 1], [], []>} : vector<32x512xbf16>, vector<512x128xbf16>, vector<32x128xf32> -> vector<32x128xf32>
    %7 = arith.addf %3, %6 : vector<32x128xf32>
    %c0_6 = arith.constant 0 : index
    %c0_7 = arith.constant 0 : index
    %8 = vector.load %arg6[%c0_6, %c0_7] : memref<32x128xf32, #tpu.memory_space<vmem>>, vector<32x128xf32>
    tpu.vector_store %arg6[%c0_6, %c0_7], %7 {strides = array<i32>} : memref<32x128xf32, #tpu.memory_space<vmem>>, vector<32x128xf32>,
    %c0_i32_8 = arith.constant 0 : i32
    %9 = arith.cmpi eq, %arg2, %c0_i32_8 : i32
    %10 = arith.extui %9 : i1 to i32
    %c0_i32_9 = arith.constant 0 : i32
    %11 = arith.cmpi ne, %10, %c0_i32_9 : i32
    scf.if %11 {
      %c0_10 = arith.constant 0 : index
      %c0_11 = arith.constant 0 : index
      %12 = vector.load %arg6[%c0_10, %c0_11] : memref<32x128xf32, #tpu.memory_space<vmem>>, vector<32x128xf32>
      %c0_12 = arith.constant 0 : index
      %c0_13 = arith.constant 0 : index
      %13 = vector.load %arg5[%c0_12, %c0_13] : memref<32x128xf32, #tpu.memory_space<vmem>>, vector<32x128xf32>
      tpu.vector_store %arg5[%c0_12, %c0_13], %12 {strides = array<i32>} : memref<32x128xf32, #tpu.memory_space<vmem>>, vector<32x128xf32>,
    } else {
    }
    return
  }
  func.func @transform_0(%arg0: i32, %arg1: i32, %arg2: i32) -> (i32, i32) {
    %c0_i32 = arith.constant 0 : i32
    return %arg0, %arg2 : i32, i32
  }
  func.func @transform_1(%arg0: i32, %arg1: i32, %arg2: i32) -> (i32, i32) {
    %c0_i32 = arith.constant 0 : i32
    return %arg2, %arg1 : i32, i32
  }
  func.func @transform_2(%arg0: i32, %arg1: i32, %arg2: i32) -> (i32, i32) {
    %c0_i32 = arith.constant 0 : i32
    return %arg0, %arg1 : i32, i32
  }
}

module attributes {stable_mosaic.version = 11 : i64} {
  func.func @_matmul_kernel(%arg0: i32, %arg1: i32, %arg2: i32, %arg3: memref<32x128xbf16, #tpu.memory_space<vmem>>, %arg4: memref<128x256xbf16, #tpu.memory_space<vmem>>, %arg5: memref<32x256xf32, #tpu.memory_space<vmem>>, %arg6: memref<32x256xf32, #tpu.memory_space<vmem>>) attributes {dimension_semantics = [#tpu.dimension_semantics<parallel>, #tpu.dimension_semantics<parallel>, #tpu.dimension_semantics<arbitrary>], iteration_bounds = array<i64: 1, 1, 1>, scalar_prefetch = 0 : i64, scratch_operands = 1 : i64, tpu.core_type = #tpu.core_type<tc>, window_params = [{transform_indices = @transform_0, window_bounds = array<i64: 32, 128>}, {transform_indices = @transform_1, window_bounds = array<i64: 128, 256>}, {transform_indices = @transform_2, window_bounds = array<i64: 32, 256>}]} {
    %c0_i32 = arith.constant 0 : i32
    %0 = arith.cmpi eq, %arg2, %c0_i32 : i32
    %1 = arith.extui %0 : i1 to i32
    %c0_i32_0 = arith.constant 0 : i32
    %2 = arith.cmpi ne, %1, %c0_i32_0 : i32
    scf.if %2 {
      %cst_10 = arith.constant 0.000000e+00 : f32
      %12 = vector.broadcast %cst_10 : f32 to vector<32x256xf32>
      %c0_11 = arith.constant 0 : index
      %c0_12 = arith.constant 0 : index
      %13 = vector.load %arg6[%c0_11, %c0_12] : memref<32x256xf32, #tpu.memory_space<vmem>>, vector<32x256xf32>
      tpu.vector_store %arg6[%c0_11, %c0_12], %12 {strides = array<i32>} : memref<32x256xf32, #tpu.memory_space<vmem>>, vector<32x256xf32>,
    } else {
    }
    %c0 = arith.constant 0 : index
    %c0_1 = arith.constant 0 : index
    %3 = vector.load %arg6[%c0, %c0_1] : memref<32x256xf32, #tpu.memory_space<vmem>>, vector<32x256xf32>
    %c0_2 = arith.constant 0 : index
    %c0_3 = arith.constant 0 : index
    %4 = vector.load %arg3[%c0_2, %c0_3] : memref<32x128xbf16, #tpu.memory_space<vmem>>, vector<32x128xbf16>
    %c0_4 = arith.constant 0 : index
    %c0_5 = arith.constant 0 : index
    %5 = vector.load %arg4[%c0_4, %c0_5] : memref<128x256xbf16, #tpu.memory_space<vmem>>, vector<128x256xbf16>
    %cst = arith.constant dense<0.000000e+00> : vector<32x256xf32>
    %6 = tpu.matmul %4, %5, %cst {dimension_numbers = #tpu.dot_dimension_numbers<[1], [0], [0], [1], [0, 0, 1, 1], [], []>} : vector<32x128xbf16>, vector<128x256xbf16>, vector<32x256xf32> -> vector<32x256xf32>
    %7 = arith.addf %3, %6 : vector<32x256xf32>
    %c0_6 = arith.constant 0 : index
    %c0_7 = arith.constant 0 : index
    %8 = vector.load %arg6[%c0_6, %c0_7] : memref<32x256xf32, #tpu.memory_space<vmem>>, vector<32x256xf32>
    tpu.vector_store %arg6[%c0_6, %c0_7], %7 {strides = array<i32>} : memref<32x256xf32, #tpu.memory_space<vmem>>, vector<32x256xf32>,
    %c0_i32_8 = arith.constant 0 : i32
    %9 = arith.cmpi eq, %arg2, %c0_i32_8 : i32
    %10 = arith.extui %9 : i1 to i32
    %c0_i32_9 = arith.constant 0 : i32
    %11 = arith.cmpi ne, %10, %c0_i32_9 : i32
    scf.if %11 {
      %c0_10 = arith.constant 0 : index
      %c0_11 = arith.constant 0 : index
      %12 = vector.load %arg6[%c0_10, %c0_11] : memref<32x256xf32, #tpu.memory_space<vmem>>, vector<32x256xf32>
      %c0_12 = arith.constant 0 : index
      %c0_13 = arith.constant 0 : index
      %13 = vector.load %arg5[%c0_12, %c0_13] : memref<32x256xf32, #tpu.memory_space<vmem>>, vector<32x256xf32>
      tpu.vector_store %arg5[%c0_12, %c0_13], %12 {strides = array<i32>} : memref<32x256xf32, #tpu.memory_space<vmem>>, vector<32x256xf32>,
    } else {
    }
    return
  }
  func.func @transform_0(%arg0: i32, %arg1: i32, %arg2: i32) -> (i32, i32) {
    %c0_i32 = arith.constant 0 : i32
    return %arg0, %arg2 : i32, i32
  }
  func.func @transform_1(%arg0: i32, %arg1: i32, %arg2: i32) -> (i32, i32) {
    %c0_i32 = arith.constant 0 : i32
    return %arg2, %arg1 : i32, i32
  }
  func.func @transform_2(%arg0: i32, %arg1: i32, %arg2: i32) -> (i32, i32) {
    %c0_i32 = arith.constant 0 : i32
    return %arg0, %arg1 : i32, i32
  }
}

</mosaic_0001>

<llo_original>
// kernel: llm_forward.18
$region0: #{llm_forward.18}
  #allocation0 [shape = 'u32[]', space=smem, size = 0x4, offset = 0x4, fixed_abs, tag = 'smem constant byte address 0x4 - core index']
  #allocation1 [shape = 'u32[144,128]{1,0:T(1,128)}', space=vmem, size = 0x12000, scoped, tag = 'internal scratch']
  %s0 = inlined_call_operand.vmem [shape: f32[32,128], index: 0, kind: input, shape index: {}]
  %s1 = inlined_call_operand.vmem [shape: f32[1,128], index: 1, kind: input, shape index: {}]
  %s2 = inlined_call_operand.vmem [shape: f32[1,128], index: 2, kind: input, shape index: {}]
  %s3 = inlined_call_operand.vmem [shape: bf16[32,128], index: 3, kind: output, shape index: {}]
  %s4 = sld [smem:[#allocation0]]
  $region22: #{llm_forward.18} parent=0
    _
  %s6 = ssub.s32 1, %s4
  %s7 = scalar_select 0, %s6, %s4
  // Predicated region
  $region2: #{llm_forward.18} parent=0 // pred_check
    _
  $region3: #{llm_forward.18} parent=0 // pred_check_branch
    %9 = sbr.rel (0) target = $region5
  $region4: #{llm_forward.18} parent=0 // pred_region
    _
  $region5: #{llm_forward.18} parent=0 // pred_fallthru
    _
  // Predicated region
  $region6: #{llm_forward.18} parent=0 // pred_check
    _
  $region7: #{llm_forward.18} parent=0 // pred_check_branch
    %11 = sbr.rel (0) target = $region9
  $region8: #{llm_forward.18} parent=0 // pred_region
    _
  $region9: #{llm_forward.18} parent=0 // pred_fallthru
    _
  // Predicated region
  $region10: #{llm_forward.18} parent=0 // pred_check
    _
  $region11: #{llm_forward.18} parent=0 // pred_check_branch
    %13 = sbr.rel (0) target = $region13
  $region12: #{llm_forward.18} parent=0 // pred_region
    _
  $region13: #{llm_forward.18} parent=0 // pred_fallthru
    _
  %v14 = vld [vmem:[%s0] sm:$0xff]
  %v15 = vld [vmem:[%s0 + $0x8] sm:$0xff]
  %v16 = vld [vmem:[%s0 + $0x10] sm:$0xff]
  %v17 = vld [vmem:[%s0 + $0x18] sm:$0xff]
  %18 = vadd.xlane.f32.xlu0 %v14
  %v19 = vpop.xlane.xlu0 %18
  %20 = vadd.xlane.f32.xlu0 %v15
  %v21 = vpop.xlane.xlu0 %20
  %22 = vadd.xlane.f32.xlu0 %v16
  %v23 = vpop.xlane.xlu0 %22
  %24 = vadd.xlane.f32.xlu0 %v17
  %v25 = vpop.xlane.xlu0 %24
  %v26 = vrcp.pop 128.0
  %v27 = vmul.f32 %v19, %v26
  %v28 = vmul.f32 %v21, %v26
  %v29 = vmul.f32 %v23, %v26
  %v30 = vmul.f32 %v25, %v26
  %v31 = vsub.f32 %v14, %v27
  %v32 = vsub.f32 %v15, %v28
  %v33 = vsub.f32 %v16, %v29
  %v34 = vsub.f32 %v17, %v30
  %v35 = vmul.f32 %v31, %v31
  %v36 = vmul.f32 %v32, %v32
  %v37 = vmul.f32 %v33, %v33
  %v38 = vmul.f32 %v34, %v34
  %39 = vadd.xlane.f32.xlu0 %v35
  %v40 = vpop.xlane.xlu0 %39
  %41 = vadd.xlane.f32.xlu0 %v36
  %v42 = vpop.xlane.xlu0 %41
  %43 = vadd.xlane.f32.xlu0 %v37
  %v44 = vpop.xlane.xlu0 %43
  %45 = vadd.xlane.f32.xlu0 %v38
  %v46 = vpop.xlane.xlu0 %45
  %v47 = vmul.f32 %v40, %v26
  %v48 = vmul.f32 %v42, %v26
  %v49 = vmul.f32 %v44, %v26
  %v50 = vmul.f32 %v46, %v26
  %v51 = vadd.f32 %v47, 1e-05
  %v52 = vadd.f32 %v48, 1e-05
  %v53 = vadd.f32 %v49, 1e-05
  %v54 = vadd.f32 %v50, 1e-05
  %v55 = vrsqrt.pop %v51
  %v56 = vrsqrt.pop %v52
  %v57 = vrsqrt.pop %v53
  %v58 = vrsqrt.pop %v54
  %v59 = vmul.f32 %v31, %v55
  %v60 = vmul.f32 %v32, %v56
  %v61 = vmul.f32 %v33, %v57
  %v62 = vmul.f32 %v34, %v58
  %v63 = vld [vmem:[%s1] sm:$0x1]
  %v65 = vlaneseq
  %v66 = vshrl.u32 %v65, 7
  %v67 = vsub.s32 0, %v66
  %v68 = vrot.slane %v63, %v67
  %v70 = vmul.f32 %v59, %v68
  %v71 = vmul.f32 %v60, %v68
  %v72 = vmul.f32 %v61, %v68
  %v73 = vmul.f32 %v62, %v68
  %v74 = vld [vmem:[%s2] sm:$0x1]
  %v76 = vlaneseq
  %v77 = vshrl.u32 %v76, 7
  %v78 = vsub.s32 0, %v77
  %v79 = vrot.slane %v74, %v78
  %v81 = vadd.f32 %v70, %v79
  %v82 = vadd.f32 %v71, %v79
  %v83 = vadd.f32 %v72, %v79
  %v84 = vadd.f32 %v73, %v79
  %v85 = vpack.c.bf16 %v82, %v81
  %v86 = vpack.c.bf16 %v84, %v83
  %v89 = vunpack.c.l.b16 %v85
  %v90 = vunpack.c.h.b16 %v85
  %v91 = vunpack.c.l.b16 %v86
  %v92 = vunpack.c.h.b16 %v86
  %v93 = vpack.c.b16 %v89, %v89
  %v94 = vpack.c.b16 %v90, %v90
  %v95 = vpack.c.b16 %v91, %v91
  %v96 = vpack.c.b16 %v92, %v92
  %101 = vst [vmem:[%s3] sm:$0xf] %v93
  %102 = vst [vmem:[%s3 + $0x4] sm:$0xf] %v94
  %103 = vst [vmem:[%s3 + $0x8] sm:$0xf] %v95
  %104 = vst [vmem:[%s3 + $0xc] sm:$0xf] %v96
  // Predicated region
  $region14: #{llm_forward.18} parent=0 // pred_check
    _
  $region15: #{llm_forward.18} parent=0 // pred_check_branch
    %106 = sbr.rel (0) target = $region17
  $region16: #{llm_forward.18} parent=0 // pred_region
    _
  $region17: #{llm_forward.18} parent=0 // pred_fallthru
    _
  // Predicated region
  $region18: #{llm_forward.18} parent=0 // pred_check
    _
  $region19: #{llm_forward.18} parent=0 // pred_check_branch
    %108 = sbr.rel (0) target = $region21
  $region20: #{llm_forward.18} parent=0 // pred_region
    _
  $region21: #{llm_forward.18} parent=0 // pred_fallthru
    _

// kernel: llm_forward.17
$region0: #{llm_forward.17}
  #allocation0 [shape = 'u32[]', space=smem, size = 0x4, offset = 0x4, fixed_abs, tag = 'smem constant byte address 0x4 - core index']
  #allocation1 [shape = 'u32[144,128]{1,0:T(1,128)}', space=vmem, size = 0x12000, scoped, tag = 'internal scratch']
  %s0 = inlined_call_operand.vmem [shape: f32[32,128], index: 0, kind: input, shape index: {}]
  %s1 = inlined_call_operand.vmem [shape: f32[1,128], index: 1, kind: input, shape index: {}]
  %s2 = inlined_call_operand.vmem [shape: f32[1,128], index: 2, kind: input, shape index: {}]
  %s3 = inlined_call_operand.vmem [shape: f32[32,128], index: 3, kind: output, shape index: {}]
  %s4 = sld [smem:[#allocation0]]
  $region22: #{llm_forward.17} parent=0
    _
  %s6 = ssub.s32 1, %s4
  %s7 = scalar_select 0, %s6, %s4
  // Predicated region
  $region2: #{llm_forward.17} parent=0 // pred_check
    _
  $region3: #{llm_forward.17} parent=0 // pred_check_branch
    %9 = sbr.rel (0) target = $region5
  $region4: #{llm_forward.17} parent=0 // pred_region
    _
  $region5: #{llm_forward.17} parent=0 // pred_fallthru
    _
  // Predicated region
  $region6: #{llm_forward.17} parent=0 // pred_check
    _
  $region7: #{llm_forward.17} parent=0 // pred_check_branch
    %11 = sbr.rel (0) target = $region9
  $region8: #{llm_forward.17} parent=0 // pred_region
    _
  $region9: #{llm_forward.17} parent=0 // pred_fallthru
    _
  // Predicated region
  $region10: #{llm_forward.17} parent=0 // pred_check
    _
  $region11: #{llm_forward.17} parent=0 // pred_check_branch
    %13 = sbr.rel (0) target = $region13
  $region12: #{llm_forward.17} parent=0 // pred_region
    _
  $region13: #{llm_forward.17} parent=0 // pred_fallthru
    _
  %v14 = vld [vmem:[%s0] sm:$0xff]
  %v15 = vld [vmem:[%s0 + $0x8] sm:$0xff]
  %v16 = vld [vmem:[%s0 + $0x10] sm:$0xff]
  %v17 = vld [vmem:[%s0 + $0x18] sm:$0xff]
  %18 = vadd.xlane.f32.xlu0 %v14
  %v19 = vpop.xlane.xlu0 %18
  %20 = vadd.xlane.f32.xlu0 %v15
  %v21 = vpop.xlane.xlu0 %20
  %22 = vadd.xlane.f32.xlu0 %v16
  %v23 = vpop.xlane.xlu0 %22
  %24 = vadd.xlane.f32.xlu0 %v17
  %v25 = vpop.xlane.xlu0 %24
  %v26 = vrcp.pop 128.0
  %v27 = vmul.f32 %v19, %v26
  %v28 = vmul.f32 %v21, %v26
  %v29 = vmul.f32 %v23, %v26
  %v30 = vmul.f32 %v25, %v26
  %v31 = vsub.f32 %v14, %v27
  %v32 = vsub.f32 %v15, %v28
  %v33 = vsub.f32 %v16, %v29
  %v34 = vsub.f32 %v17, %v30
  %v35 = vmul.f32 %v31, %v31
  %v36 = vmul.f32 %v32, %v32
  %v37 = vmul.f32 %v33, %v33
  %v38 = vmul.f32 %v34, %v34
  %39 = vadd.xlane.f32.xlu0 %v35
  %v40 = vpop.xlane.xlu0 %39
  %41 = vadd.xlane.f32.xlu0 %v36
  %v42 = vpop.xlane.xlu0 %41
  %43 = vadd.xlane.f32.xlu0 %v37
  %v44 = vpop.xlane.xlu0 %43
  %45 = vadd.xlane.f32.xlu0 %v38
  %v46 = vpop.xlane.xlu0 %45
  %v47 = vmul.f32 %v40, %v26
  %v48 = vmul.f32 %v42, %v26
  %v49 = vmul.f32 %v44, %v26
  %v50 = vmul.f32 %v46, %v26
  %v51 = vadd.f32 %v47, 1e-05
  %v52 = vadd.f32 %v48, 1e-05
  %v53 = vadd.f32 %v49, 1e-05
  %v54 = vadd.f32 %v50, 1e-05
  %v55 = vrsqrt.pop %v51
  %v56 = vrsqrt.pop %v52
  %v57 = vrsqrt.pop %v53
  %v58 = vrsqrt.pop %v54
  %v59 = vmul.f32 %v31, %v55
  %v60 = vmul.f32 %v32, %v56
  %v61 = vmul.f32 %v33, %v57
  %v62 = vmul.f32 %v34, %v58
  %v63 = vld [vmem:[%s1] sm:$0x1]
  %v65 = vlaneseq
  %v66 = vshrl.u32 %v65, 7
  %v67 = vsub.s32 0, %v66
  %v68 = vrot.slane %v63, %v67
  %v70 = vmul.f32 %v59, %v68
  %v71 = vmul.f32 %v60, %v68
  %v72 = vmul.f32 %v61, %v68
  %v73 = vmul.f32 %v62, %v68
  %v74 = vld [vmem:[%s2] sm:$0x1]
  %v76 = vlaneseq
  %v77 = vshrl.u32 %v76, 7
  %v78 = vsub.s32 0, %v77
  %v79 = vrot.slane %v74, %v78
  %v81 = vadd.f32 %v70, %v79
  %v82 = vadd.f32 %v71, %v79
  %v83 = vadd.f32 %v72, %v79
  %v84 = vadd.f32 %v73, %v79
  %85 = vst [vmem:[%s3] sm:$0xff] %v81
  %86 = vst [vmem:[%s3 + $0x8] sm:$0xff] %v82
  %87 = vst [vmem:[%s3 + $0x10] sm:$0xff] %v83
  %88 = vst [vmem:[%s3 + $0x18] sm:$0xff] %v84
  // Predicated region
  $region14: #{llm_forward.17} parent=0 // pred_check
    _
  $region15: #{llm_forward.17} parent=0 // pred_check_branch
    %90 = sbr.rel (0) target = $region17
  $region16: #{llm_forward.17} parent=0 // pred_region
    _
  $region17: #{llm_forward.17} parent=0 // pred_fallthru
    _
  // Predicated region
  $region18: #{llm_forward.17} parent=0 // pred_check
    _
  $region19: #{llm_forward.17} parent=0 // pred_check_branch
    %92 = sbr.rel (0) target = $region21
  $region20: #{llm_forward.17} parent=0 // pred_region
    _
  $region21: #{llm_forward.17} parent=0 // pred_fallthru
    _

// kernel: llm_forward.19
$region0: #{llm_forward.19}
  #allocation0 [shape = 'u32[]', space=smem, size = 0x4, offset = 0x4, fixed_abs, tag = 'smem constant byte address 0x4 - core index']
  #allocation1 [shape = 'u32[144,128]{1,0:T(1,128)}', space=vmem, size = 0x12000, scoped, tag = 'internal scratch']
  #allocation2 [shape = 'f32[32,512]{1,0:T(8,128)}', space=vmem, size = 0x10000, scoped, tag = 'scratch operand']
  %s0 = inlined_call_operand.vmem [shape: bf16[32,128], index: 0, kind: input, shape index: {}]
  %s1 = inlined_call_operand.vmem [shape: bf16[32,128], index: 1, kind: input, shape index: {}]
  %s2 = inlined_call_operand.vmem [shape: f32[4,128], index: 2, kind: input, shape index: {}]
  %s3 = inlined_call_operand.vmem [shape: bf16[128,512], index: 3, kind: input, shape index: {}]
  %s4 = inlined_call_operand.vmem [shape: f32[1,128], index: 4, kind: input, shape index: {}]
  %s5 = inlined_call_operand.vmem [shape: bf16[32,128], index: 5, kind: output, shape index: {0}]
  %s6 = inlined_call_operand.vmem [shape: bf16[32,128], index: 6, kind: output, shape index: {1}]
  %s7 = inlined_call_operand.vmem [shape: bf16[32,128], index: 7, kind: output, shape index: {2}]
  %s8 = inlined_call_operand.vmem [shape: bf16[32,128], index: 8, kind: output, shape index: {3}]
  %9 = xla_tuple %s5, %s6, %s7, %s8
  %s10 = sld [smem:[#allocation0]]
  $region62: #{llm_forward.19} parent=0
    _
  %s12 = ssub.s32 1, %s10
  %s13 = scalar_select 0, %s12, %s10
  // Predicated region
  $region2: #{llm_forward.19} parent=0 // pred_check
    _
  $region3: #{llm_forward.19} parent=0 // pred_check_branch
    %15 = sbr.rel (0) target = $region5
  $region4: #{llm_forward.19} parent=0 // pred_region
    _
  $region5: #{llm_forward.19} parent=0 // pred_fallthru
    _
  // Predicated region
  $region6: #{llm_forward.19} parent=0 // pred_check
    _
  $region7: #{llm_forward.19} parent=0 // pred_check_branch
    %17 = sbr.rel (0) target = $region9
  $region8: #{llm_forward.19} parent=0 // pred_region
    _
  $region9: #{llm_forward.19} parent=0 // pred_fallthru
    _
  // Predicated region
  $region10: #{llm_forward.19} parent=0 // pred_check
    _
  $region11: #{llm_forward.19} parent=0 // pred_check_branch
    %19 = sbr.rel (0) target = $region13
  $region12: #{llm_forward.19} parent=0 // pred_region
    _
  $region13: #{llm_forward.19} parent=0 // pred_fallthru
    _
  // Predicated region
  $region14: #{llm_forward.19} parent=0 // pred_check
    _
  $region15: #{llm_forward.19} parent=0 // pred_check_branch
    %21 = sbr.rel (0) target = $region17
  $region16: #{llm_forward.19} parent=0 // pred_region
    _
  $region17: #{llm_forward.19} parent=0 // pred_fallthru
    _
  // Predicated region
  $region18: #{llm_forward.19} parent=0 // pred_check
    _
  $region19: #{llm_forward.19} parent=0 // pred_check_branch
    %23 = sbr.rel (0) target = $region21
  $region20: #{llm_forward.19} parent=0 // pred_region
    _
  $region21: #{llm_forward.19} parent=0 // pred_fallthru
    _
  %p25 = scmp.eq.s32.totalorder 0, 0
  // Predicated region
  $region22: #{llm_forward.19} parent=0 // pred_check
    %p26 = pneg %p25
  $region23: #{llm_forward.19} parent=0 // pred_check_branch
    %28 = sbr.rel (%p26) target = $region25
  $region24: #{llm_forward.19} parent=0 // pred_region
    %29 = vst [vmem:[#allocation2] sm:$0xff] 0.0
    %30 = vst [vmem:[#allocation2 + $0x8] sm:$0xff] 0.0
    %31 = vst [vmem:[#allocation2 + $0x10] sm:$0xff] 0.0
    %32 = vst [vmem:[#allocation2 + $0x18] sm:$0xff] 0.0
    %33 = vst [vmem:[#allocation2 + $0x20] sm:$0xff] 0.0
    %34 = vst [vmem:[#allocation2 + $0x28] sm:$0xff] 0.0
    %35 = vst [vmem:[#allocation2 + $0x30] sm:$0xff] 0.0
    %36 = vst [vmem:[#allocation2 + $0x38] sm:$0xff] 0.0
    %37 = vst [vmem:[#allocation2 + $0x40] sm:$0xff] 0.0
    %38 = vst [vmem:[#allocation2 + $0x48] sm:$0xff] 0.0
    %39 = vst [vmem:[#allocation2 + $0x50] sm:$0xff] 0.0
    %40 = vst [vmem:[#allocation2 + $0x58] sm:$0xff] 0.0
    %41 = vst [vmem:[#allocation2 + $0x60] sm:$0xff] 0.0
    %42 = vst [vmem:[#allocation2 + $0x68] sm:$0xff] 0.0
    %43 = vst [vmem:[#allocation2 + $0x70] sm:$0xff] 0.0
    %44 = vst [vmem:[#allocation2 + $0x78] sm:$0xff] 0.0
  $region25: #{llm_forward.19} parent=0 // pred_fallthru
    _
  %v45 = vld [vmem:[%s0] sm:$0xf]
  %v46 = vld [vmem:[%s0 + $0x4] sm:$0xf]
  %v47 = vld [vmem:[%s0 + $0x8] sm:$0xf]
  %v48 = vld [vmem:[%s0 + $0xc] sm:$0xf]
  %v49 = vunpack.c.l.bf16 %v45
  %v50 = vunpack.c.l.bf16 %v46
  %v51 = vunpack.c.l.bf16 %v47
  %v52 = vunpack.c.l.bf16 %v48
  %v53 = vld [vmem:[%s1] sm:$0xf]
  %v54 = vld [vmem:[%s1 + $0x4] sm:$0xf]
  %v55 = vld [vmem:[%s1 + $0x8] sm:$0xf]
  %v56 = vld [vmem:[%s1 + $0xc] sm:$0xf]
  %v57 = vunpack.c.l.bf16 %v53
  %v58 = vunpack.c.l.bf16 %v54
  %v59 = vunpack.c.l.bf16 %v55
  %v60 = vunpack.c.l.bf16 %v56
  %v61 = vld [vmem:[%s2] sm:$0x1]
  %v62 = vlaneseq
  %v63 = vshrl.u32 %v62, 7
  %v64 = vsub.s32 0, %v63
  %v65 = vrot.slane %v61, %v64
  %v66 = vmul.f32 %v49, %v65
  %v67 = vmul.f32 %v50, %v65
  %v68 = vmul.f32 %v51, %v65
  %v69 = vmul.f32 %v52, %v65
  %v70 = vsub.f32 1.0, %v61
  %v71 = vlaneseq
  %v72 = vshrl.u32 %v71, 7
  %v73 = vsub.s32 0, %v72
  %v74 = vrot.slane %v70, %v73
  %v75 = vmul.f32 %v57, %v74
  %v76 = vmul.f32 %v58, %v74
  %v77 = vmul.f32 %v59, %v74
  %v78 = vmul.f32 %v60, %v74
  %v79 = vadd.f32 %v66, %v75
  %v80 = vadd.f32 %v67, %v76
  %v81 = vadd.f32 %v68, %v77
  %v82 = vadd.f32 %v69, %v78
  %v83 = vpack.c.bf16 %v80, %v79
  %v84 = vpack.c.bf16 %v82, %v81
  %v85 = vld [vmem:[#allocation2] sm:$0xff]
  %v86 = vld [vmem:[#allocation2 + $0x20] sm:$0xff]
  %v87 = vld [vmem:[#allocation2 + $0x40] sm:$0xff]
  %v88 = vld [vmem:[#allocation2 + $0x60] sm:$0xff]
  %v89 = vld [vmem:[%s3] sm:$0xf]
  %v90 = vld [vmem:[%s3 + $0x10] sm:$0xf]
  %v91 = vld [vmem:[%s3 + $0x20] sm:$0xf]
  %v92 = vld [vmem:[%s3 + $0x30] sm:$0xf]
  %v93 = vld [vmem:[%s3 + $0x40] sm:$0xf]
  %v94 = vld [vmem:[%s3 + $0x50] sm:$0xf]
  %v95 = vld [vmem:[%s3 + $0x60] sm:$0xf]
  %v96 = vld [vmem:[%s3 + $0x70] sm:$0xf]
  %v97 = vld [vmem:[%s3 + $0x80] sm:$0xf]
  %v98 = vld [vmem:[%s3 + $0x90] sm:$0xf]
  %v99 = vld [vmem:[%s3 + $0xa0] sm:$0xf]
  %v100 = vld [vmem:[%s3 + $0xb0] sm:$0xf]
  %v101 = vld [vmem:[%s3 + $0xc0] sm:$0xf]
  %v102 = vld [vmem:[%s3 + $0xd0] sm:$0xf]
  %v103 = vld [vmem:[%s3 + $0xe0] sm:$0xf]
  %v104 = vld [vmem:[%s3 + $0xf0] sm:$0xf]
  %v121 = vunpack.c.l.b16 %v89
  %v122 = vunpack.c.l.b16 %v90
  %v123 = vunpack.c.l.b16 %v91
  %v124 = vunpack.c.l.b16 %v92
  %v125 = vunpack.c.l.b16 %v93
  %v126 = vunpack.c.l.b16 %v94
  %v127 = vunpack.c.l.b16 %v95
  %v128 = vunpack.c.l.b16 %v96
  %v129 = vunpack.c.l.b16 %v97
  %v130 = vunpack.c.l.b16 %v98
  %v131 = vunpack.c.l.b16 %v99
  %v132 = vunpack.c.l.b16 %v100
  %v133 = vunpack.c.l.b16 %v101
  %v134 = vunpack.c.l.b16 %v102
  %v135 = vunpack.c.l.b16 %v103
  %v136 = vunpack.c.l.b16 %v104
  %v137 = vpack.c.b16 %v122, %v121
  %v138 = vpack.c.b16 %v124, %v123
  %v139 = vpack.c.b16 %v126, %v125
  %v140 = vpack.c.b16 %v128, %v127
  %v141 = vpack.c.b16 %v130, %v129
  %v142 = vpack.c.b16 %v132, %v131
  %v143 = vpack.c.b16 %v134, %v133
  %v144 = vpack.c.b16 %v136, %v135
  %153 = vmatprep.subr.bf16.mxu0 0
  %154 = vmatpush1.bf16.msra.mxu0 %v137
  %155 = vmatprep.subr.bf16.mxu0 0
  %156 = vmatpush1.bf16.msra.mxu0 %v138
  %157 = vmatprep.subr.bf16.mxu0 0
  %158 = vmatpush1.bf16.msra.mxu0 %v139
  %159 = vmatprep.subr.bf16.mxu0 0
  %160 = vmatpush1.bf16.msra.mxu0 %v140
  %161 = vmatprep.subr.bf16.mxu0 0
  %162 = vmatpush1.bf16.msra.mxu0 %v141
  %163 = vmatprep.subr.bf16.mxu0 0
  %164 = vmatpush1.bf16.msra.mxu0 %v142
  %165 = vmatprep.subr.bf16.mxu0 0
  %166 = vmatpush1.bf16.msra.mxu0 %v143
  %167 = vmatprep.subr.bf16.mxu0 0
  %168 = vmatpush1.bf16.msra.mxu0 %v144
  %169 = vmatprep.subr.bf16.mxu0 0
  %170 = vmatpush1.bf16.msra.mxu0 0
  %171 = vmatprep.subr.bf16.mxu0 0
  %172 = vmatpush1.bf16.msra.mxu0 0
  %173 = vmatprep.subr.bf16.mxu0 0
  %174 = vmatpush1.bf16.msra.mxu0 0
  %175 = vmatprep.subr.bf16.mxu0 0
  %176 = vmatpush1.bf16.msra.mxu0 0
  %177 = vmatprep.subr.bf16.mxu0 0
  %178 = vmatpush1.bf16.msra.mxu0 0
  %179 = vmatprep.subr.bf16.mxu0 0
  %180 = vmatpush1.bf16.msra.mxu0 0
  %181 = vmatprep.subr.bf16.mxu0 0
  %182 = vmatpush1.bf16.msra.mxu0 0
  %183 = vmatprep.subr.bf16.mxu0 0
  %184 = vmatpush1.bf16.msra.mxu0 0
  %185 = vmatprep.mubr.bf16.mxu0 0
  %186 = vmatmul.mubr.bf16.gmra.mrb[0].mxu0 %v83
  %v187 = vpop.f32.mrb[0].mxu0
  %v188 = vadd.f32 0.0, %v187
  %v189 = vpop.f32.mrb[0].mxu0
  %v190 = vpop.f32.mrb[0].mxu0
  %v191 = vadd.f32 0.0, %v190
  %v192 = vpop.f32.mrb[0].mxu0
  %193 = vmatprep.mubr.bf16.mxu0 0
  %194 = vmatmul.mubr.bf16.gmra.mrb[0].mxu0 %v84
  %v195 = vpop.f32.mrb[0].mxu0
  %v196 = vadd.f32 0.0, %v195
  %v197 = vpop.f32.mrb[0].mxu0
  %v198 = vpop.f32.mrb[0].mxu0
  %v199 = vadd.f32 0.0, %v198
  %v200 = vpop.f32.mrb[0].mxu0
  %201 = vdwg.mxu0
  %v202 = vadd.f32 %v85, %v188
  %v203 = vadd.f32 %v86, %v191
  %v204 = vadd.f32 %v87, %v196
  %v205 = vadd.f32 %v88, %v199
  %206 = vst [vmem:[#allocation2] sm:$0xff] %v202
  %207 = vst [vmem:[#allocation2 + $0x20] sm:$0xff] %v203
  %208 = vst [vmem:[#allocation2 + $0x40] sm:$0xff] %v204
  %209 = vst [vmem:[#allocation2 + $0x60] sm:$0xff] %v205
  %v210 = vld [vmem:[%s2 + $0x1] sm:$0x1]
  %v211 = vlaneseq
  %v212 = vshrl.u32 %v211, 7
  %v213 = vsub.s32 0, %v212
  %v214 = vrot.slane %v210, %v213
  %v215 = vmul.f32 %v49, %v214
  %v216 = vmul.f32 %v50, %v214
  %v217 = vmul.f32 %v51, %v214
  %v218 = vmul.f32 %v52, %v214
  %v219 = vsub.f32 1.0, %v210
  %v220 = vlaneseq
  %v221 = vshrl.u32 %v220, 7
  %v222 = vsub.s32 0, %v221
  %v223 = vrot.slane %v219, %v222
  %v224 = vmul.f32 %v57, %v223
  %v225 = vmul.f32 %v58, %v223
  %v226 = vmul.f32 %v59, %v223
  %v227 = vmul.f32 %v60, %v223
  %v228 = vadd.f32 %v215, %v224
  %v229 = vadd.f32 %v216, %v225
  %v230 = vadd.f32 %v217, %v226
  %v231 = vadd.f32 %v218, %v227
  %v232 = vpack.c.bf16 %v229, %v228
  %v233 = vpack.c.bf16 %v231, %v230
  %v234 = vld [vmem:[#allocation2 + $0x8] sm:$0xff]
  %v235 = vld [vmem:[#allocation2 + $0x28] sm:$0xff]
  %v236 = vld [vmem:[#allocation2 + $0x48] sm:$0xff]
  %v237 = vld [vmem:[#allocation2 + $0x68] sm:$0xff]
  %v238 = vld [vmem:[%s3 + $0x4] sm:$0xf]
  %v239 = vld [vmem:[%s3 + $0x14] sm:$0xf]
  %v240 = vld [vmem:[%s3 + $0x24] sm:$0xf]
  %v241 = vld [vmem:[%s3 + $0x34] sm:$0xf]
  %v242 = vld [vmem:[%s3 + $0x44] sm:$0xf]
  %v243 = vld [vmem:[%s3 + $0x54] sm:$0xf]
  %v244 = vld [vmem:[%s3 + $0x64] sm:$0xf]
  %v245 = vld [vmem:[%s3 + $0x74] sm:$0xf]
  %v246 = vld [vmem:[%s3 + $0x84] sm:$0xf]
  %v247 = vld [vmem:[%s3 + $0x94] sm:$0xf]
  %v248 = vld [vmem:[%s3 + $0xa4] sm:$0xf]
  %v249 = vld [vmem:[%s3 + $0xb4] sm:$0xf]
  %v250 = vld [vmem:[%s3 + $0xc4] sm:$0xf]
  %v251 = vld [vmem:[%s3 + $0xd4] sm:$0xf]
  %v252 = vld [vmem:[%s3 + $0xe4] sm:$0xf]
  %v253 = vld [vmem:[%s3 + $0xf4] sm:$0xf]
  %v270 = vunpack.c.l.b16 %v238
  %v271 = vunpack.c.l.b16 %v239
  %v272 = vunpack.c.l.b16 %v240
  %v273 = vunpack.c.l.b16 %v241
  %v274 = vunpack.c.l.b16 %v242
  %v275 = vunpack.c.l.b16 %v243
  %v276 = vunpack.c.l.b16 %v244
  %v277 = vunpack.c.l.b16 %v245
  %v278 = vunpack.c.l.b16 %v246
  %v279 = vunpack.c.l.b16 %v247
  %v280 = vunpack.c.l.b16 %v248
  %v281 = vunpack.c.l.b16 %v249
  %v282 = vunpack.c.l.b16 %v250
  %v283 = vunpack.c.l.b16 %v251
  %v284 = vunpack.c.l.b16 %v252
  %v285 = vunpack.c.l.b16 %v253
  %v286 = vpack.c.b16 %v271, %v270
  %v287 = vpack.c.b16 %v273, %v272
  %v288 = vpack.c.b16 %v275, %v274
  %v289 = vpack.c.b16 %v277, %v276
  %v290 = vpack.c.b16 %v279, %v278
  %v291 = vpack.c.b16 %v281, %v280
  %v292 = vpack.c.b16 %v283, %v282
  %v293 = vpack.c.b16 %v285, %v284
  %302 = vmatprep.subr.bf16.mxu0 0
  %303 = vmatpush1.bf16.msra.mxu0 %v286
  %304 = vmatprep.subr.bf16.mxu0 0
  %305 = vmatpush1.bf16.msra.mxu0 %v287
  %306 = vmatprep.subr.bf16.mxu0 0
  %307 = vmatpush1.bf16.msra.mxu0 %v288
  %308 = vmatprep.subr.bf16.mxu0 0
  %309 = vmatpush1.bf16.msra.mxu0 %v289
  %310 = vmatprep.subr.bf16.mxu0 0
  %311 = vmatpush1.bf16.msra.mxu0 %v290
  %312 = vmatprep.subr.bf16.mxu0 0
  %313 = vmatpush1.bf16.msra.mxu0 %v291
  %314 = vmatprep.subr.bf16.mxu0 0
  %315 = vmatpush1.bf16.msra.mxu0 %v292
  %316 = vmatprep.subr.bf16.mxu0 0
  %317 = vmatpush1.bf16.msra.mxu0 %v293
  %318 = vmatprep.subr.bf16.mxu0 0
  %319 = vmatpush1.bf16.msra.mxu0 0
  %320 = vmatprep.subr.bf16.mxu0 0
  %321 = vmatpush1.bf16.msra.mxu0 0
  %322 = vmatprep.subr.bf16.mxu0 0
  %323 = vmatpush1.bf16.msra.mxu0 0
  %324 = vmatprep.subr.bf16.mxu0 0
  %325 = vmatpush1.bf16.msra.mxu0 0
  %326 = vmatprep.subr.bf16.mxu0 0
  %327 = vmatpush1.bf16.msra.mxu0 0
  %328 = vmatprep.subr.bf16.mxu0 0
  %329 = vmatpush1.bf16.msra.mxu0 0
  %330 = vmatprep.subr.bf16.mxu0 0
  %331 = vmatpush1.bf16.msra.mxu0 0
  %332 = vmatprep.subr.bf16.mxu0 0
  %333 = vmatpush1.bf16.msra.mxu0 0
  %334 = vmatprep.mubr.bf16.mxu0 0
  %335 = vmatmul.mubr.bf16.gmra.mrb[0].mxu0 %v232
  %v336 = vpop.f32.mrb[0].mxu0
  %v337 = vadd.f32 0.0, %v336
  %v338 = vpop.f32.mrb[0].mxu0
  %v339 = vpop.f32.mrb[0].mxu0
  %v340 = vadd.f32 0.0, %v339
  %v341 = vpop.f32.mrb[0].mxu0
  %342 = vmatprep.mubr.bf16.mxu0 0
  %343 = vmatmul.mubr.bf16.gmra.mrb[0].mxu0 %v233
  %v344 = vpop.f32.mrb[0].mxu0
  %v345 = vadd.f32 0.0, %v344
  %v346 = vpop.f32.mrb[0].mxu0
  %v347 = vpop.f32.mrb[0].mxu0
  %v348 = vadd.f32 0.0, %v347
  %v349 = vpop.f32.mrb[0].mxu0
  %350 = vdwg.mxu0
  %v351 = vadd.f32 %v234, %v337
  %v352 = vadd.f32 %v235, %v340
  %v353 = vadd.f32 %v236, %v345
  %v354 = vadd.f32 %v237, %v348
  %355 = vst [vmem:[#allocation2 + $0x8] sm:$0xff] %v351
  %356 = vst [vmem:[#allocation2 + $0x28] sm:$0xff] %v352
  %357 = vst [vmem:[#allocation2 + $0x48] sm:$0xff] %v353
  %358 = vst [vmem:[#allocation2 + $0x68] sm:$0xff] %v354
  %v359 = vld [vmem:[%s2 + $0x2] sm:$0x1]
  %v360 = vlaneseq
  %v361 = vshrl.u32 %v360, 7
  %v362 = vsub.s32 0, %v361
  %v363 = vrot.slane %v359, %v362
  %v364 = vmul.f32 %v49, %v363
  %v365 = vmul.f32 %v50, %v363
  %v366 = vmul.f32 %v51, %v363
  %v367 = vmul.f32 %v52, %v363
  %v368 = vsub.f32 1.0, %v359
  %v369 = vlaneseq
  %v370 = vshrl.u32 %v369, 7
  %v371 = vsub.s32 0, %v370
  %v372 = vrot.slane %v368, %v371
  %v373 = vmul.f32 %v57, %v372
  %v374 = vmul.f32 %v58, %v372
  %v375 = vmul.f32 %v59, %v372
  %v376 = vmul.f32 %v60, %v372
  %v377 = vadd.f32 %v364, %v373
  %v378 = vadd.f32 %v365, %v374
  %v379 = vadd.f32 %v366, %v375
  %v380 = vadd.f32 %v367, %v376
  %v381 = vpack.c.bf16 %v378, %v377
  %v382 = vpack.c.bf16 %v380, %v379
  %v383 = vld [vmem:[#allocation2 + $0x10] sm:$0xff]
  %v384 = vld [vmem:[#allocation2 + $0x30] sm:$0xff]
  %v385 = vld [vmem:[#allocation2 + $0x50] sm:$0xff]
  %v386 = vld [vmem:[#allocation2 + $0x70] sm:$0xff]
  %v387 = vld [vmem:[%s3 + $0x8] sm:$0xf]
  %v388 = vld [vmem:[%s3 + $0x18] sm:$0xf]
  %v389 = vld [vmem:[%s3 + $0x28] sm:$0xf]
  %v390 = vld [vmem:[%s3 + $0x38] sm:$0xf]
  %v391 = vld [vmem:[%s3 + $0x48] sm:$0xf]
  %v392 = vld [vmem:[%s3 + $0x58] sm:$0xf]
  %v393 = vld [vmem:[%s3 + $0x68] sm:$0xf]
  %v394 = vld [vmem:[%s3 + $0x78] sm:$0xf]
  %v395 = vld [vmem:[%s3 + $0x88] sm:$0xf]
  %v396 = vld [vmem:[%s3 + $0x98] sm:$0xf]
  %v397 = vld [vmem:[%s3 + $0xa8] sm:$0xf]
  %v398 = vld [vmem:[%s3 + $0xb8] sm:$0xf]
  %v399 = vld [vmem:[%s3 + $0xc8] sm:$0xf]
  %v400 = vld [vmem:[%s3 + $0xd8] sm:$0xf]
  %v401 = vld [vmem:[%s3 + $0xe8] sm:$0xf]
  %v402 = vld [vmem:[%s3 + $0xf8] sm:$0xf]
  %v419 = vunpack.c.l.b16 %v387
  %v420 = vunpack.c.l.b16 %v388
  %v421 = vunpack.c.l.b16 %v389
  %v422 = vunpack.c.l.b16 %v390
  %v423 = vunpack.c.l.b16 %v391
  %v424 = vunpack.c.l.b16 %v392
  %v425 = vunpack.c.l.b16 %v393
  %v426 = vunpack.c.l.b16 %v394
  %v427 = vunpack.c.l.b16 %v395
  %v428 = vunpack.c.l.b16 %v396
  %v429 = vunpack.c.l.b16 %v397
  %v430 = vunpack.c.l.b16 %v398
  %v431 = vunpack.c.l.b16 %v399
  %v432 = vunpack.c.l.b16 %v400
  %v433 = vunpack.c.l.b16 %v401
  %v434 = vunpack.c.l.b16 %v402
  %v435 = vpack.c.b16 %v420, %v419
  %v436 = vpack.c.b16 %v422, %v421
  %v437 = vpack.c.b16 %v424, %v423
  %v438 = vpack.c.b16 %v426, %v425
  %v439 = vpack.c.b16 %v428, %v427
  %v440 = vpack.c.b16 %v430, %v429
  %v441 = vpack.c.b16 %v432, %v431
  %v442 = vpack.c.b16 %v434, %v433
  %451 = vmatprep.subr.bf16.mxu0 0
  %452 = vmatpush1.bf16.msra.mxu0 %v435
  %453 = vmatprep.subr.bf16.mxu0 0
  %454 = vmatpush1.bf16.msra.mxu0 %v436
  %455 = vmatprep.subr.bf16.mxu0 0
  %456 = vmatpush1.bf16.msra.mxu0 %v437
  %457 = vmatprep.subr.bf16.mxu0 0
  %458 = vmatpush1.bf16.msra.mxu0 %v438
  %459 = vmatprep.subr.bf16.mxu0 0
  %460 = vmatpush1.bf16.msra.mxu0 %v439
  %461 = vmatprep.subr.bf16.mxu0 0
  %462 = vmatpush1.bf16.msra.mxu0 %v440
  %463 = vmatprep.subr.bf16.mxu0 0
  %464 = vmatpush1.bf16.msra.mxu0 %v441
  %465 = vmatprep.subr.bf16.mxu0 0
  %466 = vmatpush1.bf16.msra.mxu0 %v442
  %467 = vmatprep.subr.bf16.mxu0 0
  %468 = vmatpush1.bf16.msra.mxu0 0
  %469 = vmatprep.subr.bf16.mxu0 0
  %470 = vmatpush1.bf16.msra.mxu0 0
  %471 = vmatprep.subr.bf16.mxu0 0
  %472 = vmatpush1.bf16.msra.mxu0 0
  %473 = vmatprep.subr.bf16.mxu0 0
  %474 = vmatpush1.bf16.msra.mxu0 0
  %475 = vmatprep.subr.bf16.mxu0 0
  %476 = vmatpush1.bf16.msra.mxu0 0
  %477 = vmatprep.subr.bf16.mxu0 0
  %478 = vmatpush1.bf16.msra.mxu0 0
  %479 = vmatprep.subr.bf16.mxu0 0
  %480 = vmatpush1.bf16.msra.mxu0 0
  %481 = vmatprep.subr.bf16.mxu0 0
  %482 = vmatpush1.bf16.msra.mxu0 0
  %483 = vmatprep.mubr.bf16.mxu0 0
  %484 = vmatmul.mubr.bf16.gmra.mrb[0].mxu0 %v381
  %v485 = vpop.f32.mrb[0].mxu0
  %v486 = vadd.f32 0.0, %v485
  %v487 = vpop.f32.mrb[0].mxu0
  %v488 = vpop.f32.mrb[0].mxu0
  %v489 = vadd.f32 0.0, %v488
  %v490 = vpop.f32.mrb[0].mxu0
  %491 = vmatprep.mubr.bf16.mxu0 0
  %492 = vmatmul.mubr.bf16.gmra.mrb[0].mxu0 %v382
  %v493 = vpop.f32.mrb[0].mxu0
  %v494 = vadd.f32 0.0, %v493
  %v495 = vpop.f32.mrb[0].mxu0
  %v496 = vpop.f32.mrb[0].mxu0
  %v497 = vadd.f32 0.0, %v496
  %v498 = vpop.f32.mrb[0].mxu0
  %499 = vdwg.mxu0
  %v500 = vadd.f32 %v383, %v486
  %v501 = vadd.f32 %v384, %v489
  %v502 = vadd.f32 %v385, %v494
  %v503 = vadd.f32 %v386, %v497
  %504 = vst [vmem:[#allocation2 + $0x10] sm:$0xff] %v500
  %505 = vst [vmem:[#allocation2 + $0x30] sm:$0xff] %v501
  %506 = vst [vmem:[#allocation2 + $0x50] sm:$0xff] %v502
  %507 = vst [vmem:[#allocation2 + $0x70] sm:$0xff] %v503
  %v508 = vld [vmem:[%s2 + $0x3] sm:$0x1]
  %v509 = vlaneseq
  %v510 = vshrl.u32 %v509, 7
  %v511 = vsub.s32 0, %v510
  %v512 = vrot.slane %v508, %v511
  %v513 = vmul.f32 %v49, %v512
  %v514 = vmul.f32 %v50, %v512
  %v515 = vmul.f32 %v51, %v512
  %v516 = vmul.f32 %v52, %v512
  %v517 = vsub.f32 1.0, %v508
  %v518 = vlaneseq
  %v519 = vshrl.u32 %v518, 7
  %v520 = vsub.s32 0, %v519
  %v521 = vrot.slane %v517, %v520
  %v522 = vmul.f32 %v57, %v521
  %v523 = vmul.f32 %v58, %v521
  %v524 = vmul.f32 %v59, %v521
  %v525 = vmul.f32 %v60, %v521
  %v526 = vadd.f32 %v513, %v522
  %v527 = vadd.f32 %v514, %v523
  %v528 = vadd.f32 %v515, %v524
  %v529 = vadd.f32 %v516, %v525
  %v530 = vpack.c.bf16 %v527, %v526
  %v531 = vpack.c.bf16 %v529, %v528
  %v532 = vld [vmem:[#allocation2 + $0x18] sm:$0xff]
  %v533 = vld [vmem:[#allocation2 + $0x38] sm:$0xff]
  %v534 = vld [vmem:[#allocation2 + $0x58] sm:$0xff]
  %v535 = vld [vmem:[#allocation2 + $0x78] sm:$0xff]
  %v536 = vld [vmem:[%s3 + $0xc] sm:$0xf]
  %v537 = vld [vmem:[%s3 + $0x1c] sm:$0xf]
  %v538 = vld [vmem:[%s3 + $0x2c] sm:$0xf]
  %v539 = vld [vmem:[%s3 + $0x3c] sm:$0xf]
  %v540 = vld [vmem:[%s3 + $0x4c] sm:$0xf]
  %v541 = vld [vmem:[%s3 + $0x5c] sm:$0xf]
  %v542 = vld [vmem:[%s3 + $0x6c] sm:$0xf]
  %v543 = vld [vmem:[%s3 + $0x7c] sm:$0xf]
  %v544 = vld [vmem:[%s3 + $0x8c] sm:$0xf]
  %v545 = vld [vmem:[%s3 + $0x9c] sm:$0xf]
  %v546 = vld [vmem:[%s3 + $0xac] sm:$0xf]
  %v547 = vld [vmem:[%s3 + $0xbc] sm:$0xf]
  %v548 = vld [vmem:[%s3 + $0xcc] sm:$0xf]
  %v549 = vld [vmem:[%s3 + $0xdc] sm:$0xf]
  %v550 = vld [vmem:[%s3 + $0xec] sm:$0xf]
  %v551 = vld [vmem:[%s3 + $0xfc] sm:$0xf]
  %v568 = vunpack.c.l.b16 %v536
  %v569 = vunpack.c.l.b16 %v537
  %v570 = vunpack.c.l.b16 %v538
  %v571 = vunpack.c.l.b16 %v539
  %v572 = vunpack.c.l.b16 %v540
  %v573 = vunpack.c.l.b16 %v541
  %v574 = vunpack.c.l.b16 %v542
  %v575 = vunpack.c.l.b16 %v543
  %v576 = vunpack.c.l.b16 %v544
  %v577 = vunpack.c.l.b16 %v545
  %v578 = vunpack.c.l.b16 %v546
  %v579 = vunpack.c.l.b16 %v547
  %v580 = vunpack.c.l.b16 %v548
  %v581 = vunpack.c.l.b16 %v549
  %v582 = vunpack.c.l.b16 %v550
  %v583 = vunpack.c.l.b16 %v551
  %v584 = vpack.c.b16 %v569, %v568
  %v585 = vpack.c.b16 %v571, %v570
  %v586 = vpack.c.b16 %v573, %v572
  %v587 = vpack.c.b16 %v575, %v574
  %v588 = vpack.c.b16 %v577, %v576
  %v589 = vpack.c.b16 %v579, %v578
  %v590 = vpack.c.b16 %v581, %v580
  %v591 = vpack.c.b16 %v583, %v582
  %600 = vmatprep.subr.bf16.mxu0 0
  %601 = vmatpush1.bf16.msra.mxu0 %v584
  %602 = vmatprep.subr.bf16.mxu0 0
  %603 = vmatpush1.bf16.msra.mxu0 %v585
  %604 = vmatprep.subr.bf16.mxu0 0
  %605 = vmatpush1.bf16.msra.mxu0 %v586
  %606 = vmatprep.subr.bf16.mxu0 0
  %607 = vmatpush1.bf16.msra.mxu0 %v587
  %608 = vmatprep.subr.bf16.mxu0 0
  %609 = vmatpush1.bf16.msra.mxu0 %v588
  %610 = vmatprep.subr.bf16.mxu0 0
  %611 = vmatpush1.bf16.msra.mxu0 %v589
  %612 = vmatprep.subr.bf16.mxu0 0
  %613 = vmatpush1.bf16.msra.mxu0 %v590
  %614 = vmatprep.subr.bf16.mxu0 0
  %615 = vmatpush1.bf16.msra.mxu0 %v591
  %616 = vmatprep.subr.bf16.mxu0 0
  %617 = vmatpush1.bf16.msra.mxu0 0
  %618 = vmatprep.subr.bf16.mxu0 0
  %619 = vmatpush1.bf16.msra.mxu0 0
  %620 = vmatprep.subr.bf16.mxu0 0
  %621 = vmatpush1.bf16.msra.mxu0 0
  %622 = vmatprep.subr.bf16.mxu0 0
  %623 = vmatpush1.bf16.msra.mxu0 0
  %624 = vmatprep.subr.bf16.mxu0 0
  %625 = vmatpush1.bf16.msra.mxu0 0
  %626 = vmatprep.subr.bf16.mxu0 0
  %627 = vmatpush1.bf16.msra.mxu0 0
  %628 = vmatprep.subr.bf16.mxu0 0
  %629 = vmatpush1.bf16.msra.mxu0 0
  %630 = vmatprep.subr.bf16.mxu0 0
  %631 = vmatpush1.bf16.msra.mxu0 0
  %632 = vmatprep.mubr.bf16.mxu0 0
  %633 = vmatmul.mubr.bf16.gmra.mrb[0].mxu0 %v530
  %v634 = vpop.f32.mrb[0].mxu0
  %v635 = vadd.f32 0.0, %v634
  %v636 = vpop.f32.mrb[0].mxu0
  %v637 = vpop.f32.mrb[0].mxu0
  %v638 = vadd.f32 0.0, %v637
  %v639 = vpop.f32.mrb[0].mxu0
  %640 = vmatprep.mubr.bf16.mxu0 0
  %641 = vmatmul.mubr.bf16.gmra.mrb[0].mxu0 %v531
  %v642 = vpop.f32.mrb[0].mxu0
  %v643 = vadd.f32 0.0, %v642
  %v644 = vpop.f32.mrb[0].mxu0
  %v645 = vpop.f32.mrb[0].mxu0
  %v646 = vadd.f32 0.0, %v645
  %v647 = vpop.f32.mrb[0].mxu0
  %648 = vdwg.mxu0
  %v649 = vadd.f32 %v532, %v635
  %v650 = vadd.f32 %v533, %v638
  %v651 = vadd.f32 %v534, %v643
  %v652 = vadd.f32 %v535, %v646
  %653 = vst [vmem:[#allocation2 + $0x18] sm:$0xff] %v649
  %654 = vst [vmem:[#allocation2 + $0x38] sm:$0xff] %v650
  %655 = vst [vmem:[#allocation2 + $0x58] sm:$0xff] %v651
  %656 = vst [vmem:[#allocation2 + $0x78] sm:$0xff] %v652
  // Predicated region
  $region26: #{llm_forward.19} parent=0 // pred_check
    %p657 = pneg %p25
  $region27: #{llm_forward.19} parent=0 // pred_check_branch
    %659 = sbr.rel (%p657) target = $region29
  $region28: #{llm_forward.19} parent=0 // pred_region
    %v660 = vld [vmem:[%s4] sm:$0x1]
    %v661 = vld [vmem:[#allocation2] sm:$0xff]
    %v662 = vld [vmem:[#allocation2 + $0x20] sm:$0xff]
    %v663 = vld [vmem:[#allocation2 + $0x40] sm:$0xff]
    %v664 = vld [vmem:[#allocation2 + $0x60] sm:$0xff]
    %v665 = vmul.f32 %v661, %v661
    %v666 = vmul.f32 %v662, %v662
    %v667 = vmul.f32 %v663, %v663
    %v668 = vmul.f32 %v664, %v664
    %669 = vadd.xlane.f32.xlu0 %v665
    %v670 = vpop.xlane.xlu0 %669
    %671 = vadd.xlane.f32.xlu0 %v666
    %v672 = vpop.xlane.xlu0 %671
    %673 = vadd.xlane.f32.xlu0 %v667
    %v674 = vpop.xlane.xlu0 %673
    %675 = vadd.xlane.f32.xlu0 %v668
    %v676 = vpop.xlane.xlu0 %675
    %v677 = vrsqrt.pop %v670
    %v678 = vmul.f32 %v670, %v677
    %vm679 = vcmp.eq.f32.partialorder %v670, inf
    %v680 = vsel %vm679, %v670, %v678
    %vm681 = vcmp.eq.f32.partialorder %v670, 0.0
    %v682 = vand.u32 %v670, 2147483648
    %v683 = vsel %vm681, %v682, %v680
    %v684 = vrsqrt.pop %v672
    %v685 = vmul.f32 %v672, %v684
    %vm686 = vcmp.eq.f32.partialorder %v672, inf
    %v687 = vsel %vm686, %v672, %v685
    %vm688 = vcmp.eq.f32.partialorder %v672, 0.0
    %v689 = vand.u32 %v672, 2147483648
    %v690 = vsel %vm688, %v689, %v687
    %v691 = vrsqrt.pop %v674
    %v692 = vmul.f32 %v674, %v691
    %vm693 = vcmp.eq.f32.partialorder %v674, inf
    %v694 = vsel %vm693, %v674, %v692
    %vm695 = vcmp.eq.f32.partialorder %v674, 0.0
    %v696 = vand.u32 %v674, 2147483648
    %v697 = vsel %vm695, %v696, %v694
    %v698 = vrsqrt.pop %v676
    %v699 = vmul.f32 %v676, %v698
    %vm700 = vcmp.eq.f32.partialorder %v676, inf
    %v701 = vsel %vm700, %v676, %v699
    %vm702 = vcmp.eq.f32.partialorder %v676, 0.0
    %v703 = vand.u32 %v676, 2147483648
    %v704 = vsel %vm702, %v703, %v701
    %v705 = vrcp.pop 11.313708
    %v706 = vmul.f32 %v683, %v705
    %v707 = vmul.f32 %v690, %v705
    %v708 = vmul.f32 %v697, %v705
    %v709 = vmul.f32 %v704, %v705
    %v710 = vadd.f32 %v706, 1e-08
    %v711 = vadd.f32 %v707, 1e-08
    %v712 = vadd.f32 %v708, 1e-08
    %v713 = vadd.f32 %v709, 1e-08
    %v714 = vrcp.pop %v710
    %v715 = vmul.f32 %v661, %v714
    %v716 = vrcp.pop %v711
    %v717 = vmul.f32 %v662, %v716
    %v718 = vrcp.pop %v712
    %v719 = vmul.f32 %v663, %v718
    %v720 = vrcp.pop %v713
    %v721 = vmul.f32 %v664, %v720
    %v723 = vlaneseq
    %v724 = vshrl.u32 %v723, 7
    %v725 = vsub.s32 0, %v724
    %v726 = vrot.slane %v660, %v725
    %v728 = vmul.f32 %v726, %v715
    %v729 = vmul.f32 %v726, %v717
    %v730 = vmul.f32 %v726, %v719
    %v731 = vmul.f32 %v726, %v721
    %v732 = vmul.f32 %v728, 1.442695
    %v733 = vpow.pop %v732
    %v734 = vmul.f32 %v729, 1.442695
    %v735 = vpow.pop %v734
    %v736 = vmul.f32 %v730, 1.442695
    %v737 = vpow.pop %v736
    %v738 = vmul.f32 %v731, 1.442695
    %v739 = vpow.pop %v738
    %v740 = vpack.c.bf16 %v735, %v733
    %v741 = vpack.c.bf16 %v739, %v737
    %v744 = vunpack.c.l.b16 %v740
    %v745 = vunpack.c.h.b16 %v740
    %v746 = vunpack.c.l.b16 %v741
    %v747 = vunpack.c.h.b16 %v741
    %v748 = vpack.c.b16 %v744, %v744
    %v749 = vpack.c.b16 %v745, %v745
    %v750 = vpack.c.b16 %v746, %v746
    %v751 = vpack.c.b16 %v747, %v747
    %756 = vst [vmem:[%s5] sm:$0xf] %v748
    %757 = vst [vmem:[%s5 + $0x4] sm:$0xf] %v749
    %758 = vst [vmem:[%s5 + $0x8] sm:$0xf] %v750
    %759 = vst [vmem:[%s5 + $0xc] sm:$0xf] %v751
    %v760 = vld [vmem:[#allocation2 + $0x8] sm:$0xff]
    %v761 = vld [vmem:[#allocation2 + $0x28] sm:$0xff]
    %v762 = vld [vmem:[#allocation2 + $0x48] sm:$0xff]
    %v763 = vld [vmem:[#allocation2 + $0x68] sm:$0xff]
    %v764 = vmul.f32 %v760, %v760
    %v765 = vmul.f32 %v761, %v761
    %v766 = vmul.f32 %v762, %v762
    %v767 = vmul.f32 %v763, %v763
    %768 = vadd.xlane.f32.xlu0 %v764
    %v769 = vpop.xlane.xlu0 %768
    %770 = vadd.xlane.f32.xlu0 %v765
    %v771 = vpop.xlane.xlu0 %770
    %772 = vadd.xlane.f32.xlu0 %v766
    %v773 = vpop.xlane.xlu0 %772
    %774 = vadd.xlane.f32.xlu0 %v767
    %v775 = vpop.xlane.xlu0 %774
    %v776 = vrsqrt.pop %v769
    %v777 = vmul.f32 %v769, %v776
    %vm778 = vcmp.eq.f32.partialorder %v769, inf
    %v779 = vsel %vm778, %v769, %v777
    %vm780 = vcmp.eq.f32.partialorder %v769, 0.0
    %v781 = vand.u32 %v769, 2147483648
    %v782 = vsel %vm780, %v781, %v779
    %v783 = vrsqrt.pop %v771
    %v784 = vmul.f32 %v771, %v783
    %vm785 = vcmp.eq.f32.partialorder %v771, inf
    %v786 = vsel %vm785, %v771, %v784
    %vm787 = vcmp.eq.f32.partialorder %v771, 0.0
    %v788 = vand.u32 %v771, 2147483648
    %v789 = vsel %vm787, %v788, %v786
    %v790 = vrsqrt.pop %v773
    %v791 = vmul.f32 %v773, %v790
    %vm792 = vcmp.eq.f32.partialorder %v773, inf
    %v793 = vsel %vm792, %v773, %v791
    %vm794 = vcmp.eq.f32.partialorder %v773, 0.0
    %v795 = vand.u32 %v773, 2147483648
    %v796 = vsel %vm794, %v795, %v793
    %v797 = vrsqrt.pop %v775
    %v798 = vmul.f32 %v775, %v797
    %vm799 = vcmp.eq.f32.partialorder %v775, inf
    %v800 = vsel %vm799, %v775, %v798
    %vm801 = vcmp.eq.f32.partialorder %v775, 0.0
    %v802 = vand.u32 %v775, 2147483648
    %v803 = vsel %vm801, %v802, %v800
    %v804 = vmul.f32 %v782, %v705
    %v805 = vmul.f32 %v789, %v705
    %v806 = vmul.f32 %v796, %v705
    %v807 = vmul.f32 %v803, %v705
    %v808 = vadd.f32 %v804, 1e-08
    %v809 = vadd.f32 %v805, 1e-08
    %v810 = vadd.f32 %v806, 1e-08
    %v811 = vadd.f32 %v807, 1e-08
    %v812 = vrcp.pop %v808
    %v813 = vmul.f32 %v760, %v812
    %v814 = vrcp.pop %v809
    %v815 = vmul.f32 %v761, %v814
    %v816 = vrcp.pop %v810
    %v817 = vmul.f32 %v762, %v816
    %v818 = vrcp.pop %v811
    %v819 = vmul.f32 %v763, %v818
    %v820 = vmul.f32 %v726, %v813
    %v821 = vmul.f32 %v726, %v815
    %v822 = vmul.f32 %v726, %v817
    %v823 = vmul.f32 %v726, %v819
    %v824 = vmul.f32 %v820, 1.442695
    %v825 = vpow.pop %v824
    %v826 = vmul.f32 %v821, 1.442695
    %v827 = vpow.pop %v826
    %v828 = vmul.f32 %v822, 1.442695
    %v829 = vpow.pop %v828
    %v830 = vmul.f32 %v823, 1.442695
    %v831 = vpow.pop %v830
    %v832 = vpack.c.bf16 %v827, %v825
    %v833 = vpack.c.bf16 %v831, %v829
    %v836 = vunpack.c.l.b16 %v832
    %v837 = vunpack.c.h.b16 %v832
    %v838 = vunpack.c.l.b16 %v833
    %v839 = vunpack.c.h.b16 %v833
    %v840 = vpack.c.b16 %v836, %v836
    %v841 = vpack.c.b16 %v837, %v837
    %v842 = vpack.c.b16 %v838, %v838
    %v843 = vpack.c.b16 %v839, %v839
    %848 = vst [vmem:[%s6] sm:$0xf] %v840
    %849 = vst [vmem:[%s6 + $0x4] sm:$0xf] %v841
    %850 = vst [vmem:[%s6 + $0x8] sm:$0xf] %v842
    %851 = vst [vmem:[%s6 + $0xc] sm:$0xf] %v843
    %v852 = vld [vmem:[#allocation2 + $0x10] sm:$0xff]
    %v853 = vld [vmem:[#allocation2 + $0x30] sm:$0xff]
    %v854 = vld [vmem:[#allocation2 + $0x50] sm:$0xff]
    %v855 = vld [vmem:[#allocation2 + $0x70] sm:$0xff]
    %v856 = vpack.c.bf16 %v853, %v852
    %v857 = vpack.c.bf16 %v855, %v854
    %v860 = vunpack.c.l.b16 %v856
    %v861 = vunpack.c.h.b16 %v856
    %v862 = vunpack.c.l.b16 %v857
    %v863 = vunpack.c.h.b16 %v857
    %v864 = vpack.c.b16 %v860, %v860
    %v865 = vpack.c.b16 %v861, %v861
    %v866 = vpack.c.b16 %v862, %v862
    %v867 = vpack.c.b16 %v863, %v863
    %872 = vst [vmem:[%s7] sm:$0xf] %v864
    %873 = vst [vmem:[%s7 + $0x4] sm:$0xf] %v865
    %874 = vst [vmem:[%s7 + $0x8] sm:$0xf] %v866
    %875 = vst [vmem:[%s7 + $0xc] sm:$0xf] %v867
    %v876 = vld [vmem:[#allocation2 + $0x18] sm:$0xff]
    %v877 = vld [vmem:[#allocation2 + $0x38] sm:$0xff]
    %v878 = vld [vmem:[#allocation2 + $0x58] sm:$0xff]
    %v879 = vld [vmem:[#allocation2 + $0x78] sm:$0xff]
    %v880 = vpack.c.bf16 %v877, %v876
    %v881 = vpack.c.bf16 %v879, %v878
    %v884 = vunpack.c.l.b16 %v880
    %v885 = vunpack.c.h.b16 %v880
    %v886 = vunpack.c.l.b16 %v881
    %v887 = vunpack.c.h.b16 %v881
    %v888 = vpack.c.b16 %v884, %v884
    %v889 = vpack.c.b16 %v885, %v885
    %v890 = vpack.c.b16 %v886, %v886
    %v891 = vpack.c.b16 %v887, %v887
    %896 = vst [vmem:[%s8] sm:$0xf] %v888
    %897 = vst [vmem:[%s8 + $0x4] sm:$0xf] %v889
    %898 = vst [vmem:[%s8 + $0x8] sm:$0xf] %v890
    %899 = vst [vmem:[%s8 + $0xc] sm:$0xf] %v891
  $region29: #{llm_forward.19} parent=0 // pred_fallthru
    _
  // Predicated region
  $region30: #{llm_forward.19} parent=0 // pred_check
    _
  $region31: #{llm_forward.19} parent=0 // pred_check_branch
    %901 = sbr.rel (0) target = $region33
  $region32: #{llm_forward.19} parent=0 // pred_region
    _
  $region33: #{llm_forward.19} parent=0 // pred_fallthru
    _
  // Predicated region
  $region34: #{llm_forward.19} parent=0 // pred_check
    _
  $region35: #{llm_forward.19} parent=0 // pred_check_branch
    %903 = sbr.rel (0) target = $region37
  $region36: #{llm_forward.19} parent=0 // pred_region
    _
  $region37: #{llm_forward.19} parent=0 // pred_fallthru
    _
  // Predicated region
  $region38: #{llm_forward.19} parent=0 // pred_check
    _
  $region39: #{llm_forward.19} parent=0 // pred_check_branch
    %905 = sbr.rel (0) target = $region41
  $region40: #{llm_forward.19} parent=0 // pred_region
    _
  $region41: #{llm_forward.19} parent=0 // pred_fallthru
    _
  // Predicated region
  $region42: #{llm_forward.19} parent=0 // pred_check
    _
  $region43: #{llm_forward.19} parent=0 // pred_check_branch
    %907 = sbr.rel (0) target = $region45
  $region44: #{llm_forward.19} parent=0 // pred_region
    _
  $region45: #{llm_forward.19} parent=0 // pred_fallthru
    _
  // Predicated region
  $region46: #{llm_forward.19} parent=0 // pred_check
    _
  $region47: #{llm_forward.19} parent=0 // pred_check_branch
    %909 = sbr.rel (0) target = $region49
  $region48: #{llm_forward.19} parent=0 // pred_region
    _
  $region49: #{llm_forward.19} parent=0 // pred_fallthru
    _
  // Predicated region
  $region50: #{llm_forward.19} parent=0 // pred_check
    _
  $region51: #{llm_forward.19} parent=0 // pred_check_branch
    %911 = sbr.rel (0) target = $region53
  $region52: #{llm_forward.19} parent=0 // pred_region
    _
  $region53: #{llm_forward.19} parent=0 // pred_fallthru
    _
  // Predicated region
  $region54: #{llm_forward.19} parent=0 // pred_check
    _
  $region55: #{llm_forward.19} parent=0 // pred_check_branch
    %913 = sbr.rel (0) target = $region57
  $region56: #{llm_forward.19} parent=0 // pred_region
    _
  $region57: #{llm_forward.19} parent=0 // pred_fallthru
    _
  // Predicated region
  $region58: #{llm_forward.19} parent=0 // pred_check
    _
  $region59: #{llm_forward.19} parent=0 // pred_check_branch
    %915 = sbr.rel (0) target = $region61
  $region60: #{llm_forward.19} parent=0 // pred_region
    _
  $region61: #{llm_forward.19} parent=0 // pred_fallthru
    _

// kernel: llm_forward.21
$region0: #{llm_forward.21}
  #allocation0 [shape = 'u32[]', space=smem, size = 0x4, offset = 0x4, fixed_abs, tag = 'smem constant byte address 0x4 - core index']
  #allocation1 [shape = 'u32[144,128]{1,0:T(1,128)}', space=vmem, size = 0x12000, scoped, tag = 'internal scratch']
  #allocation2 [shape = 'f32[32,128]{1,0:T(8,128)}', space=vmem, size = 0x4000, scoped, tag = 'scratch operand']
  %s0 = inlined_call_operand.vmem [shape: bf16[32,128], index: 0, kind: input, shape index: {}]
  %s1 = inlined_call_operand.vmem [shape: bf16[128,128], index: 1, kind: input, shape index: {}]
  %s2 = inlined_call_operand.vmem [shape: f32[32,128], index: 2, kind: output, shape index: {}]
  %s3 = sld [smem:[#allocation0]]
  $region26: #{llm_forward.21} parent=0
    _
  %s5 = ssub.s32 1, %s3
  %s6 = scalar_select 0, %s5, %s3
  // Predicated region
  $region2: #{llm_forward.21} parent=0 // pred_check
    _
  $region3: #{llm_forward.21} parent=0 // pred_check_branch
    %8 = sbr.rel (0) target = $region5
  $region4: #{llm_forward.21} parent=0 // pred_region
    _
  $region5: #{llm_forward.21} parent=0 // pred_fallthru
    _
  // Predicated region
  $region6: #{llm_forward.21} parent=0 // pred_check
    _
  $region7: #{llm_forward.21} parent=0 // pred_check_branch
    %10 = sbr.rel (0) target = $region9
  $region8: #{llm_forward.21} parent=0 // pred_region
    _
  $region9: #{llm_forward.21} parent=0 // pred_fallthru
    _
  %p12 = scmp.eq.s32.totalorder 0, 0
  // Predicated region
  $region10: #{llm_forward.21} parent=0 // pred_check
    %p13 = pneg %p12
  $region11: #{llm_forward.21} parent=0 // pred_check_branch
    %15 = sbr.rel (%p13) target = $region13
  $region12: #{llm_forward.21} parent=0 // pred_region
    %16 = vst [vmem:[#allocation2] sm:$0xff] 0.0
    %17 = vst [vmem:[#allocation2 + $0x8] sm:$0xff] 0.0
    %18 = vst [vmem:[#allocation2 + $0x10] sm:$0xff] 0.0
    %19 = vst [vmem:[#allocation2 + $0x18] sm:$0xff] 0.0
  $region13: #{llm_forward.21} parent=0 // pred_fallthru
    _
  %v20 = vld [vmem:[#allocation2] sm:$0xff]
  %v21 = vld [vmem:[#allocation2 + $0x8] sm:$0xff]
  %v22 = vld [vmem:[#allocation2 + $0x10] sm:$0xff]
  %v23 = vld [vmem:[#allocation2 + $0x18] sm:$0xff]
  %v24 = vld [vmem:[%s0] sm:$0xf]
  %v25 = vld [vmem:[%s0 + $0x4] sm:$0xf]
  %v26 = vld [vmem:[%s0 + $0x8] sm:$0xf]
  %v27 = vld [vmem:[%s0 + $0xc] sm:$0xf]
  %v28 = vld [vmem:[%s1] sm:$0xf]
  %v29 = vld [vmem:[%s1 + $0x4] sm:$0xf]
  %v30 = vld [vmem:[%s1 + $0x8] sm:$0xf]
  %v31 = vld [vmem:[%s1 + $0xc] sm:$0xf]
  %v32 = vld [vmem:[%s1 + $0x10] sm:$0xf]
  %v33 = vld [vmem:[%s1 + $0x14] sm:$0xf]
  %v34 = vld [vmem:[%s1 + $0x18] sm:$0xf]
  %v35 = vld [vmem:[%s1 + $0x1c] sm:$0xf]
  %v36 = vld [vmem:[%s1 + $0x20] sm:$0xf]
  %v37 = vld [vmem:[%s1 + $0x24] sm:$0xf]
  %v38 = vld [vmem:[%s1 + $0x28] sm:$0xf]
  %v39 = vld [vmem:[%s1 + $0x2c] sm:$0xf]
  %v40 = vld [vmem:[%s1 + $0x30] sm:$0xf]
  %v41 = vld [vmem:[%s1 + $0x34] sm:$0xf]
  %v42 = vld [vmem:[%s1 + $0x38] sm:$0xf]
  %v43 = vld [vmem:[%s1 + $0x3c] sm:$0xf]
  %v48 = vunpack.c.l.b16 %v24
  %v49 = vunpack.c.l.b16 %v25
  %v50 = vunpack.c.l.b16 %v26
  %v51 = vunpack.c.l.b16 %v27
  %v52 = vpack.c.b16 %v49, %v48
  %v53 = vpack.c.b16 %v51, %v50
  %v72 = vunpack.c.l.b16 %v28
  %v73 = vunpack.c.l.b16 %v29
  %v74 = vunpack.c.l.b16 %v30
  %v75 = vunpack.c.l.b16 %v31
  %v76 = vunpack.c.l.b16 %v32
  %v77 = vunpack.c.l.b16 %v33
  %v78 = vunpack.c.l.b16 %v34
  %v79 = vunpack.c.l.b16 %v35
  %v80 = vunpack.c.l.b16 %v36
  %v81 = vunpack.c.l.b16 %v37
  %v82 = vunpack.c.l.b16 %v38
  %v83 = vunpack.c.l.b16 %v39
  %v84 = vunpack.c.l.b16 %v40
  %v85 = vunpack.c.l.b16 %v41
  %v86 = vunpack.c.l.b16 %v42
  %v87 = vunpack.c.l.b16 %v43
  %v88 = vpack.c.b16 %v73, %v72
  %v89 = vpack.c.b16 %v75, %v74
  %v90 = vpack.c.b16 %v77, %v76
  %v91 = vpack.c.b16 %v79, %v78
  %v92 = vpack.c.b16 %v81, %v80
  %v93 = vpack.c.b16 %v83, %v82
  %v94 = vpack.c.b16 %v85, %v84
  %v95 = vpack.c.b16 %v87, %v86
  %104 = vmatprep.subr.bf16.mxu0 0
  %105 = vmatpush1.bf16.msra.mxu0 %v88
  %106 = vmatprep.subr.bf16.mxu0 0
  %107 = vmatpush1.bf16.msra.mxu0 %v89
  %108 = vmatprep.subr.bf16.mxu0 0
  %109 = vmatpush1.bf16.msra.mxu0 %v90
  %110 = vmatprep.subr.bf16.mxu0 0
  %111 = vmatpush1.bf16.msra.mxu0 %v91
  %112 = vmatprep.subr.bf16.mxu0 0
  %113 = vmatpush1.bf16.msra.mxu0 %v92
  %114 = vmatprep.subr.bf16.mxu0 0
  %115 = vmatpush1.bf16.msra.mxu0 %v93
  %116 = vmatprep.subr.bf16.mxu0 0
  %117 = vmatpush1.bf16.msra.mxu0 %v94
  %118 = vmatprep.subr.bf16.mxu0 0
  %119 = vmatpush1.bf16.msra.mxu0 %v95
  %120 = vmatprep.subr.bf16.mxu0 0
  %121 = vmatpush1.bf16.msra.mxu0 0
  %122 = vmatprep.subr.bf16.mxu0 0
  %123 = vmatpush1.bf16.msra.mxu0 0
  %124 = vmatprep.subr.bf16.mxu0 0
  %125 = vmatpush1.bf16.msra.mxu0 0
  %126 = vmatprep.subr.bf16.mxu0 0
  %127 = vmatpush1.bf16.msra.mxu0 0
  %128 = vmatprep.subr.bf16.mxu0 0
  %129 = vmatpush1.bf16.msra.mxu0 0
  %130 = vmatprep.subr.bf16.mxu0 0
  %131 = vmatpush1.bf16.msra.mxu0 0
  %132 = vmatprep.subr.bf16.mxu0 0
  %133 = vmatpush1.bf16.msra.mxu0 0
  %134 = vmatprep.subr.bf16.mxu0 0
  %135 = vmatpush1.bf16.msra.mxu0 0
  %136 = vmatprep.mubr.bf16.mxu0 0
  %137 = vmatmul.mubr.bf16.gmra.mrb[0].mxu0 %v52
  %v138 = vpop.f32.mrb[0].mxu0
  %v139 = vadd.f32 0.0, %v138
  %v140 = vpop.f32.mrb[0].mxu0
  %v141 = vpop.f32.mrb[0].mxu0
  %v142 = vadd.f32 0.0, %v141
  %v143 = vpop.f32.mrb[0].mxu0
  %144 = vmatprep.mubr.bf16.mxu0 0
  %145 = vmatmul.mubr.bf16.gmra.mrb[0].mxu0 %v53
  %v146 = vpop.f32.mrb[0].mxu0
  %v147 = vadd.f32 0.0, %v146
  %v148 = vpop.f32.mrb[0].mxu0
  %v149 = vpop.f32.mrb[0].mxu0
  %v150 = vadd.f32 0.0, %v149
  %v151 = vpop.f32.mrb[0].mxu0
  %152 = vdwg.mxu0
  %v153 = vadd.f32 %v20, %v139
  %v154 = vadd.f32 %v21, %v142
  %v155 = vadd.f32 %v22, %v147
  %v156 = vadd.f32 %v23, %v150
  %157 = vst [vmem:[#allocation2] sm:$0xff] %v153
  %158 = vst [vmem:[#allocation2 + $0x8] sm:$0xff] %v154
  %159 = vst [vmem:[#allocation2 + $0x10] sm:$0xff] %v155
  %160 = vst [vmem:[#allocation2 + $0x18] sm:$0xff] %v156
  // Predicated region
  $region14: #{llm_forward.21} parent=0 // pred_check
    %p161 = pneg %p12
  $region15: #{llm_forward.21} parent=0 // pred_check_branch
    %163 = sbr.rel (%p161) target = $region17
  $region16: #{llm_forward.21} parent=0 // pred_region
    %v164 = vld [vmem:[#allocation2] sm:$0xff]
    %v165 = vld [vmem:[#allocation2 + $0x8] sm:$0xff]
    %v166 = vld [vmem:[#allocation2 + $0x10] sm:$0xff]
    %v167 = vld [vmem:[#allocation2 + $0x18] sm:$0xff]
    %168 = vst [vmem:[%s2] sm:$0xff] %v164
    %169 = vst [vmem:[%s2 + $0x8] sm:$0xff] %v165
    %170 = vst [vmem:[%s2 + $0x10] sm:$0xff] %v166
    %171 = vst [vmem:[%s2 + $0x18] sm:$0xff] %v167
  $region17: #{llm_forward.21} parent=0 // pred_fallthru
    _
  // Predicated region
  $region18: #{llm_forward.21} parent=0 // pred_check
    _
  $region19: #{llm_forward.21} parent=0 // pred_check_branch
    %173 = sbr.rel (0) target = $region21
  $region20: #{llm_forward.21} parent=0 // pred_region
    _
  $region21: #{llm_forward.21} parent=0 // pred_fallthru
    _
  // Predicated region
  $region22: #{llm_forward.21} parent=0 // pred_check
    _
  $region23: #{llm_forward.21} parent=0 // pred_check_branch
    %175 = sbr.rel (0) target = $region25
  $region24: #{llm_forward.21} parent=0 // pred_region
    _
  $region25: #{llm_forward.21} parent=0 // pred_fallthru
    _

// kernel: llm_forward.23
$region0: #{llm_forward.23}
  #allocation0 [shape = 'u32[]', space=smem, size = 0x4, offset = 0x4, fixed_abs, tag = 'smem constant byte address 0x4 - core index']
  #allocation1 [shape = 'u32[144,128]{1,0:T(1,128)}', space=vmem, size = 0x12000, scoped, tag = 'internal scratch']
  #allocation2 [shape = 'f32[32,512]{1,0:T(8,128)}', space=vmem, size = 0x10000, scoped, tag = 'scratch operand']
  %s0 = inlined_call_operand.vmem [shape: bf16[32,128], index: 0, kind: input, shape index: {}]
  %s1 = inlined_call_operand.vmem [shape: bf16[128,512], index: 1, kind: input, shape index: {}]
  %s2 = inlined_call_operand.vmem [shape: bf16[32,512], index: 2, kind: output, shape index: {}]
  %s3 = sld [smem:[#allocation0]]
  $region26: #{llm_forward.23} parent=0
    _
  %s5 = ssub.s32 1, %s3
  %s6 = scalar_select 0, %s5, %s3
  // Predicated region
  $region2: #{llm_forward.23} parent=0 // pred_check
    _
  $region3: #{llm_forward.23} parent=0 // pred_check_branch
    %8 = sbr.rel (0) target = $region5
  $region4: #{llm_forward.23} parent=0 // pred_region
    _
  $region5: #{llm_forward.23} parent=0 // pred_fallthru
    _
  // Predicated region
  $region6: #{llm_forward.23} parent=0 // pred_check
    _
  $region7: #{llm_forward.23} parent=0 // pred_check_branch
    %10 = sbr.rel (0) target = $region9
  $region8: #{llm_forward.23} parent=0 // pred_region
    _
  $region9: #{llm_forward.23} parent=0 // pred_fallthru
    _
  %p12 = scmp.eq.s32.totalorder 0, 0
  // Predicated region
  $region10: #{llm_forward.23} parent=0 // pred_check
    %p13 = pneg %p12
  $region11: #{llm_forward.23} parent=0 // pred_check_branch
    %15 = sbr.rel (%p13) target = $region13
  $region12: #{llm_forward.23} parent=0 // pred_region
    %16 = vst [vmem:[#allocation2] sm:$0xff] 0.0
    %17 = vst [vmem:[#allocation2 + $0x8] sm:$0xff] 0.0
    %18 = vst [vmem:[#allocation2 + $0x10] sm:$0xff] 0.0
    %19 = vst [vmem:[#allocation2 + $0x18] sm:$0xff] 0.0
    %20 = vst [vmem:[#allocation2 + $0x20] sm:$0xff] 0.0
    %21 = vst [vmem:[#allocation2 + $0x28] sm:$0xff] 0.0
    %22 = vst [vmem:[#allocation2 + $0x30] sm:$0xff] 0.0
    %23 = vst [vmem:[#allocation2 + $0x38] sm:$0xff] 0.0
    %24 = vst [vmem:[#allocation2 + $0x40] sm:$0xff] 0.0
    %25 = vst [vmem:[#allocation2 + $0x48] sm:$0xff] 0.0
    %26 = vst [vmem:[#allocation2 + $0x50] sm:$0xff] 0.0
    %27 = vst [vmem:[#allocation2 + $0x58] sm:$0xff] 0.0
    %28 = vst [vmem:[#allocation2 + $0x60] sm:$0xff] 0.0
    %29 = vst [vmem:[#allocation2 + $0x68] sm:$0xff] 0.0
    %30 = vst [vmem:[#allocation2 + $0x70] sm:$0xff] 0.0
    %31 = vst [vmem:[#allocation2 + $0x78] sm:$0xff] 0.0
  $region13: #{llm_forward.23} parent=0 // pred_fallthru
    _
  %v32 = vld [vmem:[#allocation2] sm:$0xff]
  %v33 = vld [vmem:[#allocation2 + $0x8] sm:$0xff]
  %v34 = vld [vmem:[#allocation2 + $0x10] sm:$0xff]
  %v35 = vld [vmem:[#allocation2 + $0x18] sm:$0xff]
  %v36 = vld [vmem:[#allocation2 + $0x20] sm:$0xff]
  %v37 = vld [vmem:[#allocation2 + $0x28] sm:$0xff]
  %v38 = vld [vmem:[#allocation2 + $0x30] sm:$0xff]
  %v39 = vld [vmem:[#allocation2 + $0x38] sm:$0xff]
  %v40 = vld [vmem:[#allocation2 + $0x40] sm:$0xff]
  %v41 = vld [vmem:[#allocation2 + $0x48] sm:$0xff]
  %v42 = vld [vmem:[#allocation2 + $0x50] sm:$0xff]
  %v43 = vld [vmem:[#allocation2 + $0x58] sm:$0xff]
  %v44 = vld [vmem:[#allocation2 + $0x60] sm:$0xff]
  %v45 = vld [vmem:[#allocation2 + $0x68] sm:$0xff]
  %v46 = vld [vmem:[#allocation2 + $0x70] sm:$0xff]
  %v47 = vld [vmem:[#allocation2 + $0x78] sm:$0xff]
  %v48 = vld [vmem:[%s0] sm:$0xf]
  %v49 = vld [vmem:[%s0 + $0x4] sm:$0xf]
  %v50 = vld [vmem:[%s0 + $0x8] sm:$0xf]
  %v51 = vld [vmem:[%s0 + $0xc] sm:$0xf]
  %v52 = vld [vmem:[%s1] sm:$0xff]
  %v53 = vld [vmem:[%s1 + $0x8] sm:$0xff]
  %v54 = vld [vmem:[%s1 + $0x10] sm:$0xff]
  %v55 = vld [vmem:[%s1 + $0x18] sm:$0xff]
  %v56 = vld [vmem:[%s1 + $0x20] sm:$0xff]
  %v57 = vld [vmem:[%s1 + $0x28] sm:$0xff]
  %v58 = vld [vmem:[%s1 + $0x30] sm:$0xff]
  %v59 = vld [vmem:[%s1 + $0x38] sm:$0xff]
  %v60 = vld [vmem:[%s1 + $0x40] sm:$0xff]
  %v61 = vld [vmem:[%s1 + $0x48] sm:$0xff]
  %v62 = vld [vmem:[%s1 + $0x50] sm:$0xff]
  %v63 = vld [vmem:[%s1 + $0x58] sm:$0xff]
  %v64 = vld [vmem:[%s1 + $0x60] sm:$0xff]
  %v65 = vld [vmem:[%s1 + $0x68] sm:$0xff]
  %v66 = vld [vmem:[%s1 + $0x70] sm:$0xff]
  %v67 = vld [vmem:[%s1 + $0x78] sm:$0xff]
  %v68 = vld [vmem:[%s1 + $0x80] sm:$0xff]
  %v69 = vld [vmem:[%s1 + $0x88] sm:$0xff]
  %v70 = vld [vmem:[%s1 + $0x90] sm:$0xff]
  %v71 = vld [vmem:[%s1 + $0x98] sm:$0xff]
  %v72 = vld [vmem:[%s1 + $0xa0] sm:$0xff]
  %v73 = vld [vmem:[%s1 + $0xa8] sm:$0xff]
  %v74 = vld [vmem:[%s1 + $0xb0] sm:$0xff]
  %v75 = vld [vmem:[%s1 + $0xb8] sm:$0xff]
  %v76 = vld [vmem:[%s1 + $0xc0] sm:$0xff]
  %v77 = vld [vmem:[%s1 + $0xc8] sm:$0xff]
  %v78 = vld [vmem:[%s1 + $0xd0] sm:$0xff]
  %v79 = vld [vmem:[%s1 + $0xd8] sm:$0xff]
  %v80 = vld [vmem:[%s1 + $0xe0] sm:$0xff]
  %v81 = vld [vmem:[%s1 + $0xe8] sm:$0xff]
  %v82 = vld [vmem:[%s1 + $0xf0] sm:$0xff]
  %v83 = vld [vmem:[%s1 + $0xf8] sm:$0xff]
  %v88 = vunpack.c.l.b16 %v48
  %v89 = vunpack.c.l.b16 %v49
  %v90 = vunpack.c.l.b16 %v50
  %v91 = vunpack.c.l.b16 %v51
  %v92 = vpack.c.b16 %v89, %v88
  %v93 = vpack.c.b16 %v91, %v90
  %v128 = vunpack.c.l.b16 %v52
  %v129 = vunpack.c.h.b16 %v52
  %v130 = vunpack.c.l.b16 %v53
  %v131 = vunpack.c.h.b16 %v53
  %v132 = vunpack.c.l.b16 %v54
  %v133 = vunpack.c.h.b16 %v54
  %v134 = vunpack.c.l.b16 %v55
  %v135 = vunpack.c.h.b16 %v55
  %v136 = vunpack.c.l.b16 %v56
  %v137 = vunpack.c.h.b16 %v56
  %v138 = vunpack.c.l.b16 %v57
  %v139 = vunpack.c.h.b16 %v57
  %v140 = vunpack.c.l.b16 %v58
  %v141 = vunpack.c.h.b16 %v58
  %v142 = vunpack.c.l.b16 %v59
  %v143 = vunpack.c.h.b16 %v59
  %v144 = vunpack.c.l.b16 %v60
  %v145 = vunpack.c.h.b16 %v60
  %v146 = vunpack.c.l.b16 %v61
  %v147 = vunpack.c.h.b16 %v61
  %v148 = vunpack.c.l.b16 %v62
  %v149 = vunpack.c.h.b16 %v62
  %v150 = vunpack.c.l.b16 %v63
  %v151 = vunpack.c.h.b16 %v63
  %v152 = vunpack.c.l.b16 %v64
  %v153 = vunpack.c.h.b16 %v64
  %v154 = vunpack.c.l.b16 %v65
  %v155 = vunpack.c.h.b16 %v65
  %v156 = vunpack.c.l.b16 %v66
  %v157 = vunpack.c.h.b16 %v66
  %v158 = vunpack.c.l.b16 %v67
  %v159 = vunpack.c.h.b16 %v67
  %v160 = vunpack.c.l.b16 %v68
  %v161 = vunpack.c.h.b16 %v68
  %v162 = vunpack.c.l.b16 %v69
  %v163 = vunpack.c.h.b16 %v69
  %v164 = vunpack.c.l.b16 %v70
  %v165 = vunpack.c.h.b16 %v70
  %v166 = vunpack.c.l.b16 %v71
  %v167 = vunpack.c.h.b16 %v71
  %v168 = vunpack.c.l.b16 %v72
  %v169 = vunpack.c.h.b16 %v72
  %v170 = vunpack.c.l.b16 %v73
  %v171 = vunpack.c.h.b16 %v73
  %v172 = vunpack.c.l.b16 %v74
  %v173 = vunpack.c.h.b16 %v74
  %v174 = vunpack.c.l.b16 %v75
  %v175 = vunpack.c.h.b16 %v75
  %v176 = vunpack.c.l.b16 %v76
  %v177 = vunpack.c.h.b16 %v76
  %v178 = vunpack.c.l.b16 %v77
  %v179 = vunpack.c.h.b16 %v77
  %v180 = vunpack.c.l.b16 %v78
  %v181 = vunpack.c.h.b16 %v78
  %v182 = vunpack.c.l.b16 %v79
  %v183 = vunpack.c.h.b16 %v79
  %v184 = vunpack.c.l.b16 %v80
  %v185 = vunpack.c.h.b16 %v80
  %v186 = vunpack.c.l.b16 %v81
  %v187 = vunpack.c.h.b16 %v81
  %v188 = vunpack.c.l.b16 %v82
  %v189 = vunpack.c.h.b16 %v82
  %v190 = vunpack.c.l.b16 %v83
  %v191 = vunpack.c.h.b16 %v83
  %v192 = vpack.c.b16 %v132, %v128
  %v193 = vpack.c.b16 %v133, %v129
  %v194 = vpack.c.b16 %v134, %v130
  %v195 = vpack.c.b16 %v135, %v131
  %v196 = vpack.c.b16 %v140, %v136
  %v197 = vpack.c.b16 %v141, %v137
  %v198 = vpack.c.b16 %v142, %v138
  %v199 = vpack.c.b16 %v143, %v139
  %v200 = vpack.c.b16 %v148, %v144
  %v201 = vpack.c.b16 %v149, %v145
  %v202 = vpack.c.b16 %v150, %v146
  %v203 = vpack.c.b16 %v151, %v147
  %v204 = vpack.c.b16 %v156, %v152
  %v205 = vpack.c.b16 %v157, %v153
  %v206 = vpack.c.b16 %v158, %v154
  %v207 = vpack.c.b16 %v159, %v155
  %v208 = vpack.c.b16 %v164, %v160
  %v209 = vpack.c.b16 %v165, %v161
  %v210 = vpack.c.b16 %v166, %v162
  %v211 = vpack.c.b16 %v167, %v163
  %v212 = vpack.c.b16 %v172, %v168
  %v213 = vpack.c.b16 %v173, %v169
  %v214 = vpack.c.b16 %v174, %v170
  %v215 = vpack.c.b16 %v175, %v171
  %v216 = vpack.c.b16 %v180, %v176
  %v217 = vpack.c.b16 %v181, %v177
  %v218 = vpack.c.b16 %v182, %v178
  %v219 = vpack.c.b16 %v183, %v179
  %v220 = vpack.c.b16 %v188, %v184
  %v221 = vpack.c.b16 %v189, %v185
  %v222 = vpack.c.b16 %v190, %v186
  %v223 = vpack.c.b16 %v191, %v187
  %256 = vmatprep.subr.bf16.mxu0 %v193
  %257 = vmatpush1.bf16.msra.mxu0 %v192
  %258 = vmatprep.subr.bf16.mxu0 %v197
  %259 = vmatpush1.bf16.msra.mxu0 %v196
  %260 = vmatprep.subr.bf16.mxu0 %v201
  %261 = vmatpush1.bf16.msra.mxu0 %v200
  %262 = vmatprep.subr.bf16.mxu0 %v205
  %263 = vmatpush1.bf16.msra.mxu0 %v204
  %264 = vmatprep.subr.bf16.mxu0 %v209
  %265 = vmatpush1.bf16.msra.mxu0 %v208
  %266 = vmatprep.subr.bf16.mxu0 %v213
  %267 = vmatpush1.bf16.msra.mxu0 %v212
  %268 = vmatprep.subr.bf16.mxu0 %v217
  %269 = vmatpush1.bf16.msra.mxu0 %v216
  %270 = vmatprep.subr.bf16.mxu0 %v221
  %271 = vmatpush1.bf16.msra.mxu0 %v220
  %272 = vmatprep.subr.bf16.mxu0 0
  %273 = vmatpush1.bf16.msra.mxu0 0
  %274 = vmatprep.subr.bf16.mxu0 0
  %275 = vmatpush1.bf16.msra.mxu0 0
  %276 = vmatprep.subr.bf16.mxu0 0
  %277 = vmatpush1.bf16.msra.mxu0 0
  %278 = vmatprep.subr.bf16.mxu0 0
  %279 = vmatpush1.bf16.msra.mxu0 0
  %280 = vmatprep.subr.bf16.mxu0 0
  %281 = vmatpush1.bf16.msra.mxu0 0
  %282 = vmatprep.subr.bf16.mxu0 0
  %283 = vmatpush1.bf16.msra.mxu0 0
  %284 = vmatprep.subr.bf16.mxu0 0
  %285 = vmatpush1.bf16.msra.mxu0 0
  %286 = vmatprep.subr.bf16.mxu0 0
  %287 = vmatpush1.bf16.msra.mxu0 0
  %288 = vmatprep.mubr.bf16.mxu0 0
  %289 = vmatmul.mubr.bf16.gmra.mrb[0].mxu0 %v92
  %v290 = vpop.f32.mrb[0].mxu0
  %v291 = vadd.f32 0.0, %v290
  %v292 = vpop.f32.mrb[0].mxu0
  %v293 = vadd.f32 0.0, %v292
  %v294 = vpop.f32.mrb[0].mxu0
  %v295 = vadd.f32 0.0, %v294
  %v296 = vpop.f32.mrb[0].mxu0
  %v297 = vadd.f32 0.0, %v296
  %298 = vmatprep.mubr.bf16.mxu0 0
  %299 = vmatmul.mubr.bf16.gmra.mrb[0].mxu0 %v93
  %v300 = vpop.f32.mrb[0].mxu0
  %v301 = vadd.f32 0.0, %v300
  %v302 = vpop.f32.mrb[0].mxu0
  %v303 = vadd.f32 0.0, %v302
  %v304 = vpop.f32.mrb[0].mxu0
  %v305 = vadd.f32 0.0, %v304
  %v306 = vpop.f32.mrb[0].mxu0
  %v307 = vadd.f32 0.0, %v306
  %308 = vdwg.mxu0
  %309 = vmatprep.subr.bf16.mxu0 %v195
  %310 = vmatpush1.bf16.msra.mxu0 %v194
  %311 = vmatprep.subr.bf16.mxu0 %v199
  %312 = vmatpush1.bf16.msra.mxu0 %v198
  %313 = vmatprep.subr.bf16.mxu0 %v203
  %314 = vmatpush1.bf16.msra.mxu0 %v202
  %315 = vmatprep.subr.bf16.mxu0 %v207
  %316 = vmatpush1.bf16.msra.mxu0 %v206
  %317 = vmatprep.subr.bf16.mxu0 %v211
  %318 = vmatpush1.bf16.msra.mxu0 %v210
  %319 = vmatprep.subr.bf16.mxu0 %v215
  %320 = vmatpush1.bf16.msra.mxu0 %v214
  %321 = vmatprep.subr.bf16.mxu0 %v219
  %322 = vmatpush1.bf16.msra.mxu0 %v218
  %323 = vmatprep.subr.bf16.mxu0 %v223
  %324 = vmatpush1.bf16.msra.mxu0 %v222
  %325 = vmatprep.subr.bf16.mxu0 0
  %326 = vmatpush1.bf16.msra.mxu0 0
  %327 = vmatprep.subr.bf16.mxu0 0
  %328 = vmatpush1.bf16.msra.mxu0 0
  %329 = vmatprep.subr.bf16.mxu0 0
  %330 = vmatpush1.bf16.msra.mxu0 0
  %331 = vmatprep.subr.bf16.mxu0 0
  %332 = vmatpush1.bf16.msra.mxu0 0
  %333 = vmatprep.subr.bf16.mxu0 0
  %334 = vmatpush1.bf16.msra.mxu0 0
  %335 = vmatprep.subr.bf16.mxu0 0
  %336 = vmatpush1.bf16.msra.mxu0 0
  %337 = vmatprep.subr.bf16.mxu0 0
  %338 = vmatpush1.bf16.msra.mxu0 0
  %339 = vmatprep.subr.bf16.mxu0 0
  %340 = vmatpush1.bf16.msra.mxu0 0
  %341 = vmatprep.mubr.bf16.mxu0 0
  %342 = vmatmul.mubr.bf16.gmra.mrb[0].mxu0 %v92
  %v343 = vpop.f32.mrb[0].mxu0
  %v344 = vadd.f32 0.0, %v343
  %v345 = vpop.f32.mrb[0].mxu0
  %v346 = vadd.f32 0.0, %v345
  %v347 = vpop.f32.mrb[0].mxu0
  %v348 = vadd.f32 0.0, %v347
  %v349 = vpop.f32.mrb[0].mxu0
  %v350 = vadd.f32 0.0, %v349
  %351 = vmatprep.mubr.bf16.mxu0 0
  %352 = vmatmul.mubr.bf16.gmra.mrb[0].mxu0 %v93
  %v353 = vpop.f32.mrb[0].mxu0
  %v354 = vadd.f32 0.0, %v353
  %v355 = vpop.f32.mrb[0].mxu0
  %v356 = vadd.f32 0.0, %v355
  %v357 = vpop.f32.mrb[0].mxu0
  %v358 = vadd.f32 0.0, %v357
  %v359 = vpop.f32.mrb[0].mxu0
  %v360 = vadd.f32 0.0, %v359
  %361 = vdwg.mxu0
  %v362 = vadd.f32 %v32, %v291
  %v363 = vadd.f32 %v33, %v293
  %v364 = vadd.f32 %v34, %v344
  %v365 = vadd.f32 %v35, %v346
  %v366 = vadd.f32 %v36, %v295
  %v367 = vadd.f32 %v37, %v297
  %v368 = vadd.f32 %v38, %v348
  %v369 = vadd.f32 %v39, %v350
  %v370 = vadd.f32 %v40, %v301
  %v371 = vadd.f32 %v41, %v303
  %v372 = vadd.f32 %v42, %v354
  %v373 = vadd.f32 %v43, %v356
  %v374 = vadd.f32 %v44, %v305
  %v375 = vadd.f32 %v45, %v307
  %v376 = vadd.f32 %v46, %v358
  %v377 = vadd.f32 %v47, %v360
  %378 = vst [vmem:[#allocation2] sm:$0xff] %v362
  %379 = vst [vmem:[#allocation2 + $0x8] sm:$0xff] %v363
  %380 = vst [vmem:[#allocation2 + $0x10] sm:$0xff] %v364
  %381 = vst [vmem:[#allocation2 + $0x18] sm:$0xff] %v365
  %382 = vst [vmem:[#allocation2 + $0x20] sm:$0xff] %v366
  %383 = vst [vmem:[#allocation2 + $0x28] sm:$0xff] %v367
  %384 = vst [vmem:[#allocation2 + $0x30] sm:$0xff] %v368
  %385 = vst [vmem:[#allocation2 + $0x38] sm:$0xff] %v369
  %386 = vst [vmem:[#allocation2 + $0x40] sm:$0xff] %v370
  %387 = vst [vmem:[#allocation2 + $0x48] sm:$0xff] %v371
  %388 = vst [vmem:[#allocation2 + $0x50] sm:$0xff] %v372
  %389 = vst [vmem:[#allocation2 + $0x58] sm:$0xff] %v373
  %390 = vst [vmem:[#allocation2 + $0x60] sm:$0xff] %v374
  %391 = vst [vmem:[#allocation2 + $0x68] sm:$0xff] %v375
  %392 = vst [vmem:[#allocation2 + $0x70] sm:$0xff] %v376
  %393 = vst [vmem:[#allocation2 + $0x78] sm:$0xff] %v377
  // Predicated region
  $region14: #{llm_forward.23} parent=0 // pred_check
    %p394 = pneg %p12
  $region15: #{llm_forward.23} parent=0 // pred_check_branch
    %396 = sbr.rel (%p394) target = $region17
  $region16: #{llm_forward.23} parent=0 // pred_region
    %v397 = vld [vmem:[#allocation2] sm:$0xff]
    %v398 = vld [vmem:[#allocation2 + $0x8] sm:$0xff]
    %v399 = vld [vmem:[#allocation2 + $0x10] sm:$0xff]
    %v400 = vld [vmem:[#allocation2 + $0x18] sm:$0xff]
    %v401 = vld [vmem:[#allocation2 + $0x20] sm:$0xff]
    %v402 = vld [vmem:[#allocation2 + $0x28] sm:$0xff]
    %v403 = vld [vmem:[#allocation2 + $0x30] sm:$0xff]
    %v404 = vld [vmem:[#allocation2 + $0x38] sm:$0xff]
    %v405 = vld [vmem:[#allocation2 + $0x40] sm:$0xff]
    %v406 = vld [vmem:[#allocation2 + $0x48] sm:$0xff]
    %v407 = vld [vmem:[#allocation2 + $0x50] sm:$0xff]
    %v408 = vld [vmem:[#allocation2 + $0x58] sm:$0xff]
    %v409 = vld [vmem:[#allocation2 + $0x60] sm:$0xff]
    %v410 = vld [vmem:[#allocation2 + $0x68] sm:$0xff]
    %v411 = vld [vmem:[#allocation2 + $0x70] sm:$0xff]
    %v412 = vld [vmem:[#allocation2 + $0x78] sm:$0xff]
    %v413 = vpack.c.bf16 %v401, %v397
    %v414 = vpack.c.bf16 %v402, %v398
    %v415 = vpack.c.bf16 %v403, %v399
    %v416 = vpack.c.bf16 %v404, %v400
    %v417 = vpack.c.bf16 %v409, %v405
    %v418 = vpack.c.bf16 %v410, %v406
    %v419 = vpack.c.bf16 %v411, %v407
    %v420 = vpack.c.bf16 %v412, %v408
    %v429 = vunpack.c.l.b16 %v413
    %v430 = vunpack.c.l.b16 %v414
    %v431 = vunpack.c.l.b16 %v415
    %v432 = vunpack.c.l.b16 %v416
    %v433 = vunpack.c.h.b16 %v413
    %v434 = vunpack.c.h.b16 %v414
    %v435 = vunpack.c.h.b16 %v415
    %v436 = vunpack.c.h.b16 %v416
    %v437 = vunpack.c.l.b16 %v417
    %v438 = vunpack.c.l.b16 %v418
    %v439 = vunpack.c.l.b16 %v419
    %v440 = vunpack.c.l.b16 %v420
    %v441 = vunpack.c.h.b16 %v417
    %v442 = vunpack.c.h.b16 %v418
    %v443 = vunpack.c.h.b16 %v419
    %v444 = vunpack.c.h.b16 %v420
    %v445 = vpack.c.b16 %v430, %v429
    %v446 = vpack.c.b16 %v432, %v431
    %v447 = vpack.c.b16 %v434, %v433
    %v448 = vpack.c.b16 %v436, %v435
    %v449 = vpack.c.b16 %v438, %v437
    %v450 = vpack.c.b16 %v440, %v439
    %v451 = vpack.c.b16 %v442, %v441
    %v452 = vpack.c.b16 %v444, %v443
    %461 = vst [vmem:[%s2] sm:$0xff] %v445
    %462 = vst [vmem:[%s2 + $0x8] sm:$0xff] %v446
    %463 = vst [vmem:[%s2 + $0x10] sm:$0xff] %v447
    %464 = vst [vmem:[%s2 + $0x18] sm:$0xff] %v448
    %465 = vst [vmem:[%s2 + $0x20] sm:$0xff] %v449
    %466 = vst [vmem:[%s2 + $0x28] sm:$0xff] %v450
    %467 = vst [vmem:[%s2 + $0x30] sm:$0xff] %v451
    %468 = vst [vmem:[%s2 + $0x38] sm:$0xff] %v452
  $region17: #{llm_forward.23} parent=0 // pred_fallthru
    _
  // Predicated region
  $region18: #{llm_forward.23} parent=0 // pred_check
    _
  $region19: #{llm_forward.23} parent=0 // pred_check_branch
    %470 = sbr.rel (0) target = $region21
  $region20: #{llm_forward.23} parent=0 // pred_region
    _
  $region21: #{llm_forward.23} parent=0 // pred_fallthru
    _
  // Predicated region
  $region22: #{llm_forward.23} parent=0 // pred_check
    _
  $region23: #{llm_forward.23} parent=0 // pred_check_branch
    %472 = sbr.rel (0) target = $region25
  $region24: #{llm_forward.23} parent=0 // pred_region
    _
  $region25: #{llm_forward.23} parent=0 // pred_fallthru
    _

// kernel: llm_forward.24
$region0: #{llm_forward.24}
  #allocation0 [shape = 'u32[]', space=smem, size = 0x4, offset = 0x4, fixed_abs, tag = 'smem constant byte address 0x4 - core index']
  #allocation1 [shape = 'u32[144,128]{1,0:T(1,128)}', space=vmem, size = 0x12000, scoped, tag = 'internal scratch']
  #allocation2 [shape = 'f32[32,128]{1,0:T(8,128)}', space=vmem, size = 0x4000, scoped, tag = 'scratch operand']
  %s0 = inlined_call_operand.vmem [shape: bf16[32,512], index: 0, kind: input, shape index: {}]
  %s1 = inlined_call_operand.vmem [shape: bf16[512,128], index: 1, kind: input, shape index: {}]
  %s2 = inlined_call_operand.vmem [shape: f32[32,128], index: 2, kind: output, shape index: {}]
  %s3 = sld [smem:[#allocation0]]
  $region26: #{llm_forward.24} parent=0
    _
  %s5 = ssub.s32 1, %s3
  %s6 = scalar_select 0, %s5, %s3
  // Predicated region
  $region2: #{llm_forward.24} parent=0 // pred_check
    _
  $region3: #{llm_forward.24} parent=0 // pred_check_branch
    %8 = sbr.rel (0) target = $region5
  $region4: #{llm_forward.24} parent=0 // pred_region
    _
  $region5: #{llm_forward.24} parent=0 // pred_fallthru
    _
  // Predicated region
  $region6: #{llm_forward.24} parent=0 // pred_check
    _
  $region7: #{llm_forward.24} parent=0 // pred_check_branch
    %10 = sbr.rel (0) target = $region9
  $region8: #{llm_forward.24} parent=0 // pred_region
    _
  $region9: #{llm_forward.24} parent=0 // pred_fallthru
    _
  %p12 = scmp.eq.s32.totalorder 0, 0
  // Predicated region
  $region10: #{llm_forward.24} parent=0 // pred_check
    %p13 = pneg %p12
  $region11: #{llm_forward.24} parent=0 // pred_check_branch
    %15 = sbr.rel (%p13) target = $region13
  $region12: #{llm_forward.24} parent=0 // pred_region
    %16 = vst [vmem:[#allocation2] sm:$0xff] 0.0
    %17 = vst [vmem:[#allocation2 + $0x8] sm:$0xff] 0.0
    %18 = vst [vmem:[#allocation2 + $0x10] sm:$0xff] 0.0
    %19 = vst [vmem:[#allocation2 + $0x18] sm:$0xff] 0.0
  $region13: #{llm_forward.24} parent=0 // pred_fallthru
    _
  %v20 = vld [vmem:[#allocation2] sm:$0xff]
  %v21 = vld [vmem:[#allocation2 + $0x8] sm:$0xff]
  %v22 = vld [vmem:[#allocation2 + $0x10] sm:$0xff]
  %v23 = vld [vmem:[#allocation2 + $0x18] sm:$0xff]
  %v24 = vld [vmem:[%s0] sm:$0xff]
  %v25 = vld [vmem:[%s0 + $0x8] sm:$0xff]
  %v26 = vld [vmem:[%s0 + $0x10] sm:$0xff]
  %v27 = vld [vmem:[%s0 + $0x18] sm:$0xff]
  %v28 = vld [vmem:[%s0 + $0x20] sm:$0xff]
  %v29 = vld [vmem:[%s0 + $0x28] sm:$0xff]
  %v30 = vld [vmem:[%s0 + $0x30] sm:$0xff]
  %v31 = vld [vmem:[%s0 + $0x38] sm:$0xff]
  %v32 = vld [vmem:[%s1] sm:$0xf]
  %v33 = vld [vmem:[%s1 + $0x4] sm:$0xf]
  %v34 = vld [vmem:[%s1 + $0x8] sm:$0xf]
  %v35 = vld [vmem:[%s1 + $0xc] sm:$0xf]
  %v36 = vld [vmem:[%s1 + $0x10] sm:$0xf]
  %v37 = vld [vmem:[%s1 + $0x14] sm:$0xf]
  %v38 = vld [vmem:[%s1 + $0x18] sm:$0xf]
  %v39 = vld [vmem:[%s1 + $0x1c] sm:$0xf]
  %v40 = vld [vmem:[%s1 + $0x20] sm:$0xf]
  %v41 = vld [vmem:[%s1 + $0x24] sm:$0xf]
  %v42 = vld [vmem:[%s1 + $0x28] sm:$0xf]
  %v43 = vld [vmem:[%s1 + $0x2c] sm:$0xf]
  %v44 = vld [vmem:[%s1 + $0x30] sm:$0xf]
  %v45 = vld [vmem:[%s1 + $0x34] sm:$0xf]
  %v46 = vld [vmem:[%s1 + $0x38] sm:$0xf]
  %v47 = vld [vmem:[%s1 + $0x3c] sm:$0xf]
  %v48 = vld [vmem:[%s1 + $0x40] sm:$0xf]
  %v49 = vld [vmem:[%s1 + $0x44] sm:$0xf]
  %v50 = vld [vmem:[%s1 + $0x48] sm:$0xf]
  %v51 = vld [vmem:[%s1 + $0x4c] sm:$0xf]
  %v52 = vld [vmem:[%s1 + $0x50] sm:$0xf]
  %v53 = vld [vmem:[%s1 + $0x54] sm:$0xf]
  %v54 = vld [vmem:[%s1 + $0x58] sm:$0xf]
  %v55 = vld [vmem:[%s1 + $0x5c] sm:$0xf]
  %v56 = vld [vmem:[%s1 + $0x60] sm:$0xf]
  %v57 = vld [vmem:[%s1 + $0x64] sm:$0xf]
  %v58 = vld [vmem:[%s1 + $0x68] sm:$0xf]
  %v59 = vld [vmem:[%s1 + $0x6c] sm:$0xf]
  %v60 = vld [vmem:[%s1 + $0x70] sm:$0xf]
  %v61 = vld [vmem:[%s1 + $0x74] sm:$0xf]
  %v62 = vld [vmem:[%s1 + $0x78] sm:$0xf]
  %v63 = vld [vmem:[%s1 + $0x7c] sm:$0xf]
  %v64 = vld [vmem:[%s1 + $0x80] sm:$0xf]
  %v65 = vld [vmem:[%s1 + $0x84] sm:$0xf]
  %v66 = vld [vmem:[%s1 + $0x88] sm:$0xf]
  %v67 = vld [vmem:[%s1 + $0x8c] sm:$0xf]
  %v68 = vld [vmem:[%s1 + $0x90] sm:$0xf]
  %v69 = vld [vmem:[%s1 + $0x94] sm:$0xf]
  %v70 = vld [vmem:[%s1 + $0x98] sm:$0xf]
  %v71 = vld [vmem:[%s1 + $0x9c] sm:$0xf]
  %v72 = vld [vmem:[%s1 + $0xa0] sm:$0xf]
  %v73 = vld [vmem:[%s1 + $0xa4] sm:$0xf]
  %v74 = vld [vmem:[%s1 + $0xa8] sm:$0xf]
  %v75 = vld [vmem:[%s1 + $0xac] sm:$0xf]
  %v76 = vld [vmem:[%s1 + $0xb0] sm:$0xf]
  %v77 = vld [vmem:[%s1 + $0xb4] sm:$0xf]
  %v78 = vld [vmem:[%s1 + $0xb8] sm:$0xf]
  %v79 = vld [vmem:[%s1 + $0xbc] sm:$0xf]
  %v80 = vld [vmem:[%s1 + $0xc0] sm:$0xf]
  %v81 = vld [vmem:[%s1 + $0xc4] sm:$0xf]
  %v82 = vld [vmem:[%s1 + $0xc8] sm:$0xf]
  %v83 = vld [vmem:[%s1 + $0xcc] sm:$0xf]
  %v84 = vld [vmem:[%s1 + $0xd0] sm:$0xf]
  %v85 = vld [vmem:[%s1 + $0xd4] sm:$0xf]
  %v86 = vld [vmem:[%s1 + $0xd8] sm:$0xf]
  %v87 = vld [vmem:[%s1 + $0xdc] sm:$0xf]
  %v88 = vld [vmem:[%s1 + $0xe0] sm:$0xf]
  %v89 = vld [vmem:[%s1 + $0xe4] sm:$0xf]
  %v90 = vld [vmem:[%s1 + $0xe8] sm:$0xf]
  %v91 = vld [vmem:[%s1 + $0xec] sm:$0xf]
  %v92 = vld [vmem:[%s1 + $0xf0] sm:$0xf]
  %v93 = vld [vmem:[%s1 + $0xf4] sm:$0xf]
  %v94 = vld [vmem:[%s1 + $0xf8] sm:$0xf]
  %v95 = vld [vmem:[%s1 + $0xfc] sm:$0xf]
  %v104 = vunpack.c.l.b16 %v24
  %v105 = vunpack.c.h.b16 %v24
  %v106 = vunpack.c.l.b16 %v25
  %v107 = vunpack.c.h.b16 %v25
  %v108 = vunpack.c.l.b16 %v26
  %v109 = vunpack.c.h.b16 %v26
  %v110 = vunpack.c.l.b16 %v27
  %v111 = vunpack.c.h.b16 %v27
  %v112 = vunpack.c.l.b16 %v28
  %v113 = vunpack.c.h.b16 %v28
  %v114 = vunpack.c.l.b16 %v29
  %v115 = vunpack.c.h.b16 %v29
  %v116 = vunpack.c.l.b16 %v30
  %v117 = vunpack.c.h.b16 %v30
  %v118 = vunpack.c.l.b16 %v31
  %v119 = vunpack.c.h.b16 %v31
  %v120 = vpack.c.b16 %v108, %v104
  %v121 = vpack.c.b16 %v109, %v105
  %v122 = vpack.c.b16 %v110, %v106
  %v123 = vpack.c.b16 %v111, %v107
  %v124 = vpack.c.b16 %v116, %v112
  %v125 = vpack.c.b16 %v117, %v113
  %v126 = vpack.c.b16 %v118, %v114
  %v127 = vpack.c.b16 %v119, %v115
  %v200 = vunpack.c.l.b16 %v32
  %v201 = vunpack.c.l.b16 %v33
  %v202 = vunpack.c.l.b16 %v34
  %v203 = vunpack.c.l.b16 %v35
  %v204 = vunpack.c.l.b16 %v36
  %v205 = vunpack.c.l.b16 %v37
  %v206 = vunpack.c.l.b16 %v38
  %v207 = vunpack.c.l.b16 %v39
  %v208 = vunpack.c.l.b16 %v40
  %v209 = vunpack.c.l.b16 %v41
  %v210 = vunpack.c.l.b16 %v42
  %v211 = vunpack.c.l.b16 %v43
  %v212 = vunpack.c.l.b16 %v44
  %v213 = vunpack.c.l.b16 %v45
  %v214 = vunpack.c.l.b16 %v46
  %v215 = vunpack.c.l.b16 %v47
  %v216 = vunpack.c.l.b16 %v48
  %v217 = vunpack.c.l.b16 %v49
  %v218 = vunpack.c.l.b16 %v50
  %v219 = vunpack.c.l.b16 %v51
  %v220 = vunpack.c.l.b16 %v52
  %v221 = vunpack.c.l.b16 %v53
  %v222 = vunpack.c.l.b16 %v54
  %v223 = vunpack.c.l.b16 %v55
  %v224 = vunpack.c.l.b16 %v56
  %v225 = vunpack.c.l.b16 %v57
  %v226 = vunpack.c.l.b16 %v58
  %v227 = vunpack.c.l.b16 %v59
  %v228 = vunpack.c.l.b16 %v60
  %v229 = vunpack.c.l.b16 %v61
  %v230 = vunpack.c.l.b16 %v62
  %v231 = vunpack.c.l.b16 %v63
  %v232 = vunpack.c.l.b16 %v64
  %v233 = vunpack.c.l.b16 %v65
  %v234 = vunpack.c.l.b16 %v66
  %v235 = vunpack.c.l.b16 %v67
  %v236 = vunpack.c.l.b16 %v68
  %v237 = vunpack.c.l.b16 %v69
  %v238 = vunpack.c.l.b16 %v70
  %v239 = vunpack.c.l.b16 %v71
  %v240 = vunpack.c.l.b16 %v72
  %v241 = vunpack.c.l.b16 %v73
  %v242 = vunpack.c.l.b16 %v74
  %v243 = vunpack.c.l.b16 %v75
  %v244 = vunpack.c.l.b16 %v76
  %v245 = vunpack.c.l.b16 %v77
  %v246 = vunpack.c.l.b16 %v78
  %v247 = vunpack.c.l.b16 %v79
  %v248 = vunpack.c.l.b16 %v80
  %v249 = vunpack.c.l.b16 %v81
  %v250 = vunpack.c.l.b16 %v82
  %v251 = vunpack.c.l.b16 %v83
  %v252 = vunpack.c.l.b16 %v84
  %v253 = vunpack.c.l.b16 %v85
  %v254 = vunpack.c.l.b16 %v86
  %v255 = vunpack.c.l.b16 %v87
  %v256 = vunpack.c.l.b16 %v88
  %v257 = vunpack.c.l.b16 %v89
  %v258 = vunpack.c.l.b16 %v90
  %v259 = vunpack.c.l.b16 %v91
  %v260 = vunpack.c.l.b16 %v92
  %v261 = vunpack.c.l.b16 %v93
  %v262 = vunpack.c.l.b16 %v94
  %v263 = vunpack.c.l.b16 %v95
  %v264 = vpack.c.b16 %v201, %v200
  %v265 = vpack.c.b16 %v203, %v202
  %v266 = vpack.c.b16 %v205, %v204
  %v267 = vpack.c.b16 %v207, %v206
  %v268 = vpack.c.b16 %v209, %v208
  %v269 = vpack.c.b16 %v211, %v210
  %v270 = vpack.c.b16 %v213, %v212
  %v271 = vpack.c.b16 %v215, %v214
  %v272 = vpack.c.b16 %v217, %v216
  %v273 = vpack.c.b16 %v219, %v218
  %v274 = vpack.c.b16 %v221, %v220
  %v275 = vpack.c.b16 %v223, %v222
  %v276 = vpack.c.b16 %v225, %v224
  %v277 = vpack.c.b16 %v227, %v226
  %v278 = vpack.c.b16 %v229, %v228
  %v279 = vpack.c.b16 %v231, %v230
  %v280 = vpack.c.b16 %v233, %v232
  %v281 = vpack.c.b16 %v235, %v234
  %v282 = vpack.c.b16 %v237, %v236
  %v283 = vpack.c.b16 %v239, %v238
  %v284 = vpack.c.b16 %v241, %v240
  %v285 = vpack.c.b16 %v243, %v242
  %v286 = vpack.c.b16 %v245, %v244
  %v287 = vpack.c.b16 %v247, %v246
  %v288 = vpack.c.b16 %v249, %v248
  %v289 = vpack.c.b16 %v251, %v250
  %v290 = vpack.c.b16 %v253, %v252
  %v291 = vpack.c.b16 %v255, %v254
  %v292 = vpack.c.b16 %v257, %v256
  %v293 = vpack.c.b16 %v259, %v258
  %v294 = vpack.c.b16 %v261, %v260
  %v295 = vpack.c.b16 %v263, %v262
  %328 = vmatprep.subr.bf16.mxu0 0
  %329 = vmatpush1.bf16.msra.mxu0 %v264
  %330 = vmatprep.subr.bf16.mxu0 0
  %331 = vmatpush1.bf16.msra.mxu0 %v265
  %332 = vmatprep.subr.bf16.mxu0 0
  %333 = vmatpush1.bf16.msra.mxu0 %v266
  %334 = vmatprep.subr.bf16.mxu0 0
  %335 = vmatpush1.bf16.msra.mxu0 %v267
  %336 = vmatprep.subr.bf16.mxu0 0
  %337 = vmatpush1.bf16.msra.mxu0 %v268
  %338 = vmatprep.subr.bf16.mxu0 0
  %339 = vmatpush1.bf16.msra.mxu0 %v269
  %340 = vmatprep.subr.bf16.mxu0 0
  %341 = vmatpush1.bf16.msra.mxu0 %v270
  %342 = vmatprep.subr.bf16.mxu0 0
  %343 = vmatpush1.bf16.msra.mxu0 %v271
  %344 = vmatprep.subr.bf16.mxu0 0
  %345 = vmatpush1.bf16.msra.mxu0 %v272
  %346 = vmatprep.subr.bf16.mxu0 0
  %347 = vmatpush1.bf16.msra.mxu0 %v273
  %348 = vmatprep.subr.bf16.mxu0 0
  %349 = vmatpush1.bf16.msra.mxu0 %v274
  %350 = vmatprep.subr.bf16.mxu0 0
  %351 = vmatpush1.bf16.msra.mxu0 %v275
  %352 = vmatprep.subr.bf16.mxu0 0
  %353 = vmatpush1.bf16.msra.mxu0 %v276
  %354 = vmatprep.subr.bf16.mxu0 0
  %355 = vmatpush1.bf16.msra.mxu0 %v277
  %356 = vmatprep.subr.bf16.mxu0 0
  %357 = vmatpush1.bf16.msra.mxu0 %v278
  %358 = vmatprep.subr.bf16.mxu0 0
  %359 = vmatpush1.bf16.msra.mxu0 %v279
  %360 = vmatprep.mubr.bf16.mxu0 %v121
  %361 = vmatmul.mubr.bf16.gmra.mrb[0].mxu0 %v120
  %v362 = vpop.f32.mrb[0].mxu0
  %v363 = vadd.f32 0.0, %v362
  %v364 = vpop.f32.mrb[0].mxu0
  %v365 = vpop.f32.mrb[0].mxu0
  %v366 = vadd.f32 0.0, %v365
  %v367 = vpop.f32.mrb[0].mxu0
  %368 = vmatprep.mubr.bf16.mxu0 %v125
  %369 = vmatmul.mubr.bf16.gmra.mrb[0].mxu0 %v124
  %v370 = vpop.f32.mrb[0].mxu0
  %v371 = vadd.f32 0.0, %v370
  %v372 = vpop.f32.mrb[0].mxu0
  %v373 = vpop.f32.mrb[0].mxu0
  %v374 = vadd.f32 0.0, %v373
  %v375 = vpop.f32.mrb[0].mxu0
  %376 = vdwg.mxu0
  %377 = vmatprep.subr.bf16.mxu0 0
  %378 = vmatpush1.bf16.msra.mxu0 %v280
  %379 = vmatprep.subr.bf16.mxu0 0
  %380 = vmatpush1.bf16.msra.mxu0 %v281
  %381 = vmatprep.subr.bf16.mxu0 0
  %382 = vmatpush1.bf16.msra.mxu0 %v282
  %383 = vmatprep.subr.bf16.mxu0 0
  %384 = vmatpush1.bf16.msra.mxu0 %v283
  %385 = vmatprep.subr.bf16.mxu0 0
  %386 = vmatpush1.bf16.msra.mxu0 %v284
  %387 = vmatprep.subr.bf16.mxu0 0
  %388 = vmatpush1.bf16.msra.mxu0 %v285
  %389 = vmatprep.subr.bf16.mxu0 0
  %390 = vmatpush1.bf16.msra.mxu0 %v286
  %391 = vmatprep.subr.bf16.mxu0 0
  %392 = vmatpush1.bf16.msra.mxu0 %v287
  %393 = vmatprep.subr.bf16.mxu0 0
  %394 = vmatpush1.bf16.msra.mxu0 %v288
  %395 = vmatprep.subr.bf16.mxu0 0
  %396 = vmatpush1.bf16.msra.mxu0 %v289
  %397 = vmatprep.subr.bf16.mxu0 0
  %398 = vmatpush1.bf16.msra.mxu0 %v290
  %399 = vmatprep.subr.bf16.mxu0 0
  %400 = vmatpush1.bf16.msra.mxu0 %v291
  %401 = vmatprep.subr.bf16.mxu0 0
  %402 = vmatpush1.bf16.msra.mxu0 %v292
  %403 = vmatprep.subr.bf16.mxu0 0
  %404 = vmatpush1.bf16.msra.mxu0 %v293
  %405 = vmatprep.subr.bf16.mxu0 0
  %406 = vmatpush1.bf16.msra.mxu0 %v294
  %407 = vmatprep.subr.bf16.mxu0 0
  %408 = vmatpush1.bf16.msra.mxu0 %v295
  %409 = vmatprep.mubr.bf16.mxu0 %v123
  %410 = vmatmul.mubr.bf16.gmra.mrb[0].mxu0 %v122
  %v411 = vpop.f32.mrb[0].mxu0
  %v412 = vadd.f32 %v363, %v411
  %v413 = vpop.f32.mrb[0].mxu0
  %v414 = vpop.f32.mrb[0].mxu0
  %v415 = vadd.f32 %v366, %v414
  %v416 = vpop.f32.mrb[0].mxu0
  %417 = vmatprep.mubr.bf16.mxu0 %v127
  %418 = vmatmul.mubr.bf16.gmra.mrb[0].mxu0 %v126
  %v419 = vpop.f32.mrb[0].mxu0
  %v420 = vadd.f32 %v371, %v419
  %v421 = vpop.f32.mrb[0].mxu0
  %v422 = vpop.f32.mrb[0].mxu0
  %v423 = vadd.f32 %v374, %v422
  %v424 = vpop.f32.mrb[0].mxu0
  %425 = vdwg.mxu0
  %v426 = vadd.f32 %v20, %v412
  %v427 = vadd.f32 %v21, %v415
  %v428 = vadd.f32 %v22, %v420
  %v429 = vadd.f32 %v23, %v423
  %430 = vst [vmem:[#allocation2] sm:$0xff] %v426
  %431 = vst [vmem:[#allocation2 + $0x8] sm:$0xff] %v427
  %432 = vst [vmem:[#allocation2 + $0x10] sm:$0xff] %v428
  %433 = vst [vmem:[#allocation2 + $0x18] sm:$0xff] %v429
  // Predicated region
  $region14: #{llm_forward.24} parent=0 // pred_check
    %p434 = pneg %p12
  $region15: #{llm_forward.24} parent=0 // pred_check_branch
    %436 = sbr.rel (%p434) target = $region17
  $region16: #{llm_forward.24} parent=0 // pred_region
    %v437 = vld [vmem:[#allocation2] sm:$0xff]
    %v438 = vld [vmem:[#allocation2 + $0x8] sm:$0xff]
    %v439 = vld [vmem:[#allocation2 + $0x10] sm:$0xff]
    %v440 = vld [vmem:[#allocation2 + $0x18] sm:$0xff]
    %441 = vst [vmem:[%s2] sm:$0xff] %v437
    %442 = vst [vmem:[%s2 + $0x8] sm:$0xff] %v438
    %443 = vst [vmem:[%s2 + $0x10] sm:$0xff] %v439
    %444 = vst [vmem:[%s2 + $0x18] sm:$0xff] %v440
  $region17: #{llm_forward.24} parent=0 // pred_fallthru
    _
  // Predicated region
  $region18: #{llm_forward.24} parent=0 // pred_check
    _
  $region19: #{llm_forward.24} parent=0 // pred_check_branch
    %446 = sbr.rel (0) target = $region21
  $region20: #{llm_forward.24} parent=0 // pred_region
    _
  $region21: #{llm_forward.24} parent=0 // pred_fallthru
    _
  // Predicated region
  $region22: #{llm_forward.24} parent=0 // pred_check
    _
  $region23: #{llm_forward.24} parent=0 // pred_check_branch
    %448 = sbr.rel (0) target = $region25
  $region24: #{llm_forward.24} parent=0 // pred_region
    _
  $region25: #{llm_forward.24} parent=0 // pred_fallthru
    _

// kernel: llm_forward.33
$region0: #{llm_forward.33}
  #allocation0 [shape = 'u32[]', space=smem, size = 0x4, offset = 0x4, fixed_abs, tag = 'smem constant byte address 0x4 - core index']
  #allocation1 [shape = 'u32[144,128]{1,0:T(1,128)}', space=vmem, size = 0x12000, scoped, tag = 'internal scratch']
  #allocation2 [shape = 'f32[32,256]{1,0:T(8,128)}', space=vmem, size = 0x8000, scoped, tag = 'scratch operand']
  %s0 = inlined_call_operand.vmem [shape: bf16[32,128], index: 0, kind: input, shape index: {}]
  %s1 = inlined_call_operand.vmem [shape: bf16[128,256], index: 1, kind: input, shape index: {}]
  %s2 = inlined_call_operand.vmem [shape: f32[32,256], index: 2, kind: output, shape index: {}]
  %s3 = sld [smem:[#allocation0]]
  $region26: #{llm_forward.33} parent=0
    _
  %s5 = ssub.s32 1, %s3
  %s6 = scalar_select 0, %s5, %s3
  // Predicated region
  $region2: #{llm_forward.33} parent=0 // pred_check
    _
  $region3: #{llm_forward.33} parent=0 // pred_check_branch
    %8 = sbr.rel (0) target = $region5
  $region4: #{llm_forward.33} parent=0 // pred_region
    _
  $region5: #{llm_forward.33} parent=0 // pred_fallthru
    _
  // Predicated region
  $region6: #{llm_forward.33} parent=0 // pred_check
    _
  $region7: #{llm_forward.33} parent=0 // pred_check_branch
    %10 = sbr.rel (0) target = $region9
  $region8: #{llm_forward.33} parent=0 // pred_region
    _
  $region9: #{llm_forward.33} parent=0 // pred_fallthru
    _
  %p12 = scmp.eq.s32.totalorder 0, 0
  // Predicated region
  $region10: #{llm_forward.33} parent=0 // pred_check
    %p13 = pneg %p12
  $region11: #{llm_forward.33} parent=0 // pred_check_branch
    %15 = sbr.rel (%p13) target = $region13
  $region12: #{llm_forward.33} parent=0 // pred_region
    %16 = vst [vmem:[#allocation2] sm:$0xff] 0.0
    %17 = vst [vmem:[#allocation2 + $0x8] sm:$0xff] 0.0
    %18 = vst [vmem:[#allocation2 + $0x10] sm:$0xff] 0.0
    %19 = vst [vmem:[#allocation2 + $0x18] sm:$0xff] 0.0
    %20 = vst [vmem:[#allocation2 + $0x20] sm:$0xff] 0.0
    %21 = vst [vmem:[#allocation2 + $0x28] sm:$0xff] 0.0
    %22 = vst [vmem:[#allocation2 + $0x30] sm:$0xff] 0.0
    %23 = vst [vmem:[#allocation2 + $0x38] sm:$0xff] 0.0
  $region13: #{llm_forward.33} parent=0 // pred_fallthru
    _
  %v24 = vld [vmem:[#allocation2] sm:$0xff]
  %v25 = vld [vmem:[#allocation2 + $0x8] sm:$0xff]
  %v26 = vld [vmem:[#allocation2 + $0x10] sm:$0xff]
  %v27 = vld [vmem:[#allocation2 + $0x18] sm:$0xff]
  %v28 = vld [vmem:[#allocation2 + $0x20] sm:$0xff]
  %v29 = vld [vmem:[#allocation2 + $0x28] sm:$0xff]
  %v30 = vld [vmem:[#allocation2 + $0x30] sm:$0xff]
  %v31 = vld [vmem:[#allocation2 + $0x38] sm:$0xff]
  %v32 = vld [vmem:[%s0] sm:$0xf]
  %v33 = vld [vmem:[%s0 + $0x4] sm:$0xf]
  %v34 = vld [vmem:[%s0 + $0x8] sm:$0xf]
  %v35 = vld [vmem:[%s0 + $0xc] sm:$0xf]
  %v36 = vld [vmem:[%s1] sm:$0xff]
  %v37 = vld [vmem:[%s1 + $0x8] sm:$0xff]
  %v38 = vld [vmem:[%s1 + $0x10] sm:$0xff]
  %v39 = vld [vmem:[%s1 + $0x18] sm:$0xff]
  %v40 = vld [vmem:[%s1 + $0x20] sm:$0xff]
  %v41 = vld [vmem:[%s1 + $0x28] sm:$0xff]
  %v42 = vld [vmem:[%s1 + $0x30] sm:$0xff]
  %v43 = vld [vmem:[%s1 + $0x38] sm:$0xff]
  %v44 = vld [vmem:[%s1 + $0x40] sm:$0xff]
  %v45 = vld [vmem:[%s1 + $0x48] sm:$0xff]
  %v46 = vld [vmem:[%s1 + $0x50] sm:$0xff]
  %v47 = vld [vmem:[%s1 + $0x58] sm:$0xff]
  %v48 = vld [vmem:[%s1 + $0x60] sm:$0xff]
  %v49 = vld [vmem:[%s1 + $0x68] sm:$0xff]
  %v50 = vld [vmem:[%s1 + $0x70] sm:$0xff]
  %v51 = vld [vmem:[%s1 + $0x78] sm:$0xff]
  %v56 = vunpack.c.l.b16 %v32
  %v57 = vunpack.c.l.b16 %v33
  %v58 = vunpack.c.l.b16 %v34
  %v59 = vunpack.c.l.b16 %v35
  %v60 = vpack.c.b16 %v57, %v56
  %v61 = vpack.c.b16 %v59, %v58
  %v80 = vunpack.c.l.b16 %v36
  %v81 = vunpack.c.h.b16 %v36
  %v82 = vunpack.c.l.b16 %v37
  %v83 = vunpack.c.h.b16 %v37
  %v84 = vunpack.c.l.b16 %v38
  %v85 = vunpack.c.h.b16 %v38
  %v86 = vunpack.c.l.b16 %v39
  %v87 = vunpack.c.h.b16 %v39
  %v88 = vunpack.c.l.b16 %v40
  %v89 = vunpack.c.h.b16 %v40
  %v90 = vunpack.c.l.b16 %v41
  %v91 = vunpack.c.h.b16 %v41
  %v92 = vunpack.c.l.b16 %v42
  %v93 = vunpack.c.h.b16 %v42
  %v94 = vunpack.c.l.b16 %v43
  %v95 = vunpack.c.h.b16 %v43
  %v96 = vunpack.c.l.b16 %v44
  %v97 = vunpack.c.h.b16 %v44
  %v98 = vunpack.c.l.b16 %v45
  %v99 = vunpack.c.h.b16 %v45
  %v100 = vunpack.c.l.b16 %v46
  %v101 = vunpack.c.h.b16 %v46
  %v102 = vunpack.c.l.b16 %v47
  %v103 = vunpack.c.h.b16 %v47
  %v104 = vunpack.c.l.b16 %v48
  %v105 = vunpack.c.h.b16 %v48
  %v106 = vunpack.c.l.b16 %v49
  %v107 = vunpack.c.h.b16 %v49
  %v108 = vunpack.c.l.b16 %v50
  %v109 = vunpack.c.h.b16 %v50
  %v110 = vunpack.c.l.b16 %v51
  %v111 = vunpack.c.h.b16 %v51
  %v112 = vpack.c.b16 %v82, %v80
  %v113 = vpack.c.b16 %v83, %v81
  %v114 = vpack.c.b16 %v86, %v84
  %v115 = vpack.c.b16 %v87, %v85
  %v116 = vpack.c.b16 %v90, %v88
  %v117 = vpack.c.b16 %v91, %v89
  %v118 = vpack.c.b16 %v94, %v92
  %v119 = vpack.c.b16 %v95, %v93
  %v120 = vpack.c.b16 %v98, %v96
  %v121 = vpack.c.b16 %v99, %v97
  %v122 = vpack.c.b16 %v102, %v100
  %v123 = vpack.c.b16 %v103, %v101
  %v124 = vpack.c.b16 %v106, %v104
  %v125 = vpack.c.b16 %v107, %v105
  %v126 = vpack.c.b16 %v110, %v108
  %v127 = vpack.c.b16 %v111, %v109
  %144 = vmatprep.subr.bf16.mxu0 %v113
  %145 = vmatpush1.bf16.msra.mxu0 %v112
  %146 = vmatprep.subr.bf16.mxu0 %v115
  %147 = vmatpush1.bf16.msra.mxu0 %v114
  %148 = vmatprep.subr.bf16.mxu0 %v117
  %149 = vmatpush1.bf16.msra.mxu0 %v116
  %150 = vmatprep.subr.bf16.mxu0 %v119
  %151 = vmatpush1.bf16.msra.mxu0 %v118
  %152 = vmatprep.subr.bf16.mxu0 %v121
  %153 = vmatpush1.bf16.msra.mxu0 %v120
  %154 = vmatprep.subr.bf16.mxu0 %v123
  %155 = vmatpush1.bf16.msra.mxu0 %v122
  %156 = vmatprep.subr.bf16.mxu0 %v125
  %157 = vmatpush1.bf16.msra.mxu0 %v124
  %158 = vmatprep.subr.bf16.mxu0 %v127
  %159 = vmatpush1.bf16.msra.mxu0 %v126
  %160 = vmatprep.subr.bf16.mxu0 0
  %161 = vmatpush1.bf16.msra.mxu0 0
  %162 = vmatprep.subr.bf16.mxu0 0
  %163 = vmatpush1.bf16.msra.mxu0 0
  %164 = vmatprep.subr.bf16.mxu0 0
  %165 = vmatpush1.bf16.msra.mxu0 0
  %166 = vmatprep.subr.bf16.mxu0 0
  %167 = vmatpush1.bf16.msra.mxu0 0
  %168 = vmatprep.subr.bf16.mxu0 0
  %169 = vmatpush1.bf16.msra.mxu0 0
  %170 = vmatprep.subr.bf16.mxu0 0
  %171 = vmatpush1.bf16.msra.mxu0 0
  %172 = vmatprep.subr.bf16.mxu0 0
  %173 = vmatpush1.bf16.msra.mxu0 0
  %174 = vmatprep.subr.bf16.mxu0 0
  %175 = vmatpush1.bf16.msra.mxu0 0
  %176 = vmatprep.mubr.bf16.mxu0 0
  %177 = vmatmul.mubr.bf16.gmra.mrb[0].mxu0 %v60
  %v178 = vpop.f32.mrb[0].mxu0
  %v179 = vadd.f32 0.0, %v178
  %v180 = vpop.f32.mrb[0].mxu0
  %v181 = vadd.f32 0.0, %v180
  %v182 = vpop.f32.mrb[0].mxu0
  %v183 = vadd.f32 0.0, %v182
  %v184 = vpop.f32.mrb[0].mxu0
  %v185 = vadd.f32 0.0, %v184
  %186 = vmatprep.mubr.bf16.mxu0 0
  %187 = vmatmul.mubr.bf16.gmra.mrb[0].mxu0 %v61
  %v188 = vpop.f32.mrb[0].mxu0
  %v189 = vadd.f32 0.0, %v188
  %v190 = vpop.f32.mrb[0].mxu0
  %v191 = vadd.f32 0.0, %v190
  %v192 = vpop.f32.mrb[0].mxu0
  %v193 = vadd.f32 0.0, %v192
  %v194 = vpop.f32.mrb[0].mxu0
  %v195 = vadd.f32 0.0, %v194
  %196 = vdwg.mxu0
  %v197 = vadd.f32 %v24, %v179
  %v198 = vadd.f32 %v25, %v181
  %v199 = vadd.f32 %v26, %v183
  %v200 = vadd.f32 %v27, %v185
  %v201 = vadd.f32 %v28, %v189
  %v202 = vadd.f32 %v29, %v191
  %v203 = vadd.f32 %v30, %v193
  %v204 = vadd.f32 %v31, %v195
  %205 = vst [vmem:[#allocation2] sm:$0xff] %v197
  %206 = vst [vmem:[#allocation2 + $0x8] sm:$0xff] %v198
  %207 = vst [vmem:[#allocation2 + $0x10] sm:$0xff] %v199
  %208 = vst [vmem:[#allocation2 + $0x18] sm:$0xff] %v200
  %209 = vst [vmem:[#allocation2 + $0x20] sm:$0xff] %v201
  %210 = vst [vmem:[#allocation2 + $0x28] sm:$0xff] %v202
  %211 = vst [vmem:[#allocation2 + $0x30] sm:$0xff] %v203
  %212 = vst [vmem:[#allocation2 + $0x38] sm:$0xff] %v204
  // Predicated region
  $region14: #{llm_forward.33} parent=0 // pred_check
    %p213 = pneg %p12
  $region15: #{llm_forward.33} parent=0 // pred_check_branch
    %215 = sbr.rel (%p213) target = $region17
  $region16: #{llm_forward.33} parent=0 // pred_region
    %v216 = vld [vmem:[#allocation2] sm:$0xff]
    %v217 = vld [vmem:[#allocation2 + $0x8] sm:$0xff]
    %v218 = vld [vmem:[#allocation2 + $0x10] sm:$0xff]
    %v219 = vld [vmem:[#allocation2 + $0x18] sm:$0xff]
    %v220 = vld [vmem:[#allocation2 + $0x20] sm:$0xff]
    %v221 = vld [vmem:[#allocation2 + $0x28] sm:$0xff]
    %v222 = vld [vmem:[#allocation2 + $0x30] sm:$0xff]
    %v223 = vld [vmem:[#allocation2 + $0x38] sm:$0xff]
    %224 = vst [vmem:[%s2] sm:$0xff] %v216
    %225 = vst [vmem:[%s2 + $0x8] sm:$0xff] %v217
    %226 = vst [vmem:[%s2 + $0x10] sm:$0xff] %v218
    %227 = vst [vmem:[%s2 + $0x18] sm:$0xff] %v219
    %228 = vst [vmem:[%s2 + $0x20] sm:$0xff] %v220
    %229 = vst [vmem:[%s2 + $0x28] sm:$0xff] %v221
    %230 = vst [vmem:[%s2 + $0x30] sm:$0xff] %v222
    %231 = vst [vmem:[%s2 + $0x38] sm:$0xff] %v223
  $region17: #{llm_forward.33} parent=0 // pred_fallthru
    _
  // Predicated region
  $region18: #{llm_forward.33} parent=0 // pred_check
    _
  $region19: #{llm_forward.33} parent=0 // pred_check_branch
    %233 = sbr.rel (0) target = $region21
  $region20: #{llm_forward.33} parent=0 // pred_region
    _
  $region21: #{llm_forward.33} parent=0 // pred_fallthru
    _
  // Predicated region
  $region22: #{llm_forward.33} parent=0 // pred_check
    _
  $region23: #{llm_forward.33} parent=0 // pred_check_branch
    %235 = sbr.rel (0) target = $region25
  $region24: #{llm_forward.33} parent=0 // pred_region
    _
  $region25: #{llm_forward.33} parent=0 // pred_fallthru
    _

// kernel: llm_forward.20
$region0: #{llm_forward.20}
  #allocation0 [shape = 'u32[]', space=smem, size = 0x4, offset = 0x4, fixed_abs, tag = 'smem constant byte address 0x4 - core index']
  #allocation1 [shape = 'u32[144,128]{1,0:T(1,128)}', space=vmem, size = 0x12000, scoped, tag = 'internal scratch']
  #allocation2 [shape = 'f32[32,128]{1,0:T(8,128)}', space=vmem, size = 0x4000, scoped, tag = 'scratch operand']
  #allocation3 [shape = 'f32[1,128]{1,0:T(1,128)}', space=vmem, size = 0x200, scoped, tag = 'scratch operand']
  %s0 = inlined_call_operand.vmem [shape: bf16[2,16,128], index: 0, kind: input, shape index: {}]
  %s1 = inlined_call_operand.vmem [shape: bf16[2,16,128], index: 1, kind: input, shape index: {}]
  %s2 = inlined_call_operand.vmem [shape: bf16[2,16,128], index: 2, kind: input, shape index: {}]
  %s3 = inlined_call_operand.vmem [shape: bf16[2,16,128], index: 3, kind: input, shape index: {}]
  %s4 = inlined_call_operand.vmem [shape: f32[16,128], index: 4, kind: input, shape index: {}]
  %s5 = inlined_call_operand.vmem [shape: f32[16,128], index: 5, kind: input, shape index: {}]
  %s6 = inlined_call_operand.vmem [shape: f32[16,16,128], index: 6, kind: input, shape index: {}]
  %s7 = inlined_call_operand.vmem [shape: f32[1,128], index: 7, kind: input, shape index: {}]
  %s8 = inlined_call_operand.vmem [shape: f32[32,128], index: 8, kind: input, shape index: {}]
  %s9 = inlined_call_operand.vmem [shape: bf16[2,16,128], index: 9, kind: output, shape index: {}]
  %s10 = sld [smem:[#allocation0]]
  $region73: #{llm_forward.20} parent=0
    _
  %s12 = ssub.s32 1, %s10
  %s13 = scalar_select 0, %s12, %s10
  loop: start=0, step=1, limit=4
  $region2: #{llm_forward.20} parent=0 // loop_pre_header
    _
  $region3: #{llm_forward.20} parent=0 // loop_header
    %s15 = sphi 0, %s19
    %p16 = scmp.ge.s32.totalorder %s15, 4
    %s22 = sphi 0, %s34
    %s23 = sphi 0, %s30
    %s24 = sphi 0, %s22
    %s25 = sphi 0, %s23
    %s26 = sphi 0, %s24
    %s27 = sphi 0, %s25
    %s39 = sphi 0, %s41
    %s42 = sphi 0, %s39
    %s43 = sphi 0, %s42
    %s59 = sphi 0, %s43
    %s67 = sphi 0, %s69
    %s70 = sphi 0, %s67
    %s71 = sphi 0, %s70
    %s87 = sphi 0, %s71
    %s95 = sphi 0, %s97
    %s98 = sphi 0, %s95
    %s99 = sphi 0, %s98
    %s115 = sphi 0, %s99
    %s123 = sphi 0, %s125
    %s126 = sphi 0, %s123
    %s127 = sphi 0, %s126
    %s143 = sphi 0, %s127
    %s147 = sphi 0, %s147
    %s149 = sphi 0, %s147
    %s150 = sphi 0, %s149
    %s164 = sphi 0, %s150
    %s168 = sphi 0, %s168
    %s170 = sphi 0, %s168
    %s171 = sphi 0, %s170
    %s185 = sphi 0, %s171
    %s189 = sphi 0, %s189
    %s191 = sphi 0, %s189
    %s192 = sphi 0, %s191
    %s206 = sphi 0, %s192
    %s210 = sphi 0, %s210
    %s212 = sphi 0, %s210
    %s213 = sphi 0, %s212
    %s227 = sphi 0, %s213
    %s231 = sphi 0, %s231
    %s233 = sphi 0, %s231
    %s234 = sphi 0, %s233
    %s248 = sphi 0, %s234
    %s256 = sphi 0, %s258
    %s259 = sphi 0, %s256
    %s260 = sphi 0, %s259
    %s276 = sphi 0, %s260
  $region4: #{llm_forward.20} parent=0 // loop_header_branch
    %18 = sbr.rel (%p16) target = $region8
  $region5: #{llm_forward.20} parent=0 // loop_body
    %s20 = ssub.s32 %s15, 1
    %s21 = ssub.s32 %s15, 2
    %s28 = sadd.s32 1, %s23
    %p29 = scmp.ge.s32.totalorder %s28, 1
    %s30 = scalar_select %p29, 0, %s28
    %s31 = sadd.s32 1, %s22
    %s32 = scalar_select %p29, %s31, %s22
    %p33 = scmp.ge.s32.totalorder %s32, 2
    %s34 = scalar_select %p33, 0, %s32
    %s35 = ssub.s32 %s22, %s34
    %s36 = ssub.s32 %s23, %s30
    %s37 = sor.u32 %s35, %s36
    %p38 = scmp.eq.s32.totalorder %s37, 0
    %s40 = sadd.s32 %s39, 1
    %s41 = scalar_select %p38, %s39, %s40
    %p44 = pneg %p38
    %p45 = scmp.eq.s32.totalorder %s15, 1
    %p46 = por %p44, %p45
    %p47 = scmp.ne.s32.totalorder %s39, %s42
    %p48 = scmp.eq.s32.totalorder %s15, 0
    %p49 = por %p47, %p48
    %p50 = scmp.ne.s32.totalorder %s39, %s42
    %p51 = scmp.eq.s32.totalorder %s20, 1
    %p52 = por %p50, %p51
    %p53 = scmp.ne.s32.totalorder %s42, %s43
    %p54 = scmp.eq.s32.totalorder %s20, 0
    %p55 = por %p53, %p54
    %p56 = scmp.ne.s32.totalorder %s42, %s43
    %p57 = scmp.eq.s32.totalorder %s21, 1
    %p58 = por %p56, %p57
    %p60 = scmp.ne.s32.totalorder %s43, %s59
    %p61 = scmp.eq.s32.totalorder %s21, 0
    %p62 = por %p60, %p61
    %s63 = ssub.s32 %s22, %s34
    %s64 = ssub.s32 %s23, %s30
    %s65 = sor.u32 %s63, %s64
    %p66 = scmp.eq.s32.totalorder %s65, 0
    %s68 = sadd.s32 %s67, 1
    %s69 = scalar_select %p66, %s67, %s68
    %p72 = pneg %p66
    %p73 = scmp.eq.s32.totalorder %s15, 1
    %p74 = por %p72, %p73
    %p75 = scmp.ne.s32.totalorder %s67, %s70
    %p76 = scmp.eq.s32.totalorder %s15, 0
    %p77 = por %p75, %p76
    %p78 = scmp.ne.s32.totalorder %s67, %s70
    %p79 = scmp.eq.s32.totalorder %s20, 1
    %p80 = por %p78, %p79
    %p81 = scmp.ne.s32.totalorder %s70, %s71
    %p82 = scmp.eq.s32.totalorder %s20, 0
    %p83 = por %p81, %p82
    %p84 = scmp.ne.s32.totalorder %s70, %s71
    %p85 = scmp.eq.s32.totalorder %s21, 1
    %p86 = por %p84, %p85
    %p88 = scmp.ne.s32.totalorder %s71, %s87
    %p89 = scmp.eq.s32.totalorder %s21, 0
    %p90 = por %p88, %p89
    %s91 = ssub.s32 %s22, %s34
    %s92 = ssub.s32 %s23, %s30
    %s93 = sor.u32 %s91, %s92
    %p94 = scmp.eq.s32.totalorder %s93, 0
    %s96 = sadd.s32 %s95, 1
    %s97 = scalar_select %p94, %s95, %s96
    %p100 = pneg %p94
    %p101 = scmp.eq.s32.totalorder %s15, 1
    %p102 = por %p100, %p101
    %p103 = scmp.ne.s32.totalorder %s95, %s98
    %p104 = scmp.eq.s32.totalorder %s15, 0
    %p105 = por %p103, %p104
    %p106 = scmp.ne.s32.totalorder %s95, %s98
    %p107 = scmp.eq.s32.totalorder %s20, 1
    %p108 = por %p106, %p107
    %p109 = scmp.ne.s32.totalorder %s98, %s99
    %p110 = scmp.eq.s32.totalorder %s20, 0
    %p111 = por %p109, %p110
    %p112 = scmp.ne.s32.totalorder %s98, %s99
    %p113 = scmp.eq.s32.totalorder %s21, 1
    %p114 = por %p112, %p113
    %p116 = scmp.ne.s32.totalorder %s99, %s115
    %p117 = scmp.eq.s32.totalorder %s21, 0
    %p118 = por %p116, %p117
    %s119 = ssub.s32 %s22, %s34
    %s120 = ssub.s32 %s23, %s30
    %s121 = sor.u32 %s119, %s120
    %p122 = scmp.eq.s32.totalorder %s121, 0
    %s124 = sadd.s32 %s123, 1
    %s125 = scalar_select %p122, %s123, %s124
    %p128 = pneg %p122
    %p129 = scmp.eq.s32.totalorder %s15, 1
    %p130 = por %p128, %p129
    %p131 = scmp.ne.s32.totalorder %s123, %s126
    %p132 = scmp.eq.s32.totalorder %s15, 0
    %p133 = por %p131, %p132
    %p134 = scmp.ne.s32.totalorder %s123, %s126
    %p135 = scmp.eq.s32.totalorder %s20, 1
    %p136 = por %p134, %p135
    %p137 = scmp.ne.s32.totalorder %s126, %s127
    %p138 = scmp.eq.s32.totalorder %s20, 0
    %p139 = por %p137, %p138
    %p140 = scmp.ne.s32.totalorder %s126, %s127
    %p141 = scmp.eq.s32.totalorder %s21, 1
    %p142 = por %p140, %p141
    %p144 = scmp.ne.s32.totalorder %s127, %s143
    %p145 = scmp.eq.s32.totalorder %s21, 0
    %p146 = por %p144, %p145
    %s148 = sadd.s32 %s147, 1
    %p151 = scmp.eq.s32.totalorder %s15, 1
    %p152 = scmp.ne.s32.totalorder %s147, %s149
    %p153 = scmp.eq.s32.totalorder %s15, 0
    %p154 = por %p152, %p153
    %p155 = scmp.ne.s32.totalorder %s147, %s149
    %p156 = scmp.eq.s32.totalorder %s20, 1
    %p157 = por %p155, %p156
    %p158 = scmp.ne.s32.totalorder %s149, %s150
    %p159 = scmp.eq.s32.totalorder %s20, 0
    %p160 = por %p158, %p159
    %p161 = scmp.ne.s32.totalorder %s149, %s150
    %p162 = scmp.eq.s32.totalorder %s21, 1
    %p163 = por %p161, %p162
    %p165 = scmp.ne.s32.totalorder %s150, %s164
    %p166 = scmp.eq.s32.totalorder %s21, 0
    %p167 = por %p165, %p166
    %s169 = sadd.s32 %s168, 1
    %p172 = scmp.eq.s32.totalorder %s15, 1
    %p173 = scmp.ne.s32.totalorder %s168, %s170
    %p174 = scmp.eq.s32.totalorder %s15, 0
    %p175 = por %p173, %p174
    %p176 = scmp.ne.s32.totalorder %s168, %s170
    %p177 = scmp.eq.s32.totalorder %s20, 1
    %p178 = por %p176, %p177
    %p179 = scmp.ne.s32.totalorder %s170, %s171
    %p180 = scmp.eq.s32.totalorder %s20, 0
    %p181 = por %p179, %p180
    %p182 = scmp.ne.s32.totalorder %s170, %s171
    %p183 = scmp.eq.s32.totalorder %s21, 1
    %p184 = por %p182, %p183
    %p186 = scmp.ne.s32.totalorder %s171, %s185
    %p187 = scmp.eq.s32.totalorder %s21, 0
    %p188 = por %p186, %p187
    %s190 = sadd.s32 %s189, 1
    %p193 = scmp.eq.s32.totalorder %s15, 1
    %p194 = scmp.ne.s32.totalorder %s189, %s191
    %p195 = scmp.eq.s32.totalorder %s15, 0
    %p196 = por %p194, %p195
    %p197 = scmp.ne.s32.totalorder %s189, %s191
    %p198 = scmp.eq.s32.totalorder %s20, 1
    %p199 = por %p197, %p198
    %p200 = scmp.ne.s32.totalorder %s191, %s192
    %p201 = scmp.eq.s32.totalorder %s20, 0
    %p202 = por %p200, %p201
    %p203 = scmp.ne.s32.totalorder %s191, %s192
    %p204 = scmp.eq.s32.totalorder %s21, 1
    %p205 = por %p203, %p204
    %p207 = scmp.ne.s32.totalorder %s192, %s206
    %p208 = scmp.eq.s32.totalorder %s21, 0
    %p209 = por %p207, %p208
    %s211 = sadd.s32 %s210, 1
    %p214 = scmp.eq.s32.totalorder %s15, 1
    %p215 = scmp.ne.s32.totalorder %s210, %s212
    %p216 = scmp.eq.s32.totalorder %s15, 0
    %p217 = por %p215, %p216
    %p218 = scmp.ne.s32.totalorder %s210, %s212
    %p219 = scmp.eq.s32.totalorder %s20, 1
    %p220 = por %p218, %p219
    %p221 = scmp.ne.s32.totalorder %s212, %s213
    %p222 = scmp.eq.s32.totalorder %s20, 0
    %p223 = por %p221, %p222
    %p224 = scmp.ne.s32.totalorder %s212, %s213
    %p225 = scmp.eq.s32.totalorder %s21, 1
    %p226 = por %p224, %p225
    %p228 = scmp.ne.s32.totalorder %s213, %s227
    %p229 = scmp.eq.s32.totalorder %s21, 0
    %p230 = por %p228, %p229
    %s232 = sadd.s32 %s231, 1
    %p235 = scmp.eq.s32.totalorder %s15, 1
    %p236 = scmp.ne.s32.totalorder %s231, %s233
    %p237 = scmp.eq.s32.totalorder %s15, 0
    %p238 = por %p236, %p237
    %p239 = scmp.ne.s32.totalorder %s231, %s233
    %p240 = scmp.eq.s32.totalorder %s20, 1
    %p241 = por %p239, %p240
    %p242 = scmp.ne.s32.totalorder %s233, %s234
    %p243 = scmp.eq.s32.totalorder %s20, 0
    %p244 = por %p242, %p243
    %p245 = scmp.ne.s32.totalorder %s233, %s234
    %p246 = scmp.eq.s32.totalorder %s21, 1
    %p247 = por %p245, %p246
    %p249 = scmp.ne.s32.totalorder %s234, %s248
    %p250 = scmp.eq.s32.totalorder %s21, 0
    %p251 = por %p249, %p250
    %s252 = ssub.s32 %s22, %s34
    %s253 = ssub.s32 %s23, %s30
    %s254 = sor.u32 %s252, %s253
    %p255 = scmp.eq.s32.totalorder %s254, 0
    %s257 = sadd.s32 %s256, 1
    %s258 = scalar_select %p255, %s256, %s257
    %p261 = pneg %p255
    %p262 = scmp.eq.s32.totalorder %s15, 1
    %p263 = por %p261, %p262
    %p264 = scmp.ne.s32.totalorder %s256, %s259
    %p265 = scmp.eq.s32.totalorder %s15, 0
    %p266 = por %p264, %p265
    %p267 = scmp.ne.s32.totalorder %s256, %s259
    %p268 = scmp.eq.s32.totalorder %s20, 1
    %p269 = por %p267, %p268
    %p270 = scmp.ne.s32.totalorder %s259, %s260
    %p271 = scmp.eq.s32.totalorder %s20, 0
    %p272 = por %p270, %p271
    %p273 = scmp.ne.s32.totalorder %s259, %s260
    %p274 = scmp.eq.s32.totalorder %s21, 1
    %p275 = por %p273, %p274
    %p277 = scmp.ne.s32.totalorder %s260, %s276
    %p278 = scmp.eq.s32.totalorder %s21, 0
    %p279 = por %p277, %p278
    %p280 = scmp.le.s32.totalorder 1, %s15
    %p281 = scmp.lt.s32.totalorder %s15, 3
    %p282 = pnand %p280, %p281
    %p283 = pneg %p282
    // Predicated region
    $region9: #{llm_forward.20} parent=5 // pred_check
      _
    $region10: #{llm_forward.20} parent=5 // pred_check_branch
      %285 = sbr.rel (%p282) target = $region12
    $region11: #{llm_forward.20} parent=5 // pred_region
      %s286 = ssub.s32 %s15, 1
      // Predicated region
      $region13: #{llm_forward.20} parent=11 // pred_check
        %p287 = pneg %p160
      $region14: #{llm_forward.20} parent=11 // pred_check_branch
        %289 = sbr.rel (%p287) target = $region16
      $region15: #{llm_forward.20} parent=11 // pred_region
        _
      $region16: #{llm_forward.20} parent=11 // pred_fallthru
        _
      // Predicated region
      $region17: #{llm_forward.20} parent=11 // pred_check
        %p290 = pneg %p181
      $region18: #{llm_forward.20} parent=11 // pred_check_branch
        %292 = sbr.rel (%p290) target = $region20
      $region19: #{llm_forward.20} parent=11 // pred_region
        _
      $region20: #{llm_forward.20} parent=11 // pred_fallthru
        _
      // Predicated region
      $region21: #{llm_forward.20} parent=11 // pred_check
        %p293 = pneg %p202
      $region22: #{llm_forward.20} parent=11 // pred_check_branch
        %295 = sbr.rel (%p293) target = $region24
      $region23: #{llm_forward.20} parent=11 // pred_region
        _
      $region24: #{llm_forward.20} parent=11 // pred_fallthru
        _
      // Predicated region
      $region25: #{llm_forward.20} parent=11 // pred_check
        %p296 = pneg %p223
      $region26: #{llm_forward.20} parent=11 // pred_check_branch
        %298 = sbr.rel (%p296) target = $region28
      $region27: #{llm_forward.20} parent=11 // pred_region
        _
      $region28: #{llm_forward.20} parent=11 // pred_fallthru
        _
      // Predicated region
      $region29: #{llm_forward.20} parent=11 // pred_check
        %p299 = pneg %p244
      $region30: #{llm_forward.20} parent=11 // pred_check_branch
        %301 = sbr.rel (%p299) target = $region32
      $region31: #{llm_forward.20} parent=11 // pred_region
        _
      $region32: #{llm_forward.20} parent=11 // pred_fallthru
        _
    $region12: #{llm_forward.20} parent=5 // pred_fallthru
      _
    %p302 = scmp.lt.s32.totalorder %s15, 2
    // Predicated region
    $region33: #{llm_forward.20} parent=5 // pred_check
      %p303 = pneg %p302
    $region34: #{llm_forward.20} parent=5 // pred_check_branch
      %305 = sbr.rel (%p303) target = $region36
    $region35: #{llm_forward.20} parent=5 // pred_region
      // Predicated region
      $region37: #{llm_forward.20} parent=35 // pred_check
        %p306 = pneg %p49
      $region38: #{llm_forward.20} parent=35 // pred_check_branch
        %308 = sbr.rel (%p306) target = $region40
      $region39: #{llm_forward.20} parent=35 // pred_region
        %s309 = smul.u32 2, %s23
        %p310 = scmp.lt.s32.totalorder %s22, 1
        %s311 = scalar_select %p310, %s22, 1
        %p312 = scmp.lt.s32.totalorder %s309, 1
        %s313 = scalar_select %p312, %s309, 1
        %s314 = smul.addr %s311, 2
        %s315 = sadd.s32 %s313, %s314
        %s316 = smul.addr %s315, 4
        %s317 = scalar_lea.vmem %s0, %s316
        %s318 = smul.u32 2, %s23
      $region40: #{llm_forward.20} parent=35 // pred_fallthru
        _
      // Predicated region
      $region41: #{llm_forward.20} parent=35 // pred_check
        %p319 = pneg %p77
      $region42: #{llm_forward.20} parent=35 // pred_check_branch
        %321 = sbr.rel (%p319) target = $region44
      $region43: #{llm_forward.20} parent=35 // pred_region
        %s322 = smul.u32 2, %s23
        %p323 = scmp.lt.s32.totalorder %s22, 1
        %s324 = scalar_select %p323, %s22, 1
        %p325 = scmp.lt.s32.totalorder %s322, 1
        %s326 = scalar_select %p325, %s322, 1
        %s327 = smul.addr %s324, 2
        %s328 = sadd.s32 %s326, %s327
        %s329 = smul.addr %s328, 4
        %s330 = scalar_lea.vmem %s1, %s329
        %s331 = smul.u32 2, %s23
      $region44: #{llm_forward.20} parent=35 // pred_fallthru
        _
      // Predicated region
      $region45: #{llm_forward.20} parent=35 // pred_check
        %p332 = pneg %p105
      $region46: #{llm_forward.20} parent=35 // pred_check_branch
        %334 = sbr.rel (%p332) target = $region48
      $region47: #{llm_forward.20} parent=35 // pred_region
        %s335 = smul.u32 2, %s23
        %p336 = scmp.lt.s32.totalorder %s22, 1
        %s337 = scalar_select %p336, %s22, 1
        %p338 = scmp.lt.s32.totalorder %s335, 1
        %s339 = scalar_select %p338, %s335, 1
        %s340 = smul.addr %s337, 2
        %s341 = sadd.s32 %s339, %s340
        %s342 = smul.addr %s341, 4
        %s343 = scalar_lea.vmem %s2, %s342
        %s344 = smul.u32 2, %s23
      $region48: #{llm_forward.20} parent=35 // pred_fallthru
        _
      // Predicated region
      $region49: #{llm_forward.20} parent=35 // pred_check
        %p345 = pneg %p133
      $region50: #{llm_forward.20} parent=35 // pred_check_branch
        %347 = sbr.rel (%p345) target = $region52
      $region51: #{llm_forward.20} parent=35 // pred_region
        %s348 = smul.u32 2, %s23
        %p349 = scmp.lt.s32.totalorder %s22, 1
        %s350 = scalar_select %p349, %s22, 1
        %p351 = scmp.lt.s32.totalorder %s348, 1
        %s352 = scalar_select %p351, %s348, 1
        %s353 = smul.addr %s350, 2
        %s354 = sadd.s32 %s352, %s353
        %s355 = smul.addr %s354, 4
        %s356 = scalar_lea.vmem %s3, %s355
        %s357 = smul.u32 2, %s23
      $region52: #{llm_forward.20} parent=35 // pred_fallthru
        _
    $region36: #{llm_forward.20} parent=5 // pred_fallthru
      _
    %p358 = scmp.le.s32.totalorder 1, %s15
    %p359 = scmp.lt.s32.totalorder %s15, 3
    %p360 = pnand %p358, %p359
    %p361 = pneg %p360
    // Predicated region
    $region53: #{llm_forward.20} parent=5 // pred_check
      _
    $region54: #{llm_forward.20} parent=5 // pred_check_branch
      %363 = sbr.rel (%p360) target = $region56
    $region55: #{llm_forward.20} parent=5 // pred_region
      %s364 = ssub.s32 %s15, 1
      %s365 = smul.u32 2, %s25
      %p366 = scmp.lt.s32.totalorder %s24, 1
      %s367 = scalar_select %p366, %s24, 1
      %p368 = scmp.lt.s32.totalorder %s365, 1
      %s369 = scalar_select %p368, %s365, 1
      %s370 = smul.addr %s367, 2
      %s371 = sadd.s32 %s369, %s370
      %s372 = smul.addr %s371, 4
      %s373 = scalar_lea.vmem %s0, %s372
      %p374 = pneg %p55
      %p375 = pneg %p52
      %s376 = smul.u32 2, %s25
      %p377 = scmp.lt.s32.totalorder %s24, 1
      %s378 = scalar_select %p377, %s24, 1
      %p379 = scmp.lt.s32.totalorder %s376, 1
      %s380 = scalar_select %p379, %s376, 1
      %s381 = smul.addr %s378, 2
      %s382 = sadd.s32 %s380, %s381
      %s383 = smul.addr %s382, 4
      %s384 = scalar_lea.vmem %s1, %s383
      %p385 = pneg %p83
      %p386 = pneg %p80
      %s387 = smul.u32 2, %s25
      %p388 = scmp.lt.s32.totalorder %s24, 1
      %s389 = scalar_select %p388, %s24, 1
      %p390 = scmp.lt.s32.totalorder %s387, 1
      %s391 = scalar_select %p390, %s387, 1
      %s392 = smul.addr %s389, 2
      %s393 = sadd.s32 %s391, %s392
      %s394 = smul.addr %s393, 4
      %s395 = scalar_lea.vmem %s2, %s394
      %p396 = pneg %p111
      %p397 = pneg %p108
      %s398 = smul.u32 2, %s25
      %p399 = scmp.lt.s32.totalorder %s24, 1
      %s400 = scalar_select %p399, %s24, 1
      %p401 = scmp.lt.s32.totalorder %s398, 1
      %s402 = scalar_select %p401, %s398, 1
      %s403 = smul.addr %s400, 2
      %s404 = sadd.s32 %s402, %s403
      %s405 = smul.addr %s404, 4
      %s406 = scalar_lea.vmem %s3, %s405
      %p407 = pneg %p139
      %p408 = pneg %p136
      %p409 = pneg %p160
      %p410 = pneg %p157
      %p411 = pneg %p181
      %p412 = pneg %p178
      %p413 = pneg %p202
      %p414 = pneg %p199
      %p415 = pneg %p223
      %p416 = pneg %p220
      %p417 = pneg %p244
      %p418 = pneg %p241
      %p419 = pneg %p272
      %p420 = pneg %p269
      %s421 = smul.u32 2, %s25
      %p422 = scmp.lt.s32.totalorder %s24, 1
      %s423 = scalar_select %p422, %s24, 1
      %p424 = scmp.lt.s32.totalorder %s421, 1
      %s425 = scalar_select %p424, %s421, 1
      %s426 = smul.addr %s423, 2
      %s427 = sadd.s32 %s425, %s426
      %s428 = smul.addr %s427, 4
      %s429 = scalar_lea.vmem %s9, %s428
      %s430 = smul.u32 2, %s25
      %p431 = scmp.lt.s32.totalorder %s24, 1
      %s432 = scalar_select %p431, %s24, 1
      %p433 = scmp.lt.s32.totalorder %s430, 1
      %s434 = scalar_select %p433, %s430, 1
      %s435 = smul.addr %s432, 2
      %s436 = sadd.s32 %s434, %s435
      %s437 = smul.addr %s436, 4
      %s438 = scalar_lea.vmem %s0, %s437
      %s439 = smul.u32 2, %s25
      %s440 = smul.u32 2, %s25
      %p441 = scmp.lt.s32.totalorder %s24, 1
      %s442 = scalar_select %p441, %s24, 1
      %p443 = scmp.lt.s32.totalorder %s440, 1
      %s444 = scalar_select %p443, %s440, 1
      %s445 = smul.addr %s442, 2
      %s446 = sadd.s32 %s444, %s445
      %s447 = smul.addr %s446, 4
      %s448 = scalar_lea.vmem %s1, %s447
      %s449 = smul.u32 2, %s25
      %s450 = smul.u32 2, %s25
      %p451 = scmp.lt.s32.totalorder %s24, 1
      %s452 = scalar_select %p451, %s24, 1
      %p453 = scmp.lt.s32.totalorder %s450, 1
      %s454 = scalar_select %p453, %s450, 1
      %s455 = smul.addr %s452, 2
      %s456 = sadd.s32 %s454, %s455
      %s457 = smul.addr %s456, 4
      %s458 = scalar_lea.vmem %s2, %s457
      %s459 = smul.u32 2, %s25
      %s460 = smul.u32 2, %s25
      %p461 = scmp.lt.s32.totalorder %s24, 1
      %s462 = scalar_select %p461, %s24, 1
      %p463 = scmp.lt.s32.totalorder %s460, 1
      %s464 = scalar_select %p463, %s460, 1
      %s465 = smul.addr %s462, 2
      %s466 = sadd.s32 %s464, %s465
      %s467 = smul.addr %s466, 4
      %s468 = scalar_lea.vmem %s3, %s467
      %s469 = smul.u32 2, %s25
      %s470 = smul.u32 2, %s25
      %p471 = scmp.lt.s32.totalorder %s24, 1
      %s472 = scalar_select %p471, %s24, 1
      %p473 = scmp.lt.s32.totalorder %s470, 1
      %s474 = scalar_select %p473, %s470, 1
      %s475 = smul.addr %s472, 2
      %s476 = sadd.s32 %s474, %s475
      %s477 = smul.addr %s476, 4
      %s478 = scalar_lea.vmem %s9, %s477
      %s479 = smul.u32 2, %s25
      %p480 = scmp.eq.s32.totalorder %s25, 0
      // Predicated region
      $region57: #{llm_forward.20} parent=55 // pred_check
        %p481 = pneg %p480
      $region58: #{llm_forward.20} parent=55 // pred_check_branch
        %483 = sbr.rel (%p481) target = $region60
      $region59: #{llm_forward.20} parent=55 // pred_region
        %484 = vst [vmem:[#allocation2] sm:$0xff] 0.0
        %485 = vst [vmem:[#allocation2 + $0x8] sm:$0xff] 0.0
        %486 = vst [vmem:[#allocation2 + $0x10] sm:$0xff] 0.0
        %487 = vst [vmem:[#allocation2 + $0x18] sm:$0xff] 0.0
        %488 = vst [vmem:[#allocation3] sm:$0x1] 0.0
      $region60: #{llm_forward.20} parent=55 // pred_fallthru
        _
      %v489 = vld [vmem:[%s4] sm:$0xff]
      %v490 = vld [vmem:[%s4 + $0x8] sm:$0xff]
      %v491 = vld [vmem:[%s5] sm:$0xff]
      %v492 = vld [vmem:[%s5 + $0x8] sm:$0xff]
      %v493 = vld [vmem:[%s7] sm:$0x1]
      %v494 = vld [vmem:[%s8] sm:$0xff]
      %v495 = vld [vmem:[%s8 + $0x8] sm:$0xff]
      %v496 = vld [vmem:[%s8 + $0x10] sm:$0xff]
      %v497 = vld [vmem:[%s8 + $0x18] sm:$0xff]
      %v498 = vld [vmem:[%s438] sm:$0xf]
      %v499 = vld [vmem:[%s438 + $0x4] sm:$0xf]
      %v500 = vunpack.c.l.bf16 %v498
      %v501 = vunpack.c.l.bf16 %v499
      %v502 = vld [vmem:[%s448] sm:$0xf]
      %v503 = vld [vmem:[%s448 + $0x4] sm:$0xf]
      %v504 = vunpack.c.l.bf16 %v502
      %v505 = vunpack.c.l.bf16 %v503
      %v506 = vld [vmem:[%s458] sm:$0xf]
      %v507 = vld [vmem:[%s458 + $0x4] sm:$0xf]
      %v508 = vunpack.c.l.bf16 %v506
      %v509 = vunpack.c.l.bf16 %v507
      %v510 = vld [vmem:[%s468] sm:$0xf]
      %v511 = vld [vmem:[%s468 + $0x4] sm:$0xf]
      %v512 = vunpack.c.l.bf16 %v510
      %v513 = vunpack.c.l.bf16 %v511
      %v514 = vmul.f32 %v500, %v489
      %v515 = vmul.f32 %v501, %v490
      %v516 = vmul.f32 %v504, %v491
      %v517 = vmul.f32 %v505, %v492
      %v518 = vld [vmem:[%s6] sm:$0xff]
      %v519 = vld [vmem:[%s6 + $0x8] sm:$0xff]
      %v520 = vld [vmem:[%s6 + $0x10] sm:$0xff]
      %v521 = vld [vmem:[%s6 + $0x18] sm:$0xff]
      %v522 = vld [vmem:[%s6 + $0x20] sm:$0xff]
      %v523 = vld [vmem:[%s6 + $0x28] sm:$0xff]
      %v524 = vld [vmem:[%s6 + $0x30] sm:$0xff]
      %v525 = vld [vmem:[%s6 + $0x38] sm:$0xff]
      %v526 = vld [vmem:[%s6 + $0x40] sm:$0xff]
      %v527 = vld [vmem:[%s6 + $0x48] sm:$0xff]
      %v528 = vld [vmem:[%s6 + $0x50] sm:$0xff]
      %v529 = vld [vmem:[%s6 + $0x58] sm:$0xff]
      %v530 = vld [vmem:[%s6 + $0x60] sm:$0xff]
      %v531 = vld [vmem:[%s6 + $0x68] sm:$0xff]
      %v532 = vld [vmem:[%s6 + $0x70] sm:$0xff]
      %v533 = vld [vmem:[%s6 + $0x78] sm:$0xff]
      %v534 = vld [vmem:[%s6 + $0x80] sm:$0xff]
      %v535 = vld [vmem:[%s6 + $0x88] sm:$0xff]
      %v536 = vld [vmem:[%s6 + $0x90] sm:$0xff]
      %v537 = vld [vmem:[%s6 + $0x98] sm:$0xff]
      %v538 = vld [vmem:[%s6 + $0xa0] sm:$0xff]
      %v539 = vld [vmem:[%s6 + $0xa8] sm:$0xff]
      %v540 = vld [vmem:[%s6 + $0xb0] sm:$0xff]
      %v541 = vld [vmem:[%s6 + $0xb8] sm:$0xff]
      %v542 = vld [vmem:[%s6 + $0xc0] sm:$0xff]
      %v543 = vld [vmem:[%s6 + $0xc8] sm:$0xff]
      %v544 = vld [vmem:[%s6 + $0xd0] sm:$0xff]
      %v545 = vld [vmem:[%s6 + $0xd8] sm:$0xff]
      %v546 = vld [vmem:[%s6 + $0xe0] sm:$0xff]
      %v547 = vld [vmem:[%s6 + $0xe8] sm:$0xff]
      %v548 = vld [vmem:[%s6 + $0xf0] sm:$0xff]
      %v549 = vld [vmem:[%s6 + $0xf8] sm:$0xff]
      %v550 = vld [vmem:[#allocation2] sm:$0xff]
      %v551 = vld [vmem:[#allocation2 + $0x8] sm:$0xff]
      %v552 = vld [vmem:[#allocation2 + $0x10] sm:$0xff]
      %v553 = vld [vmem:[#allocation2 + $0x18] sm:$0xff]
      %v554 = vld [vmem:[#allocation3] sm:$0x1]
      %v557 = vcombine.high %v500, %v500
      %v559 = vunpack.c.l.s4 1966171168
      %v560 = vunpack.c.0.s8 %v559
      %v561 = vlaneseq
      %v562 = vshrl.u32 %v561, 7
      %v563 = vsub.s32 %v560, %v562
      %v564 = vrot.slane %v500, %v563
      %v566 = vunpack.c.l.s4 1966171168
      %v567 = vunpack.c.0.s8 %v566
      %v568 = vlaneseq
      %v569 = vshrl.u32 %v568, 7
      %v570 = vsub.s32 %v567, %v569
      %v571 = vrot.slane %v557, %v570
      %v572 = vcombine.high %v564, %v564
      %v573 = vcombine.high %v571, %v571
      %v575 = vunpack.c.l.s4 1966171168
      %v576 = vunpack.c.0.s8 %v575
      %v577 = vlaneseq
      %v578 = vshrl.u32 %v577, 7
      %v579 = vsub.s32 %v576, %v578
      %v580 = vrot.slane %v564, %v579
      %v582 = vunpack.c.l.s4 1966171168
      %v583 = vunpack.c.0.s8 %v582
      %v584 = vlaneseq
      %v585 = vshrl.u32 %v584, 7
      %v586 = vsub.s32 %v583, %v585
      %v587 = vrot.slane %v571, %v586
      %v589 = vunpack.c.l.s4 1966171168
      %v590 = vunpack.c.0.s8 %v589
      %v591 = vlaneseq
      %v592 = vshrl.u32 %v591, 7
      %v593 = vsub.s32 %v590, %v592
      %v594 = vrot.slane %v572, %v593
      %v596 = vunpack.c.l.s4 1966171168
      %v597 = vunpack.c.0.s8 %v596
      %v598 = vlaneseq
      %v599 = vshrl.u32 %v598, 7
      %v600 = vsub.s32 %v597, %v599
      %v601 = vrot.slane %v573, %v600
      %v602 = vcombine.high %v580, %v580
      %v603 = vcombine.high %v587, %v587
      %v604 = vcombine.high %v594, %v594
      %v605 = vcombine.high %v601, %v601
      %v606 = vcombine.high %v501, %v501
      %v608 = vunpack.c.l.s4 1966171168
      %v609 = vunpack.c.0.s8 %v608
      %v610 = vlaneseq
      %v611 = vshrl.u32 %v610, 7
      %v612 = vsub.s32 %v609, %v611
      %v613 = vrot.slane %v501, %v612
      %v615 = vunpack.c.l.s4 1966171168
      %v616 = vunpack.c.0.s8 %v615
      %v617 = vlaneseq
      %v618 = vshrl.u32 %v617, 7
      %v619 = vsub.s32 %v616, %v618
      %v620 = vrot.slane %v606, %v619
      %v621 = vcombine.high %v613, %v613
      %v622 = vcombine.high %v620, %v620
      %v624 = vunpack.c.l.s4 1966171168
      %v625 = vunpack.c.0.s8 %v624
      %v626 = vlaneseq
      %v627 = vshrl.u32 %v626, 7
      %v628 = vsub.s32 %v625, %v627
      %v629 = vrot.slane %v613, %v628
      %v631 = vunpack.c.l.s4 1966171168
      %v632 = vunpack.c.0.s8 %v631
      %v633 = vlaneseq
      %v634 = vshrl.u32 %v633, 7
      %v635 = vsub.s32 %v632, %v634
      %v636 = vrot.slane %v620, %v635
      %v638 = vunpack.c.l.s4 1966171168
      %v639 = vunpack.c.0.s8 %v638
      %v640 = vlaneseq
      %v641 = vshrl.u32 %v640, 7
      %v642 = vsub.s32 %v639, %v641
      %v643 = vrot.slane %v621, %v642
      %v645 = vunpack.c.l.s4 1966171168
      %v646 = vunpack.c.0.s8 %v645
      %v647 = vlaneseq
      %v648 = vshrl.u32 %v647, 7
      %v649 = vsub.s32 %v646, %v648
      %v650 = vrot.slane %v622, %v649
      %v651 = vcombine.high %v629, %v629
      %v652 = vcombine.high %v636, %v636
      %v653 = vcombine.high %v643, %v643
      %v654 = vcombine.high %v650, %v650
      %v655 = vlaneseq
      %v656 = vshrl.u32 %v655, 7
      %v657 = vsub.s32 0, %v656
      %v658 = vrot.slane %v580, %v657
      %v659 = vlaneseq
      %v660 = vshrl.u32 %v659, 7
      %v661 = vsub.s32 0, %v660
      %v662 = vrot.slane %v594, %v661
      %v663 = vlaneseq
      %v664 = vshrl.u32 %v663, 7
      %v665 = vsub.s32 0, %v664
      %v666 = vrot.slane %v602, %v665
      %v667 = vlaneseq
      %v668 = vshrl.u32 %v667, 7
      %v669 = vsub.s32 0, %v668
      %v670 = vrot.slane %v604, %v669
      %v671 = vlaneseq
      %v672 = vshrl.u32 %v671, 7
      %v673 = vsub.s32 0, %v672
      %v674 = vrot.slane %v587, %v673
      %v675 = vlaneseq
      %v676 = vshrl.u32 %v675, 7
      %v677 = vsub.s32 0, %v676
      %v678 = vrot.slane %v601, %v677
      %v679 = vlaneseq
      %v680 = vshrl.u32 %v679, 7
      %v681 = vsub.s32 0, %v680
      %v682 = vrot.slane %v603, %v681
      %v683 = vlaneseq
      %v684 = vshrl.u32 %v683, 7
      %v685 = vsub.s32 0, %v684
      %v686 = vrot.slane %v605, %v685
      %v687 = vlaneseq
      %v688 = vshrl.u32 %v687, 7
      %v689 = vsub.s32 0, %v688
      %v690 = vrot.slane %v629, %v689
      %v691 = vlaneseq
      %v692 = vshrl.u32 %v691, 7
      %v693 = vsub.s32 0, %v692
      %v694 = vrot.slane %v643, %v693
      %v695 = vlaneseq
      %v696 = vshrl.u32 %v695, 7
      %v697 = vsub.s32 0, %v696
      %v698 = vrot.slane %v651, %v697
      %v699 = vlaneseq
      %v700 = vshrl.u32 %v699, 7
      %v701 = vsub.s32 0, %v700
      %v702 = vrot.slane %v653, %v701
      %v703 = vlaneseq
      %v704 = vshrl.u32 %v703, 7
      %v705 = vsub.s32 0, %v704
      %v706 = vrot.slane %v636, %v705
      %v707 = vlaneseq
      %v708 = vshrl.u32 %v707, 7
      %v709 = vsub.s32 0, %v708
      %v710 = vrot.slane %v650, %v709
      %v711 = vlaneseq
      %v712 = vshrl.u32 %v711, 7
      %v713 = vsub.s32 0, %v712
      %v714 = vrot.slane %v652, %v713
      %v715 = vlaneseq
      %v716 = vshrl.u32 %v715, 7
      %v717 = vsub.s32 0, %v716
      %v718 = vrot.slane %v654, %v717
      %v735 = vmul.f32 %v658, %v504
      %v736 = vmul.f32 %v658, %v505
      %v737 = vmul.f32 %v662, %v504
      %v738 = vmul.f32 %v662, %v505
      %v739 = vmul.f32 %v666, %v504
      %v740 = vmul.f32 %v666, %v505
      %v741 = vmul.f32 %v670, %v504
      %v742 = vmul.f32 %v670, %v505
      %v743 = vmul.f32 %v674, %v504
      %v744 = vmul.f32 %v674, %v505
      %v745 = vmul.f32 %v678, %v504
      %v746 = vmul.f32 %v678, %v505
      %v747 = vmul.f32 %v682, %v504
      %v748 = vmul.f32 %v682, %v505
      %v749 = vmul.f32 %v686, %v504
      %v750 = vmul.f32 %v686, %v505
      %v751 = vmul.f32 %v690, %v504
      %v752 = vmul.f32 %v690, %v505
      %v753 = vmul.f32 %v694, %v504
      %v754 = vmul.f32 %v694, %v505
      %v755 = vmul.f32 %v698, %v504
      %v756 = vmul.f32 %v698, %v505
      %v757 = vmul.f32 %v702, %v504
      %v758 = vmul.f32 %v702, %v505
      %v759 = vmul.f32 %v706, %v504
      %v760 = vmul.f32 %v706, %v505
      %v761 = vmul.f32 %v710, %v504
      %v762 = vmul.f32 %v710, %v505
      %v763 = vmul.f32 %v714, %v504
      %v764 = vmul.f32 %v714, %v505
      %v765 = vmul.f32 %v718, %v504
      %v766 = vmul.f32 %v718, %v505
      %v767 = vmul.f32 %v735, %v518
      %v768 = vmul.f32 %v736, %v519
      %v769 = vmul.f32 %v737, %v520
      %v770 = vmul.f32 %v738, %v521
      %v771 = vmul.f32 %v739, %v522
      %v772 = vmul.f32 %v740, %v523
      %v773 = vmul.f32 %v741, %v524
      %v774 = vmul.f32 %v742, %v525
      %v775 = vmul.f32 %v743, %v526
      %v776 = vmul.f32 %v744, %v527
      %v777 = vmul.f32 %v745, %v528
      %v778 = vmul.f32 %v746, %v529
      %v779 = vmul.f32 %v747, %v530
      %v780 = vmul.f32 %v748, %v531
      %v781 = vmul.f32 %v749, %v532
      %v782 = vmul.f32 %v750, %v533
      %v783 = vmul.f32 %v751, %v534
      %v784 = vmul.f32 %v752, %v535
      %v785 = vmul.f32 %v753, %v536
      %v786 = vmul.f32 %v754, %v537
      %v787 = vmul.f32 %v755, %v538
      %v788 = vmul.f32 %v756, %v539
      %v789 = vmul.f32 %v757, %v540
      %v790 = vmul.f32 %v758, %v541
      %v791 = vmul.f32 %v759, %v542
      %v792 = vmul.f32 %v760, %v543
      %v793 = vmul.f32 %v761, %v544
      %v794 = vmul.f32 %v762, %v545
      %v795 = vmul.f32 %v763, %v546
      %v796 = vmul.f32 %v764, %v547
      %v797 = vmul.f32 %v765, %v548
      %v798 = vmul.f32 %v766, %v549
      %vm799 = vcmask 261120
      %v800 = vsel %vm799, %v767, 0.0
      %801 = vadd.xlane.f32.xlu0 %v800
      %v802 = vpop.xlane.xlu0 %801
      %v803 = vsel %vm799, %v768, 0.0
      %804 = vadd.xlane.f32.xlu0 %v803
      %v805 = vpop.xlane.xlu0 %804
      %v806 = vsel %vm799, %v769, 0.0
      %807 = vadd.xlane.f32.xlu0 %v806
      %v808 = vpop.xlane.xlu0 %807
      %v809 = vsel %vm799, %v770, 0.0
      %810 = vadd.xlane.f32.xlu0 %v809
      %v811 = vpop.xlane.xlu0 %810
      %v812 = vsel %vm799, %v771, 0.0
      %813 = vadd.xlane.f32.xlu0 %v812
      %v814 = vpop.xlane.xlu0 %813
      %v815 = vsel %vm799, %v772, 0.0
      %816 = vadd.xlane.f32.xlu0 %v815
      %v817 = vpop.xlane.xlu0 %816
      %v818 = vsel %vm799, %v773, 0.0
      %819 = vadd.xlane.f32.xlu0 %v818
      %v820 = vpop.xlane.xlu0 %819
      %v821 = vsel %vm799, %v774, 0.0
      %822 = vadd.xlane.f32.xlu0 %v821
      %v823 = vpop.xlane.xlu0 %822
      %v824 = vsel %vm799, %v775, 0.0
      %825 = vadd.xlane.f32.xlu0 %v824
      %v826 = vpop.xlane.xlu0 %825
      %v827 = vsel %vm799, %v776, 0.0
      %828 = vadd.xlane.f32.xlu0 %v827
      %v829 = vpop.xlane.xlu0 %828
      %v830 = vsel %vm799, %v777, 0.0
      %831 = vadd.xlane.f32.xlu0 %v830
      %v832 = vpop.xlane.xlu0 %831
      %v833 = vsel %vm799, %v778, 0.0
      %834 = vadd.xlane.f32.xlu0 %v833
      %v835 = vpop.xlane.xlu0 %834
      %v836 = vsel %vm799, %v779, 0.0
      %837 = vadd.xlane.f32.xlu0 %v836
      %v838 = vpop.xlane.xlu0 %837
      %v839 = vsel %vm799, %v780, 0.0
      %840 = vadd.xlane.f32.xlu0 %v839
      %v841 = vpop.xlane.xlu0 %840
      %v842 = vsel %vm799, %v781, 0.0
      %843 = vadd.xlane.f32.xlu0 %v842
      %v844 = vpop.xlane.xlu0 %843
      %v845 = vsel %vm799, %v782, 0.0
      %846 = vadd.xlane.f32.xlu0 %v845
      %v847 = vpop.xlane.xlu0 %846
      %v848 = vsel %vm799, %v783, 0.0
      %849 = vadd.xlane.f32.xlu0 %v848
      %v850 = vpop.xlane.xlu0 %849
      %v851 = vsel %vm799, %v784, 0.0
      %852 = vadd.xlane.f32.xlu0 %v851
      %v853 = vpop.xlane.xlu0 %852
      %v854 = vsel %vm799, %v785, 0.0
      %855 = vadd.xlane.f32.xlu0 %v854
      %v856 = vpop.xlane.xlu0 %855
      %v857 = vsel %vm799, %v786, 0.0
      %858 = vadd.xlane.f32.xlu0 %v857
      %v859 = vpop.xlane.xlu0 %858
      %v860 = vsel %vm799, %v787, 0.0
      %861 = vadd.xlane.f32.xlu0 %v860
      %v862 = vpop.xlane.xlu0 %861
      %v863 = vsel %vm799, %v788, 0.0
      %864 = vadd.xlane.f32.xlu0 %v863
      %v865 = vpop.xlane.xlu0 %864
      %v866 = vsel %vm799, %v789, 0.0
      %867 = vadd.xlane.f32.xlu0 %v866
      %v868 = vpop.xlane.xlu0 %867
      %v869 = vsel %vm799, %v790, 0.0
      %870 = vadd.xlane.f32.xlu0 %v869
      %v871 = vpop.xlane.xlu0 %870
      %v872 = vsel %vm799, %v791, 0.0
      %873 = vadd.xlane.f32.xlu0 %v872
      %v874 = vpop.xlane.xlu0 %873
      %v875 = vsel %vm799, %v792, 0.0
      %876 = vadd.xlane.f32.xlu0 %v875
      %v877 = vpop.xlane.xlu0 %876
      %v878 = vsel %vm799, %v793, 0.0
      %879 = vadd.xlane.f32.xlu0 %v878
      %v880 = vpop.xlane.xlu0 %879
      %v881 = vsel %vm799, %v794, 0.0
      %882 = vadd.xlane.f32.xlu0 %v881
      %v883 = vpop.xlane.xlu0 %882
      %v884 = vsel %vm799, %v795, 0.0
      %885 = vadd.xlane.f32.xlu0 %v884
      %v886 = vpop.xlane.xlu0 %885
      %v887 = vsel %vm799, %v796, 0.0
      %888 = vadd.xlane.f32.xlu0 %v887
      %v889 = vpop.xlane.xlu0 %888
      %v890 = vsel %vm799, %v797, 0.0
      %891 = vadd.xlane.f32.xlu0 %v890
      %v892 = vpop.xlane.xlu0 %891
      %v893 = vsel %vm799, %v798, 0.0
      %894 = vadd.xlane.f32.xlu0 %v893
      %v895 = vpop.xlane.xlu0 %894
      %v928 = vlaneseq
      %v929 = vand.u32 %v928, 127
      %v930 = vlaneseq
      %v931 = vshrl.u32 %v930, 7
      %v932 = vsub.s32 %v929, %v931
      %v933 = vrot.slane %v802, %v932
      %v934 = vadd.s32 %v929, 4294967288
      %v935 = vlaneseq
      %v936 = vshrl.u32 %v935, 7
      %v937 = vsub.s32 %v934, %v936
      %v938 = vrot.slane %v805, %v937
      %vm939 = vcmask 130112
      %v940 = vsel %vm939, %v938, %v933
      %v941 = vlaneseq
      %v942 = vshrl.u32 %v941, 7
      %v943 = vsub.s32 %v929, %v942
      %v944 = vrot.slane %v808, %v943
      %v945 = vlaneseq
      %v946 = vshrl.u32 %v945, 7
      %v947 = vsub.s32 %v934, %v946
      %v948 = vrot.slane %v811, %v947
      %v949 = vsel %vm939, %v948, %v944
      %v950 = vlaneseq
      %v951 = vshrl.u32 %v950, 7
      %v952 = vsub.s32 %v929, %v951
      %v953 = vrot.slane %v814, %v952
      %v954 = vlaneseq
      %v955 = vshrl.u32 %v954, 7
      %v956 = vsub.s32 %v934, %v955
      %v957 = vrot.slane %v817, %v956
      %v958 = vsel %vm939, %v957, %v953
      %v959 = vlaneseq
      %v960 = vshrl.u32 %v959, 7
      %v961 = vsub.s32 %v929, %v960
      %v962 = vrot.slane %v820, %v961
      %v963 = vlaneseq
      %v964 = vshrl.u32 %v963, 7
      %v965 = vsub.s32 %v934, %v964
      %v966 = vrot.slane %v823, %v965
      %v967 = vsel %vm939, %v966, %v962
      %v968 = vlaneseq
      %v969 = vshrl.u32 %v968, 7
      %v970 = vsub.s32 %v929, %v969
      %v971 = vrot.slane %v826, %v970
      %v972 = vlaneseq
      %v973 = vshrl.u32 %v972, 7
      %v974 = vsub.s32 %v934, %v973
      %v975 = vrot.slane %v829, %v974
      %v976 = vsel %vm939, %v975, %v971
      %v977 = vlaneseq
      %v978 = vshrl.u32 %v977, 7
      %v979 = vsub.s32 %v929, %v978
      %v980 = vrot.slane %v832, %v979
      %v981 = vlaneseq
      %v982 = vshrl.u32 %v981, 7
      %v983 = vsub.s32 %v934, %v982
      %v984 = vrot.slane %v835, %v983
      %v985 = vsel %vm939, %v984, %v980
      %v986 = vlaneseq
      %v987 = vshrl.u32 %v986, 7
      %v988 = vsub.s32 %v929, %v987
      %v989 = vrot.slane %v838, %v988
      %v990 = vlaneseq
      %v991 = vshrl.u32 %v990, 7
      %v992 = vsub.s32 %v934, %v991
      %v993 = vrot.slane %v841, %v992
      %v994 = vsel %vm939, %v993, %v989
      %v995 = vlaneseq
      %v996 = vshrl.u32 %v995, 7
      %v997 = vsub.s32 %v929, %v996
      %v998 = vrot.slane %v844, %v997
      %v999 = vlaneseq
      %v1000 = vshrl.u32 %v999, 7
      %v1001 = vsub.s32 %v934, %v1000
      %v1002 = vrot.slane %v847, %v1001
      %v1003 = vsel %vm939, %v1002, %v998
      %v1004 = vlaneseq
      %v1005 = vshrl.u32 %v1004, 7
      %v1006 = vsub.s32 %v929, %v1005
      %v1007 = vrot.slane %v850, %v1006
      %v1008 = vlaneseq
      %v1009 = vshrl.u32 %v1008, 7
      %v1010 = vsub.s32 %v934, %v1009
      %v1011 = vrot.slane %v853, %v1010
      %v1012 = vsel %vm939, %v1011, %v1007
      %v1013 = vlaneseq
      %v1014 = vshrl.u32 %v1013, 7
      %v1015 = vsub.s32 %v929, %v1014
      %v1016 = vrot.slane %v856, %v1015
      %v1017 = vlaneseq
      %v1018 = vshrl.u32 %v1017, 7
      %v1019 = vsub.s32 %v934, %v1018
      %v1020 = vrot.slane %v859, %v1019
      %v1021 = vsel %vm939, %v1020, %v1016
      %v1022 = vlaneseq
      %v1023 = vshrl.u32 %v1022, 7
      %v1024 = vsub.s32 %v929, %v1023
      %v1025 = vrot.slane %v862, %v1024
      %v1026 = vlaneseq
      %v1027 = vshrl.u32 %v1026, 7
      %v1028 = vsub.s32 %v934, %v1027
      %v1029 = vrot.slane %v865, %v1028
      %v1030 = vsel %vm939, %v1029, %v1025
      %v1031 = vlaneseq
      %v1032 = vshrl.u32 %v1031, 7
      %v1033 = vsub.s32 %v929, %v1032
      %v1034 = vrot.slane %v868, %v1033
      %v1035 = vlaneseq
      %v1036 = vshrl.u32 %v1035, 7
      %v1037 = vsub.s32 %v934, %v1036
      %v1038 = vrot.slane %v871, %v1037
      %v1039 = vsel %vm939, %v1038, %v1034
      %v1040 = vlaneseq
      %v1041 = vshrl.u32 %v1040, 7
      %v1042 = vsub.s32 %v929, %v1041
      %v1043 = vrot.slane %v874, %v1042
      %v1044 = vlaneseq
      %v1045 = vshrl.u32 %v1044, 7
      %v1046 = vsub.s32 %v934, %v1045
      %v1047 = vrot.slane %v877, %v1046
      %v1048 = vsel %vm939, %v1047, %v1043
      %v1049 = vlaneseq
      %v1050 = vshrl.u32 %v1049, 7
      %v1051 = vsub.s32 %v929, %v1050
      %v1052 = vrot.slane %v880, %v1051
      %v1053 = vlaneseq
      %v1054 = vshrl.u32 %v1053, 7
      %v1055 = vsub.s32 %v934, %v1054
      %v1056 = vrot.slane %v883, %v1055
      %v1057 = vsel %vm939, %v1056, %v1052
      %v1058 = vlaneseq
      %v1059 = vshrl.u32 %v1058, 7
      %v1060 = vsub.s32 %v929, %v1059
      %v1061 = vrot.slane %v886, %v1060
      %v1062 = vlaneseq
      %v1063 = vshrl.u32 %v1062, 7
      %v1064 = vsub.s32 %v934, %v1063
      %v1065 = vrot.slane %v889, %v1064
      %v1066 = vsel %vm939, %v1065, %v1061
      %v1067 = vlaneseq
      %v1068 = vshrl.u32 %v1067, 7
      %v1069 = vsub.s32 %v929, %v1068
      %v1070 = vrot.slane %v892, %v1069
      %v1071 = vlaneseq
      %v1072 = vshrl.u32 %v1071, 7
      %v1073 = vsub.s32 %v934, %v1072
      %v1074 = vrot.slane %v895, %v1073
      %v1075 = vsel %vm939, %v1074, %v1070
      %vm1076 = vcmask 1041409
      %v1077 = vsel %vm1076, %v949, %v940
      %vm1078 = vcmask 1042434
      %v1079 = vsel %vm1078, %v958, %v1077
      %vm1080 = vcmask 1043459
      %v1081 = vsel %vm1080, %v967, %v1079
      %vm1082 = vcmask 1044484
      %v1083 = vsel %vm1082, %v976, %v1081
      %vm1084 = vcmask 1045509
      %v1085 = vsel %vm1084, %v985, %v1083
      %vm1086 = vcmask 1046534
      %v1087 = vsel %vm1086, %v994, %v1085
      %vm1088 = vcmask 1047559
      %v1089 = vsel %vm1088, %v1003, %v1087
      %v1090 = vsel %vm1076, %v1021, %v1012
      %v1091 = vsel %vm1078, %v1030, %v1090
      %v1092 = vsel %vm1080, %v1039, %v1091
      %v1093 = vsel %vm1082, %v1048, %v1092
      %v1094 = vsel %vm1084, %v1057, %v1093
      %v1095 = vsel %vm1086, %v1066, %v1094
      %v1096 = vsel %vm1088, %v1075, %v1095
      %vm1097 = vcmask 130048
      %v1098 = vsel %vm1097, %v1089, 0
      %v1100 = vsel %vm1097, %v1096, 0
      %1102 = vmatprep.subr.mxu0 0.0
      %1103 = vmatpush1.msra.mxu0 %v508
      %1104 = vmatprep.subr.mxu0 0.0
      %1105 = vmatpush1.msra.mxu0 %v509
      %1106 = vmatprep.subr.mxu0 0.0
      %1107 = vmatpush1.msra.mxu0 0.0
      %1108 = vmatprep.subr.mxu0 0.0
      %1109 = vmatpush1.msra.mxu0 0.0
      %1110 = vmatprep.subr.mxu0 0.0
      %1111 = vmatpush1.msra.mxu0 0.0
      %1112 = vmatprep.subr.mxu0 0.0
      %1113 = vmatpush1.msra.mxu0 0.0
      %1114 = vmatprep.subr.mxu0 0.0
      %1115 = vmatpush1.msra.mxu0 0.0
      %1116 = vmatprep.subr.mxu0 0.0
      %1117 = vmatpush1.msra.mxu0 0.0
      %1118 = vmatprep.subr.mxu0 0.0
      %1119 = vmatpush1.msra.mxu0 0.0
      %1120 = vmatprep.subr.mxu0 0.0
      %1121 = vmatpush1.msra.mxu0 0.0
      %1122 = vmatprep.subr.mxu0 0.0
      %1123 = vmatpush1.msra.mxu0 0.0
      %1124 = vmatprep.subr.mxu0 0.0
      %1125 = vmatpush1.msra.mxu0 0.0
      %1126 = vmatprep.subr.mxu0 0.0
      %1127 = vmatpush1.msra.mxu0 0.0
      %1128 = vmatprep.subr.mxu0 0.0
      %1129 = vmatpush1.msra.mxu0 0.0
      %1130 = vmatprep.subr.mxu0 0.0
      %1131 = vmatpush1.msra.mxu0 0.0
      %1132 = vmatprep.subr.mxu0 0.0
      %1133 = vmatpush1.msra.mxu0 0.0
      %1134 = vmatprep.subr.mxu0 0.0
      %1135 = vmatpush1.msra.mxu0 0.0
      %1136 = vmatprep.subr.mxu0 0.0
      %1137 = vmatpush1.msra.mxu0 0.0
      %1138 = vmatprep.subr.mxu0 0.0
      %1139 = vmatpush1.msra.mxu0 0.0
      %1140 = vmatprep.subr.mxu0 0.0
      %1141 = vmatpush1.msra.mxu0 0.0
      %1142 = vmatprep.subr.mxu0 0.0
      %1143 = vmatpush1.msra.mxu0 0.0
      %1144 = vmatprep.subr.mxu0 0.0
      %1145 = vmatpush1.msra.mxu0 0.0
      %1146 = vmatprep.subr.mxu0 0.0
      %1147 = vmatpush1.msra.mxu0 0.0
      %1148 = vmatprep.subr.mxu0 0.0
      %1149 = vmatpush1.msra.mxu0 0.0
      %1150 = vmatprep.subr.mxu0 0.0
      %1151 = vmatpush1.msra.mxu0 0.0
      %1152 = vmatprep.subr.mxu0 0.0
      %1153 = vmatpush1.msra.mxu0 0.0
      %1154 = vmatprep.subr.mxu0 0.0
      %1155 = vmatpush1.msra.mxu0 0.0
      %1156 = vmatprep.subr.mxu0 0.0
      %1157 = vmatpush1.msra.mxu0 0.0
      %1158 = vmatprep.subr.mxu0 0.0
      %1159 = vmatpush1.msra.mxu0 0.0
      %1160 = vmatprep.subr.mxu0 0.0
      %1161 = vmatpush1.msra.mxu0 0.0
      %1162 = vmatprep.subr.mxu0 0.0
      %1163 = vmatpush1.msra.mxu0 0.0
      %1164 = vmatprep.subr.mxu0 0.0
      %1165 = vmatpush1.msra.mxu0 0.0
      %1166 = vmatprep.mubr.f32.mxu0 0.0
      %1167 = vmatmul.mubr.f32.gmra.mrb[0].mxu0 %v1098
      %v1168 = vpop.f32.mrb[0].mxu0
      %v1169 = vadd.f32 0.0, %v1168
      %v1170 = vpop.f32.mrb[0].mxu0
      %1171 = vmatprep.mubr.f32.mxu0 0.0
      %1172 = vmatmul.mubr.f32.gmra.mrb[0].mxu0 %v1100
      %v1173 = vpop.f32.mrb[0].mxu0
      %v1174 = vadd.f32 0.0, %v1173
      %v1175 = vpop.f32.mrb[0].mxu0
      %1176 = vdwg.mxu0
      %v1178 = vsel %vm799, %v514, 0
      %v1181 = vsel %vm799, %v515, 0
      %1183 = vmatprep.subr.mxu0 0.0
      %1184 = vmatpush1.msra.mxu0 %v550
      %1185 = vmatprep.subr.mxu0 0.0
      %1186 = vmatpush1.msra.mxu0 %v551
      %1187 = vmatprep.subr.mxu0 0.0
      %1188 = vmatpush1.msra.mxu0 %v552
      %1189 = vmatprep.subr.mxu0 0.0
      %1190 = vmatpush1.msra.mxu0 %v553
      %1191 = vmatprep.subr.mxu0 0.0
      %1192 = vmatpush1.msra.mxu0 0.0
      %1193 = vmatprep.subr.mxu0 0.0
      %1194 = vmatpush1.msra.mxu0 0.0
      %1195 = vmatprep.subr.mxu0 0.0
      %1196 = vmatpush1.msra.mxu0 0.0
      %1197 = vmatprep.subr.mxu0 0.0
      %1198 = vmatpush1.msra.mxu0 0.0
      %1199 = vmatprep.subr.mxu0 0.0
      %1200 = vmatpush1.msra.mxu0 0.0
      %1201 = vmatprep.subr.mxu0 0.0
      %1202 = vmatpush1.msra.mxu0 0.0
      %1203 = vmatprep.subr.mxu0 0.0
      %1204 = vmatpush1.msra.mxu0 0.0
      %1205 = vmatprep.subr.mxu0 0.0
      %1206 = vmatpush1.msra.mxu0 0.0
      %1207 = vmatprep.subr.mxu0 0.0
      %1208 = vmatpush1.msra.mxu0 0.0
      %1209 = vmatprep.subr.mxu0 0.0
      %1210 = vmatpush1.msra.mxu0 0.0
      %1211 = vmatprep.subr.mxu0 0.0
      %1212 = vmatpush1.msra.mxu0 0.0
      %1213 = vmatprep.subr.mxu0 0.0
      %1214 = vmatpush1.msra.mxu0 0.0
      %1215 = vmatprep.subr.mxu0 0.0
      %1216 = vmatpush1.msra.mxu0 0.0
      %1217 = vmatprep.subr.mxu0 0.0
      %1218 = vmatpush1.msra.mxu0 0.0
      %1219 = vmatprep.subr.mxu0 0.0
      %1220 = vmatpush1.msra.mxu0 0.0
      %1221 = vmatprep.subr.mxu0 0.0
      %1222 = vmatpush1.msra.mxu0 0.0
      %1223 = vmatprep.subr.mxu0 0.0
      %1224 = vmatpush1.msra.mxu0 0.0
      %1225 = vmatprep.subr.mxu0 0.0
      %1226 = vmatpush1.msra.mxu0 0.0
      %1227 = vmatprep.subr.mxu0 0.0
      %1228 = vmatpush1.msra.mxu0 0.0
      %1229 = vmatprep.subr.mxu0 0.0
      %1230 = vmatpush1.msra.mxu0 0.0
      %1231 = vmatprep.subr.mxu0 0.0
      %1232 = vmatpush1.msra.mxu0 0.0
      %1233 = vmatprep.subr.mxu0 0.0
      %1234 = vmatpush1.msra.mxu0 0.0
      %1235 = vmatprep.subr.mxu0 0.0
      %1236 = vmatpush1.msra.mxu0 0.0
      %1237 = vmatprep.subr.mxu0 0.0
      %1238 = vmatpush1.msra.mxu0 0.0
      %1239 = vmatprep.subr.mxu0 0.0
      %1240 = vmatpush1.msra.mxu0 0.0
      %1241 = vmatprep.subr.mxu0 0.0
      %1242 = vmatpush1.msra.mxu0 0.0
      %1243 = vmatprep.subr.mxu0 0.0
      %1244 = vmatpush1.msra.mxu0 0.0
      %1245 = vmatprep.subr.mxu0 0.0
      %1246 = vmatpush1.msra.mxu0 0.0
      %1247 = vmatprep.mubr.f32.mxu0 0.0
      %1248 = vmatmul.mubr.f32.gmra.mrb[0].mxu0 %v1178
      %v1249 = vpop.f32.mrb[0].mxu0
      %v1250 = vadd.f32 %v1169, %v1249
      %v1251 = vpop.f32.mrb[0].mxu0
      %1252 = vmatprep.mubr.f32.mxu0 0.0
      %1253 = vmatmul.mubr.f32.gmra.mrb[0].mxu0 %v1181
      %v1254 = vpop.f32.mrb[0].mxu0
      %v1255 = vadd.f32 %v1174, %v1254
      %v1256 = vpop.f32.mrb[0].mxu0
      %1257 = vdwg.mxu0
      %v1259 = vlaneseq
      %v1260 = vshrl.u32 %v1259, 7
      %v1261 = vsub.s32 0, %v1260
      %v1262 = vrot.slane %v554, %v1261
      %v1264 = vmul.f32 %v514, %v1262
      %v1265 = vmul.f32 %v515, %v1262
      %v1266 = vsel %vm799, %v1264, 0.0
      %1267 = vadd.xlane.f32.xlu0 %v1266
      %v1268 = vpop.xlane.xlu0 %1267
      %v1269 = vsel %vm799, %v1265, 0.0
      %1270 = vadd.xlane.f32.xlu0 %v1269
      %v1271 = vpop.xlane.xlu0 %1270
      %v1274 = vsel %vm1097, %v1089, 0.0
      %1275 = vadd.xlane.f32.xlu0 %v1274
      %v1276 = vpop.xlane.xlu0 %1275
      %v1277 = vsel %vm1097, %v1096, 0.0
      %1278 = vadd.xlane.f32.xlu0 %v1277
      %v1279 = vpop.xlane.xlu0 %1278
      %v1280 = vadd.f32 %v1268, %v1276
      %v1281 = vadd.f32 %v1271, %v1279
      %v1282 = vmul.f32 %v550, %v494
      %v1283 = vmul.f32 %v551, %v495
      %v1284 = vmul.f32 %v552, %v496
      %v1285 = vmul.f32 %v553, %v497
      %1286 = vxpose.xlu0.b32.start [1/16] %v516, 128
      %1287 = vxpose.xlu0.b32.cont [2/16] %v517, 128
      %1288 = vxpose.xlu0.b32.cont [3/16] 0.0, 128
      %1289 = vxpose.xlu0.b32.cont [4/16] 0.0, 128
      %1290 = vxpose.xlu0.b32.cont [5/16] 0.0, 128
      %1291 = vxpose.xlu0.b32.cont [6/16] 0.0, 128
      %1292 = vxpose.xlu0.b32.cont [7/16] 0.0, 128
      %1293 = vxpose.xlu0.b32.cont [8/16] 0.0, 128
      %1294 = vxpose.xlu0.b32.cont [9/16] 0.0, 128
      %1295 = vxpose.xlu0.b32.cont [10/16] 0.0, 128
      %1296 = vxpose.xlu0.b32.cont [11/16] 0.0, 128
      %1297 = vxpose.xlu0.b32.cont [12/16] 0.0, 128
      %1298 = vxpose.xlu0.b32.cont [13/16] 0.0, 128
      %1299 = vxpose.xlu0.b32.cont [14/16] 0.0, 128
      %1300 = vxpose.xlu0.b32.cont [15/16] 0.0, 128
      %1301 = vxpose.xlu0.b32.end [16/16] 0.0, 128
      %v1302 = vpop.trf.xlu0
      %v1303 = vpop.trf.xlu0
      %v1304 = vpop.trf.xlu0
      %v1305 = vpop.trf.xlu0
      %v1306 = vpop.trf.xlu0
      %v1307 = vpop.trf.xlu0
      %v1308 = vpop.trf.xlu0
      %v1309 = vpop.trf.xlu0
      %v1310 = vpop.trf.xlu0
      %v1311 = vpop.trf.xlu0
      %v1312 = vpop.trf.xlu0
      %v1313 = vpop.trf.xlu0
      %v1314 = vpop.trf.xlu0
      %v1315 = vpop.trf.xlu0
      %v1316 = vpop.trf.xlu0
      %v1317 = vpop.trf.xlu0
      %v1319 = vsel %vm1097, %v1302, 0
      %v1322 = vsel %vm1097, %v1303, 0
      %v1325 = vsel %vm1097, %v1304, 0
      %v1328 = vsel %vm1097, %v1305, 0
      %1330 = vmatprep.subr.mxu0 0.0
      %1331 = vmatpush1.msra.mxu0 %v508
      %1332 = vmatprep.subr.mxu0 0.0
      %1333 = vmatpush1.msra.mxu0 %v509
      %1334 = vmatprep.subr.mxu0 0.0
      %1335 = vmatpush1.msra.mxu0 0.0
      %1336 = vmatprep.subr.mxu0 0.0
      %1337 = vmatpush1.msra.mxu0 0.0
      %1338 = vmatprep.subr.mxu0 0.0
      %1339 = vmatpush1.msra.mxu0 0.0
      %1340 = vmatprep.subr.mxu0 0.0
      %1341 = vmatpush1.msra.mxu0 0.0
      %1342 = vmatprep.subr.mxu0 0.0
      %1343 = vmatpush1.msra.mxu0 0.0
      %1344 = vmatprep.subr.mxu0 0.0
      %1345 = vmatpush1.msra.mxu0 0.0
      %1346 = vmatprep.subr.mxu0 0.0
      %1347 = vmatpush1.msra.mxu0 0.0
      %1348 = vmatprep.subr.mxu0 0.0
      %1349 = vmatpush1.msra.mxu0 0.0
      %1350 = vmatprep.subr.mxu0 0.0
      %1351 = vmatpush1.msra.mxu0 0.0
      %1352 = vmatprep.subr.mxu0 0.0
      %1353 = vmatpush1.msra.mxu0 0.0
      %1354 = vmatprep.subr.mxu0 0.0
      %1355 = vmatpush1.msra.mxu0 0.0
      %1356 = vmatprep.subr.mxu0 0.0
      %1357 = vmatpush1.msra.mxu0 0.0
      %1358 = vmatprep.subr.mxu0 0.0
      %1359 = vmatpush1.msra.mxu0 0.0
      %1360 = vmatprep.subr.mxu0 0.0
      %1361 = vmatpush1.msra.mxu0 0.0
      %1362 = vmatprep.subr.mxu0 0.0
      %1363 = vmatpush1.msra.mxu0 0.0
      %1364 = vmatprep.subr.mxu0 0.0
      %1365 = vmatpush1.msra.mxu0 0.0
      %1366 = vmatprep.subr.mxu0 0.0
      %1367 = vmatpush1.msra.mxu0 0.0
      %1368 = vmatprep.subr.mxu0 0.0
      %1369 = vmatpush1.msra.mxu0 0.0
      %1370 = vmatprep.subr.mxu0 0.0
      %1371 = vmatpush1.msra.mxu0 0.0
      %1372 = vmatprep.subr.mxu0 0.0
      %1373 = vmatpush1.msra.mxu0 0.0
      %1374 = vmatprep.subr.mxu0 0.0
      %1375 = vmatpush1.msra.mxu0 0.0
      %1376 = vmatprep.subr.mxu0 0.0
      %1377 = vmatpush1.msra.mxu0 0.0
      %1378 = vmatprep.subr.mxu0 0.0
      %1379 = vmatpush1.msra.mxu0 0.0
      %1380 = vmatprep.subr.mxu0 0.0
      %1381 = vmatpush1.msra.mxu0 0.0
      %1382 = vmatprep.subr.mxu0 0.0
      %1383 = vmatpush1.msra.mxu0 0.0
      %1384 = vmatprep.subr.mxu0 0.0
      %1385 = vmatpush1.msra.mxu0 0.0
      %1386 = vmatprep.subr.mxu0 0.0
      %1387 = vmatpush1.msra.mxu0 0.0
      %1388 = vmatprep.subr.mxu0 0.0
      %1389 = vmatpush1.msra.mxu0 0.0
      %1390 = vmatprep.subr.mxu0 0.0
      %1391 = vmatpush1.msra.mxu0 0.0
      %1392 = vmatprep.subr.mxu0 0.0
      %1393 = vmatpush1.msra.mxu0 0.0
      %1394 = vmatprep.mubr.f32.mxu0 0.0
      %1395 = vmatmul.mubr.f32.gmra.mrb[0].mxu0 %v1319
      %v1396 = vpop.f32.mrb[0].mxu0
      %v1397 = vadd.f32 0.0, %v1396
      %v1398 = vpop.f32.mrb[0].mxu0
      %1399 = vmatprep.mubr.f32.mxu0 0.0
      %1400 = vmatmul.mubr.f32.gmra.mrb[0].mxu0 %v1322
      %v1401 = vpop.f32.mrb[0].mxu0
      %v1402 = vadd.f32 0.0, %v1401
      %v1403 = vpop.f32.mrb[0].mxu0
      %1404 = vmatprep.mubr.f32.mxu0 0.0
      %1405 = vmatmul.mubr.f32.gmra.mrb[0].mxu0 %v1325
      %v1406 = vpop.f32.mrb[0].mxu0
      %v1407 = vadd.f32 0.0, %v1406
      %v1408 = vpop.f32.mrb[0].mxu0
      %1409 = vmatprep.mubr.f32.mxu0 0.0
      %1410 = vmatmul.mubr.f32.gmra.mrb[0].mxu0 %v1328
      %v1411 = vpop.f32.mrb[0].mxu0
      %v1412 = vadd.f32 0.0, %v1411
      %v1413 = vpop.f32.mrb[0].mxu0
      %1414 = vdwg.mxu0
      %v1415 = vadd.f32 %v1282, %v1397
      %v1416 = vadd.f32 %v1283, %v1402
      %v1417 = vadd.f32 %v1284, %v1407
      %v1418 = vadd.f32 %v1285, %v1412
      %1419 = vst.msk [vmem:[#allocation2] sm:$0xff] %vm799, %v1415
      %1420 = vst.msk [vmem:[#allocation2 + $0x8] sm:$0xff] %vm799, %v1416
      %1421 = vst.msk [vmem:[#allocation2 + $0x10] sm:$0xff] %vm799, %v1417
      %1422 = vst.msk [vmem:[#allocation2 + $0x18] sm:$0xff] %vm799, %v1418
      %v1423 = vmul.f32 %v554, %v493
      %v1424 = vsel %vm799, %v516, 0.0
      %v1425 = vsel %vm799, %v517, 0.0
      %v1426 = vadd.f32 %v1424, %v1425
      %v1427 = vrot.slane %v1426, 4
      %v1428 = vadd.f32 %v1426, %v1427
      %v1429 = vrot.slane %v1428, 2
      %v1430 = vadd.f32 %v1428, %v1429
      %v1431 = vrot.slane %v1430, 1
      %v1432 = vadd.f32 %v1430, %v1431
      %v1433 = vadd.f32 %v1423, %v1432
      %vm1434 = vcmask 253952
      %1435 = vst.msk [vmem:[#allocation3] sm:$0x1] %vm1434, %v1433
      %v1436 = vrcp.pop %v1280
      %v1437 = vmul.f32 %v1250, %v1436
      %v1438 = vrcp.pop %v1281
      %v1439 = vmul.f32 %v1255, %v1438
      %v1440 = vld [vmem:[%s6] sm:$0xff]
      %v1441 = vld [vmem:[%s6 + $0x8] sm:$0xff]
      %v1442 = vld [vmem:[%s6 + $0x10] sm:$0xff]
      %v1443 = vld [vmem:[%s6 + $0x18] sm:$0xff]
      %v1444 = vld [vmem:[%s6 + $0x20] sm:$0xff]
      %v1445 = vld [vmem:[%s6 + $0x28] sm:$0xff]
      %v1446 = vld [vmem:[%s6 + $0x30] sm:$0xff]
      %v1447 = vld [vmem:[%s6 + $0x38] sm:$0xff]
      %v1448 = vld [vmem:[%s6 + $0x40] sm:$0xff]
      %v1449 = vld [vmem:[%s6 + $0x48] sm:$0xff]
      %v1450 = vld [vmem:[%s6 + $0x50] sm:$0xff]
      %v1451 = vld [vmem:[%s6 + $0x58] sm:$0xff]
      %v1452 = vld [vmem:[%s6 + $0x60] sm:$0xff]
      %v1453 = vld [vmem:[%s6 + $0x68] sm:$0xff]
      %v1454 = vld [vmem:[%s6 + $0x70] sm:$0xff]
      %v1455 = vld [vmem:[%s6 + $0x78] sm:$0xff]
      %v1456 = vld [vmem:[%s6 + $0x80] sm:$0xff]
      %v1457 = vld [vmem:[%s6 + $0x88] sm:$0xff]
      %v1458 = vld [vmem:[%s6 + $0x90] sm:$0xff]
      %v1459 = vld [vmem:[%s6 + $0x98] sm:$0xff]
      %v1460 = vld [vmem:[%s6 + $0xa0] sm:$0xff]
      %v1461 = vld [vmem:[%s6 + $0xa8] sm:$0xff]
      %v1462 = vld [vmem:[%s6 + $0xb0] sm:$0xff]
      %v1463 = vld [vmem:[%s6 + $0xb8] sm:$0xff]
      %v1464 = vld [vmem:[%s6 + $0xc0] sm:$0xff]
      %v1465 = vld [vmem:[%s6 + $0xc8] sm:$0xff]
      %v1466 = vld [vmem:[%s6 + $0xd0] sm:$0xff]
      %v1467 = vld [vmem:[%s6 + $0xd8] sm:$0xff]
      %v1468 = vld [vmem:[%s6 + $0xe0] sm:$0xff]
      %v1469 = vld [vmem:[%s6 + $0xe8] sm:$0xff]
      %v1470 = vld [vmem:[%s6 + $0xf0] sm:$0xff]
      %v1471 = vld [vmem:[%s6 + $0xf8] sm:$0xff]
      %v1472 = vld [vmem:[#allocation2] sm:$0xff]
      %v1473 = vld [vmem:[#allocation2 + $0x8] sm:$0xff]
      %v1474 = vld [vmem:[#allocation2 + $0x10] sm:$0xff]
      %v1475 = vld [vmem:[#allocation2 + $0x18] sm:$0xff]
      %v1476 = vld [vmem:[#allocation3] sm:$0x1]
      %v1477 = vmul.f32 %v735, %v1440
      %v1478 = vmul.f32 %v736, %v1441
      %v1479 = vmul.f32 %v737, %v1442
      %v1480 = vmul.f32 %v738, %v1443
      %v1481 = vmul.f32 %v739, %v1444
      %v1482 = vmul.f32 %v740, %v1445
      %v1483 = vmul.f32 %v741, %v1446
      %v1484 = vmul.f32 %v742, %v1447
      %v1485 = vmul.f32 %v743, %v1448
      %v1486 = vmul.f32 %v744, %v1449
      %v1487 = vmul.f32 %v745, %v1450
      %v1488 = vmul.f32 %v746, %v1451
      %v1489 = vmul.f32 %v747, %v1452
      %v1490 = vmul.f32 %v748, %v1453
      %v1491 = vmul.f32 %v749, %v1454
      %v1492 = vmul.f32 %v750, %v1455
      %v1493 = vmul.f32 %v751, %v1456
      %v1494 = vmul.f32 %v752, %v1457
      %v1495 = vmul.f32 %v753, %v1458
      %v1496 = vmul.f32 %v754, %v1459
      %v1497 = vmul.f32 %v755, %v1460
      %v1498 = vmul.f32 %v756, %v1461
      %v1499 = vmul.f32 %v757, %v1462
      %v1500 = vmul.f32 %v758, %v1463
      %v1501 = vmul.f32 %v759, %v1464
      %v1502 = vmul.f32 %v760, %v1465
      %v1503 = vmul.f32 %v761, %v1466
      %v1504 = vmul.f32 %v762, %v1467
      %v1505 = vmul.f32 %v763, %v1468
      %v1506 = vmul.f32 %v764, %v1469
      %v1507 = vmul.f32 %v765, %v1470
      %v1508 = vmul.f32 %v766, %v1471
      %1541 = vrot.lane.b32.xlu0 %v1477, 96
      %v1542 = vpop.permute.xlu0 %1541
      %1543 = vrot.lane.b32.xlu0 %v1478, 96
      %v1544 = vpop.permute.xlu0 %1543
      %1545 = vrot.lane.b32.xlu0 %v1479, 96
      %v1546 = vpop.permute.xlu0 %1545
      %1547 = vrot.lane.b32.xlu0 %v1480, 96
      %v1548 = vpop.permute.xlu0 %1547
      %1549 = vrot.lane.b32.xlu0 %v1481, 96
      %v1550 = vpop.permute.xlu0 %1549
      %1551 = vrot.lane.b32.xlu0 %v1482, 96
      %v1552 = vpop.permute.xlu0 %1551
      %1553 = vrot.lane.b32.xlu0 %v1483, 96
      %v1554 = vpop.permute.xlu0 %1553
      %1555 = vrot.lane.b32.xlu0 %v1484, 96
      %v1556 = vpop.permute.xlu0 %1555
      %1557 = vrot.lane.b32.xlu0 %v1485, 96
      %v1558 = vpop.permute.xlu0 %1557
      %1559 = vrot.lane.b32.xlu0 %v1486, 96
      %v1560 = vpop.permute.xlu0 %1559
      %1561 = vrot.lane.b32.xlu0 %v1487, 96
      %v1562 = vpop.permute.xlu0 %1561
      %1563 = vrot.lane.b32.xlu0 %v1488, 96
      %v1564 = vpop.permute.xlu0 %1563
      %1565 = vrot.lane.b32.xlu0 %v1489, 96
      %v1566 = vpop.permute.xlu0 %1565
      %1567 = vrot.lane.b32.xlu0 %v1490, 96
      %v1568 = vpop.permute.xlu0 %1567
      %1569 = vrot.lane.b32.xlu0 %v1491, 96
      %v1570 = vpop.permute.xlu0 %1569
      %1571 = vrot.lane.b32.xlu0 %v1492, 96
      %v1572 = vpop.permute.xlu0 %1571
      %1573 = vrot.lane.b32.xlu0 %v1493, 96
      %v1574 = vpop.permute.xlu0 %1573
      %1575 = vrot.lane.b32.xlu0 %v1494, 96
      %v1576 = vpop.permute.xlu0 %1575
      %1577 = vrot.lane.b32.xlu0 %v1495, 96
      %v1578 = vpop.permute.xlu0 %1577
      %1579 = vrot.lane.b32.xlu0 %v1496, 96
      %v1580 = vpop.permute.xlu0 %1579
      %1581 = vrot.lane.b32.xlu0 %v1497, 96
      %v1582 = vpop.permute.xlu0 %1581
      %1583 = vrot.lane.b32.xlu0 %v1498, 96
      %v1584 = vpop.permute.xlu0 %1583
      %1585 = vrot.lane.b32.xlu0 %v1499, 96
      %v1586 = vpop.permute.xlu0 %1585
      %1587 = vrot.lane.b32.xlu0 %v1500, 96
      %v1588 = vpop.permute.xlu0 %1587
      %1589 = vrot.lane.b32.xlu0 %v1501, 96
      %v1590 = vpop.permute.xlu0 %1589
      %1591 = vrot.lane.b32.xlu0 %v1502, 96
      %v1592 = vpop.permute.xlu0 %1591
      %1593 = vrot.lane.b32.xlu0 %v1503, 96
      %v1594 = vpop.permute.xlu0 %1593
      %1595 = vrot.lane.b32.xlu0 %v1504, 96
      %v1596 = vpop.permute.xlu0 %1595
      %1597 = vrot.lane.b32.xlu0 %v1505, 96
      %v1598 = vpop.permute.xlu0 %1597
      %1599 = vrot.lane.b32.xlu0 %v1506, 96
      %v1600 = vpop.permute.xlu0 %1599
      %1601 = vrot.lane.b32.xlu0 %v1507, 96
      %v1602 = vpop.permute.xlu0 %1601
      %1603 = vrot.lane.b32.xlu0 %v1508, 96
      %v1604 = vpop.permute.xlu0 %1603
      %v1637 = vsel %vm799, %v1542, 0.0
      %1638 = vadd.xlane.f32.xlu0 %v1637
      %v1639 = vpop.xlane.xlu0 %1638
      %v1640 = vsel %vm799, %v1544, 0.0
      %1641 = vadd.xlane.f32.xlu0 %v1640
      %v1642 = vpop.xlane.xlu0 %1641
      %v1643 = vsel %vm799, %v1546, 0.0
      %1644 = vadd.xlane.f32.xlu0 %v1643
      %v1645 = vpop.xlane.xlu0 %1644
      %v1646 = vsel %vm799, %v1548, 0.0
      %1647 = vadd.xlane.f32.xlu0 %v1646
      %v1648 = vpop.xlane.xlu0 %1647
      %v1649 = vsel %vm799, %v1550, 0.0
      %1650 = vadd.xlane.f32.xlu0 %v1649
      %v1651 = vpop.xlane.xlu0 %1650
      %v1652 = vsel %vm799, %v1552, 0.0
      %1653 = vadd.xlane.f32.xlu0 %v1652
      %v1654 = vpop.xlane.xlu0 %1653
      %v1655 = vsel %vm799, %v1554, 0.0
      %1656 = vadd.xlane.f32.xlu0 %v1655
      %v1657 = vpop.xlane.xlu0 %1656
      %v1658 = vsel %vm799, %v1556, 0.0
      %1659 = vadd.xlane.f32.xlu0 %v1658
      %v1660 = vpop.xlane.xlu0 %1659
      %v1661 = vsel %vm799, %v1558, 0.0
      %1662 = vadd.xlane.f32.xlu0 %v1661
      %v1663 = vpop.xlane.xlu0 %1662
      %v1664 = vsel %vm799, %v1560, 0.0
      %1665 = vadd.xlane.f32.xlu0 %v1664
      %v1666 = vpop.xlane.xlu0 %1665
      %v1667 = vsel %vm799, %v1562, 0.0
      %1668 = vadd.xlane.f32.xlu0 %v1667
      %v1669 = vpop.xlane.xlu0 %1668
      %v1670 = vsel %vm799, %v1564, 0.0
      %1671 = vadd.xlane.f32.xlu0 %v1670
      %v1672 = vpop.xlane.xlu0 %1671
      %v1673 = vsel %vm799, %v1566, 0.0
      %1674 = vadd.xlane.f32.xlu0 %v1673
      %v1675 = vpop.xlane.xlu0 %1674
      %v1676 = vsel %vm799, %v1568, 0.0
      %1677 = vadd.xlane.f32.xlu0 %v1676
      %v1678 = vpop.xlane.xlu0 %1677
      %v1679 = vsel %vm799, %v1570, 0.0
      %1680 = vadd.xlane.f32.xlu0 %v1679
      %v1681 = vpop.xlane.xlu0 %1680
      %v1682 = vsel %vm799, %v1572, 0.0
      %1683 = vadd.xlane.f32.xlu0 %v1682
      %v1684 = vpop.xlane.xlu0 %1683
      %v1685 = vsel %vm799, %v1574, 0.0
      %1686 = vadd.xlane.f32.xlu0 %v1685
      %v1687 = vpop.xlane.xlu0 %1686
      %v1688 = vsel %vm799, %v1576, 0.0
      %1689 = vadd.xlane.f32.xlu0 %v1688
      %v1690 = vpop.xlane.xlu0 %1689
      %v1691 = vsel %vm799, %v1578, 0.0
      %1692 = vadd.xlane.f32.xlu0 %v1691
      %v1693 = vpop.xlane.xlu0 %1692
      %v1694 = vsel %vm799, %v1580, 0.0
      %1695 = vadd.xlane.f32.xlu0 %v1694
      %v1696 = vpop.xlane.xlu0 %1695
      %v1697 = vsel %vm799, %v1582, 0.0
      %1698 = vadd.xlane.f32.xlu0 %v1697
      %v1699 = vpop.xlane.xlu0 %1698
      %v1700 = vsel %vm799, %v1584, 0.0
      %1701 = vadd.xlane.f32.xlu0 %v1700
      %v1702 = vpop.xlane.xlu0 %1701
      %v1703 = vsel %vm799, %v1586, 0.0
      %1704 = vadd.xlane.f32.xlu0 %v1703
      %v1705 = vpop.xlane.xlu0 %1704
      %v1706 = vsel %vm799, %v1588, 0.0
      %1707 = vadd.xlane.f32.xlu0 %v1706
      %v1708 = vpop.xlane.xlu0 %1707
      %v1709 = vsel %vm799, %v1590, 0.0
      %1710 = vadd.xlane.f32.xlu0 %v1709
      %v1711 = vpop.xlane.xlu0 %1710
      %v1712 = vsel %vm799, %v1592, 0.0
      %1713 = vadd.xlane.f32.xlu0 %v1712
      %v1714 = vpop.xlane.xlu0 %1713
      %v1715 = vsel %vm799, %v1594, 0.0
      %1716 = vadd.xlane.f32.xlu0 %v1715
      %v1717 = vpop.xlane.xlu0 %1716
      %v1718 = vsel %vm799, %v1596, 0.0
      %1719 = vadd.xlane.f32.xlu0 %v1718
      %v1720 = vpop.xlane.xlu0 %1719
      %v1721 = vsel %vm799, %v1598, 0.0
      %1722 = vadd.xlane.f32.xlu0 %v1721
      %v1723 = vpop.xlane.xlu0 %1722
      %v1724 = vsel %vm799, %v1600, 0.0
      %1725 = vadd.xlane.f32.xlu0 %v1724
      %v1726 = vpop.xlane.xlu0 %1725
      %v1727 = vsel %vm799, %v1602, 0.0
      %1728 = vadd.xlane.f32.xlu0 %v1727
      %v1729 = vpop.xlane.xlu0 %1728
      %v1730 = vsel %vm799, %v1604, 0.0
      %1731 = vadd.xlane.f32.xlu0 %v1730
      %v1732 = vpop.xlane.xlu0 %1731
      %v1765 = vlaneseq
      %v1766 = vshrl.u32 %v1765, 7
      %v1767 = vsub.s32 %v929, %v1766
      %v1768 = vrot.slane %v1639, %v1767
      %v1769 = vlaneseq
      %v1770 = vshrl.u32 %v1769, 7
      %v1771 = vsub.s32 %v934, %v1770
      %v1772 = vrot.slane %v1642, %v1771
      %v1773 = vsel %vm939, %v1772, %v1768
      %v1774 = vlaneseq
      %v1775 = vshrl.u32 %v1774, 7
      %v1776 = vsub.s32 %v929, %v1775
      %v1777 = vrot.slane %v1645, %v1776
      %v1778 = vlaneseq
      %v1779 = vshrl.u32 %v1778, 7
      %v1780 = vsub.s32 %v934, %v1779
      %v1781 = vrot.slane %v1648, %v1780
      %v1782 = vsel %vm939, %v1781, %v1777
      %v1783 = vlaneseq
      %v1784 = vshrl.u32 %v1783, 7
      %v1785 = vsub.s32 %v929, %v1784
      %v1786 = vrot.slane %v1651, %v1785
      %v1787 = vlaneseq
      %v1788 = vshrl.u32 %v1787, 7
      %v1789 = vsub.s32 %v934, %v1788
      %v1790 = vrot.slane %v1654, %v1789
      %v1791 = vsel %vm939, %v1790, %v1786
      %v1792 = vlaneseq
      %v1793 = vshrl.u32 %v1792, 7
      %v1794 = vsub.s32 %v929, %v1793
      %v1795 = vrot.slane %v1657, %v1794
      %v1796 = vlaneseq
      %v1797 = vshrl.u32 %v1796, 7
      %v1798 = vsub.s32 %v934, %v1797
      %v1799 = vrot.slane %v1660, %v1798
      %v1800 = vsel %vm939, %v1799, %v1795
      %v1801 = vlaneseq
      %v1802 = vshrl.u32 %v1801, 7
      %v1803 = vsub.s32 %v929, %v1802
      %v1804 = vrot.slane %v1663, %v1803
      %v1805 = vlaneseq
      %v1806 = vshrl.u32 %v1805, 7
      %v1807 = vsub.s32 %v934, %v1806
      %v1808 = vrot.slane %v1666, %v1807
      %v1809 = vsel %vm939, %v1808, %v1804
      %v1810 = vlaneseq
      %v1811 = vshrl.u32 %v1810, 7
      %v1812 = vsub.s32 %v929, %v1811
      %v1813 = vrot.slane %v1669, %v1812
      %v1814 = vlaneseq
      %v1815 = vshrl.u32 %v1814, 7
      %v1816 = vsub.s32 %v934, %v1815
      %v1817 = vrot.slane %v1672, %v1816
      %v1818 = vsel %vm939, %v1817, %v1813
      %v1819 = vlaneseq
      %v1820 = vshrl.u32 %v1819, 7
      %v1821 = vsub.s32 %v929, %v1820
      %v1822 = vrot.slane %v1675, %v1821
      %v1823 = vlaneseq
      %v1824 = vshrl.u32 %v1823, 7
      %v1825 = vsub.s32 %v934, %v1824
      %v1826 = vrot.slane %v1678, %v1825
      %v1827 = vsel %vm939, %v1826, %v1822
      %v1828 = vlaneseq
      %v1829 = vshrl.u32 %v1828, 7
      %v1830 = vsub.s32 %v929, %v1829
      %v1831 = vrot.slane %v1681, %v1830
      %v1832 = vlaneseq
      %v1833 = vshrl.u32 %v1832, 7
      %v1834 = vsub.s32 %v934, %v1833
      %v1835 = vrot.slane %v1684, %v1834
      %v1836 = vsel %vm939, %v1835, %v1831
      %v1837 = vlaneseq
      %v1838 = vshrl.u32 %v1837, 7
      %v1839 = vsub.s32 %v929, %v1838
      %v1840 = vrot.slane %v1687, %v1839
      %v1841 = vlaneseq
      %v1842 = vshrl.u32 %v1841, 7
      %v1843 = vsub.s32 %v934, %v1842
      %v1844 = vrot.slane %v1690, %v1843
      %v1845 = vsel %vm939, %v1844, %v1840
      %v1846 = vlaneseq
      %v1847 = vshrl.u32 %v1846, 7
      %v1848 = vsub.s32 %v929, %v1847
      %v1849 = vrot.slane %v1693, %v1848
      %v1850 = vlaneseq
      %v1851 = vshrl.u32 %v1850, 7
      %v1852 = vsub.s32 %v934, %v1851
      %v1853 = vrot.slane %v1696, %v1852
      %v1854 = vsel %vm939, %v1853, %v1849
      %v1855 = vlaneseq
      %v1856 = vshrl.u32 %v1855, 7
      %v1857 = vsub.s32 %v929, %v1856
      %v1858 = vrot.slane %v1699, %v1857
      %v1859 = vlaneseq
      %v1860 = vshrl.u32 %v1859, 7
      %v1861 = vsub.s32 %v934, %v1860
      %v1862 = vrot.slane %v1702, %v1861
      %v1863 = vsel %vm939, %v1862, %v1858
      %v1864 = vlaneseq
      %v1865 = vshrl.u32 %v1864, 7
      %v1866 = vsub.s32 %v929, %v1865
      %v1867 = vrot.slane %v1705, %v1866
      %v1868 = vlaneseq
      %v1869 = vshrl.u32 %v1868, 7
      %v1870 = vsub.s32 %v934, %v1869
      %v1871 = vrot.slane %v1708, %v1870
      %v1872 = vsel %vm939, %v1871, %v1867
      %v1873 = vlaneseq
      %v1874 = vshrl.u32 %v1873, 7
      %v1875 = vsub.s32 %v929, %v1874
      %v1876 = vrot.slane %v1711, %v1875
      %v1877 = vlaneseq
      %v1878 = vshrl.u32 %v1877, 7
      %v1879 = vsub.s32 %v934, %v1878
      %v1880 = vrot.slane %v1714, %v1879
      %v1881 = vsel %vm939, %v1880, %v1876
      %v1882 = vlaneseq
      %v1883 = vshrl.u32 %v1882, 7
      %v1884 = vsub.s32 %v929, %v1883
      %v1885 = vrot.slane %v1717, %v1884
      %v1886 = vlaneseq
      %v1887 = vshrl.u32 %v1886, 7
      %v1888 = vsub.s32 %v934, %v1887
      %v1889 = vrot.slane %v1720, %v1888
      %v1890 = vsel %vm939, %v1889, %v1885
      %v1891 = vlaneseq
      %v1892 = vshrl.u32 %v1891, 7
      %v1893 = vsub.s32 %v929, %v1892
      %v1894 = vrot.slane %v1723, %v1893
      %v1895 = vlaneseq
      %v1896 = vshrl.u32 %v1895, 7
      %v1897 = vsub.s32 %v934, %v1896
      %v1898 = vrot.slane %v1726, %v1897
      %v1899 = vsel %vm939, %v1898, %v1894
      %v1900 = vlaneseq
      %v1901 = vshrl.u32 %v1900, 7
      %v1902 = vsub.s32 %v929, %v1901
      %v1903 = vrot.slane %v1729, %v1902
      %v1904 = vlaneseq
      %v1905 = vshrl.u32 %v1904, 7
      %v1906 = vsub.s32 %v934, %v1905
      %v1907 = vrot.slane %v1732, %v1906
      %v1908 = vsel %vm939, %v1907, %v1903
      %v1909 = vsel %vm1076, %v1782, %v1773
      %v1910 = vsel %vm1078, %v1791, %v1909
      %v1911 = vsel %vm1080, %v1800, %v1910
      %v1912 = vsel %vm1082, %v1809, %v1911
      %v1913 = vsel %vm1084, %v1818, %v1912
      %v1914 = vsel %vm1086, %v1827, %v1913
      %v1915 = vsel %vm1088, %v1836, %v1914
      %v1916 = vsel %vm1076, %v1854, %v1845
      %v1917 = vsel %vm1078, %v1863, %v1916
      %v1918 = vsel %vm1080, %v1872, %v1917
      %v1919 = vsel %vm1082, %v1881, %v1918
      %v1920 = vsel %vm1084, %v1890, %v1919
      %v1921 = vsel %vm1086, %v1899, %v1920
      %v1922 = vsel %vm1088, %v1908, %v1921
      %1925 = vrot.lane.b32.xlu0 %v508, 96
      %v1926 = vpop.permute.xlu0 %1925
      %1927 = vrot.lane.b32.xlu0 %v509, 96
      %v1928 = vpop.permute.xlu0 %1927
      %v1931 = vsel %vm1097, %v1915, 0
      %v1933 = vsel %vm1097, %v1922, 0
      %1935 = vmatprep.subr.mxu0 0.0
      %1936 = vmatpush1.msra.mxu0 %v1926
      %1937 = vmatprep.subr.mxu0 0.0
      %1938 = vmatpush1.msra.mxu0 %v1928
      %1939 = vmatprep.subr.mxu0 0.0
      %1940 = vmatpush1.msra.mxu0 0.0
      %1941 = vmatprep.subr.mxu0 0.0
      %1942 = vmatpush1.msra.mxu0 0.0
      %1943 = vmatprep.subr.mxu0 0.0
      %1944 = vmatpush1.msra.mxu0 0.0
      %1945 = vmatprep.subr.mxu0 0.0
      %1946 = vmatpush1.msra.mxu0 0.0
      %1947 = vmatprep.subr.mxu0 0.0
      %1948 = vmatpush1.msra.mxu0 0.0
      %1949 = vmatprep.subr.mxu0 0.0
      %1950 = vmatpush1.msra.mxu0 0.0
      %1951 = vmatprep.subr.mxu0 0.0
      %1952 = vmatpush1.msra.mxu0 0.0
      %1953 = vmatprep.subr.mxu0 0.0
      %1954 = vmatpush1.msra.mxu0 0.0
      %1955 = vmatprep.subr.mxu0 0.0
      %1956 = vmatpush1.msra.mxu0 0.0
      %1957 = vmatprep.subr.mxu0 0.0
      %1958 = vmatpush1.msra.mxu0 0.0
      %1959 = vmatprep.subr.mxu0 0.0
      %1960 = vmatpush1.msra.mxu0 0.0
      %1961 = vmatprep.subr.mxu0 0.0
      %1962 = vmatpush1.msra.mxu0 0.0
      %1963 = vmatprep.subr.mxu0 0.0
      %1964 = vmatpush1.msra.mxu0 0.0
      %1965 = vmatprep.subr.mxu0 0.0
      %1966 = vmatpush1.msra.mxu0 0.0
      %1967 = vmatprep.subr.mxu0 0.0
      %1968 = vmatpush1.msra.mxu0 0.0
      %1969 = vmatprep.subr.mxu0 0.0
      %1970 = vmatpush1.msra.mxu0 0.0
      %1971 = vmatprep.subr.mxu0 0.0
      %1972 = vmatpush1.msra.mxu0 0.0
      %1973 = vmatprep.subr.mxu0 0.0
      %1974 = vmatpush1.msra.mxu0 0.0
      %1975 = vmatprep.subr.mxu0 0.0
      %1976 = vmatpush1.msra.mxu0 0.0
      %1977 = vmatprep.subr.mxu0 0.0
      %1978 = vmatpush1.msra.mxu0 0.0
      %1979 = vmatprep.subr.mxu0 0.0
      %1980 = vmatpush1.msra.mxu0 0.0
      %1981 = vmatprep.subr.mxu0 0.0
      %1982 = vmatpush1.msra.mxu0 0.0
      %1983 = vmatprep.subr.mxu0 0.0
      %1984 = vmatpush1.msra.mxu0 0.0
      %1985 = vmatprep.subr.mxu0 0.0
      %1986 = vmatpush1.msra.mxu0 0.0
      %1987 = vmatprep.subr.mxu0 0.0
      %1988 = vmatpush1.msra.mxu0 0.0
      %1989 = vmatprep.subr.mxu0 0.0
      %1990 = vmatpush1.msra.mxu0 0.0
      %1991 = vmatprep.subr.mxu0 0.0
      %1992 = vmatpush1.msra.mxu0 0.0
      %1993 = vmatprep.subr.mxu0 0.0
      %1994 = vmatpush1.msra.mxu0 0.0
      %1995 = vmatprep.subr.mxu0 0.0
      %1996 = vmatpush1.msra.mxu0 0.0
      %1997 = vmatprep.subr.mxu0 0.0
      %1998 = vmatpush1.msra.mxu0 0.0
      %1999 = vmatprep.mubr.f32.mxu0 0.0
      %2000 = vmatmul.mubr.f32.gmra.mrb[0].mxu0 %v1931
      %v2001 = vpop.f32.mrb[0].mxu0
      %v2002 = vadd.f32 0.0, %v2001
      %v2003 = vpop.f32.mrb[0].mxu0
      %2004 = vmatprep.mubr.f32.mxu0 0.0
      %2005 = vmatmul.mubr.f32.gmra.mrb[0].mxu0 %v1933
      %v2006 = vpop.f32.mrb[0].mxu0
      %v2007 = vadd.f32 0.0, %v2006
      %v2008 = vpop.f32.mrb[0].mxu0
      %2009 = vdwg.mxu0
      %2010 = vrot.lane.b32.xlu0 %v514, 96
      %v2011 = vpop.permute.xlu0 %2010
      %2012 = vrot.lane.b32.xlu0 %v515, 96
      %v2013 = vpop.permute.xlu0 %2012
      %2018 = vrot.lane.b32.xlu0 %v1472, 96
      %v2019 = vpop.permute.xlu0 %2018
      %2020 = vrot.lane.b32.xlu0 %v1473, 96
      %v2021 = vpop.permute.xlu0 %2020
      %2022 = vrot.lane.b32.xlu0 %v1474, 96
      %v2023 = vpop.permute.xlu0 %2022
      %2024 = vrot.lane.b32.xlu0 %v1475, 96
      %v2025 = vpop.permute.xlu0 %2024
      %v2030 = vsel %vm799, %v2011, 0
      %v2032 = vsel %vm799, %v2013, 0
      %2034 = vmatprep.subr.mxu0 0.0
      %2035 = vmatpush1.msra.mxu0 %v2019
      %2036 = vmatprep.subr.mxu0 0.0
      %2037 = vmatpush1.msra.mxu0 %v2021
      %2038 = vmatprep.subr.mxu0 0.0
      %2039 = vmatpush1.msra.mxu0 %v2023
      %2040 = vmatprep.subr.mxu0 0.0
      %2041 = vmatpush1.msra.mxu0 %v2025
      %2042 = vmatprep.subr.mxu0 0.0
      %2043 = vmatpush1.msra.mxu0 0.0
      %2044 = vmatprep.subr.mxu0 0.0
      %2045 = vmatpush1.msra.mxu0 0.0
      %2046 = vmatprep.subr.mxu0 0.0
      %2047 = vmatpush1.msra.mxu0 0.0
      %2048 = vmatprep.subr.mxu0 0.0
      %2049 = vmatpush1.msra.mxu0 0.0
      %2050 = vmatprep.subr.mxu0 0.0
      %2051 = vmatpush1.msra.mxu0 0.0
      %2052 = vmatprep.subr.mxu0 0.0
      %2053 = vmatpush1.msra.mxu0 0.0
      %2054 = vmatprep.subr.mxu0 0.0
      %2055 = vmatpush1.msra.mxu0 0.0
      %2056 = vmatprep.subr.mxu0 0.0
      %2057 = vmatpush1.msra.mxu0 0.0
      %2058 = vmatprep.subr.mxu0 0.0
      %2059 = vmatpush1.msra.mxu0 0.0
      %2060 = vmatprep.subr.mxu0 0.0
      %2061 = vmatpush1.msra.mxu0 0.0
      %2062 = vmatprep.subr.mxu0 0.0
      %2063 = vmatpush1.msra.mxu0 0.0
      %2064 = vmatprep.subr.mxu0 0.0
      %2065 = vmatpush1.msra.mxu0 0.0
      %2066 = vmatprep.subr.mxu0 0.0
      %2067 = vmatpush1.msra.mxu0 0.0
      %2068 = vmatprep.subr.mxu0 0.0
      %2069 = vmatpush1.msra.mxu0 0.0
      %2070 = vmatprep.subr.mxu0 0.0
      %2071 = vmatpush1.msra.mxu0 0.0
      %2072 = vmatprep.subr.mxu0 0.0
      %2073 = vmatpush1.msra.mxu0 0.0
      %2074 = vmatprep.subr.mxu0 0.0
      %2075 = vmatpush1.msra.mxu0 0.0
      %2076 = vmatprep.subr.mxu0 0.0
      %2077 = vmatpush1.msra.mxu0 0.0
      %2078 = vmatprep.subr.mxu0 0.0
      %2079 = vmatpush1.msra.mxu0 0.0
      %2080 = vmatprep.subr.mxu0 0.0
      %2081 = vmatpush1.msra.mxu0 0.0
      %2082 = vmatprep.subr.mxu0 0.0
      %2083 = vmatpush1.msra.mxu0 0.0
      %2084 = vmatprep.subr.mxu0 0.0
      %2085 = vmatpush1.msra.mxu0 0.0
      %2086 = vmatprep.subr.mxu0 0.0
      %2087 = vmatpush1.msra.mxu0 0.0
      %2088 = vmatprep.subr.mxu0 0.0
      %2089 = vmatpush1.msra.mxu0 0.0
      %2090 = vmatprep.subr.mxu0 0.0
      %2091 = vmatpush1.msra.mxu0 0.0
      %2092 = vmatprep.subr.mxu0 0.0
      %2093 = vmatpush1.msra.mxu0 0.0
      %2094 = vmatprep.subr.mxu0 0.0
      %2095 = vmatpush1.msra.mxu0 0.0
      %2096 = vmatprep.subr.mxu0 0.0
      %2097 = vmatpush1.msra.mxu0 0.0
      %2098 = vmatprep.mubr.f32.mxu0 0.0
      %2099 = vmatmul.mubr.f32.gmra.mrb[0].mxu0 %v2030
      %v2100 = vpop.f32.mrb[0].mxu0
      %v2101 = vadd.f32 %v2002, %v2100
      %v2102 = vpop.f32.mrb[0].mxu0
      %2103 = vmatprep.mubr.f32.mxu0 0.0
      %2104 = vmatmul.mubr.f32.gmra.mrb[0].mxu0 %v2032
      %v2105 = vpop.f32.mrb[0].mxu0
      %v2106 = vadd.f32 %v2007, %v2105
      %v2107 = vpop.f32.mrb[0].mxu0
      %2108 = vdwg.mxu0
      %v2110 = vlaneseq
      %v2111 = vshrl.u32 %v2110, 7
      %v2112 = vsub.s32 0, %v2111
      %v2113 = vrot.slane %v1476, %v2112
      %v2115 = vmul.f32 %v514, %v2113
      %v2116 = vmul.f32 %v515, %v2113
      %2119 = vrot.lane.b32.xlu0 %v2115, 96
      %v2120 = vpop.permute.xlu0 %2119
      %2121 = vrot.lane.b32.xlu0 %v2116, 96
      %v2122 = vpop.permute.xlu0 %2121
      %v2125 = vsel %vm799, %v2120, 0.0
      %2126 = vadd.xlane.f32.xlu0 %v2125
      %v2127 = vpop.xlane.xlu0 %2126
      %v2128 = vsel %vm799, %v2122, 0.0
      %2129 = vadd.xlane.f32.xlu0 %v2128
      %v2130 = vpop.xlane.xlu0 %2129
      %v2133 = vsel %vm1097, %v1915, 0.0
      %2134 = vadd.xlane.f32.xlu0 %v2133
      %v2135 = vpop.xlane.xlu0 %2134
      %v2136 = vsel %vm1097, %v1922, 0.0
      %2137 = vadd.xlane.f32.xlu0 %v2136
      %v2138 = vpop.xlane.xlu0 %2137
      %v2139 = vadd.f32 %v2127, %v2135
      %v2140 = vadd.f32 %v2130, %v2138
      %v2141 = vmul.f32 %v1472, %v494
      %v2142 = vmul.f32 %v1473, %v495
      %v2143 = vmul.f32 %v1474, %v496
      %v2144 = vmul.f32 %v1475, %v497
      %2147 = vrot.lane.b32.xlu0 %v516, 96
      %v2148 = vpop.permute.xlu0 %2147
      %2149 = vrot.lane.b32.xlu0 %v517, 96
      %v2150 = vpop.permute.xlu0 %2149
      %2153 = vxpose.xlu0.b32.start [1/16] %v2148, 128
      %2154 = vxpose.xlu0.b32.cont [2/16] %v2150, 128
      %2155 = vxpose.xlu0.b32.cont [3/16] 0.0, 128
      %2156 = vxpose.xlu0.b32.cont [4/16] 0.0, 128
      %2157 = vxpose.xlu0.b32.cont [5/16] 0.0, 128
      %2158 = vxpose.xlu0.b32.cont [6/16] 0.0, 128
      %2159 = vxpose.xlu0.b32.cont [7/16] 0.0, 128
      %2160 = vxpose.xlu0.b32.cont [8/16] 0.0, 128
      %2161 = vxpose.xlu0.b32.cont [9/16] 0.0, 128
      %2162 = vxpose.xlu0.b32.cont [10/16] 0.0, 128
      %2163 = vxpose.xlu0.b32.cont [11/16] 0.0, 128
      %2164 = vxpose.xlu0.b32.cont [12/16] 0.0, 128
      %2165 = vxpose.xlu0.b32.cont [13/16] 0.0, 128
      %2166 = vxpose.xlu0.b32.cont [14/16] 0.0, 128
      %2167 = vxpose.xlu0.b32.cont [15/16] 0.0, 128
      %2168 = vxpose.xlu0.b32.end [16/16] 0.0, 128
      %v2169 = vpop.trf.xlu0
      %v2170 = vpop.trf.xlu0
      %v2171 = vpop.trf.xlu0
      %v2172 = vpop.trf.xlu0
      %v2173 = vpop.trf.xlu0
      %v2174 = vpop.trf.xlu0
      %v2175 = vpop.trf.xlu0
      %v2176 = vpop.trf.xlu0
      %v2177 = vpop.trf.xlu0
      %v2178 = vpop.trf.xlu0
      %v2179 = vpop.trf.xlu0
      %v2180 = vpop.trf.xlu0
      %v2181 = vpop.trf.xlu0
      %v2182 = vpop.trf.xlu0
      %v2183 = vpop.trf.xlu0
      %v2184 = vpop.trf.xlu0
      %v2186 = vsel %vm1097, %v2169, 0
      %v2189 = vsel %vm1097, %v2170, 0
      %v2192 = vsel %vm1097, %v2171, 0
      %v2195 = vsel %vm1097, %v2172, 0
      %2197 = vmatprep.subr.mxu0 0.0
      %2198 = vmatpush1.msra.mxu0 %v1926
      %2199 = vmatprep.subr.mxu0 0.0
      %2200 = vmatpush1.msra.mxu0 %v1928
      %2201 = vmatprep.subr.mxu0 0.0
      %2202 = vmatpush1.msra.mxu0 0.0
      %2203 = vmatprep.subr.mxu0 0.0
      %2204 = vmatpush1.msra.mxu0 0.0
      %2205 = vmatprep.subr.mxu0 0.0
      %2206 = vmatpush1.msra.mxu0 0.0
      %2207 = vmatprep.subr.mxu0 0.0
      %2208 = vmatpush1.msra.mxu0 0.0
      %2209 = vmatprep.subr.mxu0 0.0
      %2210 = vmatpush1.msra.mxu0 0.0
      %2211 = vmatprep.subr.mxu0 0.0
      %2212 = vmatpush1.msra.mxu0 0.0
      %2213 = vmatprep.subr.mxu0 0.0
      %2214 = vmatpush1.msra.mxu0 0.0
      %2215 = vmatprep.subr.mxu0 0.0
      %2216 = vmatpush1.msra.mxu0 0.0
      %2217 = vmatprep.subr.mxu0 0.0
      %2218 = vmatpush1.msra.mxu0 0.0
      %2219 = vmatprep.subr.mxu0 0.0
      %2220 = vmatpush1.msra.mxu0 0.0
      %2221 = vmatprep.subr.mxu0 0.0
      %2222 = vmatpush1.msra.mxu0 0.0
      %2223 = vmatprep.subr.mxu0 0.0
      %2224 = vmatpush1.msra.mxu0 0.0
      %2225 = vmatprep.subr.mxu0 0.0
      %2226 = vmatpush1.msra.mxu0 0.0
      %2227 = vmatprep.subr.mxu0 0.0
      %2228 = vmatpush1.msra.mxu0 0.0
      %2229 = vmatprep.subr.mxu0 0.0
      %2230 = vmatpush1.msra.mxu0 0.0
      %2231 = vmatprep.subr.mxu0 0.0
      %2232 = vmatpush1.msra.mxu0 0.0
      %2233 = vmatprep.subr.mxu0 0.0
      %2234 = vmatpush1.msra.mxu0 0.0
      %2235 = vmatprep.subr.mxu0 0.0
      %2236 = vmatpush1.msra.mxu0 0.0
      %2237 = vmatprep.subr.mxu0 0.0
      %2238 = vmatpush1.msra.mxu0 0.0
      %2239 = vmatprep.subr.mxu0 0.0
      %2240 = vmatpush1.msra.mxu0 0.0
      %2241 = vmatprep.subr.mxu0 0.0
      %2242 = vmatpush1.msra.mxu0 0.0
      %2243 = vmatprep.subr.mxu0 0.0
      %2244 = vmatpush1.msra.mxu0 0.0
      %2245 = vmatprep.subr.mxu0 0.0
      %2246 = vmatpush1.msra.mxu0 0.0
      %2247 = vmatprep.subr.mxu0 0.0
      %2248 = vmatpush1.msra.mxu0 0.0
      %2249 = vmatprep.subr.mxu0 0.0
      %2250 = vmatpush1.msra.mxu0 0.0
      %2251 = vmatprep.subr.mxu0 0.0
      %2252 = vmatpush1.msra.mxu0 0.0
      %2253 = vmatprep.subr.mxu0 0.0
      %2254 = vmatpush1.msra.mxu0 0.0
      %2255 = vmatprep.subr.mxu0 0.0
      %2256 = vmatpush1.msra.mxu0 0.0
      %2257 = vmatprep.subr.mxu0 0.0
      %2258 = vmatpush1.msra.mxu0 0.0
      %2259 = vmatprep.subr.mxu0 0.0
      %2260 = vmatpush1.msra.mxu0 0.0
      %2261 = vmatprep.mubr.f32.mxu0 0.0
      %2262 = vmatmul.mubr.f32.gmra.mrb[0].mxu0 %v2186
      %v2263 = vpop.f32.mrb[0].mxu0
      %v2264 = vadd.f32 0.0, %v2263
      %v2265 = vpop.f32.mrb[0].mxu0
      %2266 = vmatprep.mubr.f32.mxu0 0.0
      %2267 = vmatmul.mubr.f32.gmra.mrb[0].mxu0 %v2189
      %v2268 = vpop.f32.mrb[0].mxu0
      %v2269 = vadd.f32 0.0, %v2268
      %v2270 = vpop.f32.mrb[0].mxu0
      %2271 = vmatprep.mubr.f32.mxu0 0.0
      %2272 = vmatmul.mubr.f32.gmra.mrb[0].mxu0 %v2192
      %v2273 = vpop.f32.mrb[0].mxu0
      %v2274 = vadd.f32 0.0, %v2273
      %v2275 = vpop.f32.mrb[0].mxu0
      %2276 = vmatprep.mubr.f32.mxu0 0.0
      %2277 = vmatmul.mubr.f32.gmra.mrb[0].mxu0 %v2195
      %v2278 = vpop.f32.mrb[0].mxu0
      %v2279 = vadd.f32 0.0, %v2278
      %v2280 = vpop.f32.mrb[0].mxu0
      %2281 = vdwg.mxu0
      %2286 = vrot.lane.b32.xlu0 %v2264, 32
      %v2287 = vpop.permute.xlu0 %2286
      %2288 = vrot.lane.b32.xlu0 %v2269, 32
      %v2289 = vpop.permute.xlu0 %2288
      %2290 = vrot.lane.b32.xlu0 %v2274, 32
      %v2291 = vpop.permute.xlu0 %2290
      %2292 = vrot.lane.b32.xlu0 %v2279, 32
      %v2293 = vpop.permute.xlu0 %2292
      %v2298 = vadd.f32 %v2141, %v2287
      %v2299 = vadd.f32 %v2142, %v2289
      %v2300 = vadd.f32 %v2143, %v2291
      %v2301 = vadd.f32 %v2144, %v2293
      %vm2302 = vcmask 523520
      %2303 = vst.msk [vmem:[#allocation2] sm:$0xff] %vm2302, %v2298
      %2304 = vst.msk [vmem:[#allocation2 + $0x8] sm:$0xff] %vm2302, %v2299
      %2305 = vst.msk [vmem:[#allocation2 + $0x10] sm:$0xff] %vm2302, %v2300
      %2306 = vst.msk [vmem:[#allocation2 + $0x18] sm:$0xff] %vm2302, %v2301
      %v2307 = vmul.f32 %v1476, %v493
      %v2308 = vsel %vm2302, %v516, 0.0
      %v2309 = vsel %vm2302, %v517, 0.0
      %v2310 = vadd.f32 %v2308, %v2309
      %v2311 = vrot.slane %v2310, 4
      %v2312 = vadd.f32 %v2310, %v2311
      %v2313 = vrot.slane %v2312, 2
      %v2314 = vadd.f32 %v2312, %v2313
      %v2315 = vrot.slane %v2314, 1
      %v2316 = vadd.f32 %v2314, %v2315
      %v2317 = vadd.f32 %v2307, %v2316
      %vm2318 = vcmask 516352
      %2319 = vst.msk [vmem:[#allocation3] sm:$0x1] %vm2318, %v2317
      %v2320 = vrcp.pop %v2139
      %v2321 = vmul.f32 %v2101, %v2320
      %v2322 = vrcp.pop %v2140
      %v2323 = vmul.f32 %v2106, %v2322
      %v2324 = vld [vmem:[%s6] sm:$0xff]
      %v2325 = vld [vmem:[%s6 + $0x8] sm:$0xff]
      %v2326 = vld [vmem:[%s6 + $0x10] sm:$0xff]
      %v2327 = vld [vmem:[%s6 + $0x18] sm:$0xff]
      %v2328 = vld [vmem:[%s6 + $0x20] sm:$0xff]
      %v2329 = vld [vmem:[%s6 + $0x28] sm:$0xff]
      %v2330 = vld [vmem:[%s6 + $0x30] sm:$0xff]
      %v2331 = vld [vmem:[%s6 + $0x38] sm:$0xff]
      %v2332 = vld [vmem:[%s6 + $0x40] sm:$0xff]
      %v2333 = vld [vmem:[%s6 + $0x48] sm:$0xff]
      %v2334 = vld [vmem:[%s6 + $0x50] sm:$0xff]
      %v2335 = vld [vmem:[%s6 + $0x58] sm:$0xff]
      %v2336 = vld [vmem:[%s6 + $0x60] sm:$0xff]
      %v2337 = vld [vmem:[%s6 + $0x68] sm:$0xff]
      %v2338 = vld [vmem:[%s6 + $0x70] sm:$0xff]
      %v2339 = vld [vmem:[%s6 + $0x78] sm:$0xff]
      %v2340 = vld [vmem:[%s6 + $0x80] sm:$0xff]
      %v2341 = vld [vmem:[%s6 + $0x88] sm:$0xff]
      %v2342 = vld [vmem:[%s6 + $0x90] sm:$0xff]
      %v2343 = vld [vmem:[%s6 + $0x98] sm:$0xff]
      %v2344 = vld [vmem:[%s6 + $0xa0] sm:$0xff]
      %v2345 = vld [vmem:[%s6 + $0xa8] sm:$0xff]
      %v2346 = vld [vmem:[%s6 + $0xb0] sm:$0xff]
      %v2347 = vld [vmem:[%s6 + $0xb8] sm:$0xff]
      %v2348 = vld [vmem:[%s6 + $0xc0] sm:$0xff]
      %v2349 = vld [vmem:[%s6 + $0xc8] sm:$0xff]
      %v2350 = vld [vmem:[%s6 + $0xd0] sm:$0xff]
      %v2351 = vld [vmem:[%s6 + $0xd8] sm:$0xff]
      %v2352 = vld [vmem:[%s6 + $0xe0] sm:$0xff]
      %v2353 = vld [vmem:[%s6 + $0xe8] sm:$0xff]
      %v2354 = vld [vmem:[%s6 + $0xf0] sm:$0xff]
      %v2355 = vld [vmem:[%s6 + $0xf8] sm:$0xff]
      %v2356 = vld [vmem:[#allocation2] sm:$0xff]
      %v2357 = vld [vmem:[#allocation2 + $0x8] sm:$0xff]
      %v2358 = vld [vmem:[#allocation2 + $0x10] sm:$0xff]
      %v2359 = vld [vmem:[#allocation2 + $0x18] sm:$0xff]
      %v2360 = vld [vmem:[#allocation3] sm:$0x1]
      %v2361 = vmul.f32 %v735, %v2324
      %v2362 = vmul.f32 %v736, %v2325
      %v2363 = vmul.f32 %v737, %v2326
      %v2364 = vmul.f32 %v738, %v2327
      %v2365 = vmul.f32 %v739, %v2328
      %v2366 = vmul.f32 %v740, %v2329
      %v2367 = vmul.f32 %v741, %v2330
      %v2368 = vmul.f32 %v742, %v2331
      %v2369 = vmul.f32 %v743, %v2332
      %v2370 = vmul.f32 %v744, %v2333
      %v2371 = vmul.f32 %v745, %v2334
      %v2372 = vmul.f32 %v746, %v2335
      %v2373 = vmul.f32 %v747, %v2336
      %v2374 = vmul.f32 %v748, %v2337
      %v2375 = vmul.f32 %v749, %v2338
      %v2376 = vmul.f32 %v750, %v2339
      %v2377 = vmul.f32 %v751, %v2340
      %v2378 = vmul.f32 %v752, %v2341
      %v2379 = vmul.f32 %v753, %v2342
      %v2380 = vmul.f32 %v754, %v2343
      %v2381 = vmul.f32 %v755, %v2344
      %v2382 = vmul.f32 %v756, %v2345
      %v2383 = vmul.f32 %v757, %v2346
      %v2384 = vmul.f32 %v758, %v2347
      %v2385 = vmul.f32 %v759, %v2348
      %v2386 = vmul.f32 %v760, %v2349
      %v2387 = vmul.f32 %v761, %v2350
      %v2388 = vmul.f32 %v762, %v2351
      %v2389 = vmul.f32 %v763, %v2352
      %v2390 = vmul.f32 %v764, %v2353
      %v2391 = vmul.f32 %v765, %v2354
      %v2392 = vmul.f32 %v766, %v2355
      %2425 = vrot.lane.b32.xlu0 %v2361, 64
      %v2426 = vpop.permute.xlu0 %2425
      %2427 = vrot.lane.b32.xlu0 %v2362, 64
      %v2428 = vpop.permute.xlu0 %2427
      %2429 = vrot.lane.b32.xlu0 %v2363, 64
      %v2430 = vpop.permute.xlu0 %2429
      %2431 = vrot.lane.b32.xlu0 %v2364, 64
      %v2432 = vpop.permute.xlu0 %2431
      %2433 = vrot.lane.b32.xlu0 %v2365, 64
      %v2434 = vpop.permute.xlu0 %2433
      %2435 = vrot.lane.b32.xlu0 %v2366, 64
      %v2436 = vpop.permute.xlu0 %2435
      %2437 = vrot.lane.b32.xlu0 %v2367, 64
      %v2438 = vpop.permute.xlu0 %2437
      %2439 = vrot.lane.b32.xlu0 %v2368, 64
      %v2440 = vpop.permute.xlu0 %2439
      %2441 = vrot.lane.b32.xlu0 %v2369, 64
      %v2442 = vpop.permute.xlu0 %2441
      %2443 = vrot.lane.b32.xlu0 %v2370, 64
      %v2444 = vpop.permute.xlu0 %2443
      %2445 = vrot.lane.b32.xlu0 %v2371, 64
      %v2446 = vpop.permute.xlu0 %2445
      %2447 = vrot.lane.b32.xlu0 %v2372, 64
      %v2448 = vpop.permute.xlu0 %2447
      %2449 = vrot.lane.b32.xlu0 %v2373, 64
      %v2450 = vpop.permute.xlu0 %2449
      %2451 = vrot.lane.b32.xlu0 %v2374, 64
      %v2452 = vpop.permute.xlu0 %2451
      %2453 = vrot.lane.b32.xlu0 %v2375, 64
      %v2454 = vpop.permute.xlu0 %2453
      %2455 = vrot.lane.b32.xlu0 %v2376, 64
      %v2456 = vpop.permute.xlu0 %2455
      %2457 = vrot.lane.b32.xlu0 %v2377, 64
      %v2458 = vpop.permute.xlu0 %2457
      %2459 = vrot.lane.b32.xlu0 %v2378, 64
      %v2460 = vpop.permute.xlu0 %2459
      %2461 = vrot.lane.b32.xlu0 %v2379, 64
      %v2462 = vpop.permute.xlu0 %2461
      %2463 = vrot.lane.b32.xlu0 %v2380, 64
      %v2464 = vpop.permute.xlu0 %2463
      %2465 = vrot.lane.b32.xlu0 %v2381, 64
      %v2466 = vpop.permute.xlu0 %2465
      %2467 = vrot.lane.b32.xlu0 %v2382, 64
      %v2468 = vpop.permute.xlu0 %2467
      %2469 = vrot.lane.b32.xlu0 %v2383, 64
      %v2470 = vpop.permute.xlu0 %2469
      %2471 = vrot.lane.b32.xlu0 %v2384, 64
      %v2472 = vpop.permute.xlu0 %2471
      %2473 = vrot.lane.b32.xlu0 %v2385, 64
      %v2474 = vpop.permute.xlu0 %2473
      %2475 = vrot.lane.b32.xlu0 %v2386, 64
      %v2476 = vpop.permute.xlu0 %2475
      %2477 = vrot.lane.b32.xlu0 %v2387, 64
      %v2478 = vpop.permute.xlu0 %2477
      %2479 = vrot.lane.b32.xlu0 %v2388, 64
      %v2480 = vpop.permute.xlu0 %2479
      %2481 = vrot.lane.b32.xlu0 %v2389, 64
      %v2482 = vpop.permute.xlu0 %2481
      %2483 = vrot.lane.b32.xlu0 %v2390, 64
      %v2484 = vpop.permute.xlu0 %2483
      %2485 = vrot.lane.b32.xlu0 %v2391, 64
      %v2486 = vpop.permute.xlu0 %2485
      %2487 = vrot.lane.b32.xlu0 %v2392, 64
      %v2488 = vpop.permute.xlu0 %2487
      %v2521 = vsel %vm799, %v2426, 0.0
      %2522 = vadd.xlane.f32.xlu0 %v2521
      %v2523 = vpop.xlane.xlu0 %2522
      %v2524 = vsel %vm799, %v2428, 0.0
      %2525 = vadd.xlane.f32.xlu0 %v2524
      %v2526 = vpop.xlane.xlu0 %2525
      %v2527 = vsel %vm799, %v2430, 0.0
      %2528 = vadd.xlane.f32.xlu0 %v2527
      %v2529 = vpop.xlane.xlu0 %2528
      %v2530 = vsel %vm799, %v2432, 0.0
      %2531 = vadd.xlane.f32.xlu0 %v2530
      %v2532 = vpop.xlane.xlu0 %2531
      %v2533 = vsel %vm799, %v2434, 0.0
      %2534 = vadd.xlane.f32.xlu0 %v2533
      %v2535 = vpop.xlane.xlu0 %2534
      %v2536 = vsel %vm799, %v2436, 0.0
      %2537 = vadd.xlane.f32.xlu0 %v2536
      %v2538 = vpop.xlane.xlu0 %2537
      %v2539 = vsel %vm799, %v2438, 0.0
      %2540 = vadd.xlane.f32.xlu0 %v2539
      %v2541 = vpop.xlane.xlu0 %2540
      %v2542 = vsel %vm799, %v2440, 0.0
      %2543 = vadd.xlane.f32.xlu0 %v2542
      %v2544 = vpop.xlane.xlu0 %2543
      %v2545 = vsel %vm799, %v2442, 0.0
      %2546 = vadd.xlane.f32.xlu0 %v2545
      %v2547 = vpop.xlane.xlu0 %2546
      %v2548 = vsel %vm799, %v2444, 0.0
      %2549 = vadd.xlane.f32.xlu0 %v2548
      %v2550 = vpop.xlane.xlu0 %2549
      %v2551 = vsel %vm799, %v2446, 0.0
      %2552 = vadd.xlane.f32.xlu0 %v2551
      %v2553 = vpop.xlane.xlu0 %2552
      %v2554 = vsel %vm799, %v2448, 0.0
      %2555 = vadd.xlane.f32.xlu0 %v2554
      %v2556 = vpop.xlane.xlu0 %2555
      %v2557 = vsel %vm799, %v2450, 0.0
      %2558 = vadd.xlane.f32.xlu0 %v2557
      %v2559 = vpop.xlane.xlu0 %2558
      %v2560 = vsel %vm799, %v2452, 0.0
      %2561 = vadd.xlane.f32.xlu0 %v2560
      %v2562 = vpop.xlane.xlu0 %2561
      %v2563 = vsel %vm799, %v2454, 0.0
      %2564 = vadd.xlane.f32.xlu0 %v2563
      %v2565 = vpop.xlane.xlu0 %2564
      %v2566 = vsel %vm799, %v2456, 0.0
      %2567 = vadd.xlane.f32.xlu0 %v2566
      %v2568 = vpop.xlane.xlu0 %2567
      %v2569 = vsel %vm799, %v2458, 0.0
      %2570 = vadd.xlane.f32.xlu0 %v2569
      %v2571 = vpop.xlane.xlu0 %2570
      %v2572 = vsel %vm799, %v2460, 0.0
      %2573 = vadd.xlane.f32.xlu0 %v2572
      %v2574 = vpop.xlane.xlu0 %2573
      %v2575 = vsel %vm799, %v2462, 0.0
      %2576 = vadd.xlane.f32.xlu0 %v2575
      %v2577 = vpop.xlane.xlu0 %2576
      %v2578 = vsel %vm799, %v2464, 0.0
      %2579 = vadd.xlane.f32.xlu0 %v2578
      %v2580 = vpop.xlane.xlu0 %2579
      %v2581 = vsel %vm799, %v2466, 0.0
      %2582 = vadd.xlane.f32.xlu0 %v2581
      %v2583 = vpop.xlane.xlu0 %2582
      %v2584 = vsel %vm799, %v2468, 0.0
      %2585 = vadd.xlane.f32.xlu0 %v2584
      %v2586 = vpop.xlane.xlu0 %2585
      %v2587 = vsel %vm799, %v2470, 0.0
      %2588 = vadd.xlane.f32.xlu0 %v2587
      %v2589 = vpop.xlane.xlu0 %2588
      %v2590 = vsel %vm799, %v2472, 0.0
      %2591 = vadd.xlane.f32.xlu0 %v2590
      %v2592 = vpop.xlane.xlu0 %2591
      %v2593 = vsel %vm799, %v2474, 0.0
      %2594 = vadd.xlane.f32.xlu0 %v2593
      %v2595 = vpop.xlane.xlu0 %2594
      %v2596 = vsel %vm799, %v2476, 0.0
      %2597 = vadd.xlane.f32.xlu0 %v2596
      %v2598 = vpop.xlane.xlu0 %2597
      %v2599 = vsel %vm799, %v2478, 0.0
      %2600 = vadd.xlane.f32.xlu0 %v2599
      %v2601 = vpop.xlane.xlu0 %2600
      %v2602 = vsel %vm799, %v2480, 0.0
      %2603 = vadd.xlane.f32.xlu0 %v2602
      %v2604 = vpop.xlane.xlu0 %2603
      %v2605 = vsel %vm799, %v2482, 0.0
      %2606 = vadd.xlane.f32.xlu0 %v2605
      %v2607 = vpop.xlane.xlu0 %2606
      %v2608 = vsel %vm799, %v2484, 0.0
      %2609 = vadd.xlane.f32.xlu0 %v2608
      %v2610 = vpop.xlane.xlu0 %2609
      %v2611 = vsel %vm799, %v2486, 0.0
      %2612 = vadd.xlane.f32.xlu0 %v2611
      %v2613 = vpop.xlane.xlu0 %2612
      %v2614 = vsel %vm799, %v2488, 0.0
      %2615 = vadd.xlane.f32.xlu0 %v2614
      %v2616 = vpop.xlane.xlu0 %2615
      %v2649 = vlaneseq
      %v2650 = vshrl.u32 %v2649, 7
      %v2651 = vsub.s32 %v929, %v2650
      %v2652 = vrot.slane %v2523, %v2651
      %v2653 = vlaneseq
      %v2654 = vshrl.u32 %v2653, 7
      %v2655 = vsub.s32 %v934, %v2654
      %v2656 = vrot.slane %v2526, %v2655
      %v2657 = vsel %vm939, %v2656, %v2652
      %v2658 = vlaneseq
      %v2659 = vshrl.u32 %v2658, 7
      %v2660 = vsub.s32 %v929, %v2659
      %v2661 = vrot.slane %v2529, %v2660
      %v2662 = vlaneseq
      %v2663 = vshrl.u32 %v2662, 7
      %v2664 = vsub.s32 %v934, %v2663
      %v2665 = vrot.slane %v2532, %v2664
      %v2666 = vsel %vm939, %v2665, %v2661
      %v2667 = vlaneseq
      %v2668 = vshrl.u32 %v2667, 7
      %v2669 = vsub.s32 %v929, %v2668
      %v2670 = vrot.slane %v2535, %v2669
      %v2671 = vlaneseq
      %v2672 = vshrl.u32 %v2671, 7
      %v2673 = vsub.s32 %v934, %v2672
      %v2674 = vrot.slane %v2538, %v2673
      %v2675 = vsel %vm939, %v2674, %v2670
      %v2676 = vlaneseq
      %v2677 = vshrl.u32 %v2676, 7
      %v2678 = vsub.s32 %v929, %v2677
      %v2679 = vrot.slane %v2541, %v2678
      %v2680 = vlaneseq
      %v2681 = vshrl.u32 %v2680, 7
      %v2682 = vsub.s32 %v934, %v2681
      %v2683 = vrot.slane %v2544, %v2682
      %v2684 = vsel %vm939, %v2683, %v2679
      %v2685 = vlaneseq
      %v2686 = vshrl.u32 %v2685, 7
      %v2687 = vsub.s32 %v929, %v2686
      %v2688 = vrot.slane %v2547, %v2687
      %v2689 = vlaneseq
      %v2690 = vshrl.u32 %v2689, 7
      %v2691 = vsub.s32 %v934, %v2690
      %v2692 = vrot.slane %v2550, %v2691
      %v2693 = vsel %vm939, %v2692, %v2688
      %v2694 = vlaneseq
      %v2695 = vshrl.u32 %v2694, 7
      %v2696 = vsub.s32 %v929, %v2695
      %v2697 = vrot.slane %v2553, %v2696
      %v2698 = vlaneseq
      %v2699 = vshrl.u32 %v2698, 7
      %v2700 = vsub.s32 %v934, %v2699
      %v2701 = vrot.slane %v2556, %v2700
      %v2702 = vsel %vm939, %v2701, %v2697
      %v2703 = vlaneseq
      %v2704 = vshrl.u32 %v2703, 7
      %v2705 = vsub.s32 %v929, %v2704
      %v2706 = vrot.slane %v2559, %v2705
      %v2707 = vlaneseq
      %v2708 = vshrl.u32 %v2707, 7
      %v2709 = vsub.s32 %v934, %v2708
      %v2710 = vrot.slane %v2562, %v2709
      %v2711 = vsel %vm939, %v2710, %v2706
      %v2712 = vlaneseq
      %v2713 = vshrl.u32 %v2712, 7
      %v2714 = vsub.s32 %v929, %v2713
      %v2715 = vrot.slane %v2565, %v2714
      %v2716 = vlaneseq
      %v2717 = vshrl.u32 %v2716, 7
      %v2718 = vsub.s32 %v934, %v2717
      %v2719 = vrot.slane %v2568, %v2718
      %v2720 = vsel %vm939, %v2719, %v2715
      %v2721 = vlaneseq
      %v2722 = vshrl.u32 %v2721, 7
      %v2723 = vsub.s32 %v929, %v2722
      %v2724 = vrot.slane %v2571, %v2723
      %v2725 = vlaneseq
      %v2726 = vshrl.u32 %v2725, 7
      %v2727 = vsub.s32 %v934, %v2726
      %v2728 = vrot.slane %v2574, %v2727
      %v2729 = vsel %vm939, %v2728, %v2724
      %v2730 = vlaneseq
      %v2731 = vshrl.u32 %v2730, 7
      %v2732 = vsub.s32 %v929, %v2731
      %v2733 = vrot.slane %v2577, %v2732
      %v2734 = vlaneseq
      %v2735 = vshrl.u32 %v2734, 7
      %v2736 = vsub.s32 %v934, %v2735
      %v2737 = vrot.slane %v2580, %v2736
      %v2738 = vsel %vm939, %v2737, %v2733
      %v2739 = vlaneseq
      %v2740 = vshrl.u32 %v2739, 7
      %v2741 = vsub.s32 %v929, %v2740
      %v2742 = vrot.slane %v2583, %v2741
      %v2743 = vlaneseq
      %v2744 = vshrl.u32 %v2743, 7
      %v2745 = vsub.s32 %v934, %v2744
      %v2746 = vrot.slane %v2586, %v2745
      %v2747 = vsel %vm939, %v2746, %v2742
      %v2748 = vlaneseq
      %v2749 = vshrl.u32 %v2748, 7
      %v2750 = vsub.s32 %v929, %v2749
      %v2751 = vrot.slane %v2589, %v2750
      %v2752 = vlaneseq
      %v2753 = vshrl.u32 %v2752, 7
      %v2754 = vsub.s32 %v934, %v2753
      %v2755 = vrot.slane %v2592, %v2754
      %v2756 = vsel %vm939, %v2755, %v2751
      %v2757 = vlaneseq
      %v2758 = vshrl.u32 %v2757, 7
      %v2759 = vsub.s32 %v929, %v2758
      %v2760 = vrot.slane %v2595, %v2759
      %v2761 = vlaneseq
      %v2762 = vshrl.u32 %v2761, 7
      %v2763 = vsub.s32 %v934, %v2762
      %v2764 = vrot.slane %v2598, %v2763
      %v2765 = vsel %vm939, %v2764, %v2760
      %v2766 = vlaneseq
      %v2767 = vshrl.u32 %v2766, 7
      %v2768 = vsub.s32 %v929, %v2767
      %v2769 = vrot.slane %v2601, %v2768
      %v2770 = vlaneseq
      %v2771 = vshrl.u32 %v2770, 7
      %v2772 = vsub.s32 %v934, %v2771
      %v2773 = vrot.slane %v2604, %v2772
      %v2774 = vsel %vm939, %v2773, %v2769
      %v2775 = vlaneseq
      %v2776 = vshrl.u32 %v2775, 7
      %v2777 = vsub.s32 %v929, %v2776
      %v2778 = vrot.slane %v2607, %v2777
      %v2779 = vlaneseq
      %v2780 = vshrl.u32 %v2779, 7
      %v2781 = vsub.s32 %v934, %v2780
      %v2782 = vrot.slane %v2610, %v2781
      %v2783 = vsel %vm939, %v2782, %v2778
      %v2784 = vlaneseq
      %v2785 = vshrl.u32 %v2784, 7
      %v2786 = vsub.s32 %v929, %v2785
      %v2787 = vrot.slane %v2613, %v2786
      %v2788 = vlaneseq
      %v2789 = vshrl.u32 %v2788, 7
      %v2790 = vsub.s32 %v934, %v2789
      %v2791 = vrot.slane %v2616, %v2790
      %v2792 = vsel %vm939, %v2791, %v2787
      %v2793 = vsel %vm1076, %v2666, %v2657
      %v2794 = vsel %vm1078, %v2675, %v2793
      %v2795 = vsel %vm1080, %v2684, %v2794
      %v2796 = vsel %vm1082, %v2693, %v2795
      %v2797 = vsel %vm1084, %v2702, %v2796
      %v2798 = vsel %vm1086, %v2711, %v2797
      %v2799 = vsel %vm1088, %v2720, %v2798
      %v2800 = vsel %vm1076, %v2738, %v2729
      %v2801 = vsel %vm1078, %v2747, %v2800
      %v2802 = vsel %vm1080, %v2756, %v2801
      %v2803 = vsel %vm1082, %v2765, %v2802
      %v2804 = vsel %vm1084, %v2774, %v2803
      %v2805 = vsel %vm1086, %v2783, %v2804
      %v2806 = vsel %vm1088, %v2792, %v2805
      %2807 = vrot.lane.b32.xlu0 %v508, 64
      %v2808 = vpop.permute.xlu0 %2807
      %2809 = vrot.lane.b32.xlu0 %v509, 64
      %v2810 = vpop.permute.xlu0 %2809
      %v2813 = vsel %vm1097, %v2799, 0
      %v2815 = vsel %vm1097, %v2806, 0
      %2817 = vmatprep.subr.mxu0 0.0
      %2818 = vmatpush1.msra.mxu0 %v2808
      %2819 = vmatprep.subr.mxu0 0.0
      %2820 = vmatpush1.msra.mxu0 %v2810
      %2821 = vmatprep.subr.mxu0 0.0
      %2822 = vmatpush1.msra.mxu0 0.0
      %2823 = vmatprep.subr.mxu0 0.0
      %2824 = vmatpush1.msra.mxu0 0.0
      %2825 = vmatprep.subr.mxu0 0.0
      %2826 = vmatpush1.msra.mxu0 0.0
      %2827 = vmatprep.subr.mxu0 0.0
      %2828 = vmatpush1.msra.mxu0 0.0
      %2829 = vmatprep.subr.mxu0 0.0
      %2830 = vmatpush1.msra.mxu0 0.0
      %2831 = vmatprep.subr.mxu0 0.0
      %2832 = vmatpush1.msra.mxu0 0.0
      %2833 = vmatprep.subr.mxu0 0.0
      %2834 = vmatpush1.msra.mxu0 0.0
      %2835 = vmatprep.subr.mxu0 0.0
      %2836 = vmatpush1.msra.mxu0 0.0
      %2837 = vmatprep.subr.mxu0 0.0
      %2838 = vmatpush1.msra.mxu0 0.0
      %2839 = vmatprep.subr.mxu0 0.0
      %2840 = vmatpush1.msra.mxu0 0.0
      %2841 = vmatprep.subr.mxu0 0.0
      %2842 = vmatpush1.msra.mxu0 0.0
      %2843 = vmatprep.subr.mxu0 0.0
      %2844 = vmatpush1.msra.mxu0 0.0
      %2845 = vmatprep.subr.mxu0 0.0
      %2846 = vmatpush1.msra.mxu0 0.0
      %2847 = vmatprep.subr.mxu0 0.0
      %2848 = vmatpush1.msra.mxu0 0.0
      %2849 = vmatprep.subr.mxu0 0.0
      %2850 = vmatpush1.msra.mxu0 0.0
      %2851 = vmatprep.subr.mxu0 0.0
      %2852 = vmatpush1.msra.mxu0 0.0
      %2853 = vmatprep.subr.mxu0 0.0
      %2854 = vmatpush1.msra.mxu0 0.0
      %2855 = vmatprep.subr.mxu0 0.0
      %2856 = vmatpush1.msra.mxu0 0.0
      %2857 = vmatprep.subr.mxu0 0.0
      %2858 = vmatpush1.msra.mxu0 0.0
      %2859 = vmatprep.subr.mxu0 0.0
      %2860 = vmatpush1.msra.mxu0 0.0
      %2861 = vmatprep.subr.mxu0 0.0
      %2862 = vmatpush1.msra.mxu0 0.0
      %2863 = vmatprep.subr.mxu0 0.0
      %2864 = vmatpush1.msra.mxu0 0.0
      %2865 = vmatprep.subr.mxu0 0.0
      %2866 = vmatpush1.msra.mxu0 0.0
      %2867 = vmatprep.subr.mxu0 0.0
      %2868 = vmatpush1.msra.mxu0 0.0
      %2869 = vmatprep.subr.mxu0 0.0
      %2870 = vmatpush1.msra.mxu0 0.0
      %2871 = vmatprep.subr.mxu0 0.0
      %2872 = vmatpush1.msra.mxu0 0.0
      %2873 = vmatprep.subr.mxu0 0.0
      %2874 = vmatpush1.msra.mxu0 0.0
      %2875 = vmatprep.subr.mxu0 0.0
      %2876 = vmatpush1.msra.mxu0 0.0
      %2877 = vmatprep.subr.mxu0 0.0
      %2878 = vmatpush1.msra.mxu0 0.0
      %2879 = vmatprep.subr.mxu0 0.0
      %2880 = vmatpush1.msra.mxu0 0.0
      %2881 = vmatprep.mubr.f32.mxu0 0.0
      %2882 = vmatmul.mubr.f32.gmra.mrb[0].mxu0 %v2813
      %v2883 = vpop.f32.mrb[0].mxu0
      %v2884 = vadd.f32 0.0, %v2883
      %v2885 = vpop.f32.mrb[0].mxu0
      %2886 = vmatprep.mubr.f32.mxu0 0.0
      %2887 = vmatmul.mubr.f32.gmra.mrb[0].mxu0 %v2815
      %v2888 = vpop.f32.mrb[0].mxu0
      %v2889 = vadd.f32 0.0, %v2888
      %v2890 = vpop.f32.mrb[0].mxu0
      %2891 = vdwg.mxu0
      %2892 = vrot.lane.b32.xlu0 %v514, 64
      %v2893 = vpop.permute.xlu0 %2892
      %2894 = vrot.lane.b32.xlu0 %v515, 64
      %v2895 = vpop.permute.xlu0 %2894
      %2900 = vrot.lane.b32.xlu0 %v2356, 64
      %v2901 = vpop.permute.xlu0 %2900
      %2902 = vrot.lane.b32.xlu0 %v2357, 64
      %v2903 = vpop.permute.xlu0 %2902
      %2904 = vrot.lane.b32.xlu0 %v2358, 64
      %v2905 = vpop.permute.xlu0 %2904
      %2906 = vrot.lane.b32.xlu0 %v2359, 64
      %v2907 = vpop.permute.xlu0 %2906
      %v2912 = vsel %vm799, %v2893, 0
      %v2914 = vsel %vm799, %v2895, 0
      %2916 = vmatprep.subr.mxu0 0.0
      %2917 = vmatpush1.msra.mxu0 %v2901
      %2918 = vmatprep.subr.mxu0 0.0
      %2919 = vmatpush1.msra.mxu0 %v2903
      %2920 = vmatprep.subr.mxu0 0.0
      %2921 = vmatpush1.msra.mxu0 %v2905
      %2922 = vmatprep.subr.mxu0 0.0
      %2923 = vmatpush1.msra.mxu0 %v2907
      %2924 = vmatprep.subr.mxu0 0.0
      %2925 = vmatpush1.msra.mxu0 0.0
      %2926 = vmatprep.subr.mxu0 0.0
      %2927 = vmatpush1.msra.mxu0 0.0
      %2928 = vmatprep.subr.mxu0 0.0
      %2929 = vmatpush1.msra.mxu0 0.0
      %2930 = vmatprep.subr.mxu0 0.0
      %2931 = vmatpush1.msra.mxu0 0.0
      %2932 = vmatprep.subr.mxu0 0.0
      %2933 = vmatpush1.msra.mxu0 0.0
      %2934 = vmatprep.subr.mxu0 0.0
      %2935 = vmatpush1.msra.mxu0 0.0
      %2936 = vmatprep.subr.mxu0 0.0
      %2937 = vmatpush1.msra.mxu0 0.0
      %2938 = vmatprep.subr.mxu0 0.0
      %2939 = vmatpush1.msra.mxu0 0.0
      %2940 = vmatprep.subr.mxu0 0.0
      %2941 = vmatpush1.msra.mxu0 0.0
      %2942 = vmatprep.subr.mxu0 0.0
      %2943 = vmatpush1.msra.mxu0 0.0
      %2944 = vmatprep.subr.mxu0 0.0
      %2945 = vmatpush1.msra.mxu0 0.0
      %2946 = vmatprep.subr.mxu0 0.0
      %2947 = vmatpush1.msra.mxu0 0.0
      %2948 = vmatprep.subr.mxu0 0.0
      %2949 = vmatpush1.msra.mxu0 0.0
      %2950 = vmatprep.subr.mxu0 0.0
      %2951 = vmatpush1.msra.mxu0 0.0
      %2952 = vmatprep.subr.mxu0 0.0
      %2953 = vmatpush1.msra.mxu0 0.0
      %2954 = vmatprep.subr.mxu0 0.0
      %2955 = vmatpush1.msra.mxu0 0.0
      %2956 = vmatprep.subr.mxu0 0.0
      %2957 = vmatpush1.msra.mxu0 0.0
      %2958 = vmatprep.subr.mxu0 0.0
      %2959 = vmatpush1.msra.mxu0 0.0
      %2960 = vmatprep.subr.mxu0 0.0
      %2961 = vmatpush1.msra.mxu0 0.0
      %2962 = vmatprep.subr.mxu0 0.0
      %2963 = vmatpush1.msra.mxu0 0.0
      %2964 = vmatprep.subr.mxu0 0.0
      %2965 = vmatpush1.msra.mxu0 0.0
      %2966 = vmatprep.subr.mxu0 0.0
      %2967 = vmatpush1.msra.mxu0 0.0
      %2968 = vmatprep.subr.mxu0 0.0
      %2969 = vmatpush1.msra.mxu0 0.0
      %2970 = vmatprep.subr.mxu0 0.0
      %2971 = vmatpush1.msra.mxu0 0.0
      %2972 = vmatprep.subr.mxu0 0.0
      %2973 = vmatpush1.msra.mxu0 0.0
      %2974 = vmatprep.subr.mxu0 0.0
      %2975 = vmatpush1.msra.mxu0 0.0
      %2976 = vmatprep.subr.mxu0 0.0
      %2977 = vmatpush1.msra.mxu0 0.0
      %2978 = vmatprep.subr.mxu0 0.0
      %2979 = vmatpush1.msra.mxu0 0.0
      %2980 = vmatprep.mubr.f32.mxu0 0.0
      %2981 = vmatmul.mubr.f32.gmra.mrb[0].mxu0 %v2912
      %v2982 = vpop.f32.mrb[0].mxu0
      %v2983 = vadd.f32 %v2884, %v2982
      %v2984 = vpop.f32.mrb[0].mxu0
      %2985 = vmatprep.mubr.f32.mxu0 0.0
      %2986 = vmatmul.mubr.f32.gmra.mrb[0].mxu0 %v2914
      %v2987 = vpop.f32.mrb[0].mxu0
      %v2988 = vadd.f32 %v2889, %v2987
      %v2989 = vpop.f32.mrb[0].mxu0
      %2990 = vdwg.mxu0
      %v2992 = vlaneseq
      %v2993 = vshrl.u32 %v2992, 7
      %v2994 = vsub.s32 0, %v2993
      %v2995 = vrot.slane %v2360, %v2994
      %v2997 = vmul.f32 %v514, %v2995
      %v2998 = vmul.f32 %v515, %v2995
      %3001 = vrot.lane.b32.xlu0 %v2997, 64
      %v3002 = vpop.permute.xlu0 %3001
      %3003 = vrot.lane.b32.xlu0 %v2998, 64
      %v3004 = vpop.permute.xlu0 %3003
      %v3007 = vsel %vm799, %v3002, 0.0
      %3008 = vadd.xlane.f32.xlu0 %v3007
      %v3009 = vpop.xlane.xlu0 %3008
      %v3010 = vsel %vm799, %v3004, 0.0
      %3011 = vadd.xlane.f32.xlu0 %v3010
      %v3012 = vpop.xlane.xlu0 %3011
      %v3015 = vsel %vm1097, %v2799, 0.0
      %3016 = vadd.xlane.f32.xlu0 %v3015
      %v3017 = vpop.xlane.xlu0 %3016
      %v3018 = vsel %vm1097, %v2806, 0.0
      %3019 = vadd.xlane.f32.xlu0 %v3018
      %v3020 = vpop.xlane.xlu0 %3019
      %v3021 = vadd.f32 %v3009, %v3017
      %v3022 = vadd.f32 %v3012, %v3020
      %v3023 = vmul.f32 %v2356, %v494
      %v3024 = vmul.f32 %v2357, %v495
      %v3025 = vmul.f32 %v2358, %v496
      %v3026 = vmul.f32 %v2359, %v497
      %3027 = vrot.lane.b32.xlu0 %v516, 64
      %v3028 = vpop.permute.xlu0 %3027
      %3029 = vrot.lane.b32.xlu0 %v517, 64
      %v3030 = vpop.permute.xlu0 %3029
      %3033 = vxpose.xlu0.b32.start [1/16] %v3028, 128
      %3034 = vxpose.xlu0.b32.cont [2/16] %v3030, 128
      %3035 = vxpose.xlu0.b32.cont [3/16] 0.0, 128
      %3036 = vxpose.xlu0.b32.cont [4/16] 0.0, 128
      %3037 = vxpose.xlu0.b32.cont [5/16] 0.0, 128
      %3038 = vxpose.xlu0.b32.cont [6/16] 0.0, 128
      %3039 = vxpose.xlu0.b32.cont [7/16] 0.0, 128
      %3040 = vxpose.xlu0.b32.cont [8/16] 0.0, 128
      %3041 = vxpose.xlu0.b32.cont [9/16] 0.0, 128
      %3042 = vxpose.xlu0.b32.cont [10/16] 0.0, 128
      %3043 = vxpose.xlu0.b32.cont [11/16] 0.0, 128
      %3044 = vxpose.xlu0.b32.cont [12/16] 0.0, 128
      %3045 = vxpose.xlu0.b32.cont [13/16] 0.0, 128
      %3046 = vxpose.xlu0.b32.cont [14/16] 0.0, 128
      %3047 = vxpose.xlu0.b32.cont [15/16] 0.0, 128
      %3048 = vxpose.xlu0.b32.end [16/16] 0.0, 128
      %v3049 = vpop.trf.xlu0
      %v3050 = vpop.trf.xlu0
      %v3051 = vpop.trf.xlu0
      %v3052 = vpop.trf.xlu0
      %v3053 = vpop.trf.xlu0
      %v3054 = vpop.trf.xlu0
      %v3055 = vpop.trf.xlu0
      %v3056 = vpop.trf.xlu0
      %v3057 = vpop.trf.xlu0
      %v3058 = vpop.trf.xlu0
      %v3059 = vpop.trf.xlu0
      %v3060 = vpop.trf.xlu0
      %v3061 = vpop.trf.xlu0
      %v3062 = vpop.trf.xlu0
      %v3063 = vpop.trf.xlu0
      %v3064 = vpop.trf.xlu0
      %v3066 = vsel %vm1097, %v3049, 0
      %v3069 = vsel %vm1097, %v3050, 0
      %v3072 = vsel %vm1097, %v3051, 0
      %v3075 = vsel %vm1097, %v3052, 0
      %3077 = vmatprep.subr.mxu0 0.0
      %3078 = vmatpush1.msra.mxu0 %v2808
      %3079 = vmatprep.subr.mxu0 0.0
      %3080 = vmatpush1.msra.mxu0 %v2810
      %3081 = vmatprep.subr.mxu0 0.0
      %3082 = vmatpush1.msra.mxu0 0.0
      %3083 = vmatprep.subr.mxu0 0.0
      %3084 = vmatpush1.msra.mxu0 0.0
      %3085 = vmatprep.subr.mxu0 0.0
      %3086 = vmatpush1.msra.mxu0 0.0
      %3087 = vmatprep.subr.mxu0 0.0
      %3088 = vmatpush1.msra.mxu0 0.0
      %3089 = vmatprep.subr.mxu0 0.0
      %3090 = vmatpush1.msra.mxu0 0.0
      %3091 = vmatprep.subr.mxu0 0.0
      %3092 = vmatpush1.msra.mxu0 0.0
      %3093 = vmatprep.subr.mxu0 0.0
      %3094 = vmatpush1.msra.mxu0 0.0
      %3095 = vmatprep.subr.mxu0 0.0
      %3096 = vmatpush1.msra.mxu0 0.0
      %3097 = vmatprep.subr.mxu0 0.0
      %3098 = vmatpush1.msra.mxu0 0.0
      %3099 = vmatprep.subr.mxu0 0.0
      %3100 = vmatpush1.msra.mxu0 0.0
      %3101 = vmatprep.subr.mxu0 0.0
      %3102 = vmatpush1.msra.mxu0 0.0
      %3103 = vmatprep.subr.mxu0 0.0
      %3104 = vmatpush1.msra.mxu0 0.0
      %3105 = vmatprep.subr.mxu0 0.0
      %3106 = vmatpush1.msra.mxu0 0.0
      %3107 = vmatprep.subr.mxu0 0.0
      %3108 = vmatpush1.msra.mxu0 0.0
      %3109 = vmatprep.subr.mxu0 0.0
      %3110 = vmatpush1.msra.mxu0 0.0
      %3111 = vmatprep.subr.mxu0 0.0
      %3112 = vmatpush1.msra.mxu0 0.0
      %3113 = vmatprep.subr.mxu0 0.0
      %3114 = vmatpush1.msra.mxu0 0.0
      %3115 = vmatprep.subr.mxu0 0.0
      %3116 = vmatpush1.msra.mxu0 0.0
      %3117 = vmatprep.subr.mxu0 0.0
      %3118 = vmatpush1.msra.mxu0 0.0
      %3119 = vmatprep.subr.mxu0 0.0
      %3120 = vmatpush1.msra.mxu0 0.0
      %3121 = vmatprep.subr.mxu0 0.0
      %3122 = vmatpush1.msra.mxu0 0.0
      %3123 = vmatprep.subr.mxu0 0.0
      %3124 = vmatpush1.msra.mxu0 0.0
      %3125 = vmatprep.subr.mxu0 0.0
      %3126 = vmatpush1.msra.mxu0 0.0
      %3127 = vmatprep.subr.mxu0 0.0
      %3128 = vmatpush1.msra.mxu0 0.0
      %3129 = vmatprep.subr.mxu0 0.0
      %3130 = vmatpush1.msra.mxu0 0.0
      %3131 = vmatprep.subr.mxu0 0.0
      %3132 = vmatpush1.msra.mxu0 0.0
      %3133 = vmatprep.subr.mxu0 0.0
      %3134 = vmatpush1.msra.mxu0 0.0
      %3135 = vmatprep.subr.mxu0 0.0
      %3136 = vmatpush1.msra.mxu0 0.0
      %3137 = vmatprep.subr.mxu0 0.0
      %3138 = vmatpush1.msra.mxu0 0.0
      %3139 = vmatprep.subr.mxu0 0.0
      %3140 = vmatpush1.msra.mxu0 0.0
      %3141 = vmatprep.mubr.f32.mxu0 0.0
      %3142 = vmatmul.mubr.f32.gmra.mrb[0].mxu0 %v3066
      %v3143 = vpop.f32.mrb[0].mxu0
      %v3144 = vadd.f32 0.0, %v3143
      %v3145 = vpop.f32.mrb[0].mxu0
      %3146 = vmatprep.mubr.f32.mxu0 0.0
      %3147 = vmatmul.mubr.f32.gmra.mrb[0].mxu0 %v3069
      %v3148 = vpop.f32.mrb[0].mxu0
      %v3149 = vadd.f32 0.0, %v3148
      %v3150 = vpop.f32.mrb[0].mxu0
      %3151 = vmatprep.mubr.f32.mxu0 0.0
      %3152 = vmatmul.mubr.f32.gmra.mrb[0].mxu0 %v3072
      %v3153 = vpop.f32.mrb[0].mxu0
      %v3154 = vadd.f32 0.0, %v3153
      %v3155 = vpop.f32.mrb[0].mxu0
      %3156 = vmatprep.mubr.f32.mxu0 0.0
      %3157 = vmatmul.mubr.f32.gmra.mrb[0].mxu0 %v3075
      %v3158 = vpop.f32.mrb[0].mxu0
      %v3159 = vadd.f32 0.0, %v3158
      %v3160 = vpop.f32.mrb[0].mxu0
      %3161 = vdwg.mxu0
      %3166 = vrot.lane.b32.xlu0 %v3144, 64
      %v3167 = vpop.permute.xlu0 %3166
      %3168 = vrot.lane.b32.xlu0 %v3149, 64
      %v3169 = vpop.permute.xlu0 %3168
      %3170 = vrot.lane.b32.xlu0 %v3154, 64
      %v3171 = vpop.permute.xlu0 %3170
      %3172 = vrot.lane.b32.xlu0 %v3159, 64
      %v3173 = vpop.permute.xlu0 %3172
      %v3178 = vadd.f32 %v3023, %v3167
      %v3179 = vadd.f32 %v3024, %v3169
      %v3180 = vadd.f32 %v3025, %v3171
      %v3181 = vadd.f32 %v3026, %v3173
      %vm3182 = vcmask 785920
      %3183 = vst.msk [vmem:[#allocation2] sm:$0xff] %vm3182, %v3178
      %3184 = vst.msk [vmem:[#allocation2 + $0x8] sm:$0xff] %vm3182, %v3179
      %3185 = vst.msk [vmem:[#allocation2 + $0x10] sm:$0xff] %vm3182, %v3180
      %3186 = vst.msk [vmem:[#allocation2 + $0x18] sm:$0xff] %vm3182, %v3181
      %v3187 = vmul.f32 %v2360, %v493
      %v3188 = vsel %vm3182, %v516, 0.0
      %v3189 = vsel %vm3182, %v517, 0.0
      %v3190 = vadd.f32 %v3188, %v3189
      %v3191 = vrot.slane %v3190, 4
      %v3192 = vadd.f32 %v3190, %v3191
      %v3193 = vrot.slane %v3192, 2
      %v3194 = vadd.f32 %v3192, %v3193
      %v3195 = vrot.slane %v3194, 1
      %v3196 = vadd.f32 %v3194, %v3195
      %v3197 = vadd.f32 %v3187, %v3196
      %vm3198 = vcmask 778752
      %3199 = vst.msk [vmem:[#allocation3] sm:$0x1] %vm3198, %v3197
      %v3200 = vrcp.pop %v3021
      %v3201 = vmul.f32 %v2983, %v3200
      %v3202 = vrcp.pop %v3022
      %v3203 = vmul.f32 %v2988, %v3202
      %v3204 = vld [vmem:[%s6] sm:$0xff]
      %v3205 = vld [vmem:[%s6 + $0x8] sm:$0xff]
      %v3206 = vld [vmem:[%s6 + $0x10] sm:$0xff]
      %v3207 = vld [vmem:[%s6 + $0x18] sm:$0xff]
      %v3208 = vld [vmem:[%s6 + $0x20] sm:$0xff]
      %v3209 = vld [vmem:[%s6 + $0x28] sm:$0xff]
      %v3210 = vld [vmem:[%s6 + $0x30] sm:$0xff]
      %v3211 = vld [vmem:[%s6 + $0x38] sm:$0xff]
      %v3212 = vld [vmem:[%s6 + $0x40] sm:$0xff]
      %v3213 = vld [vmem:[%s6 + $0x48] sm:$0xff]
      %v3214 = vld [vmem:[%s6 + $0x50] sm:$0xff]
      %v3215 = vld [vmem:[%s6 + $0x58] sm:$0xff]
      %v3216 = vld [vmem:[%s6 + $0x60] sm:$0xff]
      %v3217 = vld [vmem:[%s6 + $0x68] sm:$0xff]
      %v3218 = vld [vmem:[%s6 + $0x70] sm:$0xff]
      %v3219 = vld [vmem:[%s6 + $0x78] sm:$0xff]
      %v3220 = vld [vmem:[%s6 + $0x80] sm:$0xff]
      %v3221 = vld [vmem:[%s6 + $0x88] sm:$0xff]
      %v3222 = vld [vmem:[%s6 + $0x90] sm:$0xff]
      %v3223 = vld [vmem:[%s6 + $0x98] sm:$0xff]
      %v3224 = vld [vmem:[%s6 + $0xa0] sm:$0xff]
      %v3225 = vld [vmem:[%s6 + $0xa8] sm:$0xff]
      %v3226 = vld [vmem:[%s6 + $0xb0] sm:$0xff]
      %v3227 = vld [vmem:[%s6 + $0xb8] sm:$0xff]
      %v3228 = vld [vmem:[%s6 + $0xc0] sm:$0xff]
      %v3229 = vld [vmem:[%s6 + $0xc8] sm:$0xff]
      %v3230 = vld [vmem:[%s6 + $0xd0] sm:$0xff]
      %v3231 = vld [vmem:[%s6 + $0xd8] sm:$0xff]
      %v3232 = vld [vmem:[%s6 + $0xe0] sm:$0xff]
      %v3233 = vld [vmem:[%s6 + $0xe8] sm:$0xff]
      %v3234 = vld [vmem:[%s6 + $0xf0] sm:$0xff]
      %v3235 = vld [vmem:[%s6 + $0xf8] sm:$0xff]
      %v3236 = vld [vmem:[#allocation2] sm:$0xff]
      %v3237 = vld [vmem:[#allocation2 + $0x8] sm:$0xff]
      %v3238 = vld [vmem:[#allocation2 + $0x10] sm:$0xff]
      %v3239 = vld [vmem:[#allocation2 + $0x18] sm:$0xff]
      %v3240 = vld [vmem:[#allocation3] sm:$0x1]
      %v3241 = vmul.f32 %v735, %v3204
      %v3242 = vmul.f32 %v736, %v3205
      %v3243 = vmul.f32 %v737, %v3206
      %v3244 = vmul.f32 %v738, %v3207
      %v3245 = vmul.f32 %v739, %v3208
      %v3246 = vmul.f32 %v740, %v3209
      %v3247 = vmul.f32 %v741, %v3210
      %v3248 = vmul.f32 %v742, %v3211
      %v3249 = vmul.f32 %v743, %v3212
      %v3250 = vmul.f32 %v744, %v3213
      %v3251 = vmul.f32 %v745, %v3214
      %v3252 = vmul.f32 %v746, %v3215
      %v3253 = vmul.f32 %v747, %v3216
      %v3254 = vmul.f32 %v748, %v3217
      %v3255 = vmul.f32 %v749, %v3218
      %v3256 = vmul.f32 %v750, %v3219
      %v3257 = vmul.f32 %v751, %v3220
      %v3258 = vmul.f32 %v752, %v3221
      %v3259 = vmul.f32 %v753, %v3222
      %v3260 = vmul.f32 %v754, %v3223
      %v3261 = vmul.f32 %v755, %v3224
      %v3262 = vmul.f32 %v756, %v3225
      %v3263 = vmul.f32 %v757, %v3226
      %v3264 = vmul.f32 %v758, %v3227
      %v3265 = vmul.f32 %v759, %v3228
      %v3266 = vmul.f32 %v760, %v3229
      %v3267 = vmul.f32 %v761, %v3230
      %v3268 = vmul.f32 %v762, %v3231
      %v3269 = vmul.f32 %v763, %v3232
      %v3270 = vmul.f32 %v764, %v3233
      %v3271 = vmul.f32 %v765, %v3234
      %v3272 = vmul.f32 %v766, %v3235
      %3305 = vrot.lane.b32.xlu0 %v3241, 32
      %v3306 = vpop.permute.xlu0 %3305
      %3307 = vrot.lane.b32.xlu0 %v3242, 32
      %v3308 = vpop.permute.xlu0 %3307
      %3309 = vrot.lane.b32.xlu0 %v3243, 32
      %v3310 = vpop.permute.xlu0 %3309
      %3311 = vrot.lane.b32.xlu0 %v3244, 32
      %v3312 = vpop.permute.xlu0 %3311
      %3313 = vrot.lane.b32.xlu0 %v3245, 32
      %v3314 = vpop.permute.xlu0 %3313
      %3315 = vrot.lane.b32.xlu0 %v3246, 32
      %v3316 = vpop.permute.xlu0 %3315
      %3317 = vrot.lane.b32.xlu0 %v3247, 32
      %v3318 = vpop.permute.xlu0 %3317
      %3319 = vrot.lane.b32.xlu0 %v3248, 32
      %v3320 = vpop.permute.xlu0 %3319
      %3321 = vrot.lane.b32.xlu0 %v3249, 32
      %v3322 = vpop.permute.xlu0 %3321
      %3323 = vrot.lane.b32.xlu0 %v3250, 32
      %v3324 = vpop.permute.xlu0 %3323
      %3325 = vrot.lane.b32.xlu0 %v3251, 32
      %v3326 = vpop.permute.xlu0 %3325
      %3327 = vrot.lane.b32.xlu0 %v3252, 32
      %v3328 = vpop.permute.xlu0 %3327
      %3329 = vrot.lane.b32.xlu0 %v3253, 32
      %v3330 = vpop.permute.xlu0 %3329
      %3331 = vrot.lane.b32.xlu0 %v3254, 32
      %v3332 = vpop.permute.xlu0 %3331
      %3333 = vrot.lane.b32.xlu0 %v3255, 32
      %v3334 = vpop.permute.xlu0 %3333
      %3335 = vrot.lane.b32.xlu0 %v3256, 32
      %v3336 = vpop.permute.xlu0 %3335
      %3337 = vrot.lane.b32.xlu0 %v3257, 32
      %v3338 = vpop.permute.xlu0 %3337
      %3339 = vrot.lane.b32.xlu0 %v3258, 32
      %v3340 = vpop.permute.xlu0 %3339
      %3341 = vrot.lane.b32.xlu0 %v3259, 32
      %v3342 = vpop.permute.xlu0 %3341
      %3343 = vrot.lane.b32.xlu0 %v3260, 32
      %v3344 = vpop.permute.xlu0 %3343
      %3345 = vrot.lane.b32.xlu0 %v3261, 32
      %v3346 = vpop.permute.xlu0 %3345
      %3347 = vrot.lane.b32.xlu0 %v3262, 32
      %v3348 = vpop.permute.xlu0 %3347
      %3349 = vrot.lane.b32.xlu0 %v3263, 32
      %v3350 = vpop.permute.xlu0 %3349
      %3351 = vrot.lane.b32.xlu0 %v3264, 32
      %v3352 = vpop.permute.xlu0 %3351
      %3353 = vrot.lane.b32.xlu0 %v3265, 32
      %v3354 = vpop.permute.xlu0 %3353
      %3355 = vrot.lane.b32.xlu0 %v3266, 32
      %v3356 = vpop.permute.xlu0 %3355
      %3357 = vrot.lane.b32.xlu0 %v3267, 32
      %v3358 = vpop.permute.xlu0 %3357
      %3359 = vrot.lane.b32.xlu0 %v3268, 32
      %v3360 = vpop.permute.xlu0 %3359
      %3361 = vrot.lane.b32.xlu0 %v3269, 32
      %v3362 = vpop.permute.xlu0 %3361
      %3363 = vrot.lane.b32.xlu0 %v3270, 32
      %v3364 = vpop.permute.xlu0 %3363
      %3365 = vrot.lane.b32.xlu0 %v3271, 32
      %v3366 = vpop.permute.xlu0 %3365
      %3367 = vrot.lane.b32.xlu0 %v3272, 32
      %v3368 = vpop.permute.xlu0 %3367
      %v3401 = vsel %vm799, %v3306, 0.0
      %3402 = vadd.xlane.f32.xlu0 %v3401
      %v3403 = vpop.xlane.xlu0 %3402
      %v3404 = vsel %vm799, %v3308, 0.0
      %3405 = vadd.xlane.f32.xlu0 %v3404
      %v3406 = vpop.xlane.xlu0 %3405
      %v3407 = vsel %vm799, %v3310, 0.0
      %3408 = vadd.xlane.f32.xlu0 %v3407
      %v3409 = vpop.xlane.xlu0 %3408
      %v3410 = vsel %vm799, %v3312, 0.0
      %3411 = vadd.xlane.f32.xlu0 %v3410
      %v3412 = vpop.xlane.xlu0 %3411
      %v3413 = vsel %vm799, %v3314, 0.0
      %3414 = vadd.xlane.f32.xlu0 %v3413
      %v3415 = vpop.xlane.xlu0 %3414
      %v3416 = vsel %vm799, %v3316, 0.0
      %3417 = vadd.xlane.f32.xlu0 %v3416
      %v3418 = vpop.xlane.xlu0 %3417
      %v3419 = vsel %vm799, %v3318, 0.0
      %3420 = vadd.xlane.f32.xlu0 %v3419
      %v3421 = vpop.xlane.xlu0 %3420
      %v3422 = vsel %vm799, %v3320, 0.0
      %3423 = vadd.xlane.f32.xlu0 %v3422
      %v3424 = vpop.xlane.xlu0 %3423
      %v3425 = vsel %vm799, %v3322, 0.0
      %3426 = vadd.xlane.f32.xlu0 %v3425
      %v3427 = vpop.xlane.xlu0 %3426
      %v3428 = vsel %vm799, %v3324, 0.0
      %3429 = vadd.xlane.f32.xlu0 %v3428
      %v3430 = vpop.xlane.xlu0 %3429
      %v3431 = vsel %vm799, %v3326, 0.0
      %3432 = vadd.xlane.f32.xlu0 %v3431
      %v3433 = vpop.xlane.xlu0 %3432
      %v3434 = vsel %vm799, %v3328, 0.0
      %3435 = vadd.xlane.f32.xlu0 %v3434
      %v3436 = vpop.xlane.xlu0 %3435
      %v3437 = vsel %vm799, %v3330, 0.0
      %3438 = vadd.xlane.f32.xlu0 %v3437
      %v3439 = vpop.xlane.xlu0 %3438
      %v3440 = vsel %vm799, %v3332, 0.0
      %3441 = vadd.xlane.f32.xlu0 %v3440
      %v3442 = vpop.xlane.xlu0 %3441
      %v3443 = vsel %vm799, %v3334, 0.0
      %3444 = vadd.xlane.f32.xlu0 %v3443
      %v3445 = vpop.xlane.xlu0 %3444
      %v3446 = vsel %vm799, %v3336, 0.0
      %3447 = vadd.xlane.f32.xlu0 %v3446
      %v3448 = vpop.xlane.xlu0 %3447
      %v3449 = vsel %vm799, %v3338, 0.0
      %3450 = vadd.xlane.f32.xlu0 %v3449
      %v3451 = vpop.xlane.xlu0 %3450
      %v3452 = vsel %vm799, %v3340, 0.0
      %3453 = vadd.xlane.f32.xlu0 %v3452
      %v3454 = vpop.xlane.xlu0 %3453
      %v3455 = vsel %vm799, %v3342, 0.0
      %3456 = vadd.xlane.f32.xlu0 %v3455
      %v3457 = vpop.xlane.xlu0 %3456
      %v3458 = vsel %vm799, %v3344, 0.0
      %3459 = vadd.xlane.f32.xlu0 %v3458
      %v3460 = vpop.xlane.xlu0 %3459
      %v3461 = vsel %vm799, %v3346, 0.0
      %3462 = vadd.xlane.f32.xlu0 %v3461
      %v3463 = vpop.xlane.xlu0 %3462
      %v3464 = vsel %vm799, %v3348, 0.0
      %3465 = vadd.xlane.f32.xlu0 %v3464
      %v3466 = vpop.xlane.xlu0 %3465
      %v3467 = vsel %vm799, %v3350, 0.0
      %3468 = vadd.xlane.f32.xlu0 %v3467
      %v3469 = vpop.xlane.xlu0 %3468
      %v3470 = vsel %vm799, %v3352, 0.0
      %3471 = vadd.xlane.f32.xlu0 %v3470
      %v3472 = vpop.xlane.xlu0 %3471
      %v3473 = vsel %vm799, %v3354, 0.0
      %3474 = vadd.xlane.f32.xlu0 %v3473
      %v3475 = vpop.xlane.xlu0 %3474
      %v3476 = vsel %vm799, %v3356, 0.0
      %3477 = vadd.xlane.f32.xlu0 %v3476
      %v3478 = vpop.xlane.xlu0 %3477
      %v3479 = vsel %vm799, %v3358, 0.0
      %3480 = vadd.xlane.f32.xlu0 %v3479
      %v3481 = vpop.xlane.xlu0 %3480
      %v3482 = vsel %vm799, %v3360, 0.0
      %3483 = vadd.xlane.f32.xlu0 %v3482
      %v3484 = vpop.xlane.xlu0 %3483
      %v3485 = vsel %vm799, %v3362, 0.0
      %3486 = vadd.xlane.f32.xlu0 %v3485
      %v3487 = vpop.xlane.xlu0 %3486
      %v3488 = vsel %vm799, %v3364, 0.0
      %3489 = vadd.xlane.f32.xlu0 %v3488
      %v3490 = vpop.xlane.xlu0 %3489
      %v3491 = vsel %vm799, %v3366, 0.0
      %3492 = vadd.xlane.f32.xlu0 %v3491
      %v3493 = vpop.xlane.xlu0 %3492
      %v3494 = vsel %vm799, %v3368, 0.0
      %3495 = vadd.xlane.f32.xlu0 %v3494
      %v3496 = vpop.xlane.xlu0 %3495
      %v3529 = vlaneseq
      %v3530 = vshrl.u32 %v3529, 7
      %v3531 = vsub.s32 %v929, %v3530
      %v3532 = vrot.slane %v3403, %v3531
      %v3533 = vlaneseq
      %v3534 = vshrl.u32 %v3533, 7
      %v3535 = vsub.s32 %v934, %v3534
      %v3536 = vrot.slane %v3406, %v3535
      %v3537 = vsel %vm939, %v3536, %v3532
      %v3538 = vlaneseq
      %v3539 = vshrl.u32 %v3538, 7
      %v3540 = vsub.s32 %v929, %v3539
      %v3541 = vrot.slane %v3409, %v3540
      %v3542 = vlaneseq
      %v3543 = vshrl.u32 %v3542, 7
      %v3544 = vsub.s32 %v934, %v3543
      %v3545 = vrot.slane %v3412, %v3544
      %v3546 = vsel %vm939, %v3545, %v3541
      %v3547 = vlaneseq
      %v3548 = vshrl.u32 %v3547, 7
      %v3549 = vsub.s32 %v929, %v3548
      %v3550 = vrot.slane %v3415, %v3549
      %v3551 = vlaneseq
      %v3552 = vshrl.u32 %v3551, 7
      %v3553 = vsub.s32 %v934, %v3552
      %v3554 = vrot.slane %v3418, %v3553
      %v3555 = vsel %vm939, %v3554, %v3550
      %v3556 = vlaneseq
      %v3557 = vshrl.u32 %v3556, 7
      %v3558 = vsub.s32 %v929, %v3557
      %v3559 = vrot.slane %v3421, %v3558
      %v3560 = vlaneseq
      %v3561 = vshrl.u32 %v3560, 7
      %v3562 = vsub.s32 %v934, %v3561
      %v3563 = vrot.slane %v3424, %v3562
      %v3564 = vsel %vm939, %v3563, %v3559
      %v3565 = vlaneseq
      %v3566 = vshrl.u32 %v3565, 7
      %v3567 = vsub.s32 %v929, %v3566
      %v3568 = vrot.slane %v3427, %v3567
      %v3569 = vlaneseq
      %v3570 = vshrl.u32 %v3569, 7
      %v3571 = vsub.s32 %v934, %v3570
      %v3572 = vrot.slane %v3430, %v3571
      %v3573 = vsel %vm939, %v3572, %v3568
      %v3574 = vlaneseq
      %v3575 = vshrl.u32 %v3574, 7
      %v3576 = vsub.s32 %v929, %v3575
      %v3577 = vrot.slane %v3433, %v3576
      %v3578 = vlaneseq
      %v3579 = vshrl.u32 %v3578, 7
      %v3580 = vsub.s32 %v934, %v3579
      %v3581 = vrot.slane %v3436, %v3580
      %v3582 = vsel %vm939, %v3581, %v3577
      %v3583 = vlaneseq
      %v3584 = vshrl.u32 %v3583, 7
      %v3585 = vsub.s32 %v929, %v3584
      %v3586 = vrot.slane %v3439, %v3585
      %v3587 = vlaneseq
      %v3588 = vshrl.u32 %v3587, 7
      %v3589 = vsub.s32 %v934, %v3588
      %v3590 = vrot.slane %v3442, %v3589
      %v3591 = vsel %vm939, %v3590, %v3586
      %v3592 = vlaneseq
      %v3593 = vshrl.u32 %v3592, 7
      %v3594 = vsub.s32 %v929, %v3593
      %v3595 = vrot.slane %v3445, %v3594
      %v3596 = vlaneseq
      %v3597 = vshrl.u32 %v3596, 7
      %v3598 = vsub.s32 %v934, %v3597
      %v3599 = vrot.slane %v3448, %v3598
      %v3600 = vsel %vm939, %v3599, %v3595
      %v3601 = vlaneseq
      %v3602 = vshrl.u32 %v3601, 7
      %v3603 = vsub.s32 %v929, %v3602
      %v3604 = vrot.slane %v3451, %v3603
      %v3605 = vlaneseq
      %v3606 = vshrl.u32 %v3605, 7
      %v3607 = vsub.s32 %v934, %v3606
      %v3608 = vrot.slane %v3454, %v3607
      %v3609 = vsel %vm939, %v3608, %v3604
      %v3610 = vlaneseq
      %v3611 = vshrl.u32 %v3610, 7
      %v3612 = vsub.s32 %v929, %v3611
      %v3613 = vrot.slane %v3457, %v3612
      %v3614 = vlaneseq
      %v3615 = vshrl.u32 %v3614, 7
      %v3616 = vsub.s32 %v934, %v3615
      %v3617 = vrot.slane %v3460, %v3616
      %v3618 = vsel %vm939, %v3617, %v3613
      %v3619 = vlaneseq
      %v3620 = vshrl.u32 %v3619, 7
      %v3621 = vsub.s32 %v929, %v3620
      %v3622 = vrot.slane %v3463, %v3621
      %v3623 = vlaneseq
      %v3624 = vshrl.u32 %v3623, 7
      %v3625 = vsub.s32 %v934, %v3624
      %v3626 = vrot.slane %v3466, %v3625
      %v3627 = vsel %vm939, %v3626, %v3622
      %v3628 = vlaneseq
      %v3629 = vshrl.u32 %v3628, 7
      %v3630 = vsub.s32 %v929, %v3629
      %v3631 = vrot.slane %v3469, %v3630
      %v3632 = vlaneseq
      %v3633 = vshrl.u32 %v3632, 7
      %v3634 = vsub.s32 %v934, %v3633
      %v3635 = vrot.slane %v3472, %v3634
      %v3636 = vsel %vm939, %v3635, %v3631
      %v3637 = vlaneseq
      %v3638 = vshrl.u32 %v3637, 7
      %v3639 = vsub.s32 %v929, %v3638
      %v3640 = vrot.slane %v3475, %v3639
      %v3641 = vlaneseq
      %v3642 = vshrl.u32 %v3641, 7
      %v3643 = vsub.s32 %v934, %v3642
      %v3644 = vrot.slane %v3478, %v3643
      %v3645 = vsel %vm939, %v3644, %v3640
      %v3646 = vlaneseq
      %v3647 = vshrl.u32 %v3646, 7
      %v3648 = vsub.s32 %v929, %v3647
      %v3649 = vrot.slane %v3481, %v3648
      %v3650 = vlaneseq
      %v3651 = vshrl.u32 %v3650, 7
      %v3652 = vsub.s32 %v934, %v3651
      %v3653 = vrot.slane %v3484, %v3652
      %v3654 = vsel %vm939, %v3653, %v3649
      %v3655 = vlaneseq
      %v3656 = vshrl.u32 %v3655, 7
      %v3657 = vsub.s32 %v929, %v3656
      %v3658 = vrot.slane %v3487, %v3657
      %v3659 = vlaneseq
      %v3660 = vshrl.u32 %v3659, 7
      %v3661 = vsub.s32 %v934, %v3660
      %v3662 = vrot.slane %v3490, %v3661
      %v3663 = vsel %vm939, %v3662, %v3658
      %v3664 = vlaneseq
      %v3665 = vshrl.u32 %v3664, 7
      %v3666 = vsub.s32 %v929, %v3665
      %v3667 = vrot.slane %v3493, %v3666
      %v3668 = vlaneseq
      %v3669 = vshrl.u32 %v3668, 7
      %v3670 = vsub.s32 %v934, %v3669
      %v3671 = vrot.slane %v3496, %v3670
      %v3672 = vsel %vm939, %v3671, %v3667
      %v3673 = vsel %vm1076, %v3546, %v3537
      %v3674 = vsel %vm1078, %v3555, %v3673
      %v3675 = vsel %vm1080, %v3564, %v3674
      %v3676 = vsel %vm1082, %v3573, %v3675
      %v3677 = vsel %vm1084, %v3582, %v3676
      %v3678 = vsel %vm1086, %v3591, %v3677
      %v3679 = vsel %vm1088, %v3600, %v3678
      %v3680 = vsel %vm1076, %v3618, %v3609
      %v3681 = vsel %vm1078, %v3627, %v3680
      %v3682 = vsel %vm1080, %v3636, %v3681
      %v3683 = vsel %vm1082, %v3645, %v3682
      %v3684 = vsel %vm1084, %v3654, %v3683
      %v3685 = vsel %vm1086, %v3663, %v3684
      %v3686 = vsel %vm1088, %v3672, %v3685
      %3687 = vrot.lane.b32.xlu0 %v508, 32
      %v3688 = vpop.permute.xlu0 %3687
      %3689 = vrot.lane.b32.xlu0 %v509, 32
      %v3690 = vpop.permute.xlu0 %3689
      %v3693 = vsel %vm1097, %v3679, 0
      %v3695 = vsel %vm1097, %v3686, 0
      %3697 = vmatprep.subr.mxu0 0.0
      %3698 = vmatpush1.msra.mxu0 %v3688
      %3699 = vmatprep.subr.mxu0 0.0
      %3700 = vmatpush1.msra.mxu0 %v3690
      %3701 = vmatprep.subr.mxu0 0.0
      %3702 = vmatpush1.msra.mxu0 0.0
      %3703 = vmatprep.subr.mxu0 0.0
      %3704 = vmatpush1.msra.mxu0 0.0
      %3705 = vmatprep.subr.mxu0 0.0
      %3706 = vmatpush1.msra.mxu0 0.0
      %3707 = vmatprep.subr.mxu0 0.0
      %3708 = vmatpush1.msra.mxu0 0.0
      %3709 = vmatprep.subr.mxu0 0.0
      %3710 = vmatpush1.msra.mxu0 0.0
      %3711 = vmatprep.subr.mxu0 0.0
      %3712 = vmatpush1.msra.mxu0 0.0
      %3713 = vmatprep.subr.mxu0 0.0
      %3714 = vmatpush1.msra.mxu0 0.0
      %3715 = vmatprep.subr.mxu0 0.0
      %3716 = vmatpush1.msra.mxu0 0.0
      %3717 = vmatprep.subr.mxu0 0.0
      %3718 = vmatpush1.msra.mxu0 0.0
      %3719 = vmatprep.subr.mxu0 0.0
      %3720 = vmatpush1.msra.mxu0 0.0
      %3721 = vmatprep.subr.mxu0 0.0
      %3722 = vmatpush1.msra.mxu0 0.0
      %3723 = vmatprep.subr.mxu0 0.0
      %3724 = vmatpush1.msra.mxu0 0.0
      %3725 = vmatprep.subr.mxu0 0.0
      %3726 = vmatpush1.msra.mxu0 0.0
      %3727 = vmatprep.subr.mxu0 0.0
      %3728 = vmatpush1.msra.mxu0 0.0
      %3729 = vmatprep.subr.mxu0 0.0
      %3730 = vmatpush1.msra.mxu0 0.0
      %3731 = vmatprep.subr.mxu0 0.0
      %3732 = vmatpush1.msra.mxu0 0.0
      %3733 = vmatprep.subr.mxu0 0.0
      %3734 = vmatpush1.msra.mxu0 0.0
      %3735 = vmatprep.subr.mxu0 0.0
      %3736 = vmatpush1.msra.mxu0 0.0
      %3737 = vmatprep.subr.mxu0 0.0
      %3738 = vmatpush1.msra.mxu0 0.0
      %3739 = vmatprep.subr.mxu0 0.0
      %3740 = vmatpush1.msra.mxu0 0.0
      %3741 = vmatprep.subr.mxu0 0.0
      %3742 = vmatpush1.msra.mxu0 0.0
      %3743 = vmatprep.subr.mxu0 0.0
      %3744 = vmatpush1.msra.mxu0 0.0
      %3745 = vmatprep.subr.mxu0 0.0
      %3746 = vmatpush1.msra.mxu0 0.0
      %3747 = vmatprep.subr.mxu0 0.0
      %3748 = vmatpush1.msra.mxu0 0.0
      %3749 = vmatprep.subr.mxu0 0.0
      %3750 = vmatpush1.msra.mxu0 0.0
      %3751 = vmatprep.subr.mxu0 0.0
      %3752 = vmatpush1.msra.mxu0 0.0
      %3753 = vmatprep.subr.mxu0 0.0
      %3754 = vmatpush1.msra.mxu0 0.0
      %3755 = vmatprep.subr.mxu0 0.0
      %3756 = vmatpush1.msra.mxu0 0.0
      %3757 = vmatprep.subr.mxu0 0.0
      %3758 = vmatpush1.msra.mxu0 0.0
      %3759 = vmatprep.subr.mxu0 0.0
      %3760 = vmatpush1.msra.mxu0 0.0
      %3761 = vmatprep.mubr.f32.mxu0 0.0
      %3762 = vmatmul.mubr.f32.gmra.mrb[0].mxu0 %v3693
      %v3763 = vpop.f32.mrb[0].mxu0
      %v3764 = vadd.f32 0.0, %v3763
      %v3765 = vpop.f32.mrb[0].mxu0
      %3766 = vmatprep.mubr.f32.mxu0 0.0
      %3767 = vmatmul.mubr.f32.gmra.mrb[0].mxu0 %v3695
      %v3768 = vpop.f32.mrb[0].mxu0
      %v3769 = vadd.f32 0.0, %v3768
      %v3770 = vpop.f32.mrb[0].mxu0
      %3771 = vdwg.mxu0
      %3772 = vrot.lane.b32.xlu0 %v514, 32
      %v3773 = vpop.permute.xlu0 %3772
      %3774 = vrot.lane.b32.xlu0 %v515, 32
      %v3775 = vpop.permute.xlu0 %3774
      %3780 = vrot.lane.b32.xlu0 %v3236, 32
      %v3781 = vpop.permute.xlu0 %3780
      %3782 = vrot.lane.b32.xlu0 %v3237, 32
      %v3783 = vpop.permute.xlu0 %3782
      %3784 = vrot.lane.b32.xlu0 %v3238, 32
      %v3785 = vpop.permute.xlu0 %3784
      %3786 = vrot.lane.b32.xlu0 %v3239, 32
      %v3787 = vpop.permute.xlu0 %3786
      %v3792 = vsel %vm799, %v3773, 0
      %v3794 = vsel %vm799, %v3775, 0
      %3796 = vmatprep.subr.mxu0 0.0
      %3797 = vmatpush1.msra.mxu0 %v3781
      %3798 = vmatprep.subr.mxu0 0.0
      %3799 = vmatpush1.msra.mxu0 %v3783
      %3800 = vmatprep.subr.mxu0 0.0
      %3801 = vmatpush1.msra.mxu0 %v3785
      %3802 = vmatprep.subr.mxu0 0.0
      %3803 = vmatpush1.msra.mxu0 %v3787
      %3804 = vmatprep.subr.mxu0 0.0
      %3805 = vmatpush1.msra.mxu0 0.0
      %3806 = vmatprep.subr.mxu0 0.0
      %3807 = vmatpush1.msra.mxu0 0.0
      %3808 = vmatprep.subr.mxu0 0.0
      %3809 = vmatpush1.msra.mxu0 0.0
      %3810 = vmatprep.subr.mxu0 0.0
      %3811 = vmatpush1.msra.mxu0 0.0
      %3812 = vmatprep.subr.mxu0 0.0
      %3813 = vmatpush1.msra.mxu0 0.0
      %3814 = vmatprep.subr.mxu0 0.0
      %3815 = vmatpush1.msra.mxu0 0.0
      %3816 = vmatprep.subr.mxu0 0.0
      %3817 = vmatpush1.msra.mxu0 0.0
      %3818 = vmatprep.subr.mxu0 0.0
      %3819 = vmatpush1.msra.mxu0 0.0
      %3820 = vmatprep.subr.mxu0 0.0
      %3821 = vmatpush1.msra.mxu0 0.0
      %3822 = vmatprep.subr.mxu0 0.0
      %3823 = vmatpush1.msra.mxu0 0.0
      %3824 = vmatprep.subr.mxu0 0.0
      %3825 = vmatpush1.msra.mxu0 0.0
      %3826 = vmatprep.subr.mxu0 0.0
      %3827 = vmatpush1.msra.mxu0 0.0
      %3828 = vmatprep.subr.mxu0 0.0
      %3829 = vmatpush1.msra.mxu0 0.0
      %3830 = vmatprep.subr.mxu0 0.0
      %3831 = vmatpush1.msra.mxu0 0.0
      %3832 = vmatprep.subr.mxu0 0.0
      %3833 = vmatpush1.msra.mxu0 0.0
      %3834 = vmatprep.subr.mxu0 0.0
      %3835 = vmatpush1.msra.mxu0 0.0
      %3836 = vmatprep.subr.mxu0 0.0
      %3837 = vmatpush1.msra.mxu0 0.0
      %3838 = vmatprep.subr.mxu0 0.0
      %3839 = vmatpush1.msra.mxu0 0.0
      %3840 = vmatprep.subr.mxu0 0.0
      %3841 = vmatpush1.msra.mxu0 0.0
      %3842 = vmatprep.subr.mxu0 0.0
      %3843 = vmatpush1.msra.mxu0 0.0
      %3844 = vmatprep.subr.mxu0 0.0
      %3845 = vmatpush1.msra.mxu0 0.0
      %3846 = vmatprep.subr.mxu0 0.0
      %3847 = vmatpush1.msra.mxu0 0.0
      %3848 = vmatprep.subr.mxu0 0.0
      %3849 = vmatpush1.msra.mxu0 0.0
      %3850 = vmatprep.subr.mxu0 0.0
      %3851 = vmatpush1.msra.mxu0 0.0
      %3852 = vmatprep.subr.mxu0 0.0
      %3853 = vmatpush1.msra.mxu0 0.0
      %3854 = vmatprep.subr.mxu0 0.0
      %3855 = vmatpush1.msra.mxu0 0.0
      %3856 = vmatprep.subr.mxu0 0.0
      %3857 = vmatpush1.msra.mxu0 0.0
      %3858 = vmatprep.subr.mxu0 0.0
      %3859 = vmatpush1.msra.mxu0 0.0
      %3860 = vmatprep.mubr.f32.mxu0 0.0
      %3861 = vmatmul.mubr.f32.gmra.mrb[0].mxu0 %v3792
      %v3862 = vpop.f32.mrb[0].mxu0
      %v3863 = vadd.f32 %v3764, %v3862
      %v3864 = vpop.f32.mrb[0].mxu0
      %3865 = vmatprep.mubr.f32.mxu0 0.0
      %3866 = vmatmul.mubr.f32.gmra.mrb[0].mxu0 %v3794
      %v3867 = vpop.f32.mrb[0].mxu0
      %v3868 = vadd.f32 %v3769, %v3867
      %v3869 = vpop.f32.mrb[0].mxu0
      %3870 = vdwg.mxu0
      %v3872 = vlaneseq
      %v3873 = vshrl.u32 %v3872, 7
      %v3874 = vsub.s32 0, %v3873
      %v3875 = vrot.slane %v3240, %v3874
      %v3877 = vmul.f32 %v514, %v3875
      %v3878 = vmul.f32 %v515, %v3875
      %3881 = vrot.lane.b32.xlu0 %v3877, 32
      %v3882 = vpop.permute.xlu0 %3881
      %3883 = vrot.lane.b32.xlu0 %v3878, 32
      %v3884 = vpop.permute.xlu0 %3883
      %v3887 = vsel %vm799, %v3882, 0.0
      %3888 = vadd.xlane.f32.xlu0 %v3887
      %v3889 = vpop.xlane.xlu0 %3888
      %v3890 = vsel %vm799, %v3884, 0.0
      %3891 = vadd.xlane.f32.xlu0 %v3890
      %v3892 = vpop.xlane.xlu0 %3891
      %v3895 = vsel %vm1097, %v3679, 0.0
      %3896 = vadd.xlane.f32.xlu0 %v3895
      %v3897 = vpop.xlane.xlu0 %3896
      %v3898 = vsel %vm1097, %v3686, 0.0
      %3899 = vadd.xlane.f32.xlu0 %v3898
      %v3900 = vpop.xlane.xlu0 %3899
      %v3901 = vadd.f32 %v3889, %v3897
      %v3902 = vadd.f32 %v3892, %v3900
      %v3903 = vmul.f32 %v3236, %v494
      %v3904 = vmul.f32 %v3237, %v495
      %v3905 = vmul.f32 %v3238, %v496
      %v3906 = vmul.f32 %v3239, %v497
      %3907 = vrot.lane.b32.xlu0 %v516, 32
      %v3908 = vpop.permute.xlu0 %3907
      %3909 = vrot.lane.b32.xlu0 %v517, 32
      %v3910 = vpop.permute.xlu0 %3909
      %3913 = vxpose.xlu0.b32.start [1/16] %v3908, 128
      %3914 = vxpose.xlu0.b32.cont [2/16] %v3910, 128
      %3915 = vxpose.xlu0.b32.cont [3/16] 0.0, 128
      %3916 = vxpose.xlu0.b32.cont [4/16] 0.0, 128
      %3917 = vxpose.xlu0.b32.cont [5/16] 0.0, 128
      %3918 = vxpose.xlu0.b32.cont [6/16] 0.0, 128
      %3919 = vxpose.xlu0.b32.cont [7/16] 0.0, 128
      %3920 = vxpose.xlu0.b32.cont [8/16] 0.0, 128
      %3921 = vxpose.xlu0.b32.cont [9/16] 0.0, 128
      %3922 = vxpose.xlu0.b32.cont [10/16] 0.0, 128
      %3923 = vxpose.xlu0.b32.cont [11/16] 0.0, 128
      %3924 = vxpose.xlu0.b32.cont [12/16] 0.0, 128
      %3925 = vxpose.xlu0.b32.cont [13/16] 0.0, 128
      %3926 = vxpose.xlu0.b32.cont [14/16] 0.0, 128
      %3927 = vxpose.xlu0.b32.cont [15/16] 0.0, 128
      %3928 = vxpose.xlu0.b32.end [16/16] 0.0, 128
      %v3929 = vpop.trf.xlu0
      %v3930 = vpop.trf.xlu0
      %v3931 = vpop.trf.xlu0
      %v3932 = vpop.trf.xlu0
      %v3933 = vpop.trf.xlu0
      %v3934 = vpop.trf.xlu0
      %v3935 = vpop.trf.xlu0
      %v3936 = vpop.trf.xlu0
      %v3937 = vpop.trf.xlu0
      %v3938 = vpop.trf.xlu0
      %v3939 = vpop.trf.xlu0
      %v3940 = vpop.trf.xlu0
      %v3941 = vpop.trf.xlu0
      %v3942 = vpop.trf.xlu0
      %v3943 = vpop.trf.xlu0
      %v3944 = vpop.trf.xlu0
      %v3946 = vsel %vm1097, %v3929, 0
      %v3949 = vsel %vm1097, %v3930, 0
      %v3952 = vsel %vm1097, %v3931, 0
      %v3955 = vsel %vm1097, %v3932, 0
      %3957 = vmatprep.subr.mxu0 0.0
      %3958 = vmatpush1.msra.mxu0 %v3688
      %3959 = vmatprep.subr.mxu0 0.0
      %3960 = vmatpush1.msra.mxu0 %v3690
      %3961 = vmatprep.subr.mxu0 0.0
      %3962 = vmatpush1.msra.mxu0 0.0
      %3963 = vmatprep.subr.mxu0 0.0
      %3964 = vmatpush1.msra.mxu0 0.0
      %3965 = vmatprep.subr.mxu0 0.0
      %3966 = vmatpush1.msra.mxu0 0.0
      %3967 = vmatprep.subr.mxu0 0.0
      %3968 = vmatpush1.msra.mxu0 0.0
      %3969 = vmatprep.subr.mxu0 0.0
      %3970 = vmatpush1.msra.mxu0 0.0
      %3971 = vmatprep.subr.mxu0 0.0
      %3972 = vmatpush1.msra.mxu0 0.0
      %3973 = vmatprep.subr.mxu0 0.0
      %3974 = vmatpush1.msra.mxu0 0.0
      %3975 = vmatprep.subr.mxu0 0.0
      %3976 = vmatpush1.msra.mxu0 0.0
      %3977 = vmatprep.subr.mxu0 0.0
      %3978 = vmatpush1.msra.mxu0 0.0
      %3979 = vmatprep.subr.mxu0 0.0
      %3980 = vmatpush1.msra.mxu0 0.0
      %3981 = vmatprep.subr.mxu0 0.0
      %3982 = vmatpush1.msra.mxu0 0.0
      %3983 = vmatprep.subr.mxu0 0.0
      %3984 = vmatpush1.msra.mxu0 0.0
      %3985 = vmatprep.subr.mxu0 0.0
      %3986 = vmatpush1.msra.mxu0 0.0
      %3987 = vmatprep.subr.mxu0 0.0
      %3988 = vmatpush1.msra.mxu0 0.0
      %3989 = vmatprep.subr.mxu0 0.0
      %3990 = vmatpush1.msra.mxu0 0.0
      %3991 = vmatprep.subr.mxu0 0.0
      %3992 = vmatpush1.msra.mxu0 0.0
      %3993 = vmatprep.subr.mxu0 0.0
      %3994 = vmatpush1.msra.mxu0 0.0
      %3995 = vmatprep.subr.mxu0 0.0
      %3996 = vmatpush1.msra.mxu0 0.0
      %3997 = vmatprep.subr.mxu0 0.0
      %3998 = vmatpush1.msra.mxu0 0.0
      %3999 = vmatprep.subr.mxu0 0.0
      %4000 = vmatpush1.msra.mxu0 0.0
      %4001 = vmatprep.subr.mxu0 0.0
      %4002 = vmatpush1.msra.mxu0 0.0
      %4003 = vmatprep.subr.mxu0 0.0
      %4004 = vmatpush1.msra.mxu0 0.0
      %4005 = vmatprep.subr.mxu0 0.0
      %4006 = vmatpush1.msra.mxu0 0.0
      %4007 = vmatprep.subr.mxu0 0.0
      %4008 = vmatpush1.msra.mxu0 0.0
      %4009 = vmatprep.subr.mxu0 0.0
      %4010 = vmatpush1.msra.mxu0 0.0
      %4011 = vmatprep.subr.mxu0 0.0
      %4012 = vmatpush1.msra.mxu0 0.0
      %4013 = vmatprep.subr.mxu0 0.0
      %4014 = vmatpush1.msra.mxu0 0.0
      %4015 = vmatprep.subr.mxu0 0.0
      %4016 = vmatpush1.msra.mxu0 0.0
      %4017 = vmatprep.subr.mxu0 0.0
      %4018 = vmatpush1.msra.mxu0 0.0
      %4019 = vmatprep.subr.mxu0 0.0
      %4020 = vmatpush1.msra.mxu0 0.0
      %4021 = vmatprep.mubr.f32.mxu0 0.0
      %4022 = vmatmul.mubr.f32.gmra.mrb[0].mxu0 %v3946
      %v4023 = vpop.f32.mrb[0].mxu0
      %v4024 = vadd.f32 0.0, %v4023
      %v4025 = vpop.f32.mrb[0].mxu0
      %4026 = vmatprep.mubr.f32.mxu0 0.0
      %4027 = vmatmul.mubr.f32.gmra.mrb[0].mxu0 %v3949
      %v4028 = vpop.f32.mrb[0].mxu0
      %v4029 = vadd.f32 0.0, %v4028
      %v4030 = vpop.f32.mrb[0].mxu0
      %4031 = vmatprep.mubr.f32.mxu0 0.0
      %4032 = vmatmul.mubr.f32.gmra.mrb[0].mxu0 %v3952
      %v4033 = vpop.f32.mrb[0].mxu0
      %v4034 = vadd.f32 0.0, %v4033
      %v4035 = vpop.f32.mrb[0].mxu0
      %4036 = vmatprep.mubr.f32.mxu0 0.0
      %4037 = vmatmul.mubr.f32.gmra.mrb[0].mxu0 %v3955
      %v4038 = vpop.f32.mrb[0].mxu0
      %v4039 = vadd.f32 0.0, %v4038
      %v4040 = vpop.f32.mrb[0].mxu0
      %4041 = vdwg.mxu0
      %4046 = vrot.lane.b32.xlu0 %v4024, 96
      %v4047 = vpop.permute.xlu0 %4046
      %4048 = vrot.lane.b32.xlu0 %v4029, 96
      %v4049 = vpop.permute.xlu0 %4048
      %4050 = vrot.lane.b32.xlu0 %v4034, 96
      %v4051 = vpop.permute.xlu0 %4050
      %4052 = vrot.lane.b32.xlu0 %v4039, 96
      %v4053 = vpop.permute.xlu0 %4052
      %v4058 = vadd.f32 %v3903, %v4047
      %v4059 = vadd.f32 %v3904, %v4049
      %v4060 = vadd.f32 %v3905, %v4051
      %v4061 = vadd.f32 %v3906, %v4053
      %vm4062 = vcmask 1048320
      %4063 = vst.msk [vmem:[#allocation2] sm:$0xff] %vm4062, %v4058
      %4064 = vst.msk [vmem:[#allocation2 + $0x8] sm:$0xff] %vm4062, %v4059
      %4065 = vst.msk [vmem:[#allocation2 + $0x10] sm:$0xff] %vm4062, %v4060
      %4066 = vst.msk [vmem:[#allocation2 + $0x18] sm:$0xff] %vm4062, %v4061
      %v4067 = vmul.f32 %v3240, %v493
      %v4068 = vsel %vm4062, %v516, 0.0
      %v4069 = vsel %vm4062, %v517, 0.0
      %v4070 = vadd.f32 %v4068, %v4069
      %v4071 = vrot.slane %v4070, 4
      %v4072 = vadd.f32 %v4070, %v4071
      %v4073 = vrot.slane %v4072, 2
      %v4074 = vadd.f32 %v4072, %v4073
      %v4075 = vrot.slane %v4074, 1
      %v4076 = vadd.f32 %v4074, %v4075
      %v4077 = vadd.f32 %v4067, %v4076
      %vm4078 = vcmask 1041152
      %4079 = vst.msk [vmem:[#allocation3] sm:$0x1] %vm4078, %v4077
      %v4080 = vrcp.pop %v3901
      %v4081 = vmul.f32 %v3863, %v4080
      %v4082 = vrcp.pop %v3902
      %v4083 = vmul.f32 %v3868, %v4082
      %4086 = vrot.lane.b32.xlu0 %v2321, 32
      %v4087 = vpop.permute.xlu0 %4086
      %4088 = vrot.lane.b32.xlu0 %v2323, 32
      %v4089 = vpop.permute.xlu0 %4088
      %4094 = vrot.lane.b32.xlu0 %v3201, 64
      %v4095 = vpop.permute.xlu0 %4094
      %4096 = vrot.lane.b32.xlu0 %v3203, 64
      %v4097 = vpop.permute.xlu0 %4096
      %4102 = vrot.lane.b32.xlu0 %v4081, 96
      %v4103 = vpop.permute.xlu0 %4102
      %4104 = vrot.lane.b32.xlu0 %v4083, 96
      %v4105 = vpop.permute.xlu0 %4104
      %v4108 = vsel %vm799, %v1437, %v4087
      %v4109 = vsel %vm799, %v1439, %v4089
      %vm4110 = vcmask 523264
      %v4111 = vsel %vm4110, %v4108, %v4095
      %v4112 = vsel %vm4110, %v4109, %v4097
      %vm4113 = vcmask 785408
      %v4114 = vsel %vm4113, %v4111, %v4103
      %v4115 = vsel %vm4113, %v4112, %v4105
      %v4116 = vsub.f32 0.0, %v512
      %v4117 = vsub.f32 0.0, %v513
      %v4118 = vmul.f32 %v4116, 1.442695
      %v4119 = vpow.pop %v4118
      %v4120 = vmul.f32 %v4117, 1.442695
      %v4121 = vpow.pop %v4120
      %v4122 = vadd.f32 %v4119, 1.0
      %v4123 = vadd.f32 %v4121, 1.0
      %v4124 = vrcp.pop %v4122
      %v4125 = vmul.f32 1.0, %v4124
      %v4126 = vrcp.pop %v4123
      %v4127 = vmul.f32 1.0, %v4126
      %v4128 = vmul.f32 %v4125, %v4114
      %v4129 = vmul.f32 %v4127, %v4115
      %v4130 = vpack.c.bf16 %v4129, %v4128
      %v4132 = vunpack.c.l.b16 %v4130
      %v4133 = vunpack.c.h.b16 %v4130
      %v4134 = vpack.c.b16 %v4132, %v4132
      %v4135 = vpack.c.b16 %v4133, %v4133
      %4138 = vst [vmem:[%s478] sm:$0xf] %v4134
      %4139 = vst [vmem:[%s478 + $0x4] sm:$0xf] %v4135
      %s4140 = smul.u32 2, %s25
      %p4141 = scmp.lt.s32.totalorder %s24, 1
      %s4142 = scalar_select %p4141, %s24, 1
      %p4143 = scmp.lt.s32.totalorder %s4140, 1
      %s4144 = scalar_select %p4143, %s4140, 1
      %s4145 = smul.addr %s4142, 2
      %s4146 = sadd.s32 %s4144, %s4145
      %s4147 = smul.addr %s4146, 4
      %s4148 = scalar_lea.vmem %s9, %s4147
      // Predicated region
      $region61: #{llm_forward.20} parent=55 // pred_check
        %p4149 = pneg %p269
      $region62: #{llm_forward.20} parent=55 // pred_check_branch
        %4151 = sbr.rel (%p4149) target = $region64
      $region63: #{llm_forward.20} parent=55 // pred_region
        %s4152 = smul.u32 2, %s25
      $region64: #{llm_forward.20} parent=55 // pred_fallthru
        _
    $region56: #{llm_forward.20} parent=5 // pred_fallthru
      _
    %p4153 = scmp.le.s32.totalorder 2, %s15
    // Predicated region
    $region65: #{llm_forward.20} parent=5 // pred_check
      %p4154 = pneg %p4153
    $region66: #{llm_forward.20} parent=5 // pred_check_branch
      %4156 = sbr.rel (%p4154) target = $region68
    $region67: #{llm_forward.20} parent=5 // pred_region
      %s4157 = ssub.s32 %s15, 2
      // Predicated region
      $region69: #{llm_forward.20} parent=67 // pred_check
        %p4158 = pneg %p275
      $region70: #{llm_forward.20} parent=67 // pred_check_branch
        %4160 = sbr.rel (%p4158) target = $region72
      $region71: #{llm_forward.20} parent=67 // pred_region
        %s4161 = smul.u32 2, %s27
        %p4162 = scmp.lt.s32.totalorder %s26, 1
        %s4163 = scalar_select %p4162, %s26, 1
        %p4164 = scmp.lt.s32.totalorder %s4161, 1
        %s4165 = scalar_select %p4164, %s4161, 1
        %s4166 = smul.addr %s4163, 2
        %s4167 = sadd.s32 %s4165, %s4166
        %s4168 = smul.addr %s4167, 4
        %s4169 = scalar_lea.vmem %s9, %s4168
      $region72: #{llm_forward.20} parent=67 // pred_fallthru
        _
    $region68: #{llm_forward.20} parent=5 // pred_fallthru
      _
  $region6: #{llm_forward.20} parent=0 // loop_footer
    %s19 = sadd.s32 1, %s15
  $region7: #{llm_forward.20} parent=0 // loop_footer_branch
    %14 = sbr.rel target = $region3
  $region8: #{llm_forward.20} parent=0 // loop_exit
    _

</llo_original>
